<compile_context>
chip_gen: v6e
topology: v6e:2x2x1
jax: 0.10.0
libtpu: 0.0.40
codegen_flags: <defaults>
</compile_context>

<pallas_src>
import functools

import jax
import jax.numpy as jnp
from jax.experimental import pallas as pl
from jax.experimental.pallas import tpu as pltpu

LEAKY_SLOPE = 0.2
BN_EPS = 1e-5
LANE = 128          # TPU lane width; channel dims are zero-padded to this.
STATS_ROWS = 8      # sublane-aligned rows for the per-tile stat partials.


# ----------------------------- Pallas kernels ------------------------------ #
def _matmul_stats_kernel(x_ref, w_ref, y_ref, s_ref, ss_ref):
    """1x1x1-conv tile: y = x @ w (bf16 operands, f32 acc) + per-tile stats."""
    y = jnp.dot(x_ref[...], w_ref[...], preferred_element_type=jnp.float32)
    y_ref[...] = y
    s = jnp.sum(y, axis=0, keepdims=True)
    ss = jnp.sum(y * y, axis=0, keepdims=True)
    s_ref[...] = jnp.broadcast_to(s, s_ref.shape)
    ss_ref[...] = jnp.broadcast_to(ss, ss_ref.shape)


def _conv3x3x3_stats_kernel(xw_ref, w_ref, y_ref, s_ref, ss_ref, *, H, W):
    """3x3x3 conv for one (n, d) output slab from a (3, H+2, W+2, C) halo
    block: 27 shifted tap matmuls accumulated in f32, plus per-tile stats."""
    Cp = y_ref.shape[-1]
    acc = jnp.zeros((H * W, Cp), jnp.float32)
    for kd in range(3):
        for kh in range(3):
            for kw in range(3):
                patch = xw_ref[0, kd, kh:kh + H, kw:kw + W, :]   # (H, W, Cp)
                patch = patch.reshape(H * W, Cp)
                acc = acc + jnp.dot(patch, w_ref[kd, kh, kw],
                                    preferred_element_type=jnp.float32)
    y_ref[...] = acc
    s = jnp.sum(acc, axis=0, keepdims=True)
    ss = jnp.sum(acc * acc, axis=0, keepdims=True)
    s_ref[...] = jnp.broadcast_to(s, s_ref.shape)
    ss_ref[...] = jnp.broadcast_to(ss, ss_ref.shape)


def _bn_act_kernel(y_ref, scale_ref, shift_ref, o_ref, *, slope):
    """Tiled folded train-mode BN (y*scale + shift) + LeakyReLU."""
    z = y_ref[...] * scale_ref[...] + shift_ref[...]
    o_ref[...] = jnp.where(z >= 0, z, slope * z).astype(o_ref.dtype)


def _final_concat_kernel(y_ref, scale_ref, shift_ref, x2_ref, o_ref, *, slope):
    """Stage-3 BN + fused concat(x2) + final LeakyReLU on both branches,
    written as one pre-concatenated lane-dense slab."""
    z = y_ref[...] * scale_ref[...] + shift_ref[...]
    z = jnp.where(z >= 0, z, slope * z)
    a = x2_ref[...]
    a = jnp.where(a >= 0, a, slope * a)
    o_ref[...] = jnp.concatenate([z, a], axis=-1).astype(o_ref.dtype)


# ------------------------------ kernel wrappers ----------------------------- #
def _cparams(*sem):
    return pltpu.CompilerParams(dimension_semantics=sem)


def _matmul_stats(x, w, tm):
    M, K = x.shape
    C = w.shape[1]
    nt = M // tm
    return pl.pallas_call(
        _matmul_stats_kernel,
        out_shape=(jax.ShapeDtypeStruct((M, C), jnp.float32),
                   jax.ShapeDtypeStruct((nt, STATS_ROWS, C), jnp.float32),
                   jax.ShapeDtypeStruct((nt, STATS_ROWS, C), jnp.float32)),
        grid=(nt,),
        in_specs=[pl.BlockSpec((tm, K), lambda i: (i, 0)),
                  pl.BlockSpec((K, C), lambda i: (0, 0))],
        out_specs=(pl.BlockSpec((tm, C), lambda i: (i, 0)),
                   pl.BlockSpec((1, STATS_ROWS, C), lambda i: (i, 0, 0)),
                   pl.BlockSpec((1, STATS_ROWS, C), lambda i: (i, 0, 0))),
        compiler_params=_cparams("parallel"),
        cost_estimate=pl.CostEstimate(
            flops=2 * M * K * C, transcendentals=0,
            bytes_accessed=M * K * x.dtype.itemsize
            + K * C * w.dtype.itemsize + M * C * 4),
    )(x, w)


def _conv3x3x3_stats(dwin, w2, H, W):
    ND, _, Hp2, Wp2, Cp = dwin.shape
    HW = H * W
    assert HW % 8 == 0, "H*W must be a multiple of 8 (sublane tiling)"
    M = ND * HW
    kernel = functools.partial(_conv3x3x3_stats_kernel, H=H, W=W)
    return pl.pallas_call(
        kernel,
        out_shape=(jax.ShapeDtypeStruct((M, Cp), jnp.float32),
                   jax.ShapeDtypeStruct((ND, STATS_ROWS, Cp), jnp.float32),
                   jax.ShapeDtypeStruct((ND, STATS_ROWS, Cp), jnp.float32)),
        grid=(ND,),
        in_specs=[pl.BlockSpec((1, 3, Hp2, Wp2, Cp),
                               lambda i: (i, 0, 0, 0, 0)),
                  pl.BlockSpec((3, 3, 3, Cp, Cp),
                               lambda i: (0, 0, 0, 0, 0))],
        out_specs=(pl.BlockSpec((HW, Cp), lambda i: (i, 0)),
                   pl.BlockSpec((1, STATS_ROWS, Cp), lambda i: (i, 0, 0)),
                   pl.BlockSpec((1, STATS_ROWS, Cp), lambda i: (i, 0, 0))),
        compiler_params=_cparams("parallel"),
        cost_estimate=pl.CostEstimate(
            flops=2 * M * 27 * Cp * Cp, transcendentals=0,
            bytes_accessed=dwin.size * dwin.dtype.itemsize
            + w2.size * w2.dtype.itemsize + M * Cp * 4),
    )(dwin, w2)


def _bn_act(y, scale, shift, tm, out_dtype):
    M, C = y.shape
    nt = M // tm
    return pl.pallas_call(
        functools.partial(_bn_act_kernel, slope=LEAKY_SLOPE),
        out_shape=jax.ShapeDtypeStruct((M, C), out_dtype),
        grid=(nt,),
        in_specs=[pl.BlockSpec((tm, C), lambda i: (i, 0)),
                  pl.BlockSpec((1, C), lambda i: (0, 0)),
                  pl.BlockSpec((1, C), lambda i: (0, 0))],
        out_specs=pl.BlockSpec((tm, C), lambda i: (i, 0)),
        compiler_params=_cparams("parallel"),
    )(y, scale, shift)


def _final_concat(y3, scale, shift, x2p, tm):
    M, Cp = y3.shape
    nt = M // tm
    return pl.pallas_call(
        functools.partial(_final_concat_kernel, slope=LEAKY_SLOPE),
        out_shape=jax.ShapeDtypeStruct((M, 2 * Cp), jnp.float32),
        grid=(nt,),
        in_specs=[pl.BlockSpec((tm, Cp), lambda i: (i, 0)),
                  pl.BlockSpec((1, Cp), lambda i: (0, 0)),
                  pl.BlockSpec((1, Cp), lambda i: (0, 0)),
                  pl.BlockSpec((tm, Cp), lambda i: (i, 0))],
        out_specs=pl.BlockSpec((tm, 2 * Cp), lambda i: (i, 0)),
        compiler_params=_cparams("parallel"),
    )(y3, scale, shift, x2p)


# --------------------------------- glue ------------------------------------ #
def _pick_tile(m):
    for t in (512, 256, 128, 64, 32, 16, 8):
        if m % t == 0:
            return t
    return m


def _pad_lanes_2d(x, cp):
    pad = cp - x.shape[-1]
    return jnp.pad(x, ((0, 0), (0, pad))) if pad else x


def _fold_bn(sum_part, sumsq_part, gamma_p, beta_p, count):
    """Reduce per-tile partials and fold train-mode BN (biased batch variance,
    like PyTorch) with gamma/beta into per-channel scale/shift."""
    s = jnp.sum(sum_part[:, 0, :], axis=0)
    ss = jnp.sum(sumsq_part[:, 0, :], axis=0)
    inv_n = 1.0 / count
    mean = s * inv_n
    var = jnp.maximum(ss * inv_n - mean * mean, 0.0)
    inv_std = jax.lax.rsqrt(var + BN_EPS)
    scale = gamma_p * inv_std
    shift = beta_p - mean * scale
    return scale.reshape(1, -1), shift.reshape(1, -1)


def _depth_windows(x_ndhwc):
    """(N, D, H, W, C) -> (N*D, 3, H+2, W+2, C) zero-padded halo windows for
    the padding=1 3x3x3 conv (one window per output depth slab)."""
    # TODO(synk): replace this 3x depth-window copy with an Element-indexed
    # halo BlockSpec / manual halo DMA so stage 2 reads each voxel only once.
    N, D, H, W, C = x_ndhwc.shape
    xp = jnp.pad(x_ndhwc, ((0, 0), (1, 1), (1, 1), (1, 1), (0, 0)))
    win = jnp.stack([xp[:, d:d + 3] for d in range(D)], axis=1)
    return win.reshape(N * D, 3, H + 2, W + 2, C)


def bottleneck_block_forward(x1_ncdhw, x2_ncdhw, params):
    N, _, D, H, W = x1_ncdhw.shape
    C2 = x2_ncdhw.shape[1]
    M = N * D * H * W
    Cp = LANE
    tm = _pick_tile(M)

    # NCDHW -> lane-dense (M, 128) slabs (channels zero-padded); bf16 operands.
    x1 = jnp.transpose(x1_ncdhw, (0, 2, 3, 4, 1)).reshape(M, -1)
    x1p = _pad_lanes_2d(x1, Cp).astype(jnp.bfloat16)
    x2 = jnp.transpose(x2_ncdhw, (0, 2, 3, 4, 1)).reshape(M, -1)
    x2p = _pad_lanes_2d(x2, Cp)                     # stays f32 (LeakyReLU only)

    # stage 1: 1x1x1 conv -> BN -> LeakyReLU
    y1, s1, ss1 = _matmul_stats(x1p, params["w1p"], tm)
    sc1, sh1 = _fold_bn(s1, ss1, params["g1p"], params["b1p"], M)
    y1a = _bn_act(y1, sc1, sh1, tm, jnp.bfloat16)

    # stage 2: 3x3x3 conv (halo blocks, no 27x im2col in HBM) -> BN -> LeakyReLU
    dwin = _depth_windows(y1a.reshape(N, D, H, W, Cp))
    y2, s2, ss2 = _conv3x3x3_stats(dwin, params["w2p"], H, W)
    sc2, sh2 = _fold_bn(s2, ss2, params["g2p"], params["b2p"], M)
    y2a = _bn_act(y2, sc2, sh2, tm, jnp.bfloat16)

    # stage 3: 1x1x1 conv -> BN, fused with concat(x2) and the final LeakyReLU
    y3, s3, ss3 = _matmul_stats(y2a, params["w3p"], tm)
    sc3, sh3 = _fold_bn(s3, ss3, params["g3p"], params["b3p"], M)
    slab = _final_concat(y3, sc3, sh3, x2p, tm)     # (M, 2*Cp) f32

    c3 = params["w3"].shape[1]                       # real 2*out_ch channels
    out = jnp.concatenate([slab[:, :c3], slab[:, Cp:Cp + C2]], axis=-1)
    out = out.reshape(N, D, H, W, c3 + C2)
    # single layout transpose back to the module's NCDHW contract
    return jnp.transpose(out, (0, 4, 1, 2, 3))


# ------------------------- deterministic parameters ------------------------- #
def init_params(key, in_ch, out_ch):
    expansion = 2
    ks = jax.random.split(key, 9)
    w1 = 0.1 * jax.random.normal(ks[0], (in_ch, out_ch), jnp.float32)
    w2 = 0.1 * jax.random.normal(ks[1], (3, 3, 3, out_ch, out_ch), jnp.float32)
    w3 = 0.1 * jax.random.normal(ks[2], (out_ch, out_ch * expansion), jnp.float32)
    g1 = 1.0 + 0.1 * jax.random.normal(ks[3], (out_ch,), jnp.float32)
    b1 = 0.1 * jax.random.normal(ks[4], (out_ch,), jnp.float32)
    g2 = 1.0 + 0.1 * jax.random.normal(ks[5], (out_ch,), jnp.float32)
    b2 = 0.1 * jax.random.normal(ks[6], (out_ch,), jnp.float32)
    g3 = 1.0 + 0.1 * jax.random.normal(ks[7], (out_ch * expansion,), jnp.float32)
    b3 = 0.1 * jax.random.normal(ks[8], (out_ch * expansion,), jnp.float32)

    cp = LANE
    pad2 = lambda w: jnp.pad(w, ((0, cp - w.shape[0]), (0, cp - w.shape[1])))
    padv = lambda v: jnp.pad(v, (0, cp - v.shape[0]))
    w2p = jnp.pad(w2, ((0, 0), (0, 0), (0, 0),
                       (0, cp - out_ch), (0, cp - out_ch)))
    return {
        # raw parameters (used by the pure-JAX reference)
        "w1": w1, "w2": w2, "w3": w3,
        "g1": g1, "b1": b1, "g2": g2, "b2": b2, "g3": g3, "b3": b3,
        # lane-padded / bf16 versions consumed by the kernels
        "w1p": pad2(w1).astype(jnp.bfloat16),
        "w2p": w2p.astype(jnp.bfloat16),
        "w3p": pad2(w3).astype(jnp.bfloat16),
        "g1p": padv(g1), "b1p": padv(b1),
        "g2p": padv(g2), "b2p": padv(b2),
        "g3p": padv(g3), "b3p": padv(b3),
    }


# ------------------------------ pure-JAX check ------------------------------ #
def reference_forward(x1, x2, params):
    """Reference mirroring the kernels' bf16 MXU operands (f32 everywhere else)."""
    def lrelu(x):
        return jnp.where(x >= 0, x, LEAKY_SLOPE * x)

    def bn(x, g, b):
        mean = jnp.mean(x, axis=(0, 2, 3, 4), keepdims=True)
        var = jnp.mean(x * x, axis=(0, 2, 3, 4), keepdims=True) - mean * mean
        return ((x - mean) * jax.lax.rsqrt(var + BN_EPS)
                * g.reshape(1, -1, 1, 1, 1) + b.reshape(1, -1, 1, 1, 1))

    bf = lambda t: t.astype(jnp.bfloat16).astype(jnp.float32)

    y = jnp.einsum("ncdhw,cf->nfdhw", bf(x1), bf(params["w1"]))
    y = lrelu(bn(y, params["g1"], params["b1"]))
    w2 = jnp.transpose(params["w2"], (4, 3, 0, 1, 2))   # (kd,kh,kw,Ci,Co)->OIDHW
    y = jax.lax.conv_general_dilated(
        bf(y), bf(w2), window_strides=(1, 1, 1),
        padding=((1, 1), (1, 1), (1, 1)),
        dimension_numbers=("NCDHW", "OIDHW", "NCDHW"))
    y = lrelu(bn(y, params["g2"], params["b2"]))
    y = jnp.einsum("ncdhw,cf->nfdhw", bf(y), bf(params["w3"]))
    y = bn(y, params["g3"], params["b3"])
    y = jnp.concatenate([y, x2], axis=1)
    return lrelu(y)


if __name__ == "__main__":
    key = jax.random.PRNGKey(0)
    k1, k2, kp = jax.random.split(key, 3)
    N, in_ch, out_ch, D, H, W = 2, 4, 8, 8, 8, 8
    c2 = 4  # channels of the second modality x2

    x1 = jax.random.normal(k1, (N, in_ch, D, H, W), jnp.float32)
    x2 = jax.random.normal(k2, (N, c2, D, H, W), jnp.float32)
    params = init_params(kp, in_ch, out_ch)

    fwd = jax.jit(bottleneck_block_forward)
    out = jax.block_until_ready(fwd(x1, x2, params))
    assert out.shape == (N, out_ch * 2 + c2, D, H, W)

    ref = reference_forward(x1, x2, params)
    err = float(jnp.max(jnp.abs(out - ref)))
    assert jnp.allclose(out, ref, rtol=2e-2, atol=2e-2), err
    print("KERNEL_OK")
</pallas_src>

<mosaic_0001>
module attributes {stable_mosaic.version = 11 : i64} {
  func.func @_matmul_stats_kernel(%arg0: i32, %arg1: memref<512x128xbf16, #tpu.memory_space<vmem>>, %arg2: memref<128x128xbf16, #tpu.memory_space<vmem>>, %arg3: memref<512x128xf32, #tpu.memory_space<vmem>>, %arg4: memref<1x8x128xf32, #tpu.memory_space<vmem>>, %arg5: memref<1x8x128xf32, #tpu.memory_space<vmem>>) attributes {dimension_semantics = [#tpu.dimension_semantics<parallel>], iteration_bounds = array<i64: 2>, scalar_prefetch = 0 : i64, scratch_operands = 0 : i64, tpu.core_type = #tpu.core_type<tc>, window_params = [{transform_indices = @transform_0, window_bounds = array<i64: 512, 128>}, {pipeline_mode = #tpu.pipeline_mode<synchronous>, transform_indices = @transform_1, window_bounds = array<i64: 128, 128>}, {transform_indices = @transform_2, window_bounds = array<i64: 512, 128>}, {transform_indices = @transform_3, window_bounds = array<i64: 1, 8, 128>}, {transform_indices = @transform_4, window_bounds = array<i64: 1, 8, 128>}]} {
    %c0 = arith.constant 0 : index
    %c0_0 = arith.constant 0 : index
    %0 = vector.load %arg1[%c0, %c0_0] : memref<512x128xbf16, #tpu.memory_space<vmem>>, vector<512x128xbf16>
    %c0_1 = arith.constant 0 : index
    %c0_2 = arith.constant 0 : index
    %1 = vector.load %arg2[%c0_1, %c0_2] : memref<128x128xbf16, #tpu.memory_space<vmem>>, vector<128x128xbf16>
    %cst = arith.constant dense<0.000000e+00> : vector<512x128xf32>
    %2 = tpu.matmul %0, %1, %cst {dimension_numbers = #tpu.dot_dimension_numbers<[1], [0], [0], [1], [0, 0, 1, 1], [], []>} : vector<512x128xbf16>, vector<128x128xbf16>, vector<512x128xf32> -> vector<512x128xf32>
    %c0_3 = arith.constant 0 : index
    %c0_4 = arith.constant 0 : index
    %3 = vector.load %arg3[%c0_3, %c0_4] : memref<512x128xf32, #tpu.memory_space<vmem>>, vector<512x128xf32>
    tpu.vector_store %arg3[%c0_3, %c0_4], %2 {strides = array<i32>} : memref<512x128xf32, #tpu.memory_space<vmem>>, vector<512x128xf32>,
    %cst_5 = arith.constant dense<0.000000e+00> : vector<128xf32>
    %4 = vector.multi_reduction <add>, %2, %cst_5 [0] : vector<512x128xf32> to vector<128xf32>
    %5 = vector.shape_cast %4 : vector<128xf32> to vector<1x128xf32>
    %6 = arith.mulf %2, %2 : vector<512x128xf32>
    %cst_6 = arith.constant dense<0.000000e+00> : vector<128xf32>
    %7 = vector.multi_reduction <add>, %6, %cst_6 [0] : vector<512x128xf32> to vector<128xf32>
    %8 = vector.shape_cast %7 : vector<128xf32> to vector<1x128xf32>
    %9 = vector.shape_cast %5 : vector<1x128xf32> to vector<1x1x128xf32>
    %10 = vector.broadcast %9 : vector<1x1x128xf32> to vector<1x8x128xf32>
    %c0_7 = arith.constant 0 : index
    %c0_8 = arith.constant 0 : index
    %c0_9 = arith.constant 0 : index
    %11 = vector.load %arg4[%c0_7, %c0_8, %c0_9] : memref<1x8x128xf32, #tpu.memory_space<vmem>>, vector<1x8x128xf32>
    tpu.vector_store %arg4[%c0_7, %c0_8, %c0_9], %10 {strides = array<i32>} : memref<1x8x128xf32, #tpu.memory_space<vmem>>, vector<1x8x128xf32>,
    %12 = vector.shape_cast %8 : vector<1x128xf32> to vector<1x1x128xf32>
    %13 = vector.broadcast %12 : vector<1x1x128xf32> to vector<1x8x128xf32>
    %c0_10 = arith.constant 0 : index
    %c0_11 = arith.constant 0 : index
    %c0_12 = arith.constant 0 : index
    %14 = vector.load %arg5[%c0_10, %c0_11, %c0_12] : memref<1x8x128xf32, #tpu.memory_space<vmem>>, vector<1x8x128xf32>
    tpu.vector_store %arg5[%c0_10, %c0_11, %c0_12], %13 {strides = array<i32>} : memref<1x8x128xf32, #tpu.memory_space<vmem>>, vector<1x8x128xf32>,
    return
  }
  func.func @transform_0(%arg0: i32) -> (i32, i32) {
    %c0_i32 = arith.constant 0 : i32
    %c0_i32_0 = arith.constant 0 : i32
    return %arg0, %c0_i32 : i32, i32
  }
  func.func @transform_1(%arg0: i32) -> (i32, i32) {
    %c0_i32 = arith.constant 0 : i32
    %c0_i32_0 = arith.constant 0 : i32
    %c0_i32_1 = arith.constant 0 : i32
    return %c0_i32, %c0_i32_0 : i32, i32
  }
  func.func @transform_2(%arg0: i32) -> (i32, i32) {
    %c0_i32 = arith.constant 0 : i32
    %c0_i32_0 = arith.constant 0 : i32
    return %arg0, %c0_i32 : i32, i32
  }
  func.func @transform_3(%arg0: i32) -> (i32, i32, i32) {
    %c0_i32 = arith.constant 0 : i32
    %c0_i32_0 = arith.constant 0 : i32
    %c0_i32_1 = arith.constant 0 : i32
    return %arg0, %c0_i32, %c0_i32_0 : i32, i32, i32
  }
  func.func @transform_4(%arg0: i32) -> (i32, i32, i32) {
    %c0_i32 = arith.constant 0 : i32
    %c0_i32_0 = arith.constant 0 : i32
    %c0_i32_1 = arith.constant 0 : i32
    return %arg0, %c0_i32, %c0_i32_0 : i32, i32, i32
  }
}

module attributes {stable_mosaic.version = 11 : i64} {
  func.func @_bn_act_kernel(%arg0: i32, %arg1: memref<512x128xf32, #tpu.memory_space<vmem>>, %arg2: memref<1x128xf32, #tpu.memory_space<vmem>>, %arg3: memref<1x128xf32, #tpu.memory_space<vmem>>, %arg4: memref<512x128xbf16, #tpu.memory_space<vmem>>) attributes {dimension_semantics = [#tpu.dimension_semantics<parallel>], iteration_bounds = array<i64: 2>, scalar_prefetch = 0 : i64, scratch_operands = 0 : i64, tpu.core_type = #tpu.core_type<tc>, window_params = [{transform_indices = @transform_0, window_bounds = array<i64: 512, 128>}, {pipeline_mode = #tpu.pipeline_mode<synchronous>, transform_indices = @transform_1, window_bounds = array<i64: 1, 128>}, {pipeline_mode = #tpu.pipeline_mode<synchronous>, transform_indices = @transform_2, window_bounds = array<i64: 1, 128>}, {transform_indices = @transform_3, window_bounds = array<i64: 512, 128>}]} {
    %c0 = arith.constant 0 : index
    %c0_0 = arith.constant 0 : index
    %0 = vector.load %arg1[%c0, %c0_0] : memref<512x128xf32, #tpu.memory_space<vmem>>, vector<512x128xf32>
    %c0_1 = arith.constant 0 : index
    %c0_2 = arith.constant 0 : index
    %1 = vector.load %arg2[%c0_1, %c0_2] : memref<1x128xf32, #tpu.memory_space<vmem>>, vector<1x128xf32>
    %2 = vector.broadcast %1 : vector<1x128xf32> to vector<512x128xf32>
    %3 = arith.mulf %0, %2 : vector<512x128xf32>
    %c0_3 = arith.constant 0 : index
    %c0_4 = arith.constant 0 : index
    %4 = vector.load %arg3[%c0_3, %c0_4] : memref<1x128xf32, #tpu.memory_space<vmem>>, vector<1x128xf32>
    %5 = vector.broadcast %4 : vector<1x128xf32> to vector<512x128xf32>
    %6 = arith.addf %3, %5 : vector<512x128xf32>
    %cst = arith.constant 0.000000e+00 : f32
    %7 = vector.broadcast %cst : f32 to vector<512x128xf32>
    %8 = arith.cmpf oge, %6, %7 : vector<512x128xf32>
    %cst_5 = arith.constant 2.000000e-01 : f32
    %9 = vector.broadcast %cst_5 : f32 to vector<512x128xf32>
    %10 = arith.mulf %9, %6 : vector<512x128xf32>
    %11 = arith.select %8, %6, %10 : vector<512x128xi1>, vector<512x128xf32>
    %12 = arith.truncf %11 : vector<512x128xf32> to vector<512x128xbf16>
    %c0_6 = arith.constant 0 : index
    %c0_7 = arith.constant 0 : index
    %13 = vector.load %arg4[%c0_6, %c0_7] : memref<512x128xbf16, #tpu.memory_space<vmem>>, vector<512x128xbf16>
    tpu.vector_store %arg4[%c0_6, %c0_7], %12 {strides = array<i32>} : memref<512x128xbf16, #tpu.memory_space<vmem>>, vector<512x128xbf16>,
    return
  }
  func.func @transform_0(%arg0: i32) -> (i32, i32) {
    %c0_i32 = arith.constant 0 : i32
    %c0_i32_0 = arith.constant 0 : i32
    return %arg0, %c0_i32 : i32, i32
  }
  func.func @transform_1(%arg0: i32) -> (i32, i32) {
    %c0_i32 = arith.constant 0 : i32
    %c0_i32_0 = arith.constant 0 : i32
    %c0_i32_1 = arith.constant 0 : i32
    return %c0_i32, %c0_i32_0 : i32, i32
  }
  func.func @transform_2(%arg0: i32) -> (i32, i32) {
    %c0_i32 = arith.constant 0 : i32
    %c0_i32_0 = arith.constant 0 : i32
    %c0_i32_1 = arith.constant 0 : i32
    return %c0_i32, %c0_i32_0 : i32, i32
  }
  func.func @transform_3(%arg0: i32) -> (i32, i32) {
    %c0_i32 = arith.constant 0 : i32
    %c0_i32_0 = arith.constant 0 : i32
    return %arg0, %c0_i32 : i32, i32
  }
}

module attributes {stable_mosaic.version = 11 : i64} {
  func.func @_conv3x3x3_stats_kernel(%arg0: i32, %arg1: memref<1x3x10x10x128xbf16, #tpu.memory_space<vmem>>, %arg2: memref<3x3x3x128x128xbf16, #tpu.memory_space<vmem>>, %arg3: memref<64x128xf32, #tpu.memory_space<vmem>>, %arg4: memref<1x8x128xf32, #tpu.memory_space<vmem>>, %arg5: memref<1x8x128xf32, #tpu.memory_space<vmem>>) attributes {dimension_semantics = [#tpu.dimension_semantics<parallel>], iteration_bounds = array<i64: 16>, scalar_prefetch = 0 : i64, scratch_operands = 0 : i64, tpu.core_type = #tpu.core_type<tc>, window_params = [{transform_indices = @transform_0, window_bounds = array<i64: 1, 3, 10, 10, 128>}, {pipeline_mode = #tpu.pipeline_mode<synchronous>, transform_indices = @transform_1, window_bounds = array<i64: 3, 3, 3, 128, 128>}, {transform_indices = @transform_2, window_bounds = array<i64: 64, 128>}, {transform_indices = @transform_3, window_bounds = array<i64: 1, 8, 128>}, {transform_indices = @transform_4, window_bounds = array<i64: 1, 8, 128>}]} {
    %cst = arith.constant 0.000000e+00 : f32
    %0 = vector.broadcast %cst : f32 to vector<64x128xf32>
    %c0 = arith.constant 0 : index
    %c0_0 = arith.constant 0 : index
    %c0_1 = arith.constant 0 : index
    %c0_2 = arith.constant 0 : index
    %c0_3 = arith.constant 0 : index
    %1 = vector.load %arg1[%c0, %c0_0, %c0_1, %c0_2, %c0_3] : memref<1x3x10x10x128xbf16, #tpu.memory_space<vmem>>, vector<1x1x8x8x128xbf16>
    %2 = vector.shape_cast %1 : vector<1x1x8x8x128xbf16> to vector<8x8x128xbf16>
    %3 = vector.shape_cast %2 : vector<8x8x128xbf16> to vector<64x128xbf16>
    %c0_4 = arith.constant 0 : index
    %c0_5 = arith.constant 0 : index
    %c0_6 = arith.constant 0 : index
    %c0_7 = arith.constant 0 : index
    %c0_8 = arith.constant 0 : index
    %4 = vector.load %arg2[%c0_4, %c0_5, %c0_6, %c0_7, %c0_8] : memref<3x3x3x128x128xbf16, #tpu.memory_space<vmem>>, vector<1x1x1x128x128xbf16>
    %5 = vector.shape_cast %4 : vector<1x1x1x128x128xbf16> to vector<128x128xbf16>
    %cst_9 = arith.constant dense<0.000000e+00> : vector<64x128xf32>
    %6 = tpu.matmul %3, %5, %cst_9 {dimension_numbers = #tpu.dot_dimension_numbers<[1], [0], [0], [1], [0, 0, 1, 1], [], []>} : vector<64x128xbf16>, vector<128x128xbf16>, vector<64x128xf32> -> vector<64x128xf32>
    %7 = arith.addf %0, %6 : vector<64x128xf32>
    %c0_10 = arith.constant 0 : index
    %c0_11 = arith.constant 0 : index
    %c0_12 = arith.constant 0 : index
    %c1 = arith.constant 1 : index
    %c0_13 = arith.constant 0 : index
    %8 = vector.load %arg1[%c0_10, %c0_11, %c0_12, %c1, %c0_13] : memref<1x3x10x10x128xbf16, #tpu.memory_space<vmem>>, vector<1x1x8x8x128xbf16>
    %9 = vector.shape_cast %8 : vector<1x1x8x8x128xbf16> to vector<8x8x128xbf16>
    %10 = vector.shape_cast %9 : vector<8x8x128xbf16> to vector<64x128xbf16>
    %c0_14 = arith.constant 0 : index
    %c0_15 = arith.constant 0 : index
    %c1_16 = arith.constant 1 : index
    %c0_17 = arith.constant 0 : index
    %c0_18 = arith.constant 0 : index
    %11 = vector.load %arg2[%c0_14, %c0_15, %c1_16, %c0_17, %c0_18] : memref<3x3x3x128x128xbf16, #tpu.memory_space<vmem>>, vector<1x1x1x128x128xbf16>
    %12 = vector.shape_cast %11 : vector<1x1x1x128x128xbf16> to vector<128x128xbf16>
    %cst_19 = arith.constant dense<0.000000e+00> : vector<64x128xf32>
    %13 = tpu.matmul %10, %12, %cst_19 {dimension_numbers = #tpu.dot_dimension_numbers<[1], [0], [0], [1], [0, 0, 1, 1], [], []>} : vector<64x128xbf16>, vector<128x128xbf16>, vector<64x128xf32> -> vector<64x128xf32>
    %14 = arith.addf %7, %13 : vector<64x128xf32>
    %c0_20 = arith.constant 0 : index
    %c0_21 = arith.constant 0 : index
    %c0_22 = arith.constant 0 : index
    %c2 = arith.constant 2 : index
    %c0_23 = arith.constant 0 : index
    %15 = vector.load %arg1[%c0_20, %c0_21, %c0_22, %c2, %c0_23] : memref<1x3x10x10x128xbf16, #tpu.memory_space<vmem>>, vector<1x1x8x8x128xbf16>
    %16 = vector.shape_cast %15 : vector<1x1x8x8x128xbf16> to vector<8x8x128xbf16>
    %17 = vector.shape_cast %16 : vector<8x8x128xbf16> to vector<64x128xbf16>
    %c0_24 = arith.constant 0 : index
    %c0_25 = arith.constant 0 : index
    %c2_26 = arith.constant 2 : index
    %c0_27 = arith.constant 0 : index
    %c0_28 = arith.constant 0 : index
    %18 = vector.load %arg2[%c0_24, %c0_25, %c2_26, %c0_27, %c0_28] : memref<3x3x3x128x128xbf16, #tpu.memory_space<vmem>>, vector<1x1x1x128x128xbf16>
    %19 = vector.shape_cast %18 : vector<1x1x1x128x128xbf16> to vector<128x128xbf16>
    %cst_29 = arith.constant dense<0.000000e+00> : vector<64x128xf32>
    %20 = tpu.matmul %17, %19, %cst_29 {dimension_numbers = #tpu.dot_dimension_numbers<[1], [0], [0], [1], [0, 0, 1, 1], [], []>} : vector<64x128xbf16>, vector<128x128xbf16>, vector<64x128xf32> -> vector<64x128xf32>
    %21 = arith.addf %14, %20 : vector<64x128xf32>
    %c0_30 = arith.constant 0 : index
    %c0_31 = arith.constant 0 : index
    %c1_32 = arith.constant 1 : index
    %c0_33 = arith.constant 0 : index
    %c0_34 = arith.constant 0 : index
    %22 = vector.load %arg1[%c0_30, %c0_31, %c1_32, %c0_33, %c0_34] : memref<1x3x10x10x128xbf16, #tpu.memory_space<vmem>>, vector<1x1x8x8x128xbf16>
    %23 = vector.shape_cast %22 : vector<1x1x8x8x128xbf16> to vector<8x8x128xbf16>
    %24 = vector.shape_cast %23 : vector<8x8x128xbf16> to vector<64x128xbf16>
    %c0_35 = arith.constant 0 : index
    %c1_36 = arith.constant 1 : index
    %c0_37 = arith.constant 0 : index
    %c0_38 = arith.constant 0 : index
    %c0_39 = arith.constant 0 : index
    %25 = vector.load %arg2[%c0_35, %c1_36, %c0_37, %c0_38, %c0_39] : memref<3x3x3x128x128xbf16, #tpu.memory_space<vmem>>, vector<1x1x1x128x128xbf16>
    %26 = vector.shape_cast %25 : vector<1x1x1x128x128xbf16> to vector<128x128xbf16>
    %cst_40 = arith.constant dense<0.000000e+00> : vector<64x128xf32>
    %27 = tpu.matmul %24, %26, %cst_40 {dimension_numbers = #tpu.dot_dimension_numbers<[1], [0], [0], [1], [0, 0, 1, 1], [], []>} : vector<64x128xbf16>, vector<128x128xbf16>, vector<64x128xf32> -> vector<64x128xf32>
    %28 = arith.addf %21, %27 : vector<64x128xf32>
    %c0_41 = arith.constant 0 : index
    %c0_42 = arith.constant 0 : index
    %c1_43 = arith.constant 1 : index
    %c1_44 = arith.constant 1 : index
    %c0_45 = arith.constant 0 : index
    %29 = vector.load %arg1[%c0_41, %c0_42, %c1_43, %c1_44, %c0_45] : memref<1x3x10x10x128xbf16, #tpu.memory_space<vmem>>, vector<1x1x8x8x128xbf16>
    %30 = vector.shape_cast %29 : vector<1x1x8x8x128xbf16> to vector<8x8x128xbf16>
    %31 = vector.shape_cast %30 : vector<8x8x128xbf16> to vector<64x128xbf16>
    %c0_46 = arith.constant 0 : index
    %c1_47 = arith.constant 1 : index
    %c1_48 = arith.constant 1 : index
    %c0_49 = arith.constant 0 : index
    %c0_50 = arith.constant 0 : index
    %32 = vector.load %arg2[%c0_46, %c1_47, %c1_48, %c0_49, %c0_50] : memref<3x3x3x128x128xbf16, #tpu.memory_space<vmem>>, vector<1x1x1x128x128xbf16>
    %33 = vector.shape_cast %32 : vector<1x1x1x128x128xbf16> to vector<128x128xbf16>
    %cst_51 = arith.constant dense<0.000000e+00> : vector<64x128xf32>
    %34 = tpu.matmul %31, %33, %cst_51 {dimension_numbers = #tpu.dot_dimension_numbers<[1], [0], [0], [1], [0, 0, 1, 1], [], []>} : vector<64x128xbf16>, vector<128x128xbf16>, vector<64x128xf32> -> vector<64x128xf32>
    %35 = arith.addf %28, %34 : vector<64x128xf32>
    %c0_52 = arith.constant 0 : index
    %c0_53 = arith.constant 0 : index
    %c1_54 = arith.constant 1 : index
    %c2_55 = arith.constant 2 : index
    %c0_56 = arith.constant 0 : index
    %36 = vector.load %arg1[%c0_52, %c0_53, %c1_54, %c2_55, %c0_56] : memref<1x3x10x10x128xbf16, #tpu.memory_space<vmem>>, vector<1x1x8x8x128xbf16>
    %37 = vector.shape_cast %36 : vector<1x1x8x8x128xbf16> to vector<8x8x128xbf16>
    %38 = vector.shape_cast %37 : vector<8x8x128xbf16> to vector<64x128xbf16>
    %c0_57 = arith.constant 0 : index
    %c1_58 = arith.constant 1 : index
    %c2_59 = arith.constant 2 : index
    %c0_60 = arith.constant 0 : index
    %c0_61 = arith.constant 0 : index
    %39 = vector.load %arg2[%c0_57, %c1_58, %c2_59, %c0_60, %c0_61] : memref<3x3x3x128x128xbf16, #tpu.memory_space<vmem>>, vector<1x1x1x128x128xbf16>
    %40 = vector.shape_cast %39 : vector<1x1x1x128x128xbf16> to vector<128x128xbf16>
    %cst_62 = arith.constant dense<0.000000e+00> : vector<64x128xf32>
    %41 = tpu.matmul %38, %40, %cst_62 {dimension_numbers = #tpu.dot_dimension_numbers<[1], [0], [0], [1], [0, 0, 1, 1], [], []>} : vector<64x128xbf16>, vector<128x128xbf16>, vector<64x128xf32> -> vector<64x128xf32>
    %42 = arith.addf %35, %41 : vector<64x128xf32>
    %c0_63 = arith.constant 0 : index
    %c0_64 = arith.constant 0 : index
    %c2_65 = arith.constant 2 : index
    %c0_66 = arith.constant 0 : index
    %c0_67 = arith.constant 0 : index
    %43 = vector.load %arg1[%c0_63, %c0_64, %c2_65, %c0_66, %c0_67] : memref<1x3x10x10x128xbf16, #tpu.memory_space<vmem>>, vector<1x1x8x8x128xbf16>
    %44 = vector.shape_cast %43 : vector<1x1x8x8x128xbf16> to vector<8x8x128xbf16>
    %45 = vector.shape_cast %44 : vector<8x8x128xbf16> to vector<64x128xbf16>
    %c0_68 = arith.constant 0 : index
    %c2_69 = arith.constant 2 : index
    %c0_70 = arith.constant 0 : index
    %c0_71 = arith.constant 0 : index
    %c0_72 = arith.constant 0 : index
    %46 = vector.load %arg2[%c0_68, %c2_69, %c0_70, %c0_71, %c0_72] : memref<3x3x3x128x128xbf16, #tpu.memory_space<vmem>>, vector<1x1x1x128x128xbf16>
    %47 = vector.shape_cast %46 : vector<1x1x1x128x128xbf16> to vector<128x128xbf16>
    %cst_73 = arith.constant dense<0.000000e+00> : vector<64x128xf32>
    %48 = tpu.matmul %45, %47, %cst_73 {dimension_numbers = #tpu.dot_dimension_numbers<[1], [0], [0], [1], [0, 0, 1, 1], [], []>} : vector<64x128xbf16>, vector<128x128xbf16>, vector<64x128xf32> -> vector<64x128xf32>
    %49 = arith.addf %42, %48 : vector<64x128xf32>
    %c0_74 = arith.constant 0 : index
    %c0_75 = arith.constant 0 : index
    %c2_76 = arith.constant 2 : index
    %c1_77 = arith.constant 1 : index
    %c0_78 = arith.constant 0 : index
    %50 = vector.load %arg1[%c0_74, %c0_75, %c2_76, %c1_77, %c0_78] : memref<1x3x10x10x128xbf16, #tpu.memory_space<vmem>>, vector<1x1x8x8x128xbf16>
    %51 = vector.shape_cast %50 : vector<1x1x8x8x128xbf16> to vector<8x8x128xbf16>
    %52 = vector.shape_cast %51 : vector<8x8x128xbf16> to vector<64x128xbf16>
    %c0_79 = arith.constant 0 : index
    %c2_80 = arith.constant 2 : index
    %c1_81 = arith.constant 1 : index
    %c0_82 = arith.constant 0 : index
    %c0_83 = arith.constant 0 : index
    %53 = vector.load %arg2[%c0_79, %c2_80, %c1_81, %c0_82, %c0_83] : memref<3x3x3x128x128xbf16, #tpu.memory_space<vmem>>, vector<1x1x1x128x128xbf16>
    %54 = vector.shape_cast %53 : vector<1x1x1x128x128xbf16> to vector<128x128xbf16>
    %cst_84 = arith.constant dense<0.000000e+00> : vector<64x128xf32>
    %55 = tpu.matmul %52, %54, %cst_84 {dimension_numbers = #tpu.dot_dimension_numbers<[1], [0], [0], [1], [0, 0, 1, 1], [], []>} : vector<64x128xbf16>, vector<128x128xbf16>, vector<64x128xf32> -> vector<64x128xf32>
    %56 = arith.addf %49, %55 : vector<64x128xf32>
    %c0_85 = arith.constant 0 : index
    %c0_86 = arith.constant 0 : index
    %c2_87 = arith.constant 2 : index
    %c2_88 = arith.constant 2 : index
    %c0_89 = arith.constant 0 : index
    %57 = vector.load %arg1[%c0_85, %c0_86, %c2_87, %c2_88, %c0_89] : memref<1x3x10x10x128xbf16, #tpu.memory_space<vmem>>, vector<1x1x8x8x128xbf16>
    %58 = vector.shape_cast %57 : vector<1x1x8x8x128xbf16> to vector<8x8x128xbf16>
    %59 = vector.shape_cast %58 : vector<8x8x128xbf16> to vector<64x128xbf16>
    %c0_90 = arith.constant 0 : index
    %c2_91 = arith.constant 2 : index
    %c2_92 = arith.constant 2 : index
    %c0_93 = arith.constant 0 : index
    %c0_94 = arith.constant 0 : index
    %60 = vector.load %arg2[%c0_90, %c2_91, %c2_92, %c0_93, %c0_94] : memref<3x3x3x128x128xbf16, #tpu.memory_space<vmem>>, vector<1x1x1x128x128xbf16>
    %61 = vector.shape_cast %60 : vector<1x1x1x128x128xbf16> to vector<128x128xbf16>
    %cst_95 = arith.constant dense<0.000000e+00> : vector<64x128xf32>
    %62 = tpu.matmul %59, %61, %cst_95 {dimension_numbers = #tpu.dot_dimension_numbers<[1], [0], [0], [1], [0, 0, 1, 1], [], []>} : vector<64x128xbf16>, vector<128x128xbf16>, vector<64x128xf32> -> vector<64x128xf32>
    %63 = arith.addf %56, %62 : vector<64x128xf32>
    %c0_96 = arith.constant 0 : index
    %c1_97 = arith.constant 1 : index
    %c0_98 = arith.constant 0 : index
    %c0_99 = arith.constant 0 : index
    %c0_100 = arith.constant 0 : index
    %64 = vector.load %arg1[%c0_96, %c1_97, %c0_98, %c0_99, %c0_100] : memref<1x3x10x10x128xbf16, #tpu.memory_space<vmem>>, vector<1x1x8x8x128xbf16>
    %65 = vector.shape_cast %64 : vector<1x1x8x8x128xbf16> to vector<8x8x128xbf16>
    %66 = vector.shape_cast %65 : vector<8x8x128xbf16> to vector<64x128xbf16>
    %c1_101 = arith.constant 1 : index
    %c0_102 = arith.constant 0 : index
    %c0_103 = arith.constant 0 : index
    %c0_104 = arith.constant 0 : index
    %c0_105 = arith.constant 0 : index
    %67 = vector.load %arg2[%c1_101, %c0_102, %c0_103, %c0_104, %c0_105] : memref<3x3x3x128x128xbf16, #tpu.memory_space<vmem>>, vector<1x1x1x128x128xbf16>
    %68 = vector.shape_cast %67 : vector<1x1x1x128x128xbf16> to vector<128x128xbf16>
    %cst_106 = arith.constant dense<0.000000e+00> : vector<64x128xf32>
    %69 = tpu.matmul %66, %68, %cst_106 {dimension_numbers = #tpu.dot_dimension_numbers<[1], [0], [0], [1], [0, 0, 1, 1], [], []>} : vector<64x128xbf16>, vector<128x128xbf16>, vector<64x128xf32> -> vector<64x128xf32>
    %70 = arith.addf %63, %69 : vector<64x128xf32>
    %c0_107 = arith.constant 0 : index
    %c1_108 = arith.constant 1 : index
    %c0_109 = arith.constant 0 : index
    %c1_110 = arith.constant 1 : index
    %c0_111 = arith.constant 0 : index
    %71 = vector.load %arg1[%c0_107, %c1_108, %c0_109, %c1_110, %c0_111] : memref<1x3x10x10x128xbf16, #tpu.memory_space<vmem>>, vector<1x1x8x8x128xbf16>
    %72 = vector.shape_cast %71 : vector<1x1x8x8x128xbf16> to vector<8x8x128xbf16>
    %73 = vector.shape_cast %72 : vector<8x8x128xbf16> to vector<64x128xbf16>
    %c1_112 = arith.constant 1 : index
    %c0_113 = arith.constant 0 : index
    %c1_114 = arith.constant 1 : index
    %c0_115 = arith.constant 0 : index
    %c0_116 = arith.constant 0 : index
    %74 = vector.load %arg2[%c1_112, %c0_113, %c1_114, %c0_115, %c0_116] : memref<3x3x3x128x128xbf16, #tpu.memory_space<vmem>>, vector<1x1x1x128x128xbf16>
    %75 = vector.shape_cast %74 : vector<1x1x1x128x128xbf16> to vector<128x128xbf16>
    %cst_117 = arith.constant dense<0.000000e+00> : vector<64x128xf32>
    %76 = tpu.matmul %73, %75, %cst_117 {dimension_numbers = #tpu.dot_dimension_numbers<[1], [0], [0], [1], [0, 0, 1, 1], [], []>} : vector<64x128xbf16>, vector<128x128xbf16>, vector<64x128xf32> -> vector<64x128xf32>
    %77 = arith.addf %70, %76 : vector<64x128xf32>
    %c0_118 = arith.constant 0 : index
    %c1_119 = arith.constant 1 : index
    %c0_120 = arith.constant 0 : index
    %c2_121 = arith.constant 2 : index
    %c0_122 = arith.constant 0 : index
    %78 = vector.load %arg1[%c0_118, %c1_119, %c0_120, %c2_121, %c0_122] : memref<1x3x10x10x128xbf16, #tpu.memory_space<vmem>>, vector<1x1x8x8x128xbf16>
    %79 = vector.shape_cast %78 : vector<1x1x8x8x128xbf16> to vector<8x8x128xbf16>
    %80 = vector.shape_cast %79 : vector<8x8x128xbf16> to vector<64x128xbf16>
    %c1_123 = arith.constant 1 : index
    %c0_124 = arith.constant 0 : index
    %c2_125 = arith.constant 2 : index
    %c0_126 = arith.constant 0 : index
    %c0_127 = arith.constant 0 : index
    %81 = vector.load %arg2[%c1_123, %c0_124, %c2_125, %c0_126, %c0_127] : memref<3x3x3x128x128xbf16, #tpu.memory_space<vmem>>, vector<1x1x1x128x128xbf16>
    %82 = vector.shape_cast %81 : vector<1x1x1x128x128xbf16> to vector<128x128xbf16>
    %cst_128 = arith.constant dense<0.000000e+00> : vector<64x128xf32>
    %83 = tpu.matmul %80, %82, %cst_128 {dimension_numbers = #tpu.dot_dimension_numbers<[1], [0], [0], [1], [0, 0, 1, 1], [], []>} : vector<64x128xbf16>, vector<128x128xbf16>, vector<64x128xf32> -> vector<64x128xf32>
    %84 = arith.addf %77, %83 : vector<64x128xf32>
    %c0_129 = arith.constant 0 : index
    %c1_130 = arith.constant 1 : index
    %c1_131 = arith.constant 1 : index
    %c0_132 = arith.constant 0 : index
    %c0_133 = arith.constant 0 : index
    %85 = vector.load %arg1[%c0_129, %c1_130, %c1_131, %c0_132, %c0_133] : memref<1x3x10x10x128xbf16, #tpu.memory_space<vmem>>, vector<1x1x8x8x128xbf16>
    %86 = vector.shape_cast %85 : vector<1x1x8x8x128xbf16> to vector<8x8x128xbf16>
    %87 = vector.shape_cast %86 : vector<8x8x128xbf16> to vector<64x128xbf16>
    %c1_134 = arith.constant 1 : index
    %c1_135 = arith.constant 1 : index
    %c0_136 = arith.constant 0 : index
    %c0_137 = arith.constant 0 : index
    %c0_138 = arith.constant 0 : index
    %88 = vector.load %arg2[%c1_134, %c1_135, %c0_136, %c0_137, %c0_138] : memref<3x3x3x128x128xbf16, #tpu.memory_space<vmem>>, vector<1x1x1x128x128xbf16>
    %89 = vector.shape_cast %88 : vector<1x1x1x128x128xbf16> to vector<128x128xbf16>
    %cst_139 = arith.constant dense<0.000000e+00> : vector<64x128xf32>
    %90 = tpu.matmul %87, %89, %cst_139 {dimension_numbers = #tpu.dot_dimension_numbers<[1], [0], [0], [1], [0, 0, 1, 1], [], []>} : vector<64x128xbf16>, vector<128x128xbf16>, vector<64x128xf32> -> vector<64x128xf32>
    %91 = arith.addf %84, %90 : vector<64x128xf32>
    %c0_140 = arith.constant 0 : index
    %c1_141 = arith.constant 1 : index
    %c1_142 = arith.constant 1 : index
    %c1_143 = arith.constant 1 : index
    %c0_144 = arith.constant 0 : index
    %92 = vector.load %arg1[%c0_140, %c1_141, %c1_142, %c1_143, %c0_144] : memref<1x3x10x10x128xbf16, #tpu.memory_space<vmem>>, vector<1x1x8x8x128xbf16>
    %93 = vector.shape_cast %92 : vector<1x1x8x8x128xbf16> to vector<8x8x128xbf16>
    %94 = vector.shape_cast %93 : vector<8x8x128xbf16> to vector<64x128xbf16>
    %c1_145 = arith.constant 1 : index
    %c1_146 = arith.constant 1 : index
    %c1_147 = arith.constant 1 : index
    %c0_148 = arith.constant 0 : index
    %c0_149 = arith.constant 0 : index
    %95 = vector.load %arg2[%c1_145, %c1_146, %c1_147, %c0_148, %c0_149] : memref<3x3x3x128x128xbf16, #tpu.memory_space<vmem>>, vector<1x1x1x128x128xbf16>
    %96 = vector.shape_cast %95 : vector<1x1x1x128x128xbf16> to vector<128x128xbf16>
    %cst_150 = arith.constant dense<0.000000e+00> : vector<64x128xf32>
    %97 = tpu.matmul %94, %96, %cst_150 {dimension_numbers = #tpu.dot_dimension_numbers<[1], [0], [0], [1], [0, 0, 1, 1], [], []>} : vector<64x128xbf16>, vector<128x128xbf16>, vector<64x128xf32> -> vector<64x128xf32>
    %98 = arith.addf %91, %97 : vector<64x128xf32>
    %c0_151 = arith.constant 0 : index
    %c1_152 = arith.constant 1 : index
    %c1_153 = arith.constant 1 : index
    %c2_154 = arith.constant 2 : index
    %c0_155 = arith.constant 0 : index
    %99 = vector.load %arg1[%c0_151, %c1_152, %c1_153, %c2_154, %c0_155] : memref<1x3x10x10x128xbf16, #tpu.memory_space<vmem>>, vector<1x1x8x8x128xbf16>
    %100 = vector.shape_cast %99 : vector<1x1x8x8x128xbf16> to vector<8x8x128xbf16>
    %101 = vector.shape_cast %100 : vector<8x8x128xbf16> to vector<64x128xbf16>
    %c1_156 = arith.constant 1 : index
    %c1_157 = arith.constant 1 : index
    %c2_158 = arith.constant 2 : index
    %c0_159 = arith.constant 0 : index
    %c0_160 = arith.constant 0 : index
    %102 = vector.load %arg2[%c1_156, %c1_157, %c2_158, %c0_159, %c0_160] : memref<3x3x3x128x128xbf16, #tpu.memory_space<vmem>>, vector<1x1x1x128x128xbf16>
    %103 = vector.shape_cast %102 : vector<1x1x1x128x128xbf16> to vector<128x128xbf16>
    %cst_161 = arith.constant dense<0.000000e+00> : vector<64x128xf32>
    %104 = tpu.matmul %101, %103, %cst_161 {dimension_numbers = #tpu.dot_dimension_numbers<[1], [0], [0], [1], [0, 0, 1, 1], [], []>} : vector<64x128xbf16>, vector<128x128xbf16>, vector<64x128xf32> -> vector<64x128xf32>
    %105 = arith.addf %98, %104 : vector<64x128xf32>
    %c0_162 = arith.constant 0 : index
    %c1_163 = arith.constant 1 : index
    %c2_164 = arith.constant 2 : index
    %c0_165 = arith.constant 0 : index
    %c0_166 = arith.constant 0 : index
    %106 = vector.load %arg1[%c0_162, %c1_163, %c2_164, %c0_165, %c0_166] : memref<1x3x10x10x128xbf16, #tpu.memory_space<vmem>>, vector<1x1x8x8x128xbf16>
    %107 = vector.shape_cast %106 : vector<1x1x8x8x128xbf16> to vector<8x8x128xbf16>
    %108 = vector.shape_cast %107 : vector<8x8x128xbf16> to vector<64x128xbf16>
    %c1_167 = arith.constant 1 : index
    %c2_168 = arith.constant 2 : index
    %c0_169 = arith.constant 0 : index
    %c0_170 = arith.constant 0 : index
    %c0_171 = arith.constant 0 : index
    %109 = vector.load %arg2[%c1_167, %c2_168, %c0_169, %c0_170, %c0_171] : memref<3x3x3x128x128xbf16, #tpu.memory_space<vmem>>, vector<1x1x1x128x128xbf16>
    %110 = vector.shape_cast %109 : vector<1x1x1x128x128xbf16> to vector<128x128xbf16>
    %cst_172 = arith.constant dense<0.000000e+00> : vector<64x128xf32>
    %111 = tpu.matmul %108, %110, %cst_172 {dimension_numbers = #tpu.dot_dimension_numbers<[1], [0], [0], [1], [0, 0, 1, 1], [], []>} : vector<64x128xbf16>, vector<128x128xbf16>, vector<64x128xf32> -> vector<64x128xf32>
    %112 = arith.addf %105, %111 : vector<64x128xf32>
    %c0_173 = arith.constant 0 : index
    %c1_174 = arith.constant 1 : index
    %c2_175 = arith.constant 2 : index
    %c1_176 = arith.constant 1 : index
    %c0_177 = arith.constant 0 : index
    %113 = vector.load %arg1[%c0_173, %c1_174, %c2_175, %c1_176, %c0_177] : memref<1x3x10x10x128xbf16, #tpu.memory_space<vmem>>, vector<1x1x8x8x128xbf16>
    %114 = vector.shape_cast %113 : vector<1x1x8x8x128xbf16> to vector<8x8x128xbf16>
    %115 = vector.shape_cast %114 : vector<8x8x128xbf16> to vector<64x128xbf16>
    %c1_178 = arith.constant 1 : index
    %c2_179 = arith.constant 2 : index
    %c1_180 = arith.constant 1 : index
    %c0_181 = arith.constant 0 : index
    %c0_182 = arith.constant 0 : index
    %116 = vector.load %arg2[%c1_178, %c2_179, %c1_180, %c0_181, %c0_182] : memref<3x3x3x128x128xbf16, #tpu.memory_space<vmem>>, vector<1x1x1x128x128xbf16>
    %117 = vector.shape_cast %116 : vector<1x1x1x128x128xbf16> to vector<128x128xbf16>
    %cst_183 = arith.constant dense<0.000000e+00> : vector<64x128xf32>
    %118 = tpu.matmul %115, %117, %cst_183 {dimension_numbers = #tpu.dot_dimension_numbers<[1], [0], [0], [1], [0, 0, 1, 1], [], []>} : vector<64x128xbf16>, vector<128x128xbf16>, vector<64x128xf32> -> vector<64x128xf32>
    %119 = arith.addf %112, %118 : vector<64x128xf32>
    %c0_184 = arith.constant 0 : index
    %c1_185 = arith.constant 1 : index
    %c2_186 = arith.constant 2 : index
    %c2_187 = arith.constant 2 : index
    %c0_188 = arith.constant 0 : index
    %120 = vector.load %arg1[%c0_184, %c1_185, %c2_186, %c2_187, %c0_188] : memref<1x3x10x10x128xbf16, #tpu.memory_space<vmem>>, vector<1x1x8x8x128xbf16>
    %121 = vector.shape_cast %120 : vector<1x1x8x8x128xbf16> to vector<8x8x128xbf16>
    %122 = vector.shape_cast %121 : vector<8x8x128xbf16> to vector<64x128xbf16>
    %c1_189 = arith.constant 1 : index
    %c2_190 = arith.constant 2 : index
    %c2_191 = arith.constant 2 : index
    %c0_192 = arith.constant 0 : index
    %c0_193 = arith.constant 0 : index
    %123 = vector.load %arg2[%c1_189, %c2_190, %c2_191, %c0_192, %c0_193] : memref<3x3x3x128x128xbf16, #tpu.memory_space<vmem>>, vector<1x1x1x128x128xbf16>
    %124 = vector.shape_cast %123 : vector<1x1x1x128x128xbf16> to vector<128x128xbf16>
    %cst_194 = arith.constant dense<0.000000e+00> : vector<64x128xf32>
    %125 = tpu.matmul %122, %124, %cst_194 {dimension_numbers = #tpu.dot_dimension_numbers<[1], [0], [0], [1], [0, 0, 1, 1], [], []>} : vector<64x128xbf16>, vector<128x128xbf16>, vector<64x128xf32> -> vector<64x128xf32>
    %126 = arith.addf %119, %125 : vector<64x128xf32>
    %c0_195 = arith.constant 0 : index
    %c2_196 = arith.constant 2 : index
    %c0_197 = arith.constant 0 : index
    %c0_198 = arith.constant 0 : index
    %c0_199 = arith.constant 0 : index
    %127 = vector.load %arg1[%c0_195, %c2_196, %c0_197, %c0_198, %c0_199] : memref<1x3x10x10x128xbf16, #tpu.memory_space<vmem>>, vector<1x1x8x8x128xbf16>
    %128 = vector.shape_cast %127 : vector<1x1x8x8x128xbf16> to vector<8x8x128xbf16>
    %129 = vector.shape_cast %128 : vector<8x8x128xbf16> to vector<64x128xbf16>
    %c2_200 = arith.constant 2 : index
    %c0_201 = arith.constant 0 : index
    %c0_202 = arith.constant 0 : index
    %c0_203 = arith.constant 0 : index
    %c0_204 = arith.constant 0 : index
    %130 = vector.load %arg2[%c2_200, %c0_201, %c0_202, %c0_203, %c0_204] : memref<3x3x3x128x128xbf16, #tpu.memory_space<vmem>>, vector<1x1x1x128x128xbf16>
    %131 = vector.shape_cast %130 : vector<1x1x1x128x128xbf16> to vector<128x128xbf16>
    %cst_205 = arith.constant dense<0.000000e+00> : vector<64x128xf32>
    %132 = tpu.matmul %129, %131, %cst_205 {dimension_numbers = #tpu.dot_dimension_numbers<[1], [0], [0], [1], [0, 0, 1, 1], [], []>} : vector<64x128xbf16>, vector<128x128xbf16>, vector<64x128xf32> -> vector<64x128xf32>
    %133 = arith.addf %126, %132 : vector<64x128xf32>
    %c0_206 = arith.constant 0 : index
    %c2_207 = arith.constant 2 : index
    %c0_208 = arith.constant 0 : index
    %c1_209 = arith.constant 1 : index
    %c0_210 = arith.constant 0 : index
    %134 = vector.load %arg1[%c0_206, %c2_207, %c0_208, %c1_209, %c0_210] : memref<1x3x10x10x128xbf16, #tpu.memory_space<vmem>>, vector<1x1x8x8x128xbf16>
    %135 = vector.shape_cast %134 : vector<1x1x8x8x128xbf16> to vector<8x8x128xbf16>
    %136 = vector.shape_cast %135 : vector<8x8x128xbf16> to vector<64x128xbf16>
    %c2_211 = arith.constant 2 : index
    %c0_212 = arith.constant 0 : index
    %c1_213 = arith.constant 1 : index
    %c0_214 = arith.constant 0 : index
    %c0_215 = arith.constant 0 : index
    %137 = vector.load %arg2[%c2_211, %c0_212, %c1_213, %c0_214, %c0_215] : memref<3x3x3x128x128xbf16, #tpu.memory_space<vmem>>, vector<1x1x1x128x128xbf16>
    %138 = vector.shape_cast %137 : vector<1x1x1x128x128xbf16> to vector<128x128xbf16>
    %cst_216 = arith.constant dense<0.000000e+00> : vector<64x128xf32>
    %139 = tpu.matmul %136, %138, %cst_216 {dimension_numbers = #tpu.dot_dimension_numbers<[1], [0], [0], [1], [0, 0, 1, 1], [], []>} : vector<64x128xbf16>, vector<128x128xbf16>, vector<64x128xf32> -> vector<64x128xf32>
    %140 = arith.addf %133, %139 : vector<64x128xf32>
    %c0_217 = arith.constant 0 : index
    %c2_218 = arith.constant 2 : index
    %c0_219 = arith.constant 0 : index
    %c2_220 = arith.constant 2 : index
    %c0_221 = arith.constant 0 : index
    %141 = vector.load %arg1[%c0_217, %c2_218, %c0_219, %c2_220, %c0_221] : memref<1x3x10x10x128xbf16, #tpu.memory_space<vmem>>, vector<1x1x8x8x128xbf16>
    %142 = vector.shape_cast %141 : vector<1x1x8x8x128xbf16> to vector<8x8x128xbf16>
    %143 = vector.shape_cast %142 : vector<8x8x128xbf16> to vector<64x128xbf16>
    %c2_222 = arith.constant 2 : index
    %c0_223 = arith.constant 0 : index
    %c2_224 = arith.constant 2 : index
    %c0_225 = arith.constant 0 : index
    %c0_226 = arith.constant 0 : index
    %144 = vector.load %arg2[%c2_222, %c0_223, %c2_224, %c0_225, %c0_226] : memref<3x3x3x128x128xbf16, #tpu.memory_space<vmem>>, vector<1x1x1x128x128xbf16>
    %145 = vector.shape_cast %144 : vector<1x1x1x128x128xbf16> to vector<128x128xbf16>
    %cst_227 = arith.constant dense<0.000000e+00> : vector<64x128xf32>
    %146 = tpu.matmul %143, %145, %cst_227 {dimension_numbers = #tpu.dot_dimension_numbers<[1], [0], [0], [1], [0, 0, 1, 1], [], []>} : vector<64x128xbf16>, vector<128x128xbf16>, vector<64x128xf32> -> vector<64x128xf32>
    %147 = arith.addf %140, %146 : vector<64x128xf32>
    %c0_228 = arith.constant 0 : index
    %c2_229 = arith.constant 2 : index
    %c1_230 = arith.constant 1 : index
    %c0_231 = arith.constant 0 : index
    %c0_232 = arith.constant 0 : index
    %148 = vector.load %arg1[%c0_228, %c2_229, %c1_230, %c0_231, %c0_232] : memref<1x3x10x10x128xbf16, #tpu.memory_space<vmem>>, vector<1x1x8x8x128xbf16>
    %149 = vector.shape_cast %148 : vector<1x1x8x8x128xbf16> to vector<8x8x128xbf16>
    %150 = vector.shape_cast %149 : vector<8x8x128xbf16> to vector<64x128xbf16>
    %c2_233 = arith.constant 2 : index
    %c1_234 = arith.constant 1 : index
    %c0_235 = arith.constant 0 : index
    %c0_236 = arith.constant 0 : index
    %c0_237 = arith.constant 0 : index
    %151 = vector.load %arg2[%c2_233, %c1_234, %c0_235, %c0_236, %c0_237] : memref<3x3x3x128x128xbf16, #tpu.memory_space<vmem>>, vector<1x1x1x128x128xbf16>
    %152 = vector.shape_cast %151 : vector<1x1x1x128x128xbf16> to vector<128x128xbf16>
    %cst_238 = arith.constant dense<0.000000e+00> : vector<64x128xf32>
    %153 = tpu.matmul %150, %152, %cst_238 {dimension_numbers = #tpu.dot_dimension_numbers<[1], [0], [0], [1], [0, 0, 1, 1], [], []>} : vector<64x128xbf16>, vector<128x128xbf16>, vector<64x128xf32> -> vector<64x128xf32>
    %154 = arith.addf %147, %153 : vector<64x128xf32>
    %c0_239 = arith.constant 0 : index
    %c2_240 = arith.constant 2 : index
    %c1_241 = arith.constant 1 : index
    %c1_242 = arith.constant 1 : index
    %c0_243 = arith.constant 0 : index
    %155 = vector.load %arg1[%c0_239, %c2_240, %c1_241, %c1_242, %c0_243] : memref<1x3x10x10x128xbf16, #tpu.memory_space<vmem>>, vector<1x1x8x8x128xbf16>
    %156 = vector.shape_cast %155 : vector<1x1x8x8x128xbf16> to vector<8x8x128xbf16>
    %157 = vector.shape_cast %156 : vector<8x8x128xbf16> to vector<64x128xbf16>
    %c2_244 = arith.constant 2 : index
    %c1_245 = arith.constant 1 : index
    %c1_246 = arith.constant 1 : index
    %c0_247 = arith.constant 0 : index
    %c0_248 = arith.constant 0 : index
    %158 = vector.load %arg2[%c2_244, %c1_245, %c1_246, %c0_247, %c0_248] : memref<3x3x3x128x128xbf16, #tpu.memory_space<vmem>>, vector<1x1x1x128x128xbf16>
    %159 = vector.shape_cast %158 : vector<1x1x1x128x128xbf16> to vector<128x128xbf16>
    %cst_249 = arith.constant dense<0.000000e+00> : vector<64x128xf32>
    %160 = tpu.matmul %157, %159, %cst_249 {dimension_numbers = #tpu.dot_dimension_numbers<[1], [0], [0], [1], [0, 0, 1, 1], [], []>} : vector<64x128xbf16>, vector<128x128xbf16>, vector<64x128xf32> -> vector<64x128xf32>
    %161 = arith.addf %154, %160 : vector<64x128xf32>
    %c0_250 = arith.constant 0 : index
    %c2_251 = arith.constant 2 : index
    %c1_252 = arith.constant 1 : index
    %c2_253 = arith.constant 2 : index
    %c0_254 = arith.constant 0 : index
    %162 = vector.load %arg1[%c0_250, %c2_251, %c1_252, %c2_253, %c0_254] : memref<1x3x10x10x128xbf16, #tpu.memory_space<vmem>>, vector<1x1x8x8x128xbf16>
    %163 = vector.shape_cast %162 : vector<1x1x8x8x128xbf16> to vector<8x8x128xbf16>
    %164 = vector.shape_cast %163 : vector<8x8x128xbf16> to vector<64x128xbf16>
    %c2_255 = arith.constant 2 : index
    %c1_256 = arith.constant 1 : index
    %c2_257 = arith.constant 2 : index
    %c0_258 = arith.constant 0 : index
    %c0_259 = arith.constant 0 : index
    %165 = vector.load %arg2[%c2_255, %c1_256, %c2_257, %c0_258, %c0_259] : memref<3x3x3x128x128xbf16, #tpu.memory_space<vmem>>, vector<1x1x1x128x128xbf16>
    %166 = vector.shape_cast %165 : vector<1x1x1x128x128xbf16> to vector<128x128xbf16>
    %cst_260 = arith.constant dense<0.000000e+00> : vector<64x128xf32>
    %167 = tpu.matmul %164, %166, %cst_260 {dimension_numbers = #tpu.dot_dimension_numbers<[1], [0], [0], [1], [0, 0, 1, 1], [], []>} : vector<64x128xbf16>, vector<128x128xbf16>, vector<64x128xf32> -> vector<64x128xf32>
    %168 = arith.addf %161, %167 : vector<64x128xf32>
    %c0_261 = arith.constant 0 : index
    %c2_262 = arith.constant 2 : index
    %c2_263 = arith.constant 2 : index
    %c0_264 = arith.constant 0 : index
    %c0_265 = arith.constant 0 : index
    %169 = vector.load %arg1[%c0_261, %c2_262, %c2_263, %c0_264, %c0_265] : memref<1x3x10x10x128xbf16, #tpu.memory_space<vmem>>, vector<1x1x8x8x128xbf16>
    %170 = vector.shape_cast %169 : vector<1x1x8x8x128xbf16> to vector<8x8x128xbf16>
    %171 = vector.shape_cast %170 : vector<8x8x128xbf16> to vector<64x128xbf16>
    %c2_266 = arith.constant 2 : index
    %c2_267 = arith.constant 2 : index
    %c0_268 = arith.constant 0 : index
    %c0_269 = arith.constant 0 : index
    %c0_270 = arith.constant 0 : index
    %172 = vector.load %arg2[%c2_266, %c2_267, %c0_268, %c0_269, %c0_270] : memref<3x3x3x128x128xbf16, #tpu.memory_space<vmem>>, vector<1x1x1x128x128xbf16>
    %173 = vector.shape_cast %172 : vector<1x1x1x128x128xbf16> to vector<128x128xbf16>
    %cst_271 = arith.constant dense<0.000000e+00> : vector<64x128xf32>
    %174 = tpu.matmul %171, %173, %cst_271 {dimension_numbers = #tpu.dot_dimension_numbers<[1], [0], [0], [1], [0, 0, 1, 1], [], []>} : vector<64x128xbf16>, vector<128x128xbf16>, vector<64x128xf32> -> vector<64x128xf32>
    %175 = arith.addf %168, %174 : vector<64x128xf32>
    %c0_272 = arith.constant 0 : index
    %c2_273 = arith.constant 2 : index
    %c2_274 = arith.constant 2 : index
    %c1_275 = arith.constant 1 : index
    %c0_276 = arith.constant 0 : index
    %176 = vector.load %arg1[%c0_272, %c2_273, %c2_274, %c1_275, %c0_276] : memref<1x3x10x10x128xbf16, #tpu.memory_space<vmem>>, vector<1x1x8x8x128xbf16>
    %177 = vector.shape_cast %176 : vector<1x1x8x8x128xbf16> to vector<8x8x128xbf16>
    %178 = vector.shape_cast %177 : vector<8x8x128xbf16> to vector<64x128xbf16>
    %c2_277 = arith.constant 2 : index
    %c2_278 = arith.constant 2 : index
    %c1_279 = arith.constant 1 : index
    %c0_280 = arith.constant 0 : index
    %c0_281 = arith.constant 0 : index
    %179 = vector.load %arg2[%c2_277, %c2_278, %c1_279, %c0_280, %c0_281] : memref<3x3x3x128x128xbf16, #tpu.memory_space<vmem>>, vector<1x1x1x128x128xbf16>
    %180 = vector.shape_cast %179 : vector<1x1x1x128x128xbf16> to vector<128x128xbf16>
    %cst_282 = arith.constant dense<0.000000e+00> : vector<64x128xf32>
    %181 = tpu.matmul %178, %180, %cst_282 {dimension_numbers = #tpu.dot_dimension_numbers<[1], [0], [0], [1], [0, 0, 1, 1], [], []>} : vector<64x128xbf16>, vector<128x128xbf16>, vector<64x128xf32> -> vector<64x128xf32>
    %182 = arith.addf %175, %181 : vector<64x128xf32>
    %c0_283 = arith.constant 0 : index
    %c2_284 = arith.constant 2 : index
    %c2_285 = arith.constant 2 : index
    %c2_286 = arith.constant 2 : index
    %c0_287 = arith.constant 0 : index
    %183 = vector.load %arg1[%c0_283, %c2_284, %c2_285, %c2_286, %c0_287] : memref<1x3x10x10x128xbf16, #tpu.memory_space<vmem>>, vector<1x1x8x8x128xbf16>
    %184 = vector.shape_cast %183 : vector<1x1x8x8x128xbf16> to vector<8x8x128xbf16>
    %185 = vector.shape_cast %184 : vector<8x8x128xbf16> to vector<64x128xbf16>
    %c2_288 = arith.constant 2 : index
    %c2_289 = arith.constant 2 : index
    %c2_290 = arith.constant 2 : index
    %c0_291 = arith.constant 0 : index
    %c0_292 = arith.constant 0 : index
    %186 = vector.load %arg2[%c2_288, %c2_289, %c2_290, %c0_291, %c0_292] : memref<3x3x3x128x128xbf16, #tpu.memory_space<vmem>>, vector<1x1x1x128x128xbf16>
    %187 = vector.shape_cast %186 : vector<1x1x1x128x128xbf16> to vector<128x128xbf16>
    %cst_293 = arith.constant dense<0.000000e+00> : vector<64x128xf32>
    %188 = tpu.matmul %185, %187, %cst_293 {dimension_numbers = #tpu.dot_dimension_numbers<[1], [0], [0], [1], [0, 0, 1, 1], [], []>} : vector<64x128xbf16>, vector<128x128xbf16>, vector<64x128xf32> -> vector<64x128xf32>
    %189 = arith.addf %182, %188 : vector<64x128xf32>
    %c0_294 = arith.constant 0 : index
    %c0_295 = arith.constant 0 : index
    %190 = vector.load %arg3[%c0_294, %c0_295] : memref<64x128xf32, #tpu.memory_space<vmem>>, vector<64x128xf32>
    tpu.vector_store %arg3[%c0_294, %c0_295], %189 {strides = array<i32>} : memref<64x128xf32, #tpu.memory_space<vmem>>, vector<64x128xf32>,
    %cst_296 = arith.constant dense<0.000000e+00> : vector<128xf32>
    %191 = vector.multi_reduction <add>, %189, %cst_296 [0] : vector<64x128xf32> to vector<128xf32>
    %192 = vector.shape_cast %191 : vector<128xf32> to vector<1x128xf32>
    %193 = arith.mulf %189, %189 : vector<64x128xf32>
    %cst_297 = arith.constant dense<0.000000e+00> : vector<128xf32>
    %194 = vector.multi_reduction <add>, %193, %cst_297 [0] : vector<64x128xf32> to vector<128xf32>
    %195 = vector.shape_cast %194 : vector<128xf32> to vector<1x128xf32>
    %196 = vector.shape_cast %192 : vector<1x128xf32> to vector<1x1x128xf32>
    %197 = vector.broadcast %196 : vector<1x1x128xf32> to vector<1x8x128xf32>
    %c0_298 = arith.constant 0 : index
    %c0_299 = arith.constant 0 : index
    %c0_300 = arith.constant 0 : index
    %198 = vector.load %arg4[%c0_298, %c0_299, %c0_300] : memref<1x8x128xf32, #tpu.memory_space<vmem>>, vector<1x8x128xf32>
    tpu.vector_store %arg4[%c0_298, %c0_299, %c0_300], %197 {strides = array<i32>} : memref<1x8x128xf32, #tpu.memory_space<vmem>>, vector<1x8x128xf32>,
    %199 = vector.shape_cast %195 : vector<1x128xf32> to vector<1x1x128xf32>
    %200 = vector.broadcast %199 : vector<1x1x128xf32> to vector<1x8x128xf32>
    %c0_301 = arith.constant 0 : index
    %c0_302 = arith.constant 0 : index
    %c0_303 = arith.constant 0 : index
    %201 = vector.load %arg5[%c0_301, %c0_302, %c0_303] : memref<1x8x128xf32, #tpu.memory_space<vmem>>, vector<1x8x128xf32>
    tpu.vector_store %arg5[%c0_301, %c0_302, %c0_303], %200 {strides = array<i32>} : memref<1x8x128xf32, #tpu.memory_space<vmem>>, vector<1x8x128xf32>,
    return
  }
  func.func @transform_0(%arg0: i32) -> (i32, i32, i32, i32, i32) {
    %c0_i32 = arith.constant 0 : i32
    %c0_i32_0 = arith.constant 0 : i32
    %c0_i32_1 = arith.constant 0 : i32
    %c0_i32_2 = arith.constant 0 : i32
    %c0_i32_3 = arith.constant 0 : i32
    return %arg0, %c0_i32, %c0_i32_0, %c0_i32_1, %c0_i32_2 : i32, i32, i32, i32, i32
  }
  func.func @transform_1(%arg0: i32) -> (i32, i32, i32, i32, i32) {
    %c0_i32 = arith.constant 0 : i32
    %c0_i32_0 = arith.constant 0 : i32
    %c0_i32_1 = arith.constant 0 : i32
    %c0_i32_2 = arith.constant 0 : i32
    %c0_i32_3 = arith.constant 0 : i32
    %c0_i32_4 = arith.constant 0 : i32
    return %c0_i32, %c0_i32_0, %c0_i32_1, %c0_i32_2, %c0_i32_3 : i32, i32, i32, i32, i32
  }
  func.func @transform_2(%arg0: i32) -> (i32, i32) {
    %c0_i32 = arith.constant 0 : i32
    %c0_i32_0 = arith.constant 0 : i32
    return %arg0, %c0_i32 : i32, i32
  }
  func.func @transform_3(%arg0: i32) -> (i32, i32, i32) {
    %c0_i32 = arith.constant 0 : i32
    %c0_i32_0 = arith.constant 0 : i32
    %c0_i32_1 = arith.constant 0 : i32
    return %arg0, %c0_i32, %c0_i32_0 : i32, i32, i32
  }
  func.func @transform_4(%arg0: i32) -> (i32, i32, i32) {
    %c0_i32 = arith.constant 0 : i32
    %c0_i32_0 = arith.constant 0 : i32
    %c0_i32_1 = arith.constant 0 : i32
    return %arg0, %c0_i32, %c0_i32_0 : i32, i32, i32
  }
}

module attributes {stable_mosaic.version = 11 : i64} {
  func.func @_matmul_stats_kernel(%arg0: i32, %arg1: memref<512x128xbf16, #tpu.memory_space<vmem>>, %arg2: memref<128x128xbf16, #tpu.memory_space<vmem>>, %arg3: memref<512x128xf32, #tpu.memory_space<vmem>>, %arg4: memref<1x8x128xf32, #tpu.memory_space<vmem>>, %arg5: memref<1x8x128xf32, #tpu.memory_space<vmem>>) attributes {dimension_semantics = [#tpu.dimension_semantics<parallel>], iteration_bounds = array<i64: 2>, scalar_prefetch = 0 : i64, scratch_operands = 0 : i64, tpu.core_type = #tpu.core_type<tc>, window_params = [{transform_indices = @transform_0, window_bounds = array<i64: 512, 128>}, {pipeline_mode = #tpu.pipeline_mode<synchronous>, transform_indices = @transform_1, window_bounds = array<i64: 128, 128>}, {transform_indices = @transform_2, window_bounds = array<i64: 512, 128>}, {transform_indices = @transform_3, window_bounds = array<i64: 1, 8, 128>}, {transform_indices = @transform_4, window_bounds = array<i64: 1, 8, 128>}]} {
    %c0 = arith.constant 0 : index
    %c0_0 = arith.constant 0 : index
    %0 = vector.load %arg1[%c0, %c0_0] : memref<512x128xbf16, #tpu.memory_space<vmem>>, vector<512x128xbf16>
    %c0_1 = arith.constant 0 : index
    %c0_2 = arith.constant 0 : index
    %1 = vector.load %arg2[%c0_1, %c0_2] : memref<128x128xbf16, #tpu.memory_space<vmem>>, vector<128x128xbf16>
    %cst = arith.constant dense<0.000000e+00> : vector<512x128xf32>
    %2 = tpu.matmul %0, %1, %cst {dimension_numbers = #tpu.dot_dimension_numbers<[1], [0], [0], [1], [0, 0, 1, 1], [], []>} : vector<512x128xbf16>, vector<128x128xbf16>, vector<512x128xf32> -> vector<512x128xf32>
    %c0_3 = arith.constant 0 : index
    %c0_4 = arith.constant 0 : index
    %3 = vector.load %arg3[%c0_3, %c0_4] : memref<512x128xf32, #tpu.memory_space<vmem>>, vector<512x128xf32>
    tpu.vector_store %arg3[%c0_3, %c0_4], %2 {strides = array<i32>} : memref<512x128xf32, #tpu.memory_space<vmem>>, vector<512x128xf32>,
    %cst_5 = arith.constant dense<0.000000e+00> : vector<128xf32>
    %4 = vector.multi_reduction <add>, %2, %cst_5 [0] : vector<512x128xf32> to vector<128xf32>
    %5 = vector.shape_cast %4 : vector<128xf32> to vector<1x128xf32>
    %6 = arith.mulf %2, %2 : vector<512x128xf32>
    %cst_6 = arith.constant dense<0.000000e+00> : vector<128xf32>
    %7 = vector.multi_reduction <add>, %6, %cst_6 [0] : vector<512x128xf32> to vector<128xf32>
    %8 = vector.shape_cast %7 : vector<128xf32> to vector<1x128xf32>
    %9 = vector.shape_cast %5 : vector<1x128xf32> to vector<1x1x128xf32>
    %10 = vector.broadcast %9 : vector<1x1x128xf32> to vector<1x8x128xf32>
    %c0_7 = arith.constant 0 : index
    %c0_8 = arith.constant 0 : index
    %c0_9 = arith.constant 0 : index
    %11 = vector.load %arg4[%c0_7, %c0_8, %c0_9] : memref<1x8x128xf32, #tpu.memory_space<vmem>>, vector<1x8x128xf32>
    tpu.vector_store %arg4[%c0_7, %c0_8, %c0_9], %10 {strides = array<i32>} : memref<1x8x128xf32, #tpu.memory_space<vmem>>, vector<1x8x128xf32>,
    %12 = vector.shape_cast %8 : vector<1x128xf32> to vector<1x1x128xf32>
    %13 = vector.broadcast %12 : vector<1x1x128xf32> to vector<1x8x128xf32>
    %c0_10 = arith.constant 0 : index
    %c0_11 = arith.constant 0 : index
    %c0_12 = arith.constant 0 : index
    %14 = vector.load %arg5[%c0_10, %c0_11, %c0_12] : memref<1x8x128xf32, #tpu.memory_space<vmem>>, vector<1x8x128xf32>
    tpu.vector_store %arg5[%c0_10, %c0_11, %c0_12], %13 {strides = array<i32>} : memref<1x8x128xf32, #tpu.memory_space<vmem>>, vector<1x8x128xf32>,
    return
  }
  func.func @transform_0(%arg0: i32) -> (i32, i32) {
    %c0_i32 = arith.constant 0 : i32
    %c0_i32_0 = arith.constant 0 : i32
    return %arg0, %c0_i32 : i32, i32
  }
  func.func @transform_1(%arg0: i32) -> (i32, i32) {
    %c0_i32 = arith.constant 0 : i32
    %c0_i32_0 = arith.constant 0 : i32
    %c0_i32_1 = arith.constant 0 : i32
    return %c0_i32, %c0_i32_0 : i32, i32
  }
  func.func @transform_2(%arg0: i32) -> (i32, i32) {
    %c0_i32 = arith.constant 0 : i32
    %c0_i32_0 = arith.constant 0 : i32
    return %arg0, %c0_i32 : i32, i32
  }
  func.func @transform_3(%arg0: i32) -> (i32, i32, i32) {
    %c0_i32 = arith.constant 0 : i32
    %c0_i32_0 = arith.constant 0 : i32
    %c0_i32_1 = arith.constant 0 : i32
    return %arg0, %c0_i32, %c0_i32_0 : i32, i32, i32
  }
  func.func @transform_4(%arg0: i32) -> (i32, i32, i32) {
    %c0_i32 = arith.constant 0 : i32
    %c0_i32_0 = arith.constant 0 : i32
    %c0_i32_1 = arith.constant 0 : i32
    return %arg0, %c0_i32, %c0_i32_0 : i32, i32, i32
  }
}

module attributes {stable_mosaic.version = 11 : i64} {
  func.func @_final_concat_kernel(%arg0: i32, %arg1: memref<512x128xf32, #tpu.memory_space<vmem>>, %arg2: memref<1x128xf32, #tpu.memory_space<vmem>>, %arg3: memref<1x128xf32, #tpu.memory_space<vmem>>, %arg4: memref<512x128xf32, #tpu.memory_space<vmem>>, %arg5: memref<512x256xf32, #tpu.memory_space<vmem>>) attributes {dimension_semantics = [#tpu.dimension_semantics<parallel>], iteration_bounds = array<i64: 2>, scalar_prefetch = 0 : i64, scratch_operands = 0 : i64, tpu.core_type = #tpu.core_type<tc>, window_params = [{transform_indices = @transform_0, window_bounds = array<i64: 512, 128>}, {pipeline_mode = #tpu.pipeline_mode<synchronous>, transform_indices = @transform_1, window_bounds = array<i64: 1, 128>}, {pipeline_mode = #tpu.pipeline_mode<synchronous>, transform_indices = @transform_2, window_bounds = array<i64: 1, 128>}, {transform_indices = @transform_3, window_bounds = array<i64: 512, 128>}, {transform_indices = @transform_4, window_bounds = array<i64: 512, 256>}]} {
    %c0 = arith.constant 0 : index
    %c0_0 = arith.constant 0 : index
    %0 = vector.load %arg1[%c0, %c0_0] : memref<512x128xf32, #tpu.memory_space<vmem>>, vector<512x128xf32>
    %c0_1 = arith.constant 0 : index
    %c0_2 = arith.constant 0 : index
    %1 = vector.load %arg2[%c0_1, %c0_2] : memref<1x128xf32, #tpu.memory_space<vmem>>, vector<1x128xf32>
    %2 = vector.broadcast %1 : vector<1x128xf32> to vector<512x128xf32>
    %3 = arith.mulf %0, %2 : vector<512x128xf32>
    %c0_3 = arith.constant 0 : index
    %c0_4 = arith.constant 0 : index
    %4 = vector.load %arg3[%c0_3, %c0_4] : memref<1x128xf32, #tpu.memory_space<vmem>>, vector<1x128xf32>
    %5 = vector.broadcast %4 : vector<1x128xf32> to vector<512x128xf32>
    %6 = arith.addf %3, %5 : vector<512x128xf32>
    %cst = arith.constant 0.000000e+00 : f32
    %7 = vector.broadcast %cst : f32 to vector<512x128xf32>
    %8 = arith.cmpf oge, %6, %7 : vector<512x128xf32>
    %cst_5 = arith.constant 2.000000e-01 : f32
    %9 = vector.broadcast %cst_5 : f32 to vector<512x128xf32>
    %10 = arith.mulf %9, %6 : vector<512x128xf32>
    %11 = arith.select %8, %6, %10 : vector<512x128xi1>, vector<512x128xf32>
    %c0_6 = arith.constant 0 : index
    %c0_7 = arith.constant 0 : index
    %12 = vector.load %arg4[%c0_6, %c0_7] : memref<512x128xf32, #tpu.memory_space<vmem>>, vector<512x128xf32>
    %cst_8 = arith.constant 0.000000e+00 : f32
    %13 = vector.broadcast %cst_8 : f32 to vector<512x128xf32>
    %14 = arith.cmpf oge, %12, %13 : vector<512x128xf32>
    %cst_9 = arith.constant 2.000000e-01 : f32
    %15 = vector.broadcast %cst_9 : f32 to vector<512x128xf32>
    %16 = arith.mulf %15, %12 : vector<512x128xf32>
    %17 = arith.select %14, %12, %16 : vector<512x128xi1>, vector<512x128xf32>
    %18 = tpu.concatenate %11, %17 in 1 : vector<512x128xf32>, vector<512x128xf32> -> vector<512x256xf32>
    %c0_10 = arith.constant 0 : index
    %c0_11 = arith.constant 0 : index
    %19 = vector.load %arg5[%c0_10, %c0_11] : memref<512x256xf32, #tpu.memory_space<vmem>>, vector<512x256xf32>
    tpu.vector_store %arg5[%c0_10, %c0_11], %18 {strides = array<i32>} : memref<512x256xf32, #tpu.memory_space<vmem>>, vector<512x256xf32>,
    return
  }
  func.func @transform_0(%arg0: i32) -> (i32, i32) {
    %c0_i32 = arith.constant 0 : i32
    %c0_i32_0 = arith.constant 0 : i32
    return %arg0, %c0_i32 : i32, i32
  }
  func.func @transform_1(%arg0: i32) -> (i32, i32) {
    %c0_i32 = arith.constant 0 : i32
    %c0_i32_0 = arith.constant 0 : i32
    %c0_i32_1 = arith.constant 0 : i32
    return %c0_i32, %c0_i32_0 : i32, i32
  }
  func.func @transform_2(%arg0: i32) -> (i32, i32) {
    %c0_i32 = arith.constant 0 : i32
    %c0_i32_0 = arith.constant 0 : i32
    %c0_i32_1 = arith.constant 0 : i32
    return %c0_i32, %c0_i32_0 : i32, i32
  }
  func.func @transform_3(%arg0: i32) -> (i32, i32) {
    %c0_i32 = arith.constant 0 : i32
    %c0_i32_0 = arith.constant 0 : i32
    return %arg0, %c0_i32 : i32, i32
  }
  func.func @transform_4(%arg0: i32) -> (i32, i32) {
    %c0_i32 = arith.constant 0 : i32
    %c0_i32_0 = arith.constant 0 : i32
    return %arg0, %c0_i32 : i32, i32
  }
}

</mosaic_0001>

<llo_original>
// kernel: bottleneck_block_forward.6
$region0: #{bottleneck_block_forward.6}
  #allocation0 [shape = 'u32[]', space=smem, size = 0x4, offset = 0x4, fixed_abs, tag = 'smem constant byte address 0x4 - core index']
  #allocation1 [shape = 'u32[144,128]{1,0:T(1,128)}', space=vmem, size = 0x12000, scoped, tag = 'internal scratch']
  %s0 = inlined_call_operand.vmem [shape: bf16[1024,128], index: 0, kind: input, shape index: {}]
  %s1 = inlined_call_operand.hbm [shape: bf16[128,128], index: 1, kind: input, shape index: {}]
  %s2 = inlined_call_operand.vmem [shape: f32[1024,128], index: 2, kind: output, shape index: {0}]
  %s3 = inlined_call_operand.vmem [shape: f32[2,8,128], index: 3, kind: output, shape index: {1}]
  %s4 = inlined_call_operand.vmem [shape: f32[2,8,128], index: 4, kind: output, shape index: {2}]
  %5 = xla_tuple %s2, %s3, %s4
  %s6 = sld [smem:[#allocation0]]
  $region61: #{bottleneck_block_forward.6} parent=0
    _
  %s8 = ssub.s32 1, %s6
  %s9 = scalar_select 0, %s8, %s6
  $region1: #{bottleneck_block_forward.6} parent=0
    #allocation2 [shape = 'u8[32768]{0}', space=vmem, size = 0x8000, scoped, tag = 'input window, operand 1, single buffered']
    #allocation3 [shape = 's32[2]{0}', space=sflag, size = 0x8, scoped, tag = 'scoped memory for bottleneck_block_forward.6']
    %10 = vsyncpa [#allocation3], 0
    loop: start=0, step=1, limit=4
    $region2: #{bottleneck_block_forward.6} parent=1 // loop_pre_header
      _
    $region3: #{bottleneck_block_forward.6} parent=1 // loop_header
      %s12 = sphi 0, %s16
      %p13 = scmp.ge.s32.totalorder %s12, 4
      %s22 = sphi 0, %s24
      %s25 = sphi 0, %s22
      %s26 = sphi 0, %s25
      %s42 = sphi 0, %s26
      %s46 = sphi 0, %s46
      %s48 = sphi 0, %s46
      %s49 = sphi 0, %s48
      %s63 = sphi 0, %s49
      %s69 = sphi 0, %s71
      %s72 = sphi 0, %s69
      %s73 = sphi 0, %s72
      %s89 = sphi 0, %s73
      %s95 = sphi 0, %s97
      %s98 = sphi 0, %s95
      %s99 = sphi 0, %s98
      %s115 = sphi 0, %s99
      %s121 = sphi 0, %s123
      %s124 = sphi 0, %s121
      %s125 = sphi 0, %s124
      %s141 = sphi 0, %s125
    $region4: #{bottleneck_block_forward.6} parent=1 // loop_header_branch
      %15 = sbr.rel (%p13) target = $region8
    $region5: #{bottleneck_block_forward.6} parent=1 // loop_body
      %s17 = ssub.s32 %s12, 1
      %s18 = ssub.s32 %s12, 2
      %s19 = sadd.s32 %s12, 1
      %s20 = ssub.s32 %s12, %s19
      %p21 = scmp.eq.s32.totalorder %s20, 0
      %s23 = sadd.s32 %s22, 1
      %s24 = scalar_select %p21, %s22, %s23
      %p27 = pneg %p21
      %p28 = scmp.eq.s32.totalorder %s12, 1
      %p29 = por %p27, %p28
      %p30 = scmp.ne.s32.totalorder %s22, %s25
      %p31 = scmp.eq.s32.totalorder %s12, 0
      %p32 = por %p30, %p31
      %p33 = scmp.ne.s32.totalorder %s22, %s25
      %p34 = scmp.eq.s32.totalorder %s17, 1
      %p35 = por %p33, %p34
      %p36 = scmp.ne.s32.totalorder %s25, %s26
      %p37 = scmp.eq.s32.totalorder %s17, 0
      %p38 = por %p36, %p37
      %p39 = scmp.ne.s32.totalorder %s25, %s26
      %p40 = scmp.eq.s32.totalorder %s18, 1
      %p41 = por %p39, %p40
      %p43 = scmp.ne.s32.totalorder %s26, %s42
      %p44 = scmp.eq.s32.totalorder %s18, 0
      %p45 = por %p43, %p44
      %s47 = sadd.s32 %s46, 1
      %p50 = scmp.eq.s32.totalorder %s12, 1
      %p51 = scmp.ne.s32.totalorder %s46, %s48
      %p52 = scmp.eq.s32.totalorder %s12, 0
      %p53 = por %p51, %p52
      %p54 = scmp.ne.s32.totalorder %s46, %s48
      %p55 = scmp.eq.s32.totalorder %s17, 1
      %p56 = por %p54, %p55
      %p57 = scmp.ne.s32.totalorder %s48, %s49
      %p58 = scmp.eq.s32.totalorder %s17, 0
      %p59 = por %p57, %p58
      %p60 = scmp.ne.s32.totalorder %s48, %s49
      %p61 = scmp.eq.s32.totalorder %s18, 1
      %p62 = por %p60, %p61
      %p64 = scmp.ne.s32.totalorder %s49, %s63
      %p65 = scmp.eq.s32.totalorder %s18, 0
      %p66 = por %p64, %p65
      %s67 = ssub.s32 %s12, %s19
      %p68 = scmp.eq.s32.totalorder %s67, 0
      %s70 = sadd.s32 %s69, 1
      %s71 = scalar_select %p68, %s69, %s70
      %p74 = pneg %p68
      %p75 = scmp.eq.s32.totalorder %s12, 1
      %p76 = por %p74, %p75
      %p77 = scmp.ne.s32.totalorder %s69, %s72
      %p78 = scmp.eq.s32.totalorder %s12, 0
      %p79 = por %p77, %p78
      %p80 = scmp.ne.s32.totalorder %s69, %s72
      %p81 = scmp.eq.s32.totalorder %s17, 1
      %p82 = por %p80, %p81
      %p83 = scmp.ne.s32.totalorder %s72, %s73
      %p84 = scmp.eq.s32.totalorder %s17, 0
      %p85 = por %p83, %p84
      %p86 = scmp.ne.s32.totalorder %s72, %s73
      %p87 = scmp.eq.s32.totalorder %s18, 1
      %p88 = por %p86, %p87
      %p90 = scmp.ne.s32.totalorder %s73, %s89
      %p91 = scmp.eq.s32.totalorder %s18, 0
      %p92 = por %p90, %p91
      %s93 = ssub.s32 %s12, %s19
      %p94 = scmp.eq.s32.totalorder %s93, 0
      %s96 = sadd.s32 %s95, 1
      %s97 = scalar_select %p94, %s95, %s96
      %p100 = pneg %p94
      %p101 = scmp.eq.s32.totalorder %s12, 1
      %p102 = por %p100, %p101
      %p103 = scmp.ne.s32.totalorder %s95, %s98
      %p104 = scmp.eq.s32.totalorder %s12, 0
      %p105 = por %p103, %p104
      %p106 = scmp.ne.s32.totalorder %s95, %s98
      %p107 = scmp.eq.s32.totalorder %s17, 1
      %p108 = por %p106, %p107
      %p109 = scmp.ne.s32.totalorder %s98, %s99
      %p110 = scmp.eq.s32.totalorder %s17, 0
      %p111 = por %p109, %p110
      %p112 = scmp.ne.s32.totalorder %s98, %s99
      %p113 = scmp.eq.s32.totalorder %s18, 1
      %p114 = por %p112, %p113
      %p116 = scmp.ne.s32.totalorder %s99, %s115
      %p117 = scmp.eq.s32.totalorder %s18, 0
      %p118 = por %p116, %p117
      %s119 = ssub.s32 %s12, %s19
      %p120 = scmp.eq.s32.totalorder %s119, 0
      %s122 = sadd.s32 %s121, 1
      %s123 = scalar_select %p120, %s121, %s122
      %p126 = pneg %p120
      %p127 = scmp.eq.s32.totalorder %s12, 1
      %p128 = por %p126, %p127
      %p129 = scmp.ne.s32.totalorder %s121, %s124
      %p130 = scmp.eq.s32.totalorder %s12, 0
      %p131 = por %p129, %p130
      %p132 = scmp.ne.s32.totalorder %s121, %s124
      %p133 = scmp.eq.s32.totalorder %s17, 1
      %p134 = por %p132, %p133
      %p135 = scmp.ne.s32.totalorder %s124, %s125
      %p136 = scmp.eq.s32.totalorder %s17, 0
      %p137 = por %p135, %p136
      %p138 = scmp.ne.s32.totalorder %s124, %s125
      %p139 = scmp.eq.s32.totalorder %s18, 1
      %p140 = por %p138, %p139
      %p142 = scmp.ne.s32.totalorder %s125, %s141
      %p143 = scmp.eq.s32.totalorder %s18, 0
      %p144 = por %p142, %p143
      %p145 = scmp.le.s32.totalorder 1, %s12
      %p146 = scmp.lt.s32.totalorder %s12, 3
      %p147 = pnand %p145, %p146
      %p148 = pneg %p147
      // Predicated region
      $region9: #{bottleneck_block_forward.6} parent=5 // pred_check
        _
      $region10: #{bottleneck_block_forward.6} parent=5 // pred_check_branch
        %150 = sbr.rel (%p147) target = $region12
      $region11: #{bottleneck_block_forward.6} parent=5 // pred_region
        %s151 = ssub.s32 %s12, 1
        // Predicated region
        $region13: #{bottleneck_block_forward.6} parent=11 // pred_check
          %p152 = pneg %p59
        $region14: #{bottleneck_block_forward.6} parent=11 // pred_check_branch
          %154 = sbr.rel (%p152) target = $region16
        $region15: #{bottleneck_block_forward.6} parent=11 // pred_region
          %s156 = ssub.s32 1024, 1024
          %157 = vsyncadd [#allocation3], %s156
          %s158 = sshll.u32 [#allocation2], 4
          %s159 = int_to_ptr.vmem [resolvable:$true] %s158
          %164 = dma.hbm_to_vmem [thread:$0]  %s1, 1024, %s159, [#allocation3], 64, 64, 4
        $region16: #{bottleneck_block_forward.6} parent=11 // pred_fallthru
          _
      $region12: #{bottleneck_block_forward.6} parent=5 // pred_fallthru
        _
      %p165 = scmp.lt.s32.totalorder %s12, 2
      // Predicated region
      $region17: #{bottleneck_block_forward.6} parent=5 // pred_check
        %p166 = pneg %p165
      $region18: #{bottleneck_block_forward.6} parent=5 // pred_check_branch
        %168 = sbr.rel (%p166) target = $region20
      $region19: #{bottleneck_block_forward.6} parent=5 // pred_region
        // Predicated region
        $region21: #{bottleneck_block_forward.6} parent=19 // pred_check
          %p169 = pneg %p32
        $region22: #{bottleneck_block_forward.6} parent=19 // pred_check_branch
          %171 = sbr.rel (%p169) target = $region24
        $region23: #{bottleneck_block_forward.6} parent=19 // pred_region
          %s172 = smul.u32 64, %s12
          %p173 = scmp.lt.s32.totalorder %s172, 127
          %s174 = scalar_select %p173, %s172, 127
          %s175 = smul.addr %s174, 4
          %s176 = scalar_lea.vmem %s0, %s175
          %s177 = smul.u32 64, %s12
        $region24: #{bottleneck_block_forward.6} parent=19 // pred_fallthru
          _
      $region20: #{bottleneck_block_forward.6} parent=5 // pred_fallthru
        _
      %p178 = scmp.le.s32.totalorder 1, %s12
      %p179 = scmp.lt.s32.totalorder %s12, 3
      %p180 = pnand %p178, %p179
      %p181 = pneg %p180
      // Predicated region
      $region25: #{bottleneck_block_forward.6} parent=5 // pred_check
        _
      $region26: #{bottleneck_block_forward.6} parent=5 // pred_check_branch
        %183 = sbr.rel (%p180) target = $region28
      $region27: #{bottleneck_block_forward.6} parent=5 // pred_region
        %s184 = ssub.s32 %s12, 1
        // Predicated region
        $region29: #{bottleneck_block_forward.6} parent=27 // pred_check
          %p185 = pneg %p59
        $region30: #{bottleneck_block_forward.6} parent=27 // pred_check_branch
          %187 = sbr.rel (%p185) target = $region32
        $region31: #{bottleneck_block_forward.6} parent=27 // pred_region
          %188 = dma.done [#allocation3], 1024
        $region32: #{bottleneck_block_forward.6} parent=27 // pred_fallthru
          _
        %s189 = smul.u32 64, %s17
        %p190 = scmp.lt.s32.totalorder %s189, 127
        %s191 = scalar_select %p190, %s189, 127
        %s192 = smul.addr %s191, 4
        %s193 = scalar_lea.vmem %s0, %s192
        %p194 = pneg %p38
        %p195 = pneg %p35
        %p196 = pneg %p59
        %p197 = pneg %p56
        %p198 = pneg %p85
        %p199 = pneg %p82
        %s200 = smul.u32 64, %s17
        %p201 = scmp.lt.s32.totalorder %s200, 127
        %s202 = scalar_select %p201, %s200, 127
        %s203 = smul.addr %s202, 8
        %s204 = scalar_lea.vmem %s2, %s203
        %p205 = pneg %p111
        %p206 = pneg %p108
        %p207 = scmp.lt.s32.totalorder %s17, 1
        %s208 = scalar_select %p207, %s17, 1
        %s209 = smul.addr %s208, 8
        %s210 = scalar_lea.vmem %s3, %s209
        %p211 = pneg %p137
        %p212 = pneg %p134
        %p213 = scmp.lt.s32.totalorder %s17, 1
        %s214 = scalar_select %p213, %s17, 1
        %s215 = smul.addr %s214, 8
        %s216 = scalar_lea.vmem %s4, %s215
        %s217 = smul.u32 64, %s17
        %p218 = scmp.lt.s32.totalorder %s217, 127
        %s219 = scalar_select %p218, %s217, 127
        %s220 = smul.addr %s219, 4
        %s221 = scalar_lea.vmem %s0, %s220
        %s222 = smul.u32 64, %s17
        %s223 = smul.u32 64, %s17
        %p224 = scmp.lt.s32.totalorder %s223, 127
        %s225 = scalar_select %p224, %s223, 127
        %s226 = smul.addr %s225, 8
        %s227 = scalar_lea.vmem %s2, %s226
        %s228 = smul.u32 64, %s17
        %p229 = scmp.lt.s32.totalorder %s17, 1
        %s230 = scalar_select %p229, %s17, 1
        %s231 = smul.addr %s230, 8
        %s232 = scalar_lea.vmem %s3, %s231
        %p233 = scmp.lt.s32.totalorder %s17, 1
        %s234 = scalar_select %p233, %s17, 1
        %s235 = smul.addr %s234, 8
        %s236 = scalar_lea.vmem %s4, %s235
        %v238 = vld [vmem:[%s221] sm:$0xf]
        %v239 = vld [vmem:[%s221 + $0x4] sm:$0xf]
        %v240 = vld [vmem:[%s221 + $0x8] sm:$0xf]
        %v241 = vld [vmem:[%s221 + $0xc] sm:$0xf]
        %v242 = vld [vmem:[%s221 + $0x10] sm:$0xf]
        %v243 = vld [vmem:[%s221 + $0x14] sm:$0xf]
        %v244 = vld [vmem:[%s221 + $0x18] sm:$0xf]
        %v245 = vld [vmem:[%s221 + $0x1c] sm:$0xf]
        %v246 = vld [vmem:[%s221 + $0x20] sm:$0xf]
        %v247 = vld [vmem:[%s221 + $0x24] sm:$0xf]
        %v248 = vld [vmem:[%s221 + $0x28] sm:$0xf]
        %v249 = vld [vmem:[%s221 + $0x2c] sm:$0xf]
        %v250 = vld [vmem:[%s221 + $0x30] sm:$0xf]
        %v251 = vld [vmem:[%s221 + $0x34] sm:$0xf]
        %v252 = vld [vmem:[%s221 + $0x38] sm:$0xf]
        %v253 = vld [vmem:[%s221 + $0x3c] sm:$0xf]
        %v254 = vld [vmem:[%s221 + $0x40] sm:$0xf]
        %v255 = vld [vmem:[%s221 + $0x44] sm:$0xf]
        %v256 = vld [vmem:[%s221 + $0x48] sm:$0xf]
        %v257 = vld [vmem:[%s221 + $0x4c] sm:$0xf]
        %v258 = vld [vmem:[%s221 + $0x50] sm:$0xf]
        %v259 = vld [vmem:[%s221 + $0x54] sm:$0xf]
        %v260 = vld [vmem:[%s221 + $0x58] sm:$0xf]
        %v261 = vld [vmem:[%s221 + $0x5c] sm:$0xf]
        %v262 = vld [vmem:[%s221 + $0x60] sm:$0xf]
        %v263 = vld [vmem:[%s221 + $0x64] sm:$0xf]
        %v264 = vld [vmem:[%s221 + $0x68] sm:$0xf]
        %v265 = vld [vmem:[%s221 + $0x6c] sm:$0xf]
        %v266 = vld [vmem:[%s221 + $0x70] sm:$0xf]
        %v267 = vld [vmem:[%s221 + $0x74] sm:$0xf]
        %v268 = vld [vmem:[%s221 + $0x78] sm:$0xf]
        %v269 = vld [vmem:[%s221 + $0x7c] sm:$0xf]
        %v270 = vld [vmem:[%s221 + $0x80] sm:$0xf]
        %v271 = vld [vmem:[%s221 + $0x84] sm:$0xf]
        %v272 = vld [vmem:[%s221 + $0x88] sm:$0xf]
        %v273 = vld [vmem:[%s221 + $0x8c] sm:$0xf]
        %v274 = vld [vmem:[%s221 + $0x90] sm:$0xf]
        %v275 = vld [vmem:[%s221 + $0x94] sm:$0xf]
        %v276 = vld [vmem:[%s221 + $0x98] sm:$0xf]
        %v277 = vld [vmem:[%s221 + $0x9c] sm:$0xf]
        %v278 = vld [vmem:[%s221 + $0xa0] sm:$0xf]
        %v279 = vld [vmem:[%s221 + $0xa4] sm:$0xf]
        %v280 = vld [vmem:[%s221 + $0xa8] sm:$0xf]
        %v281 = vld [vmem:[%s221 + $0xac] sm:$0xf]
        %v282 = vld [vmem:[%s221 + $0xb0] sm:$0xf]
        %v283 = vld [vmem:[%s221 + $0xb4] sm:$0xf]
        %v284 = vld [vmem:[%s221 + $0xb8] sm:$0xf]
        %v285 = vld [vmem:[%s221 + $0xbc] sm:$0xf]
        %v286 = vld [vmem:[%s221 + $0xc0] sm:$0xf]
        %v287 = vld [vmem:[%s221 + $0xc4] sm:$0xf]
        %v288 = vld [vmem:[%s221 + $0xc8] sm:$0xf]
        %v289 = vld [vmem:[%s221 + $0xcc] sm:$0xf]
        %v290 = vld [vmem:[%s221 + $0xd0] sm:$0xf]
        %v291 = vld [vmem:[%s221 + $0xd4] sm:$0xf]
        %v292 = vld [vmem:[%s221 + $0xd8] sm:$0xf]
        %v293 = vld [vmem:[%s221 + $0xdc] sm:$0xf]
        %v294 = vld [vmem:[%s221 + $0xe0] sm:$0xf]
        %v295 = vld [vmem:[%s221 + $0xe4] sm:$0xf]
        %v296 = vld [vmem:[%s221 + $0xe8] sm:$0xf]
        %v297 = vld [vmem:[%s221 + $0xec] sm:$0xf]
        %v298 = vld [vmem:[%s221 + $0xf0] sm:$0xf]
        %v299 = vld [vmem:[%s221 + $0xf4] sm:$0xf]
        %v300 = vld [vmem:[%s221 + $0xf8] sm:$0xf]
        %v301 = vld [vmem:[%s221 + $0xfc] sm:$0xf]
        %v302 = vld [vmem:[#allocation2] sm:$0xf]
        %v303 = vld [vmem:[#allocation2 + $0x4] sm:$0xf]
        %v304 = vld [vmem:[#allocation2 + $0x8] sm:$0xf]
        %v305 = vld [vmem:[#allocation2 + $0xc] sm:$0xf]
        %v306 = vld [vmem:[#allocation2 + $0x10] sm:$0xf]
        %v307 = vld [vmem:[#allocation2 + $0x14] sm:$0xf]
        %v308 = vld [vmem:[#allocation2 + $0x18] sm:$0xf]
        %v309 = vld [vmem:[#allocation2 + $0x1c] sm:$0xf]
        %v310 = vld [vmem:[#allocation2 + $0x20] sm:$0xf]
        %v311 = vld [vmem:[#allocation2 + $0x24] sm:$0xf]
        %v312 = vld [vmem:[#allocation2 + $0x28] sm:$0xf]
        %v313 = vld [vmem:[#allocation2 + $0x2c] sm:$0xf]
        %v314 = vld [vmem:[#allocation2 + $0x30] sm:$0xf]
        %v315 = vld [vmem:[#allocation2 + $0x34] sm:$0xf]
        %v316 = vld [vmem:[#allocation2 + $0x38] sm:$0xf]
        %v317 = vld [vmem:[#allocation2 + $0x3c] sm:$0xf]
        %v382 = vunpack.c.l.b16 %v238
        %v383 = vunpack.c.l.b16 %v239
        %v384 = vunpack.c.l.b16 %v240
        %v385 = vunpack.c.l.b16 %v241
        %v386 = vunpack.c.l.b16 %v242
        %v387 = vunpack.c.l.b16 %v243
        %v388 = vunpack.c.l.b16 %v244
        %v389 = vunpack.c.l.b16 %v245
        %v390 = vunpack.c.l.b16 %v246
        %v391 = vunpack.c.l.b16 %v247
        %v392 = vunpack.c.l.b16 %v248
        %v393 = vunpack.c.l.b16 %v249
        %v394 = vunpack.c.l.b16 %v250
        %v395 = vunpack.c.l.b16 %v251
        %v396 = vunpack.c.l.b16 %v252
        %v397 = vunpack.c.l.b16 %v253
        %v398 = vunpack.c.l.b16 %v254
        %v399 = vunpack.c.l.b16 %v255
        %v400 = vunpack.c.l.b16 %v256
        %v401 = vunpack.c.l.b16 %v257
        %v402 = vunpack.c.l.b16 %v258
        %v403 = vunpack.c.l.b16 %v259
        %v404 = vunpack.c.l.b16 %v260
        %v405 = vunpack.c.l.b16 %v261
        %v406 = vunpack.c.l.b16 %v262
        %v407 = vunpack.c.l.b16 %v263
        %v408 = vunpack.c.l.b16 %v264
        %v409 = vunpack.c.l.b16 %v265
        %v410 = vunpack.c.l.b16 %v266
        %v411 = vunpack.c.l.b16 %v267
        %v412 = vunpack.c.l.b16 %v268
        %v413 = vunpack.c.l.b16 %v269
        %v414 = vunpack.c.l.b16 %v270
        %v415 = vunpack.c.l.b16 %v271
        %v416 = vunpack.c.l.b16 %v272
        %v417 = vunpack.c.l.b16 %v273
        %v418 = vunpack.c.l.b16 %v274
        %v419 = vunpack.c.l.b16 %v275
        %v420 = vunpack.c.l.b16 %v276
        %v421 = vunpack.c.l.b16 %v277
        %v422 = vunpack.c.l.b16 %v278
        %v423 = vunpack.c.l.b16 %v279
        %v424 = vunpack.c.l.b16 %v280
        %v425 = vunpack.c.l.b16 %v281
        %v426 = vunpack.c.l.b16 %v282
        %v427 = vunpack.c.l.b16 %v283
        %v428 = vunpack.c.l.b16 %v284
        %v429 = vunpack.c.l.b16 %v285
        %v430 = vunpack.c.l.b16 %v286
        %v431 = vunpack.c.l.b16 %v287
        %v432 = vunpack.c.l.b16 %v288
        %v433 = vunpack.c.l.b16 %v289
        %v434 = vunpack.c.l.b16 %v290
        %v435 = vunpack.c.l.b16 %v291
        %v436 = vunpack.c.l.b16 %v292
        %v437 = vunpack.c.l.b16 %v293
        %v438 = vunpack.c.l.b16 %v294
        %v439 = vunpack.c.l.b16 %v295
        %v440 = vunpack.c.l.b16 %v296
        %v441 = vunpack.c.l.b16 %v297
        %v442 = vunpack.c.l.b16 %v298
        %v443 = vunpack.c.l.b16 %v299
        %v444 = vunpack.c.l.b16 %v300
        %v445 = vunpack.c.l.b16 %v301
        %v446 = vpack.c.b16 %v383, %v382
        %v447 = vpack.c.b16 %v385, %v384
        %v448 = vpack.c.b16 %v387, %v386
        %v449 = vpack.c.b16 %v389, %v388
        %v450 = vpack.c.b16 %v391, %v390
        %v451 = vpack.c.b16 %v393, %v392
        %v452 = vpack.c.b16 %v395, %v394
        %v453 = vpack.c.b16 %v397, %v396
        %v454 = vpack.c.b16 %v399, %v398
        %v455 = vpack.c.b16 %v401, %v400
        %v456 = vpack.c.b16 %v403, %v402
        %v457 = vpack.c.b16 %v405, %v404
        %v458 = vpack.c.b16 %v407, %v406
        %v459 = vpack.c.b16 %v409, %v408
        %v460 = vpack.c.b16 %v411, %v410
        %v461 = vpack.c.b16 %v413, %v412
        %v462 = vpack.c.b16 %v415, %v414
        %v463 = vpack.c.b16 %v417, %v416
        %v464 = vpack.c.b16 %v419, %v418
        %v465 = vpack.c.b16 %v421, %v420
        %v466 = vpack.c.b16 %v423, %v422
        %v467 = vpack.c.b16 %v425, %v424
        %v468 = vpack.c.b16 %v427, %v426
        %v469 = vpack.c.b16 %v429, %v428
        %v470 = vpack.c.b16 %v431, %v430
        %v471 = vpack.c.b16 %v433, %v432
        %v472 = vpack.c.b16 %v435, %v434
        %v473 = vpack.c.b16 %v437, %v436
        %v474 = vpack.c.b16 %v439, %v438
        %v475 = vpack.c.b16 %v441, %v440
        %v476 = vpack.c.b16 %v443, %v442
        %v477 = vpack.c.b16 %v445, %v444
        %v526 = vunpack.c.l.b16 %v302
        %v527 = vunpack.c.l.b16 %v303
        %v528 = vunpack.c.l.b16 %v304
        %v529 = vunpack.c.l.b16 %v305
        %v530 = vunpack.c.l.b16 %v306
        %v531 = vunpack.c.l.b16 %v307
        %v532 = vunpack.c.l.b16 %v308
        %v533 = vunpack.c.l.b16 %v309
        %v534 = vunpack.c.l.b16 %v310
        %v535 = vunpack.c.l.b16 %v311
        %v536 = vunpack.c.l.b16 %v312
        %v537 = vunpack.c.l.b16 %v313
        %v538 = vunpack.c.l.b16 %v314
        %v539 = vunpack.c.l.b16 %v315
        %v540 = vunpack.c.l.b16 %v316
        %v541 = vunpack.c.l.b16 %v317
        %v542 = vpack.c.b16 %v527, %v526
        %v543 = vpack.c.b16 %v529, %v528
        %v544 = vpack.c.b16 %v531, %v530
        %v545 = vpack.c.b16 %v533, %v532
        %v546 = vpack.c.b16 %v535, %v534
        %v547 = vpack.c.b16 %v537, %v536
        %v548 = vpack.c.b16 %v539, %v538
        %v549 = vpack.c.b16 %v541, %v540
        %558 = vmatprep.subr.bf16.mxu0 0
        %559 = vmatpush1.bf16.msra.mxu0 %v549
        %560 = vmatprep.subr.bf16.mxu0 0
        %561 = vmatpush1.bf16.msra.mxu0 %v548
        %562 = vmatprep.subr.bf16.mxu0 0
        %563 = vmatpush1.bf16.msra.mxu0 %v547
        %564 = vmatprep.subr.bf16.mxu0 0
        %565 = vmatpush1.bf16.msra.mxu0 %v546
        %566 = vmatprep.subr.bf16.mxu0 0
        %567 = vmatpush1.bf16.msra.mxu0 %v545
        %568 = vmatprep.subr.bf16.mxu0 0
        %569 = vmatpush1.bf16.msra.mxu0 %v544
        %570 = vmatprep.subr.bf16.mxu0 0
        %571 = vmatpush1.bf16.msra.mxu0 %v543
        %572 = vmatprep.subr.bf16.mxu0 0
        %573 = vmatpush1.bf16.msra.mxu0 %v542
        %574 = vmatprep.subr.bf16.mxu0 0
        %575 = vmatpush2.bf16.msra.mxu0 0
        %576 = vmatprep.subr.bf16.mxu0 0
        %577 = vmatpush2.bf16.msra.mxu0 0
        %578 = vmatprep.subr.bf16.mxu0 0
        %579 = vmatpush2.bf16.msra.mxu0 0
        %580 = vmatprep.subr.bf16.mxu0 0
        %581 = vmatpush2.bf16.msra.mxu0 0
        %582 = vmatprep.subr.bf16.mxu0 0
        %583 = vmatpush2.bf16.msra.mxu0 0
        %584 = vmatprep.subr.bf16.mxu0 0
        %585 = vmatpush2.bf16.msra.mxu0 0
        %586 = vmatprep.subr.bf16.mxu0 0
        %587 = vmatpush2.bf16.msra.mxu0 0
        %588 = vmatprep.subr.bf16.mxu0 0
        %589 = vmatpush2.bf16.msra.mxu0 0
        %590 = vmatprep.mubr.bf16.mxu0 0
        %591 = vmatmul.mubr.bf16.gmra.mxu0 %v446
        %v592 = vpop.f32.mrf.mxu0
        %v593 = vadd.f32 0.0, %v592
        %v594 = vpop.f32.mrf.mxu0
        %v595 = vpop.f32.mrf.mxu0
        %v596 = vadd.f32 0.0, %v595
        %v597 = vpop.f32.mrf.mxu0
        %598 = vmatprep.mubr.bf16.mxu0 0
        %599 = vmatmul.mubr.bf16.gmra.mxu0 %v447
        %v600 = vpop.f32.mrf.mxu0
        %v601 = vadd.f32 0.0, %v600
        %v602 = vpop.f32.mrf.mxu0
        %v603 = vpop.f32.mrf.mxu0
        %v604 = vadd.f32 0.0, %v603
        %v605 = vpop.f32.mrf.mxu0
        %606 = vmatprep.mubr.bf16.mxu0 0
        %607 = vmatmul.mubr.bf16.gmra.mxu0 %v448
        %v608 = vpop.f32.mrf.mxu0
        %v609 = vadd.f32 0.0, %v608
        %v610 = vpop.f32.mrf.mxu0
        %v611 = vpop.f32.mrf.mxu0
        %v612 = vadd.f32 0.0, %v611
        %v613 = vpop.f32.mrf.mxu0
        %614 = vmatprep.mubr.bf16.mxu0 0
        %615 = vmatmul.mubr.bf16.gmra.mxu0 %v449
        %v616 = vpop.f32.mrf.mxu0
        %v617 = vadd.f32 0.0, %v616
        %v618 = vpop.f32.mrf.mxu0
        %v619 = vpop.f32.mrf.mxu0
        %v620 = vadd.f32 0.0, %v619
        %v621 = vpop.f32.mrf.mxu0
        %622 = vmatprep.mubr.bf16.mxu0 0
        %623 = vmatmul.mubr.bf16.gmra.mxu0 %v450
        %v624 = vpop.f32.mrf.mxu0
        %v625 = vadd.f32 0.0, %v624
        %v626 = vpop.f32.mrf.mxu0
        %v627 = vpop.f32.mrf.mxu0
        %v628 = vadd.f32 0.0, %v627
        %v629 = vpop.f32.mrf.mxu0
        %630 = vmatprep.mubr.bf16.mxu0 0
        %631 = vmatmul.mubr.bf16.gmra.mxu0 %v451
        %v632 = vpop.f32.mrf.mxu0
        %v633 = vadd.f32 0.0, %v632
        %v634 = vpop.f32.mrf.mxu0
        %v635 = vpop.f32.mrf.mxu0
        %v636 = vadd.f32 0.0, %v635
        %v637 = vpop.f32.mrf.mxu0
        %638 = vmatprep.mubr.bf16.mxu0 0
        %639 = vmatmul.mubr.bf16.gmra.mxu0 %v452
        %v640 = vpop.f32.mrf.mxu0
        %v641 = vadd.f32 0.0, %v640
        %v642 = vpop.f32.mrf.mxu0
        %v643 = vpop.f32.mrf.mxu0
        %v644 = vadd.f32 0.0, %v643
        %v645 = vpop.f32.mrf.mxu0
        %646 = vmatprep.mubr.bf16.mxu0 0
        %647 = vmatmul.mubr.bf16.gmra.mxu0 %v453
        %v648 = vpop.f32.mrf.mxu0
        %v649 = vadd.f32 0.0, %v648
        %v650 = vpop.f32.mrf.mxu0
        %v651 = vpop.f32.mrf.mxu0
        %v652 = vadd.f32 0.0, %v651
        %v653 = vpop.f32.mrf.mxu0
        %654 = vmatprep.mubr.bf16.mxu0 0
        %655 = vmatmul.mubr.bf16.gmra.mxu0 %v454
        %v656 = vpop.f32.mrf.mxu0
        %v657 = vadd.f32 0.0, %v656
        %v658 = vpop.f32.mrf.mxu0
        %v659 = vpop.f32.mrf.mxu0
        %v660 = vadd.f32 0.0, %v659
        %v661 = vpop.f32.mrf.mxu0
        %662 = vmatprep.mubr.bf16.mxu0 0
        %663 = vmatmul.mubr.bf16.gmra.mxu0 %v455
        %v664 = vpop.f32.mrf.mxu0
        %v665 = vadd.f32 0.0, %v664
        %v666 = vpop.f32.mrf.mxu0
        %v667 = vpop.f32.mrf.mxu0
        %v668 = vadd.f32 0.0, %v667
        %v669 = vpop.f32.mrf.mxu0
        %670 = vmatprep.mubr.bf16.mxu0 0
        %671 = vmatmul.mubr.bf16.gmra.mxu0 %v456
        %v672 = vpop.f32.mrf.mxu0
        %v673 = vadd.f32 0.0, %v672
        %v674 = vpop.f32.mrf.mxu0
        %v675 = vpop.f32.mrf.mxu0
        %v676 = vadd.f32 0.0, %v675
        %v677 = vpop.f32.mrf.mxu0
        %678 = vmatprep.mubr.bf16.mxu0 0
        %679 = vmatmul.mubr.bf16.gmra.mxu0 %v457
        %v680 = vpop.f32.mrf.mxu0
        %v681 = vadd.f32 0.0, %v680
        %v682 = vpop.f32.mrf.mxu0
        %v683 = vpop.f32.mrf.mxu0
        %v684 = vadd.f32 0.0, %v683
        %v685 = vpop.f32.mrf.mxu0
        %686 = vmatprep.mubr.bf16.mxu0 0
        %687 = vmatmul.mubr.bf16.gmra.mxu0 %v458
        %v688 = vpop.f32.mrf.mxu0
        %v689 = vadd.f32 0.0, %v688
        %v690 = vpop.f32.mrf.mxu0
        %v691 = vpop.f32.mrf.mxu0
        %v692 = vadd.f32 0.0, %v691
        %v693 = vpop.f32.mrf.mxu0
        %694 = vmatprep.mubr.bf16.mxu0 0
        %695 = vmatmul.mubr.bf16.gmra.mxu0 %v459
        %v696 = vpop.f32.mrf.mxu0
        %v697 = vadd.f32 0.0, %v696
        %v698 = vpop.f32.mrf.mxu0
        %v699 = vpop.f32.mrf.mxu0
        %v700 = vadd.f32 0.0, %v699
        %v701 = vpop.f32.mrf.mxu0
        %702 = vmatprep.mubr.bf16.mxu0 0
        %703 = vmatmul.mubr.bf16.gmra.mxu0 %v460
        %v704 = vpop.f32.mrf.mxu0
        %v705 = vadd.f32 0.0, %v704
        %v706 = vpop.f32.mrf.mxu0
        %v707 = vpop.f32.mrf.mxu0
        %v708 = vadd.f32 0.0, %v707
        %v709 = vpop.f32.mrf.mxu0
        %710 = vmatprep.mubr.bf16.mxu0 0
        %711 = vmatmul.mubr.bf16.gmra.mxu0 %v461
        %v712 = vpop.f32.mrf.mxu0
        %v713 = vadd.f32 0.0, %v712
        %v714 = vpop.f32.mrf.mxu0
        %v715 = vpop.f32.mrf.mxu0
        %v716 = vadd.f32 0.0, %v715
        %v717 = vpop.f32.mrf.mxu0
        %718 = vmatprep.mubr.bf16.mxu0 0
        %719 = vmatmul.mubr.bf16.gmra.mxu0 %v462
        %v720 = vpop.f32.mrf.mxu0
        %v721 = vadd.f32 0.0, %v720
        %v722 = vpop.f32.mrf.mxu0
        %v723 = vpop.f32.mrf.mxu0
        %v724 = vadd.f32 0.0, %v723
        %v725 = vpop.f32.mrf.mxu0
        %726 = vmatprep.mubr.bf16.mxu0 0
        %727 = vmatmul.mubr.bf16.gmra.mxu0 %v463
        %v728 = vpop.f32.mrf.mxu0
        %v729 = vadd.f32 0.0, %v728
        %v730 = vpop.f32.mrf.mxu0
        %v731 = vpop.f32.mrf.mxu0
        %v732 = vadd.f32 0.0, %v731
        %v733 = vpop.f32.mrf.mxu0
        %734 = vmatprep.mubr.bf16.mxu0 0
        %735 = vmatmul.mubr.bf16.gmra.mxu0 %v464
        %v736 = vpop.f32.mrf.mxu0
        %v737 = vadd.f32 0.0, %v736
        %v738 = vpop.f32.mrf.mxu0
        %v739 = vpop.f32.mrf.mxu0
        %v740 = vadd.f32 0.0, %v739
        %v741 = vpop.f32.mrf.mxu0
        %742 = vmatprep.mubr.bf16.mxu0 0
        %743 = vmatmul.mubr.bf16.gmra.mxu0 %v465
        %v744 = vpop.f32.mrf.mxu0
        %v745 = vadd.f32 0.0, %v744
        %v746 = vpop.f32.mrf.mxu0
        %v747 = vpop.f32.mrf.mxu0
        %v748 = vadd.f32 0.0, %v747
        %v749 = vpop.f32.mrf.mxu0
        %750 = vmatprep.mubr.bf16.mxu0 0
        %751 = vmatmul.mubr.bf16.gmra.mxu0 %v466
        %v752 = vpop.f32.mrf.mxu0
        %v753 = vadd.f32 0.0, %v752
        %v754 = vpop.f32.mrf.mxu0
        %v755 = vpop.f32.mrf.mxu0
        %v756 = vadd.f32 0.0, %v755
        %v757 = vpop.f32.mrf.mxu0
        %758 = vmatprep.mubr.bf16.mxu0 0
        %759 = vmatmul.mubr.bf16.gmra.mxu0 %v467
        %v760 = vpop.f32.mrf.mxu0
        %v761 = vadd.f32 0.0, %v760
        %v762 = vpop.f32.mrf.mxu0
        %v763 = vpop.f32.mrf.mxu0
        %v764 = vadd.f32 0.0, %v763
        %v765 = vpop.f32.mrf.mxu0
        %766 = vmatprep.mubr.bf16.mxu0 0
        %767 = vmatmul.mubr.bf16.gmra.mxu0 %v468
        %v768 = vpop.f32.mrf.mxu0
        %v769 = vadd.f32 0.0, %v768
        %v770 = vpop.f32.mrf.mxu0
        %v771 = vpop.f32.mrf.mxu0
        %v772 = vadd.f32 0.0, %v771
        %v773 = vpop.f32.mrf.mxu0
        %774 = vmatprep.mubr.bf16.mxu0 0
        %775 = vmatmul.mubr.bf16.gmra.mxu0 %v469
        %v776 = vpop.f32.mrf.mxu0
        %v777 = vadd.f32 0.0, %v776
        %v778 = vpop.f32.mrf.mxu0
        %v779 = vpop.f32.mrf.mxu0
        %v780 = vadd.f32 0.0, %v779
        %v781 = vpop.f32.mrf.mxu0
        %782 = vmatprep.mubr.bf16.mxu0 0
        %783 = vmatmul.mubr.bf16.gmra.mxu0 %v470
        %v784 = vpop.f32.mrf.mxu0
        %v785 = vadd.f32 0.0, %v784
        %v786 = vpop.f32.mrf.mxu0
        %v787 = vpop.f32.mrf.mxu0
        %v788 = vadd.f32 0.0, %v787
        %v789 = vpop.f32.mrf.mxu0
        %790 = vmatprep.mubr.bf16.mxu0 0
        %791 = vmatmul.mubr.bf16.gmra.mxu0 %v471
        %v792 = vpop.f32.mrf.mxu0
        %v793 = vadd.f32 0.0, %v792
        %v794 = vpop.f32.mrf.mxu0
        %v795 = vpop.f32.mrf.mxu0
        %v796 = vadd.f32 0.0, %v795
        %v797 = vpop.f32.mrf.mxu0
        %798 = vmatprep.mubr.bf16.mxu0 0
        %799 = vmatmul.mubr.bf16.gmra.mxu0 %v472
        %v800 = vpop.f32.mrf.mxu0
        %v801 = vadd.f32 0.0, %v800
        %v802 = vpop.f32.mrf.mxu0
        %v803 = vpop.f32.mrf.mxu0
        %v804 = vadd.f32 0.0, %v803
        %v805 = vpop.f32.mrf.mxu0
        %806 = vmatprep.mubr.bf16.mxu0 0
        %807 = vmatmul.mubr.bf16.gmra.mxu0 %v473
        %v808 = vpop.f32.mrf.mxu0
        %v809 = vadd.f32 0.0, %v808
        %v810 = vpop.f32.mrf.mxu0
        %v811 = vpop.f32.mrf.mxu0
        %v812 = vadd.f32 0.0, %v811
        %v813 = vpop.f32.mrf.mxu0
        %814 = vmatprep.mubr.bf16.mxu0 0
        %815 = vmatmul.mubr.bf16.gmra.mxu0 %v474
        %v816 = vpop.f32.mrf.mxu0
        %v817 = vadd.f32 0.0, %v816
        %v818 = vpop.f32.mrf.mxu0
        %v819 = vpop.f32.mrf.mxu0
        %v820 = vadd.f32 0.0, %v819
        %v821 = vpop.f32.mrf.mxu0
        %822 = vmatprep.mubr.bf16.mxu0 0
        %823 = vmatmul.mubr.bf16.gmra.mxu0 %v475
        %v824 = vpop.f32.mrf.mxu0
        %v825 = vadd.f32 0.0, %v824
        %v826 = vpop.f32.mrf.mxu0
        %v827 = vpop.f32.mrf.mxu0
        %v828 = vadd.f32 0.0, %v827
        %v829 = vpop.f32.mrf.mxu0
        %830 = vmatprep.mubr.bf16.mxu0 0
        %831 = vmatmul.mubr.bf16.gmra.mxu0 %v476
        %v832 = vpop.f32.mrf.mxu0
        %v833 = vadd.f32 0.0, %v832
        %v834 = vpop.f32.mrf.mxu0
        %v835 = vpop.f32.mrf.mxu0
        %v836 = vadd.f32 0.0, %v835
        %v837 = vpop.f32.mrf.mxu0
        %838 = vmatprep.mubr.bf16.mxu0 0
        %839 = vmatmul.mubr.bf16.gmra.mxu0 %v477
        %v840 = vpop.f32.mrf.mxu0
        %v841 = vadd.f32 0.0, %v840
        %v842 = vpop.f32.mrf.mxu0
        %v843 = vpop.f32.mrf.mxu0
        %v844 = vadd.f32 0.0, %v843
        %v845 = vpop.f32.mrf.mxu0
        %846 = vdwg.mxu0
        %847 = vst [vmem:[%s227] sm:$0xff] %v593
        %848 = vst [vmem:[%s227 + $0x8] sm:$0xff] %v596
        %849 = vst [vmem:[%s227 + $0x10] sm:$0xff] %v601
        %850 = vst [vmem:[%s227 + $0x18] sm:$0xff] %v604
        %851 = vst [vmem:[%s227 + $0x20] sm:$0xff] %v609
        %852 = vst [vmem:[%s227 + $0x28] sm:$0xff] %v612
        %853 = vst [vmem:[%s227 + $0x30] sm:$0xff] %v617
        %854 = vst [vmem:[%s227 + $0x38] sm:$0xff] %v620
        %855 = vst [vmem:[%s227 + $0x40] sm:$0xff] %v625
        %856 = vst [vmem:[%s227 + $0x48] sm:$0xff] %v628
        %857 = vst [vmem:[%s227 + $0x50] sm:$0xff] %v633
        %858 = vst [vmem:[%s227 + $0x58] sm:$0xff] %v636
        %859 = vst [vmem:[%s227 + $0x60] sm:$0xff] %v641
        %860 = vst [vmem:[%s227 + $0x68] sm:$0xff] %v644
        %861 = vst [vmem:[%s227 + $0x70] sm:$0xff] %v649
        %862 = vst [vmem:[%s227 + $0x78] sm:$0xff] %v652
        %863 = vst [vmem:[%s227 + $0x80] sm:$0xff] %v657
        %864 = vst [vmem:[%s227 + $0x88] sm:$0xff] %v660
        %865 = vst [vmem:[%s227 + $0x90] sm:$0xff] %v665
        %866 = vst [vmem:[%s227 + $0x98] sm:$0xff] %v668
        %867 = vst [vmem:[%s227 + $0xa0] sm:$0xff] %v673
        %868 = vst [vmem:[%s227 + $0xa8] sm:$0xff] %v676
        %869 = vst [vmem:[%s227 + $0xb0] sm:$0xff] %v681
        %870 = vst [vmem:[%s227 + $0xb8] sm:$0xff] %v684
        %871 = vst [vmem:[%s227 + $0xc0] sm:$0xff] %v689
        %872 = vst [vmem:[%s227 + $0xc8] sm:$0xff] %v692
        %873 = vst [vmem:[%s227 + $0xd0] sm:$0xff] %v697
        %874 = vst [vmem:[%s227 + $0xd8] sm:$0xff] %v700
        %875 = vst [vmem:[%s227 + $0xe0] sm:$0xff] %v705
        %876 = vst [vmem:[%s227 + $0xe8] sm:$0xff] %v708
        %877 = vst [vmem:[%s227 + $0xf0] sm:$0xff] %v713
        %878 = vst [vmem:[%s227 + $0xf8] sm:$0xff] %v716
        %879 = vst [vmem:[%s227 + $0x100] sm:$0xff] %v721
        %880 = vst [vmem:[%s227 + $0x108] sm:$0xff] %v724
        %881 = vst [vmem:[%s227 + $0x110] sm:$0xff] %v729
        %882 = vst [vmem:[%s227 + $0x118] sm:$0xff] %v732
        %883 = vst [vmem:[%s227 + $0x120] sm:$0xff] %v737
        %884 = vst [vmem:[%s227 + $0x128] sm:$0xff] %v740
        %885 = vst [vmem:[%s227 + $0x130] sm:$0xff] %v745
        %886 = vst [vmem:[%s227 + $0x138] sm:$0xff] %v748
        %887 = vst [vmem:[%s227 + $0x140] sm:$0xff] %v753
        %888 = vst [vmem:[%s227 + $0x148] sm:$0xff] %v756
        %889 = vst [vmem:[%s227 + $0x150] sm:$0xff] %v761
        %890 = vst [vmem:[%s227 + $0x158] sm:$0xff] %v764
        %891 = vst [vmem:[%s227 + $0x160] sm:$0xff] %v769
        %892 = vst [vmem:[%s227 + $0x168] sm:$0xff] %v772
        %893 = vst [vmem:[%s227 + $0x170] sm:$0xff] %v777
        %894 = vst [vmem:[%s227 + $0x178] sm:$0xff] %v780
        %895 = vst [vmem:[%s227 + $0x180] sm:$0xff] %v785
        %896 = vst [vmem:[%s227 + $0x188] sm:$0xff] %v788
        %897 = vst [vmem:[%s227 + $0x190] sm:$0xff] %v793
        %898 = vst [vmem:[%s227 + $0x198] sm:$0xff] %v796
        %899 = vst [vmem:[%s227 + $0x1a0] sm:$0xff] %v801
        %900 = vst [vmem:[%s227 + $0x1a8] sm:$0xff] %v804
        %901 = vst [vmem:[%s227 + $0x1b0] sm:$0xff] %v809
        %902 = vst [vmem:[%s227 + $0x1b8] sm:$0xff] %v812
        %903 = vst [vmem:[%s227 + $0x1c0] sm:$0xff] %v817
        %904 = vst [vmem:[%s227 + $0x1c8] sm:$0xff] %v820
        %905 = vst [vmem:[%s227 + $0x1d0] sm:$0xff] %v825
        %906 = vst [vmem:[%s227 + $0x1d8] sm:$0xff] %v828
        %907 = vst [vmem:[%s227 + $0x1e0] sm:$0xff] %v833
        %908 = vst [vmem:[%s227 + $0x1e8] sm:$0xff] %v836
        %909 = vst [vmem:[%s227 + $0x1f0] sm:$0xff] %v841
        %910 = vst [vmem:[%s227 + $0x1f8] sm:$0xff] %v844
        %v911 = vadd.f32 %v593, %v596
        %v912 = vadd.f32 %v911, %v601
        %v913 = vadd.f32 %v912, %v604
        %v914 = vadd.f32 %v913, %v609
        %v915 = vadd.f32 %v914, %v612
        %v916 = vadd.f32 %v915, %v617
        %v917 = vadd.f32 %v916, %v620
        %v918 = vadd.f32 %v917, %v625
        %v919 = vadd.f32 %v918, %v628
        %v920 = vadd.f32 %v919, %v633
        %v921 = vadd.f32 %v920, %v636
        %v922 = vadd.f32 %v921, %v641
        %v923 = vadd.f32 %v922, %v644
        %v924 = vadd.f32 %v923, %v649
        %v925 = vadd.f32 %v924, %v652
        %v926 = vadd.f32 %v925, %v657
        %v927 = vadd.f32 %v926, %v660
        %v928 = vadd.f32 %v927, %v665
        %v929 = vadd.f32 %v928, %v668
        %v930 = vadd.f32 %v929, %v673
        %v931 = vadd.f32 %v930, %v676
        %v932 = vadd.f32 %v931, %v681
        %v933 = vadd.f32 %v932, %v684
        %v934 = vadd.f32 %v933, %v689
        %v935 = vadd.f32 %v934, %v692
        %v936 = vadd.f32 %v935, %v697
        %v937 = vadd.f32 %v936, %v700
        %v938 = vadd.f32 %v937, %v705
        %v939 = vadd.f32 %v938, %v708
        %v940 = vadd.f32 %v939, %v713
        %v941 = vadd.f32 %v940, %v716
        %v942 = vadd.f32 %v941, %v721
        %v943 = vadd.f32 %v942, %v724
        %v944 = vadd.f32 %v943, %v729
        %v945 = vadd.f32 %v944, %v732
        %v946 = vadd.f32 %v945, %v737
        %v947 = vadd.f32 %v946, %v740
        %v948 = vadd.f32 %v947, %v745
        %v949 = vadd.f32 %v948, %v748
        %v950 = vadd.f32 %v949, %v753
        %v951 = vadd.f32 %v950, %v756
        %v952 = vadd.f32 %v951, %v761
        %v953 = vadd.f32 %v952, %v764
        %v954 = vadd.f32 %v953, %v769
        %v955 = vadd.f32 %v954, %v772
        %v956 = vadd.f32 %v955, %v777
        %v957 = vadd.f32 %v956, %v780
        %v958 = vadd.f32 %v957, %v785
        %v959 = vadd.f32 %v958, %v788
        %v960 = vadd.f32 %v959, %v793
        %v961 = vadd.f32 %v960, %v796
        %v962 = vadd.f32 %v961, %v801
        %v963 = vadd.f32 %v962, %v804
        %v964 = vadd.f32 %v963, %v809
        %v965 = vadd.f32 %v964, %v812
        %v966 = vadd.f32 %v965, %v817
        %v967 = vadd.f32 %v966, %v820
        %v968 = vadd.f32 %v967, %v825
        %v969 = vadd.f32 %v968, %v828
        %v970 = vadd.f32 %v969, %v833
        %v971 = vadd.f32 %v970, %v836
        %v972 = vadd.f32 %v971, %v841
        %v973 = vadd.f32 %v972, %v844
        %v974 = vrot.slane %v973, 4
        %v975 = vadd.f32 %v973, %v974
        %v976 = vrot.slane %v975, 2
        %v977 = vadd.f32 %v975, %v976
        %v978 = vrot.slane %v977, 1
        %v979 = vadd.f32 %v977, %v978
        %v980 = vmul.f32 %v593, %v593
        %v981 = vmul.f32 %v596, %v596
        %v982 = vmul.f32 %v601, %v601
        %v983 = vmul.f32 %v604, %v604
        %v984 = vmul.f32 %v609, %v609
        %v985 = vmul.f32 %v612, %v612
        %v986 = vmul.f32 %v617, %v617
        %v987 = vmul.f32 %v620, %v620
        %v988 = vmul.f32 %v625, %v625
        %v989 = vmul.f32 %v628, %v628
        %v990 = vmul.f32 %v633, %v633
        %v991 = vmul.f32 %v636, %v636
        %v992 = vmul.f32 %v641, %v641
        %v993 = vmul.f32 %v644, %v644
        %v994 = vmul.f32 %v649, %v649
        %v995 = vmul.f32 %v652, %v652
        %v996 = vmul.f32 %v657, %v657
        %v997 = vmul.f32 %v660, %v660
        %v998 = vmul.f32 %v665, %v665
        %v999 = vmul.f32 %v668, %v668
        %v1000 = vmul.f32 %v673, %v673
        %v1001 = vmul.f32 %v676, %v676
        %v1002 = vmul.f32 %v681, %v681
        %v1003 = vmul.f32 %v684, %v684
        %v1004 = vmul.f32 %v689, %v689
        %v1005 = vmul.f32 %v692, %v692
        %v1006 = vmul.f32 %v697, %v697
        %v1007 = vmul.f32 %v700, %v700
        %v1008 = vmul.f32 %v705, %v705
        %v1009 = vmul.f32 %v708, %v708
        %v1010 = vmul.f32 %v713, %v713
        %v1011 = vmul.f32 %v716, %v716
        %v1012 = vmul.f32 %v721, %v721
        %v1013 = vmul.f32 %v724, %v724
        %v1014 = vmul.f32 %v729, %v729
        %v1015 = vmul.f32 %v732, %v732
        %v1016 = vmul.f32 %v737, %v737
        %v1017 = vmul.f32 %v740, %v740
        %v1018 = vmul.f32 %v745, %v745
        %v1019 = vmul.f32 %v748, %v748
        %v1020 = vmul.f32 %v753, %v753
        %v1021 = vmul.f32 %v756, %v756
        %v1022 = vmul.f32 %v761, %v761
        %v1023 = vmul.f32 %v764, %v764
        %v1024 = vmul.f32 %v769, %v769
        %v1025 = vmul.f32 %v772, %v772
        %v1026 = vmul.f32 %v777, %v777
        %v1027 = vmul.f32 %v780, %v780
        %v1028 = vmul.f32 %v785, %v785
        %v1029 = vmul.f32 %v788, %v788
        %v1030 = vmul.f32 %v793, %v793
        %v1031 = vmul.f32 %v796, %v796
        %v1032 = vmul.f32 %v801, %v801
        %v1033 = vmul.f32 %v804, %v804
        %v1034 = vmul.f32 %v809, %v809
        %v1035 = vmul.f32 %v812, %v812
        %v1036 = vmul.f32 %v817, %v817
        %v1037 = vmul.f32 %v820, %v820
        %v1038 = vmul.f32 %v825, %v825
        %v1039 = vmul.f32 %v828, %v828
        %v1040 = vmul.f32 %v833, %v833
        %v1041 = vmul.f32 %v836, %v836
        %v1042 = vmul.f32 %v841, %v841
        %v1043 = vmul.f32 %v844, %v844
        %v1044 = vadd.f32 %v980, %v981
        %v1045 = vadd.f32 %v1044, %v982
        %v1046 = vadd.f32 %v1045, %v983
        %v1047 = vadd.f32 %v1046, %v984
        %v1048 = vadd.f32 %v1047, %v985
        %v1049 = vadd.f32 %v1048, %v986
        %v1050 = vadd.f32 %v1049, %v987
        %v1051 = vadd.f32 %v1050, %v988
        %v1052 = vadd.f32 %v1051, %v989
        %v1053 = vadd.f32 %v1052, %v990
        %v1054 = vadd.f32 %v1053, %v991
        %v1055 = vadd.f32 %v1054, %v992
        %v1056 = vadd.f32 %v1055, %v993
        %v1057 = vadd.f32 %v1056, %v994
        %v1058 = vadd.f32 %v1057, %v995
        %v1059 = vadd.f32 %v1058, %v996
        %v1060 = vadd.f32 %v1059, %v997
        %v1061 = vadd.f32 %v1060, %v998
        %v1062 = vadd.f32 %v1061, %v999
        %v1063 = vadd.f32 %v1062, %v1000
        %v1064 = vadd.f32 %v1063, %v1001
        %v1065 = vadd.f32 %v1064, %v1002
        %v1066 = vadd.f32 %v1065, %v1003
        %v1067 = vadd.f32 %v1066, %v1004
        %v1068 = vadd.f32 %v1067, %v1005
        %v1069 = vadd.f32 %v1068, %v1006
        %v1070 = vadd.f32 %v1069, %v1007
        %v1071 = vadd.f32 %v1070, %v1008
        %v1072 = vadd.f32 %v1071, %v1009
        %v1073 = vadd.f32 %v1072, %v1010
        %v1074 = vadd.f32 %v1073, %v1011
        %v1075 = vadd.f32 %v1074, %v1012
        %v1076 = vadd.f32 %v1075, %v1013
        %v1077 = vadd.f32 %v1076, %v1014
        %v1078 = vadd.f32 %v1077, %v1015
        %v1079 = vadd.f32 %v1078, %v1016
        %v1080 = vadd.f32 %v1079, %v1017
        %v1081 = vadd.f32 %v1080, %v1018
        %v1082 = vadd.f32 %v1081, %v1019
        %v1083 = vadd.f32 %v1082, %v1020
        %v1084 = vadd.f32 %v1083, %v1021
        %v1085 = vadd.f32 %v1084, %v1022
        %v1086 = vadd.f32 %v1085, %v1023
        %v1087 = vadd.f32 %v1086, %v1024
        %v1088 = vadd.f32 %v1087, %v1025
        %v1089 = vadd.f32 %v1088, %v1026
        %v1090 = vadd.f32 %v1089, %v1027
        %v1091 = vadd.f32 %v1090, %v1028
        %v1092 = vadd.f32 %v1091, %v1029
        %v1093 = vadd.f32 %v1092, %v1030
        %v1094 = vadd.f32 %v1093, %v1031
        %v1095 = vadd.f32 %v1094, %v1032
        %v1096 = vadd.f32 %v1095, %v1033
        %v1097 = vadd.f32 %v1096, %v1034
        %v1098 = vadd.f32 %v1097, %v1035
        %v1099 = vadd.f32 %v1098, %v1036
        %v1100 = vadd.f32 %v1099, %v1037
        %v1101 = vadd.f32 %v1100, %v1038
        %v1102 = vadd.f32 %v1101, %v1039
        %v1103 = vadd.f32 %v1102, %v1040
        %v1104 = vadd.f32 %v1103, %v1041
        %v1105 = vadd.f32 %v1104, %v1042
        %v1106 = vadd.f32 %v1105, %v1043
        %v1107 = vrot.slane %v1106, 4
        %v1108 = vadd.f32 %v1106, %v1107
        %v1109 = vrot.slane %v1108, 2
        %v1110 = vadd.f32 %v1108, %v1109
        %v1111 = vrot.slane %v1110, 1
        %v1112 = vadd.f32 %v1110, %v1111
        %1113 = vst [vmem:[%s232] sm:$0xff] %v979
        %1114 = vst [vmem:[%s236] sm:$0xff] %v1112
        %s1115 = smul.u32 64, %s17
        %p1116 = scmp.lt.s32.totalorder %s1115, 127
        %s1117 = scalar_select %p1116, %s1115, 127
        %s1118 = smul.addr %s1117, 8
        %s1119 = scalar_lea.vmem %s2, %s1118
        %p1120 = scmp.lt.s32.totalorder %s17, 1
        %s1121 = scalar_select %p1120, %s17, 1
        %s1122 = smul.addr %s1121, 8
        %s1123 = scalar_lea.vmem %s3, %s1122
        %p1124 = scmp.lt.s32.totalorder %s17, 1
        %s1125 = scalar_select %p1124, %s17, 1
        %s1126 = smul.addr %s1125, 8
        %s1127 = scalar_lea.vmem %s4, %s1126
        // Predicated region
        $region33: #{bottleneck_block_forward.6} parent=27 // pred_check
          %p1128 = pneg %p82
        $region34: #{bottleneck_block_forward.6} parent=27 // pred_check_branch
          %1130 = sbr.rel (%p1128) target = $region36
        $region35: #{bottleneck_block_forward.6} parent=27 // pred_region
          %s1131 = smul.u32 64, %s17
        $region36: #{bottleneck_block_forward.6} parent=27 // pred_fallthru
          _
        // Predicated region
        $region37: #{bottleneck_block_forward.6} parent=27 // pred_check
          %p1132 = pneg %p108
        $region38: #{bottleneck_block_forward.6} parent=27 // pred_check_branch
          %1134 = sbr.rel (%p1132) target = $region40
        $region39: #{bottleneck_block_forward.6} parent=27 // pred_region
          _
        $region40: #{bottleneck_block_forward.6} parent=27 // pred_fallthru
          _
        // Predicated region
        $region41: #{bottleneck_block_forward.6} parent=27 // pred_check
          %p1135 = pneg %p134
        $region42: #{bottleneck_block_forward.6} parent=27 // pred_check_branch
          %1137 = sbr.rel (%p1135) target = $region44
        $region43: #{bottleneck_block_forward.6} parent=27 // pred_region
          _
        $region44: #{bottleneck_block_forward.6} parent=27 // pred_fallthru
          _
      $region28: #{bottleneck_block_forward.6} parent=5 // pred_fallthru
        _
      %p1138 = scmp.le.s32.totalorder 2, %s12
      // Predicated region
      $region45: #{bottleneck_block_forward.6} parent=5 // pred_check
        %p1139 = pneg %p1138
      $region46: #{bottleneck_block_forward.6} parent=5 // pred_check_branch
        %1141 = sbr.rel (%p1139) target = $region48
      $region47: #{bottleneck_block_forward.6} parent=5 // pred_region
        %s1142 = ssub.s32 %s12, 2
        // Predicated region
        $region49: #{bottleneck_block_forward.6} parent=47 // pred_check
          %p1143 = pneg %p88
        $region50: #{bottleneck_block_forward.6} parent=47 // pred_check_branch
          %1145 = sbr.rel (%p1143) target = $region52
        $region51: #{bottleneck_block_forward.6} parent=47 // pred_region
          %s1146 = smul.u32 64, %s18
          %p1147 = scmp.lt.s32.totalorder %s1146, 127
          %s1148 = scalar_select %p1147, %s1146, 127
          %s1149 = smul.addr %s1148, 8
          %s1150 = scalar_lea.vmem %s2, %s1149
        $region52: #{bottleneck_block_forward.6} parent=47 // pred_fallthru
          _
        // Predicated region
        $region53: #{bottleneck_block_forward.6} parent=47 // pred_check
          %p1151 = pneg %p114
        $region54: #{bottleneck_block_forward.6} parent=47 // pred_check_branch
          %1153 = sbr.rel (%p1151) target = $region56
        $region55: #{bottleneck_block_forward.6} parent=47 // pred_region
          %p1154 = scmp.lt.s32.totalorder %s18, 1
          %s1155 = scalar_select %p1154, %s18, 1
          %s1156 = smul.addr %s1155, 8
          %s1157 = scalar_lea.vmem %s3, %s1156
        $region56: #{bottleneck_block_forward.6} parent=47 // pred_fallthru
          _
        // Predicated region
        $region57: #{bottleneck_block_forward.6} parent=47 // pred_check
          %p1158 = pneg %p140
        $region58: #{bottleneck_block_forward.6} parent=47 // pred_check_branch
          %1160 = sbr.rel (%p1158) target = $region60
        $region59: #{bottleneck_block_forward.6} parent=47 // pred_region
          %p1161 = scmp.lt.s32.totalorder %s18, 1
          %s1162 = scalar_select %p1161, %s18, 1
          %s1163 = smul.addr %s1162, 8
          %s1164 = scalar_lea.vmem %s4, %s1163
        $region60: #{bottleneck_block_forward.6} parent=47 // pred_fallthru
          _
      $region48: #{bottleneck_block_forward.6} parent=5 // pred_fallthru
        _
    $region6: #{bottleneck_block_forward.6} parent=1 // loop_footer
      %s16 = sadd.s32 1, %s12
    $region7: #{bottleneck_block_forward.6} parent=1 // loop_footer_branch
      %11 = sbr.rel target = $region3
    $region8: #{bottleneck_block_forward.6} parent=1 // loop_exit
      _
    %1165 = vsyncpa [#allocation3], 1
    %s1166 = scalar_lea.sflag [#allocation3], 1
    %1167 = vsyncpa %s1166, 1

// kernel: bottleneck_block_forward.7
$region0: #{bottleneck_block_forward.7}
  #allocation0 [shape = 'u32[]', space=smem, size = 0x4, offset = 0x4, fixed_abs, tag = 'smem constant byte address 0x4 - core index']
  #allocation1 [shape = 'u32[144,128]{1,0:T(1,128)}', space=vmem, size = 0x12000, scoped, tag = 'internal scratch']
  %s0 = inlined_call_operand.vmem [shape: f32[1024,128], index: 0, kind: input, shape index: {}]
  %s1 = inlined_call_operand.vmem [shape: f32[1,128], index: 1, kind: input, shape index: {}]
  %s2 = inlined_call_operand.vmem [shape: f32[1,128], index: 2, kind: input, shape index: {}]
  %s3 = inlined_call_operand.vmem [shape: bf16[1024,128], index: 3, kind: output, shape index: {}]
  %s4 = sld [smem:[#allocation0]]
  $region45: #{bottleneck_block_forward.7} parent=0
    _
  %s6 = ssub.s32 1, %s4
  %s7 = scalar_select 0, %s6, %s4
  loop: start=0, step=1, limit=4
  $region2: #{bottleneck_block_forward.7} parent=0 // loop_pre_header
    _
  $region3: #{bottleneck_block_forward.7} parent=0 // loop_header
    %s9 = sphi 0, %s13
    %p10 = scmp.ge.s32.totalorder %s9, 4
    %s19 = sphi 0, %s21
    %s22 = sphi 0, %s19
    %s23 = sphi 0, %s22
    %s39 = sphi 0, %s23
    %s43 = sphi 0, %s43
    %s45 = sphi 0, %s43
    %s46 = sphi 0, %s45
    %s60 = sphi 0, %s46
    %s64 = sphi 0, %s64
    %s66 = sphi 0, %s64
    %s67 = sphi 0, %s66
    %s81 = sphi 0, %s67
    %s87 = sphi 0, %s89
    %s90 = sphi 0, %s87
    %s91 = sphi 0, %s90
    %s107 = sphi 0, %s91
  $region4: #{bottleneck_block_forward.7} parent=0 // loop_header_branch
    %12 = sbr.rel (%p10) target = $region8
  $region5: #{bottleneck_block_forward.7} parent=0 // loop_body
    %s14 = ssub.s32 %s9, 1
    %s15 = ssub.s32 %s9, 2
    %s16 = sadd.s32 %s9, 1
    %s17 = ssub.s32 %s9, %s16
    %p18 = scmp.eq.s32.totalorder %s17, 0
    %s20 = sadd.s32 %s19, 1
    %s21 = scalar_select %p18, %s19, %s20
    %p24 = pneg %p18
    %p25 = scmp.eq.s32.totalorder %s9, 1
    %p26 = por %p24, %p25
    %p27 = scmp.ne.s32.totalorder %s19, %s22
    %p28 = scmp.eq.s32.totalorder %s9, 0
    %p29 = por %p27, %p28
    %p30 = scmp.ne.s32.totalorder %s19, %s22
    %p31 = scmp.eq.s32.totalorder %s14, 1
    %p32 = por %p30, %p31
    %p33 = scmp.ne.s32.totalorder %s22, %s23
    %p34 = scmp.eq.s32.totalorder %s14, 0
    %p35 = por %p33, %p34
    %p36 = scmp.ne.s32.totalorder %s22, %s23
    %p37 = scmp.eq.s32.totalorder %s15, 1
    %p38 = por %p36, %p37
    %p40 = scmp.ne.s32.totalorder %s23, %s39
    %p41 = scmp.eq.s32.totalorder %s15, 0
    %p42 = por %p40, %p41
    %s44 = sadd.s32 %s43, 1
    %p47 = scmp.eq.s32.totalorder %s9, 1
    %p48 = scmp.ne.s32.totalorder %s43, %s45
    %p49 = scmp.eq.s32.totalorder %s9, 0
    %p50 = por %p48, %p49
    %p51 = scmp.ne.s32.totalorder %s43, %s45
    %p52 = scmp.eq.s32.totalorder %s14, 1
    %p53 = por %p51, %p52
    %p54 = scmp.ne.s32.totalorder %s45, %s46
    %p55 = scmp.eq.s32.totalorder %s14, 0
    %p56 = por %p54, %p55
    %p57 = scmp.ne.s32.totalorder %s45, %s46
    %p58 = scmp.eq.s32.totalorder %s15, 1
    %p59 = por %p57, %p58
    %p61 = scmp.ne.s32.totalorder %s46, %s60
    %p62 = scmp.eq.s32.totalorder %s15, 0
    %p63 = por %p61, %p62
    %s65 = sadd.s32 %s64, 1
    %p68 = scmp.eq.s32.totalorder %s9, 1
    %p69 = scmp.ne.s32.totalorder %s64, %s66
    %p70 = scmp.eq.s32.totalorder %s9, 0
    %p71 = por %p69, %p70
    %p72 = scmp.ne.s32.totalorder %s64, %s66
    %p73 = scmp.eq.s32.totalorder %s14, 1
    %p74 = por %p72, %p73
    %p75 = scmp.ne.s32.totalorder %s66, %s67
    %p76 = scmp.eq.s32.totalorder %s14, 0
    %p77 = por %p75, %p76
    %p78 = scmp.ne.s32.totalorder %s66, %s67
    %p79 = scmp.eq.s32.totalorder %s15, 1
    %p80 = por %p78, %p79
    %p82 = scmp.ne.s32.totalorder %s67, %s81
    %p83 = scmp.eq.s32.totalorder %s15, 0
    %p84 = por %p82, %p83
    %s85 = ssub.s32 %s9, %s16
    %p86 = scmp.eq.s32.totalorder %s85, 0
    %s88 = sadd.s32 %s87, 1
    %s89 = scalar_select %p86, %s87, %s88
    %p92 = pneg %p86
    %p93 = scmp.eq.s32.totalorder %s9, 1
    %p94 = por %p92, %p93
    %p95 = scmp.ne.s32.totalorder %s87, %s90
    %p96 = scmp.eq.s32.totalorder %s9, 0
    %p97 = por %p95, %p96
    %p98 = scmp.ne.s32.totalorder %s87, %s90
    %p99 = scmp.eq.s32.totalorder %s14, 1
    %p100 = por %p98, %p99
    %p101 = scmp.ne.s32.totalorder %s90, %s91
    %p102 = scmp.eq.s32.totalorder %s14, 0
    %p103 = por %p101, %p102
    %p104 = scmp.ne.s32.totalorder %s90, %s91
    %p105 = scmp.eq.s32.totalorder %s15, 1
    %p106 = por %p104, %p105
    %p108 = scmp.ne.s32.totalorder %s91, %s107
    %p109 = scmp.eq.s32.totalorder %s15, 0
    %p110 = por %p108, %p109
    %p111 = scmp.le.s32.totalorder 1, %s9
    %p112 = scmp.lt.s32.totalorder %s9, 3
    %p113 = pnand %p111, %p112
    %p114 = pneg %p113
    // Predicated region
    $region9: #{bottleneck_block_forward.7} parent=5 // pred_check
      _
    $region10: #{bottleneck_block_forward.7} parent=5 // pred_check_branch
      %116 = sbr.rel (%p113) target = $region12
    $region11: #{bottleneck_block_forward.7} parent=5 // pred_region
      %s117 = ssub.s32 %s9, 1
      // Predicated region
      $region13: #{bottleneck_block_forward.7} parent=11 // pred_check
        %p118 = pneg %p56
      $region14: #{bottleneck_block_forward.7} parent=11 // pred_check_branch
        %120 = sbr.rel (%p118) target = $region16
      $region15: #{bottleneck_block_forward.7} parent=11 // pred_region
        _
      $region16: #{bottleneck_block_forward.7} parent=11 // pred_fallthru
        _
      // Predicated region
      $region17: #{bottleneck_block_forward.7} parent=11 // pred_check
        %p121 = pneg %p77
      $region18: #{bottleneck_block_forward.7} parent=11 // pred_check_branch
        %123 = sbr.rel (%p121) target = $region20
      $region19: #{bottleneck_block_forward.7} parent=11 // pred_region
        _
      $region20: #{bottleneck_block_forward.7} parent=11 // pred_fallthru
        _
    $region12: #{bottleneck_block_forward.7} parent=5 // pred_fallthru
      _
    %p124 = scmp.lt.s32.totalorder %s9, 2
    // Predicated region
    $region21: #{bottleneck_block_forward.7} parent=5 // pred_check
      %p125 = pneg %p124
    $region22: #{bottleneck_block_forward.7} parent=5 // pred_check_branch
      %127 = sbr.rel (%p125) target = $region24
    $region23: #{bottleneck_block_forward.7} parent=5 // pred_region
      // Predicated region
      $region25: #{bottleneck_block_forward.7} parent=23 // pred_check
        %p128 = pneg %p29
      $region26: #{bottleneck_block_forward.7} parent=23 // pred_check_branch
        %130 = sbr.rel (%p128) target = $region28
      $region27: #{bottleneck_block_forward.7} parent=23 // pred_region
        %s131 = smul.u32 64, %s9
        %p132 = scmp.lt.s32.totalorder %s131, 127
        %s133 = scalar_select %p132, %s131, 127
        %s134 = smul.addr %s133, 8
        %s135 = scalar_lea.vmem %s0, %s134
        %s136 = smul.u32 64, %s9
      $region28: #{bottleneck_block_forward.7} parent=23 // pred_fallthru
        _
    $region24: #{bottleneck_block_forward.7} parent=5 // pred_fallthru
      _
    %p137 = scmp.le.s32.totalorder 1, %s9
    %p138 = scmp.lt.s32.totalorder %s9, 3
    %p139 = pnand %p137, %p138
    %p140 = pneg %p139
    // Predicated region
    $region29: #{bottleneck_block_forward.7} parent=5 // pred_check
      _
    $region30: #{bottleneck_block_forward.7} parent=5 // pred_check_branch
      %142 = sbr.rel (%p139) target = $region32
    $region31: #{bottleneck_block_forward.7} parent=5 // pred_region
      %s143 = ssub.s32 %s9, 1
      %s144 = smul.u32 64, %s14
      %p145 = scmp.lt.s32.totalorder %s144, 127
      %s146 = scalar_select %p145, %s144, 127
      %s147 = smul.addr %s146, 8
      %s148 = scalar_lea.vmem %s0, %s147
      %p149 = pneg %p35
      %p150 = pneg %p32
      %p151 = pneg %p56
      %p152 = pneg %p53
      %p153 = pneg %p77
      %p154 = pneg %p74
      %p155 = pneg %p103
      %p156 = pneg %p100
      %s157 = smul.u32 64, %s14
      %p158 = scmp.lt.s32.totalorder %s157, 127
      %s159 = scalar_select %p158, %s157, 127
      %s160 = smul.addr %s159, 4
      %s161 = scalar_lea.vmem %s3, %s160
      %s162 = smul.u32 64, %s14
      %p163 = scmp.lt.s32.totalorder %s162, 127
      %s164 = scalar_select %p163, %s162, 127
      %s165 = smul.addr %s164, 8
      %s166 = scalar_lea.vmem %s0, %s165
      %s167 = smul.u32 64, %s14
      %s168 = smul.u32 64, %s14
      %p169 = scmp.lt.s32.totalorder %s168, 127
      %s170 = scalar_select %p169, %s168, 127
      %s171 = smul.addr %s170, 4
      %s172 = scalar_lea.vmem %s3, %s171
      %s173 = smul.u32 64, %s14
      %v174 = vld [vmem:[%s166] sm:$0xff]
      %v175 = vld [vmem:[%s166 + $0x8] sm:$0xff]
      %v176 = vld [vmem:[%s166 + $0x10] sm:$0xff]
      %v177 = vld [vmem:[%s166 + $0x18] sm:$0xff]
      %v178 = vld [vmem:[%s166 + $0x20] sm:$0xff]
      %v179 = vld [vmem:[%s166 + $0x28] sm:$0xff]
      %v180 = vld [vmem:[%s166 + $0x30] sm:$0xff]
      %v181 = vld [vmem:[%s166 + $0x38] sm:$0xff]
      %v182 = vld [vmem:[%s166 + $0x40] sm:$0xff]
      %v183 = vld [vmem:[%s166 + $0x48] sm:$0xff]
      %v184 = vld [vmem:[%s166 + $0x50] sm:$0xff]
      %v185 = vld [vmem:[%s166 + $0x58] sm:$0xff]
      %v186 = vld [vmem:[%s166 + $0x60] sm:$0xff]
      %v187 = vld [vmem:[%s166 + $0x68] sm:$0xff]
      %v188 = vld [vmem:[%s166 + $0x70] sm:$0xff]
      %v189 = vld [vmem:[%s166 + $0x78] sm:$0xff]
      %v190 = vld [vmem:[%s166 + $0x80] sm:$0xff]
      %v191 = vld [vmem:[%s166 + $0x88] sm:$0xff]
      %v192 = vld [vmem:[%s166 + $0x90] sm:$0xff]
      %v193 = vld [vmem:[%s166 + $0x98] sm:$0xff]
      %v194 = vld [vmem:[%s166 + $0xa0] sm:$0xff]
      %v195 = vld [vmem:[%s166 + $0xa8] sm:$0xff]
      %v196 = vld [vmem:[%s166 + $0xb0] sm:$0xff]
      %v197 = vld [vmem:[%s166 + $0xb8] sm:$0xff]
      %v198 = vld [vmem:[%s166 + $0xc0] sm:$0xff]
      %v199 = vld [vmem:[%s166 + $0xc8] sm:$0xff]
      %v200 = vld [vmem:[%s166 + $0xd0] sm:$0xff]
      %v201 = vld [vmem:[%s166 + $0xd8] sm:$0xff]
      %v202 = vld [vmem:[%s166 + $0xe0] sm:$0xff]
      %v203 = vld [vmem:[%s166 + $0xe8] sm:$0xff]
      %v204 = vld [vmem:[%s166 + $0xf0] sm:$0xff]
      %v205 = vld [vmem:[%s166 + $0xf8] sm:$0xff]
      %v206 = vld [vmem:[%s166 + $0x100] sm:$0xff]
      %v207 = vld [vmem:[%s166 + $0x108] sm:$0xff]
      %v208 = vld [vmem:[%s166 + $0x110] sm:$0xff]
      %v209 = vld [vmem:[%s166 + $0x118] sm:$0xff]
      %v210 = vld [vmem:[%s166 + $0x120] sm:$0xff]
      %v211 = vld [vmem:[%s166 + $0x128] sm:$0xff]
      %v212 = vld [vmem:[%s166 + $0x130] sm:$0xff]
      %v213 = vld [vmem:[%s166 + $0x138] sm:$0xff]
      %v214 = vld [vmem:[%s166 + $0x140] sm:$0xff]
      %v215 = vld [vmem:[%s166 + $0x148] sm:$0xff]
      %v216 = vld [vmem:[%s166 + $0x150] sm:$0xff]
      %v217 = vld [vmem:[%s166 + $0x158] sm:$0xff]
      %v218 = vld [vmem:[%s166 + $0x160] sm:$0xff]
      %v219 = vld [vmem:[%s166 + $0x168] sm:$0xff]
      %v220 = vld [vmem:[%s166 + $0x170] sm:$0xff]
      %v221 = vld [vmem:[%s166 + $0x178] sm:$0xff]
      %v222 = vld [vmem:[%s166 + $0x180] sm:$0xff]
      %v223 = vld [vmem:[%s166 + $0x188] sm:$0xff]
      %v224 = vld [vmem:[%s166 + $0x190] sm:$0xff]
      %v225 = vld [vmem:[%s166 + $0x198] sm:$0xff]
      %v226 = vld [vmem:[%s166 + $0x1a0] sm:$0xff]
      %v227 = vld [vmem:[%s166 + $0x1a8] sm:$0xff]
      %v228 = vld [vmem:[%s166 + $0x1b0] sm:$0xff]
      %v229 = vld [vmem:[%s166 + $0x1b8] sm:$0xff]
      %v230 = vld [vmem:[%s166 + $0x1c0] sm:$0xff]
      %v231 = vld [vmem:[%s166 + $0x1c8] sm:$0xff]
      %v232 = vld [vmem:[%s166 + $0x1d0] sm:$0xff]
      %v233 = vld [vmem:[%s166 + $0x1d8] sm:$0xff]
      %v234 = vld [vmem:[%s166 + $0x1e0] sm:$0xff]
      %v235 = vld [vmem:[%s166 + $0x1e8] sm:$0xff]
      %v236 = vld [vmem:[%s166 + $0x1f0] sm:$0xff]
      %v237 = vld [vmem:[%s166 + $0x1f8] sm:$0xff]
      %v238 = vld [vmem:[%s1] sm:$0x1]
      %v240 = vlaneseq
      %v241 = vshrl.u32 %v240, 7
      %v242 = vsub.s32 0, %v241
      %v243 = vrot.slane %v238, %v242
      %v245 = vmul.f32 %v174, %v243
      %v246 = vmul.f32 %v175, %v243
      %v247 = vmul.f32 %v176, %v243
      %v248 = vmul.f32 %v177, %v243
      %v249 = vmul.f32 %v178, %v243
      %v250 = vmul.f32 %v179, %v243
      %v251 = vmul.f32 %v180, %v243
      %v252 = vmul.f32 %v181, %v243
      %v253 = vmul.f32 %v182, %v243
      %v254 = vmul.f32 %v183, %v243
      %v255 = vmul.f32 %v184, %v243
      %v256 = vmul.f32 %v185, %v243
      %v257 = vmul.f32 %v186, %v243
      %v258 = vmul.f32 %v187, %v243
      %v259 = vmul.f32 %v188, %v243
      %v260 = vmul.f32 %v189, %v243
      %v261 = vmul.f32 %v190, %v243
      %v262 = vmul.f32 %v191, %v243
      %v263 = vmul.f32 %v192, %v243
      %v264 = vmul.f32 %v193, %v243
      %v265 = vmul.f32 %v194, %v243
      %v266 = vmul.f32 %v195, %v243
      %v267 = vmul.f32 %v196, %v243
      %v268 = vmul.f32 %v197, %v243
      %v269 = vmul.f32 %v198, %v243
      %v270 = vmul.f32 %v199, %v243
      %v271 = vmul.f32 %v200, %v243
      %v272 = vmul.f32 %v201, %v243
      %v273 = vmul.f32 %v202, %v243
      %v274 = vmul.f32 %v203, %v243
      %v275 = vmul.f32 %v204, %v243
      %v276 = vmul.f32 %v205, %v243
      %v277 = vmul.f32 %v206, %v243
      %v278 = vmul.f32 %v207, %v243
      %v279 = vmul.f32 %v208, %v243
      %v280 = vmul.f32 %v209, %v243
      %v281 = vmul.f32 %v210, %v243
      %v282 = vmul.f32 %v211, %v243
      %v283 = vmul.f32 %v212, %v243
      %v284 = vmul.f32 %v213, %v243
      %v285 = vmul.f32 %v214, %v243
      %v286 = vmul.f32 %v215, %v243
      %v287 = vmul.f32 %v216, %v243
      %v288 = vmul.f32 %v217, %v243
      %v289 = vmul.f32 %v218, %v243
      %v290 = vmul.f32 %v219, %v243
      %v291 = vmul.f32 %v220, %v243
      %v292 = vmul.f32 %v221, %v243
      %v293 = vmul.f32 %v222, %v243
      %v294 = vmul.f32 %v223, %v243
      %v295 = vmul.f32 %v224, %v243
      %v296 = vmul.f32 %v225, %v243
      %v297 = vmul.f32 %v226, %v243
      %v298 = vmul.f32 %v227, %v243
      %v299 = vmul.f32 %v228, %v243
      %v300 = vmul.f32 %v229, %v243
      %v301 = vmul.f32 %v230, %v243
      %v302 = vmul.f32 %v231, %v243
      %v303 = vmul.f32 %v232, %v243
      %v304 = vmul.f32 %v233, %v243
      %v305 = vmul.f32 %v234, %v243
      %v306 = vmul.f32 %v235, %v243
      %v307 = vmul.f32 %v236, %v243
      %v308 = vmul.f32 %v237, %v243
      %v309 = vld [vmem:[%s2] sm:$0x1]
      %v311 = vlaneseq
      %v312 = vshrl.u32 %v311, 7
      %v313 = vsub.s32 0, %v312
      %v314 = vrot.slane %v309, %v313
      %v316 = vadd.f32 %v245, %v314
      %v317 = vadd.f32 %v246, %v314
      %v318 = vadd.f32 %v247, %v314
      %v319 = vadd.f32 %v248, %v314
      %v320 = vadd.f32 %v249, %v314
      %v321 = vadd.f32 %v250, %v314
      %v322 = vadd.f32 %v251, %v314
      %v323 = vadd.f32 %v252, %v314
      %v324 = vadd.f32 %v253, %v314
      %v325 = vadd.f32 %v254, %v314
      %v326 = vadd.f32 %v255, %v314
      %v327 = vadd.f32 %v256, %v314
      %v328 = vadd.f32 %v257, %v314
      %v329 = vadd.f32 %v258, %v314
      %v330 = vadd.f32 %v259, %v314
      %v331 = vadd.f32 %v260, %v314
      %v332 = vadd.f32 %v261, %v314
      %v333 = vadd.f32 %v262, %v314
      %v334 = vadd.f32 %v263, %v314
      %v335 = vadd.f32 %v264, %v314
      %v336 = vadd.f32 %v265, %v314
      %v337 = vadd.f32 %v266, %v314
      %v338 = vadd.f32 %v267, %v314
      %v339 = vadd.f32 %v268, %v314
      %v340 = vadd.f32 %v269, %v314
      %v341 = vadd.f32 %v270, %v314
      %v342 = vadd.f32 %v271, %v314
      %v343 = vadd.f32 %v272, %v314
      %v344 = vadd.f32 %v273, %v314
      %v345 = vadd.f32 %v274, %v314
      %v346 = vadd.f32 %v275, %v314
      %v347 = vadd.f32 %v276, %v314
      %v348 = vadd.f32 %v277, %v314
      %v349 = vadd.f32 %v278, %v314
      %v350 = vadd.f32 %v279, %v314
      %v351 = vadd.f32 %v280, %v314
      %v352 = vadd.f32 %v281, %v314
      %v353 = vadd.f32 %v282, %v314
      %v354 = vadd.f32 %v283, %v314
      %v355 = vadd.f32 %v284, %v314
      %v356 = vadd.f32 %v285, %v314
      %v357 = vadd.f32 %v286, %v314
      %v358 = vadd.f32 %v287, %v314
      %v359 = vadd.f32 %v288, %v314
      %v360 = vadd.f32 %v289, %v314
      %v361 = vadd.f32 %v290, %v314
      %v362 = vadd.f32 %v291, %v314
      %v363 = vadd.f32 %v292, %v314
      %v364 = vadd.f32 %v293, %v314
      %v365 = vadd.f32 %v294, %v314
      %v366 = vadd.f32 %v295, %v314
      %v367 = vadd.f32 %v296, %v314
      %v368 = vadd.f32 %v297, %v314
      %v369 = vadd.f32 %v298, %v314
      %v370 = vadd.f32 %v299, %v314
      %v371 = vadd.f32 %v300, %v314
      %v372 = vadd.f32 %v301, %v314
      %v373 = vadd.f32 %v302, %v314
      %v374 = vadd.f32 %v303, %v314
      %v375 = vadd.f32 %v304, %v314
      %v376 = vadd.f32 %v305, %v314
      %v377 = vadd.f32 %v306, %v314
      %v378 = vadd.f32 %v307, %v314
      %v379 = vadd.f32 %v308, %v314
      %vm380 = vcmp.ge.f32.partialorder %v316, 0.0
      %vm381 = vcmp.ge.f32.partialorder %v317, 0.0
      %vm382 = vcmp.ge.f32.partialorder %v318, 0.0
      %vm383 = vcmp.ge.f32.partialorder %v319, 0.0
      %vm384 = vcmp.ge.f32.partialorder %v320, 0.0
      %vm385 = vcmp.ge.f32.partialorder %v321, 0.0
      %vm386 = vcmp.ge.f32.partialorder %v322, 0.0
      %vm387 = vcmp.ge.f32.partialorder %v323, 0.0
      %vm388 = vcmp.ge.f32.partialorder %v324, 0.0
      %vm389 = vcmp.ge.f32.partialorder %v325, 0.0
      %vm390 = vcmp.ge.f32.partialorder %v326, 0.0
      %vm391 = vcmp.ge.f32.partialorder %v327, 0.0
      %vm392 = vcmp.ge.f32.partialorder %v328, 0.0
      %vm393 = vcmp.ge.f32.partialorder %v329, 0.0
      %vm394 = vcmp.ge.f32.partialorder %v330, 0.0
      %vm395 = vcmp.ge.f32.partialorder %v331, 0.0
      %vm396 = vcmp.ge.f32.partialorder %v332, 0.0
      %vm397 = vcmp.ge.f32.partialorder %v333, 0.0
      %vm398 = vcmp.ge.f32.partialorder %v334, 0.0
      %vm399 = vcmp.ge.f32.partialorder %v335, 0.0
      %vm400 = vcmp.ge.f32.partialorder %v336, 0.0
      %vm401 = vcmp.ge.f32.partialorder %v337, 0.0
      %vm402 = vcmp.ge.f32.partialorder %v338, 0.0
      %vm403 = vcmp.ge.f32.partialorder %v339, 0.0
      %vm404 = vcmp.ge.f32.partialorder %v340, 0.0
      %vm405 = vcmp.ge.f32.partialorder %v341, 0.0
      %vm406 = vcmp.ge.f32.partialorder %v342, 0.0
      %vm407 = vcmp.ge.f32.partialorder %v343, 0.0
      %vm408 = vcmp.ge.f32.partialorder %v344, 0.0
      %vm409 = vcmp.ge.f32.partialorder %v345, 0.0
      %vm410 = vcmp.ge.f32.partialorder %v346, 0.0
      %vm411 = vcmp.ge.f32.partialorder %v347, 0.0
      %vm412 = vcmp.ge.f32.partialorder %v348, 0.0
      %vm413 = vcmp.ge.f32.partialorder %v349, 0.0
      %vm414 = vcmp.ge.f32.partialorder %v350, 0.0
      %vm415 = vcmp.ge.f32.partialorder %v351, 0.0
      %vm416 = vcmp.ge.f32.partialorder %v352, 0.0
      %vm417 = vcmp.ge.f32.partialorder %v353, 0.0
      %vm418 = vcmp.ge.f32.partialorder %v354, 0.0
      %vm419 = vcmp.ge.f32.partialorder %v355, 0.0
      %vm420 = vcmp.ge.f32.partialorder %v356, 0.0
      %vm421 = vcmp.ge.f32.partialorder %v357, 0.0
      %vm422 = vcmp.ge.f32.partialorder %v358, 0.0
      %vm423 = vcmp.ge.f32.partialorder %v359, 0.0
      %vm424 = vcmp.ge.f32.partialorder %v360, 0.0
      %vm425 = vcmp.ge.f32.partialorder %v361, 0.0
      %vm426 = vcmp.ge.f32.partialorder %v362, 0.0
      %vm427 = vcmp.ge.f32.partialorder %v363, 0.0
      %vm428 = vcmp.ge.f32.partialorder %v364, 0.0
      %vm429 = vcmp.ge.f32.partialorder %v365, 0.0
      %vm430 = vcmp.ge.f32.partialorder %v366, 0.0
      %vm431 = vcmp.ge.f32.partialorder %v367, 0.0
      %vm432 = vcmp.ge.f32.partialorder %v368, 0.0
      %vm433 = vcmp.ge.f32.partialorder %v369, 0.0
      %vm434 = vcmp.ge.f32.partialorder %v370, 0.0
      %vm435 = vcmp.ge.f32.partialorder %v371, 0.0
      %vm436 = vcmp.ge.f32.partialorder %v372, 0.0
      %vm437 = vcmp.ge.f32.partialorder %v373, 0.0
      %vm438 = vcmp.ge.f32.partialorder %v374, 0.0
      %vm439 = vcmp.ge.f32.partialorder %v375, 0.0
      %vm440 = vcmp.ge.f32.partialorder %v376, 0.0
      %vm441 = vcmp.ge.f32.partialorder %v377, 0.0
      %vm442 = vcmp.ge.f32.partialorder %v378, 0.0
      %vm443 = vcmp.ge.f32.partialorder %v379, 0.0
      %v444 = vmul.f32 %v316, 0.2
      %v445 = vmul.f32 %v317, 0.2
      %v446 = vmul.f32 %v318, 0.2
      %v447 = vmul.f32 %v319, 0.2
      %v448 = vmul.f32 %v320, 0.2
      %v449 = vmul.f32 %v321, 0.2
      %v450 = vmul.f32 %v322, 0.2
      %v451 = vmul.f32 %v323, 0.2
      %v452 = vmul.f32 %v324, 0.2
      %v453 = vmul.f32 %v325, 0.2
      %v454 = vmul.f32 %v326, 0.2
      %v455 = vmul.f32 %v327, 0.2
      %v456 = vmul.f32 %v328, 0.2
      %v457 = vmul.f32 %v329, 0.2
      %v458 = vmul.f32 %v330, 0.2
      %v459 = vmul.f32 %v331, 0.2
      %v460 = vmul.f32 %v332, 0.2
      %v461 = vmul.f32 %v333, 0.2
      %v462 = vmul.f32 %v334, 0.2
      %v463 = vmul.f32 %v335, 0.2
      %v464 = vmul.f32 %v336, 0.2
      %v465 = vmul.f32 %v337, 0.2
      %v466 = vmul.f32 %v338, 0.2
      %v467 = vmul.f32 %v339, 0.2
      %v468 = vmul.f32 %v340, 0.2
      %v469 = vmul.f32 %v341, 0.2
      %v470 = vmul.f32 %v342, 0.2
      %v471 = vmul.f32 %v343, 0.2
      %v472 = vmul.f32 %v344, 0.2
      %v473 = vmul.f32 %v345, 0.2
      %v474 = vmul.f32 %v346, 0.2
      %v475 = vmul.f32 %v347, 0.2
      %v476 = vmul.f32 %v348, 0.2
      %v477 = vmul.f32 %v349, 0.2
      %v478 = vmul.f32 %v350, 0.2
      %v479 = vmul.f32 %v351, 0.2
      %v480 = vmul.f32 %v352, 0.2
      %v481 = vmul.f32 %v353, 0.2
      %v482 = vmul.f32 %v354, 0.2
      %v483 = vmul.f32 %v355, 0.2
      %v484 = vmul.f32 %v356, 0.2
      %v485 = vmul.f32 %v357, 0.2
      %v486 = vmul.f32 %v358, 0.2
      %v487 = vmul.f32 %v359, 0.2
      %v488 = vmul.f32 %v360, 0.2
      %v489 = vmul.f32 %v361, 0.2
      %v490 = vmul.f32 %v362, 0.2
      %v491 = vmul.f32 %v363, 0.2
      %v492 = vmul.f32 %v364, 0.2
      %v493 = vmul.f32 %v365, 0.2
      %v494 = vmul.f32 %v366, 0.2
      %v495 = vmul.f32 %v367, 0.2
      %v496 = vmul.f32 %v368, 0.2
      %v497 = vmul.f32 %v369, 0.2
      %v498 = vmul.f32 %v370, 0.2
      %v499 = vmul.f32 %v371, 0.2
      %v500 = vmul.f32 %v372, 0.2
      %v501 = vmul.f32 %v373, 0.2
      %v502 = vmul.f32 %v374, 0.2
      %v503 = vmul.f32 %v375, 0.2
      %v504 = vmul.f32 %v376, 0.2
      %v505 = vmul.f32 %v377, 0.2
      %v506 = vmul.f32 %v378, 0.2
      %v507 = vmul.f32 %v379, 0.2
      %v508 = vsel %vm380, %v316, %v444
      %v509 = vsel %vm381, %v317, %v445
      %v510 = vsel %vm382, %v318, %v446
      %v511 = vsel %vm383, %v319, %v447
      %v512 = vsel %vm384, %v320, %v448
      %v513 = vsel %vm385, %v321, %v449
      %v514 = vsel %vm386, %v322, %v450
      %v515 = vsel %vm387, %v323, %v451
      %v516 = vsel %vm388, %v324, %v452
      %v517 = vsel %vm389, %v325, %v453
      %v518 = vsel %vm390, %v326, %v454
      %v519 = vsel %vm391, %v327, %v455
      %v520 = vsel %vm392, %v328, %v456
      %v521 = vsel %vm393, %v329, %v457
      %v522 = vsel %vm394, %v330, %v458
      %v523 = vsel %vm395, %v331, %v459
      %v524 = vsel %vm396, %v332, %v460
      %v525 = vsel %vm397, %v333, %v461
      %v526 = vsel %vm398, %v334, %v462
      %v527 = vsel %vm399, %v335, %v463
      %v528 = vsel %vm400, %v336, %v464
      %v529 = vsel %vm401, %v337, %v465
      %v530 = vsel %vm402, %v338, %v466
      %v531 = vsel %vm403, %v339, %v467
      %v532 = vsel %vm404, %v340, %v468
      %v533 = vsel %vm405, %v341, %v469
      %v534 = vsel %vm406, %v342, %v470
      %v535 = vsel %vm407, %v343, %v471
      %v536 = vsel %vm408, %v344, %v472
      %v537 = vsel %vm409, %v345, %v473
      %v538 = vsel %vm410, %v346, %v474
      %v539 = vsel %vm411, %v347, %v475
      %v540 = vsel %vm412, %v348, %v476
      %v541 = vsel %vm413, %v349, %v477
      %v542 = vsel %vm414, %v350, %v478
      %v543 = vsel %vm415, %v351, %v479
      %v544 = vsel %vm416, %v352, %v480
      %v545 = vsel %vm417, %v353, %v481
      %v546 = vsel %vm418, %v354, %v482
      %v547 = vsel %vm419, %v355, %v483
      %v548 = vsel %vm420, %v356, %v484
      %v549 = vsel %vm421, %v357, %v485
      %v550 = vsel %vm422, %v358, %v486
      %v551 = vsel %vm423, %v359, %v487
      %v552 = vsel %vm424, %v360, %v488
      %v553 = vsel %vm425, %v361, %v489
      %v554 = vsel %vm426, %v362, %v490
      %v555 = vsel %vm427, %v363, %v491
      %v556 = vsel %vm428, %v364, %v492
      %v557 = vsel %vm429, %v365, %v493
      %v558 = vsel %vm430, %v366, %v494
      %v559 = vsel %vm431, %v367, %v495
      %v560 = vsel %vm432, %v368, %v496
      %v561 = vsel %vm433, %v369, %v497
      %v562 = vsel %vm434, %v370, %v498
      %v563 = vsel %vm435, %v371, %v499
      %v564 = vsel %vm436, %v372, %v500
      %v565 = vsel %vm437, %v373, %v501
      %v566 = vsel %vm438, %v374, %v502
      %v567 = vsel %vm439, %v375, %v503
      %v568 = vsel %vm440, %v376, %v504
      %v569 = vsel %vm441, %v377, %v505
      %v570 = vsel %vm442, %v378, %v506
      %v571 = vsel %vm443, %v379, %v507
      %v572 = vpack.c.bf16 %v509, %v508
      %v573 = vpack.c.bf16 %v511, %v510
      %v574 = vpack.c.bf16 %v513, %v512
      %v575 = vpack.c.bf16 %v515, %v514
      %v576 = vpack.c.bf16 %v517, %v516
      %v577 = vpack.c.bf16 %v519, %v518
      %v578 = vpack.c.bf16 %v521, %v520
      %v579 = vpack.c.bf16 %v523, %v522
      %v580 = vpack.c.bf16 %v525, %v524
      %v581 = vpack.c.bf16 %v527, %v526
      %v582 = vpack.c.bf16 %v529, %v528
      %v583 = vpack.c.bf16 %v531, %v530
      %v584 = vpack.c.bf16 %v533, %v532
      %v585 = vpack.c.bf16 %v535, %v534
      %v586 = vpack.c.bf16 %v537, %v536
      %v587 = vpack.c.bf16 %v539, %v538
      %v588 = vpack.c.bf16 %v541, %v540
      %v589 = vpack.c.bf16 %v543, %v542
      %v590 = vpack.c.bf16 %v545, %v544
      %v591 = vpack.c.bf16 %v547, %v546
      %v592 = vpack.c.bf16 %v549, %v548
      %v593 = vpack.c.bf16 %v551, %v550
      %v594 = vpack.c.bf16 %v553, %v552
      %v595 = vpack.c.bf16 %v555, %v554
      %v596 = vpack.c.bf16 %v557, %v556
      %v597 = vpack.c.bf16 %v559, %v558
      %v598 = vpack.c.bf16 %v561, %v560
      %v599 = vpack.c.bf16 %v563, %v562
      %v600 = vpack.c.bf16 %v565, %v564
      %v601 = vpack.c.bf16 %v567, %v566
      %v602 = vpack.c.bf16 %v569, %v568
      %v603 = vpack.c.bf16 %v571, %v570
      %v636 = vunpack.c.l.b16 %v572
      %v637 = vunpack.c.h.b16 %v572
      %v638 = vunpack.c.l.b16 %v573
      %v639 = vunpack.c.h.b16 %v573
      %v640 = vunpack.c.l.b16 %v574
      %v641 = vunpack.c.h.b16 %v574
      %v642 = vunpack.c.l.b16 %v575
      %v643 = vunpack.c.h.b16 %v575
      %v644 = vunpack.c.l.b16 %v576
      %v645 = vunpack.c.h.b16 %v576
      %v646 = vunpack.c.l.b16 %v577
      %v647 = vunpack.c.h.b16 %v577
      %v648 = vunpack.c.l.b16 %v578
      %v649 = vunpack.c.h.b16 %v578
      %v650 = vunpack.c.l.b16 %v579
      %v651 = vunpack.c.h.b16 %v579
      %v652 = vunpack.c.l.b16 %v580
      %v653 = vunpack.c.h.b16 %v580
      %v654 = vunpack.c.l.b16 %v581
      %v655 = vunpack.c.h.b16 %v581
      %v656 = vunpack.c.l.b16 %v582
      %v657 = vunpack.c.h.b16 %v582
      %v658 = vunpack.c.l.b16 %v583
      %v659 = vunpack.c.h.b16 %v583
      %v660 = vunpack.c.l.b16 %v584
      %v661 = vunpack.c.h.b16 %v584
      %v662 = vunpack.c.l.b16 %v585
      %v663 = vunpack.c.h.b16 %v585
      %v664 = vunpack.c.l.b16 %v586
      %v665 = vunpack.c.h.b16 %v586
      %v666 = vunpack.c.l.b16 %v587
      %v667 = vunpack.c.h.b16 %v587
      %v668 = vunpack.c.l.b16 %v588
      %v669 = vunpack.c.h.b16 %v588
      %v670 = vunpack.c.l.b16 %v589
      %v671 = vunpack.c.h.b16 %v589
      %v672 = vunpack.c.l.b16 %v590
      %v673 = vunpack.c.h.b16 %v590
      %v674 = vunpack.c.l.b16 %v591
      %v675 = vunpack.c.h.b16 %v591
      %v676 = vunpack.c.l.b16 %v592
      %v677 = vunpack.c.h.b16 %v592
      %v678 = vunpack.c.l.b16 %v593
      %v679 = vunpack.c.h.b16 %v593
      %v680 = vunpack.c.l.b16 %v594
      %v681 = vunpack.c.h.b16 %v594
      %v682 = vunpack.c.l.b16 %v595
      %v683 = vunpack.c.h.b16 %v595
      %v684 = vunpack.c.l.b16 %v596
      %v685 = vunpack.c.h.b16 %v596
      %v686 = vunpack.c.l.b16 %v597
      %v687 = vunpack.c.h.b16 %v597
      %v688 = vunpack.c.l.b16 %v598
      %v689 = vunpack.c.h.b16 %v598
      %v690 = vunpack.c.l.b16 %v599
      %v691 = vunpack.c.h.b16 %v599
      %v692 = vunpack.c.l.b16 %v600
      %v693 = vunpack.c.h.b16 %v600
      %v694 = vunpack.c.l.b16 %v601
      %v695 = vunpack.c.h.b16 %v601
      %v696 = vunpack.c.l.b16 %v602
      %v697 = vunpack.c.h.b16 %v602
      %v698 = vunpack.c.l.b16 %v603
      %v699 = vunpack.c.h.b16 %v603
      %v700 = vpack.c.b16 %v636, %v636
      %v701 = vpack.c.b16 %v637, %v637
      %v702 = vpack.c.b16 %v638, %v638
      %v703 = vpack.c.b16 %v639, %v639
      %v704 = vpack.c.b16 %v640, %v640
      %v705 = vpack.c.b16 %v641, %v641
      %v706 = vpack.c.b16 %v642, %v642
      %v707 = vpack.c.b16 %v643, %v643
      %v708 = vpack.c.b16 %v644, %v644
      %v709 = vpack.c.b16 %v645, %v645
      %v710 = vpack.c.b16 %v646, %v646
      %v711 = vpack.c.b16 %v647, %v647
      %v712 = vpack.c.b16 %v648, %v648
      %v713 = vpack.c.b16 %v649, %v649
      %v714 = vpack.c.b16 %v650, %v650
      %v715 = vpack.c.b16 %v651, %v651
      %v716 = vpack.c.b16 %v652, %v652
      %v717 = vpack.c.b16 %v653, %v653
      %v718 = vpack.c.b16 %v654, %v654
      %v719 = vpack.c.b16 %v655, %v655
      %v720 = vpack.c.b16 %v656, %v656
      %v721 = vpack.c.b16 %v657, %v657
      %v722 = vpack.c.b16 %v658, %v658
      %v723 = vpack.c.b16 %v659, %v659
      %v724 = vpack.c.b16 %v660, %v660
      %v725 = vpack.c.b16 %v661, %v661
      %v726 = vpack.c.b16 %v662, %v662
      %v727 = vpack.c.b16 %v663, %v663
      %v728 = vpack.c.b16 %v664, %v664
      %v729 = vpack.c.b16 %v665, %v665
      %v730 = vpack.c.b16 %v666, %v666
      %v731 = vpack.c.b16 %v667, %v667
      %v732 = vpack.c.b16 %v668, %v668
      %v733 = vpack.c.b16 %v669, %v669
      %v734 = vpack.c.b16 %v670, %v670
      %v735 = vpack.c.b16 %v671, %v671
      %v736 = vpack.c.b16 %v672, %v672
      %v737 = vpack.c.b16 %v673, %v673
      %v738 = vpack.c.b16 %v674, %v674
      %v739 = vpack.c.b16 %v675, %v675
      %v740 = vpack.c.b16 %v676, %v676
      %v741 = vpack.c.b16 %v677, %v677
      %v742 = vpack.c.b16 %v678, %v678
      %v743 = vpack.c.b16 %v679, %v679
      %v744 = vpack.c.b16 %v680, %v680
      %v745 = vpack.c.b16 %v681, %v681
      %v746 = vpack.c.b16 %v682, %v682
      %v747 = vpack.c.b16 %v683, %v683
      %v748 = vpack.c.b16 %v684, %v684
      %v749 = vpack.c.b16 %v685, %v685
      %v750 = vpack.c.b16 %v686, %v686
      %v751 = vpack.c.b16 %v687, %v687
      %v752 = vpack.c.b16 %v688, %v688
      %v753 = vpack.c.b16 %v689, %v689
      %v754 = vpack.c.b16 %v690, %v690
      %v755 = vpack.c.b16 %v691, %v691
      %v756 = vpack.c.b16 %v692, %v692
      %v757 = vpack.c.b16 %v693, %v693
      %v758 = vpack.c.b16 %v694, %v694
      %v759 = vpack.c.b16 %v695, %v695
      %v760 = vpack.c.b16 %v696, %v696
      %v761 = vpack.c.b16 %v697, %v697
      %v762 = vpack.c.b16 %v698, %v698
      %v763 = vpack.c.b16 %v699, %v699
      %828 = vst [vmem:[%s172] sm:$0xf] %v700
      %829 = vst [vmem:[%s172 + $0x4] sm:$0xf] %v701
      %830 = vst [vmem:[%s172 + $0x8] sm:$0xf] %v702
      %831 = vst [vmem:[%s172 + $0xc] sm:$0xf] %v703
      %832 = vst [vmem:[%s172 + $0x10] sm:$0xf] %v704
      %833 = vst [vmem:[%s172 + $0x14] sm:$0xf] %v705
      %834 = vst [vmem:[%s172 + $0x18] sm:$0xf] %v706
      %835 = vst [vmem:[%s172 + $0x1c] sm:$0xf] %v707
      %836 = vst [vmem:[%s172 + $0x20] sm:$0xf] %v708
      %837 = vst [vmem:[%s172 + $0x24] sm:$0xf] %v709
      %838 = vst [vmem:[%s172 + $0x28] sm:$0xf] %v710
      %839 = vst [vmem:[%s172 + $0x2c] sm:$0xf] %v711
      %840 = vst [vmem:[%s172 + $0x30] sm:$0xf] %v712
      %841 = vst [vmem:[%s172 + $0x34] sm:$0xf] %v713
      %842 = vst [vmem:[%s172 + $0x38] sm:$0xf] %v714
      %843 = vst [vmem:[%s172 + $0x3c] sm:$0xf] %v715
      %844 = vst [vmem:[%s172 + $0x40] sm:$0xf] %v716
      %845 = vst [vmem:[%s172 + $0x44] sm:$0xf] %v717
      %846 = vst [vmem:[%s172 + $0x48] sm:$0xf] %v718
      %847 = vst [vmem:[%s172 + $0x4c] sm:$0xf] %v719
      %848 = vst [vmem:[%s172 + $0x50] sm:$0xf] %v720
      %849 = vst [vmem:[%s172 + $0x54] sm:$0xf] %v721
      %850 = vst [vmem:[%s172 + $0x58] sm:$0xf] %v722
      %851 = vst [vmem:[%s172 + $0x5c] sm:$0xf] %v723
      %852 = vst [vmem:[%s172 + $0x60] sm:$0xf] %v724
      %853 = vst [vmem:[%s172 + $0x64] sm:$0xf] %v725
      %854 = vst [vmem:[%s172 + $0x68] sm:$0xf] %v726
      %855 = vst [vmem:[%s172 + $0x6c] sm:$0xf] %v727
      %856 = vst [vmem:[%s172 + $0x70] sm:$0xf] %v728
      %857 = vst [vmem:[%s172 + $0x74] sm:$0xf] %v729
      %858 = vst [vmem:[%s172 + $0x78] sm:$0xf] %v730
      %859 = vst [vmem:[%s172 + $0x7c] sm:$0xf] %v731
      %860 = vst [vmem:[%s172 + $0x80] sm:$0xf] %v732
      %861 = vst [vmem:[%s172 + $0x84] sm:$0xf] %v733
      %862 = vst [vmem:[%s172 + $0x88] sm:$0xf] %v734
      %863 = vst [vmem:[%s172 + $0x8c] sm:$0xf] %v735
      %864 = vst [vmem:[%s172 + $0x90] sm:$0xf] %v736
      %865 = vst [vmem:[%s172 + $0x94] sm:$0xf] %v737
      %866 = vst [vmem:[%s172 + $0x98] sm:$0xf] %v738
      %867 = vst [vmem:[%s172 + $0x9c] sm:$0xf] %v739
      %868 = vst [vmem:[%s172 + $0xa0] sm:$0xf] %v740
      %869 = vst [vmem:[%s172 + $0xa4] sm:$0xf] %v741
      %870 = vst [vmem:[%s172 + $0xa8] sm:$0xf] %v742
      %871 = vst [vmem:[%s172 + $0xac] sm:$0xf] %v743
      %872 = vst [vmem:[%s172 + $0xb0] sm:$0xf] %v744
      %873 = vst [vmem:[%s172 + $0xb4] sm:$0xf] %v745
      %874 = vst [vmem:[%s172 + $0xb8] sm:$0xf] %v746
      %875 = vst [vmem:[%s172 + $0xbc] sm:$0xf] %v747
      %876 = vst [vmem:[%s172 + $0xc0] sm:$0xf] %v748
      %877 = vst [vmem:[%s172 + $0xc4] sm:$0xf] %v749
      %878 = vst [vmem:[%s172 + $0xc8] sm:$0xf] %v750
      %879 = vst [vmem:[%s172 + $0xcc] sm:$0xf] %v751
      %880 = vst [vmem:[%s172 + $0xd0] sm:$0xf] %v752
      %881 = vst [vmem:[%s172 + $0xd4] sm:$0xf] %v753
      %882 = vst [vmem:[%s172 + $0xd8] sm:$0xf] %v754
      %883 = vst [vmem:[%s172 + $0xdc] sm:$0xf] %v755
      %884 = vst [vmem:[%s172 + $0xe0] sm:$0xf] %v756
      %885 = vst [vmem:[%s172 + $0xe4] sm:$0xf] %v757
      %886 = vst [vmem:[%s172 + $0xe8] sm:$0xf] %v758
      %887 = vst [vmem:[%s172 + $0xec] sm:$0xf] %v759
      %888 = vst [vmem:[%s172 + $0xf0] sm:$0xf] %v760
      %889 = vst [vmem:[%s172 + $0xf4] sm:$0xf] %v761
      %890 = vst [vmem:[%s172 + $0xf8] sm:$0xf] %v762
      %891 = vst [vmem:[%s172 + $0xfc] sm:$0xf] %v763
      %s892 = smul.u32 64, %s14
      %p893 = scmp.lt.s32.totalorder %s892, 127
      %s894 = scalar_select %p893, %s892, 127
      %s895 = smul.addr %s894, 4
      %s896 = scalar_lea.vmem %s3, %s895
      // Predicated region
      $region33: #{bottleneck_block_forward.7} parent=31 // pred_check
        %p897 = pneg %p100
      $region34: #{bottleneck_block_forward.7} parent=31 // pred_check_branch
        %899 = sbr.rel (%p897) target = $region36
      $region35: #{bottleneck_block_forward.7} parent=31 // pred_region
        %s900 = smul.u32 64, %s14
      $region36: #{bottleneck_block_forward.7} parent=31 // pred_fallthru
        _
    $region32: #{bottleneck_block_forward.7} parent=5 // pred_fallthru
      _
    %p901 = scmp.le.s32.totalorder 2, %s9
    // Predicated region
    $region37: #{bottleneck_block_forward.7} parent=5 // pred_check
      %p902 = pneg %p901
    $region38: #{bottleneck_block_forward.7} parent=5 // pred_check_branch
      %904 = sbr.rel (%p902) target = $region40
    $region39: #{bottleneck_block_forward.7} parent=5 // pred_region
      %s905 = ssub.s32 %s9, 2
      // Predicated region
      $region41: #{bottleneck_block_forward.7} parent=39 // pred_check
        %p906 = pneg %p106
      $region42: #{bottleneck_block_forward.7} parent=39 // pred_check_branch
        %908 = sbr.rel (%p906) target = $region44
      $region43: #{bottleneck_block_forward.7} parent=39 // pred_region
        %s909 = smul.u32 64, %s15
        %p910 = scmp.lt.s32.totalorder %s909, 127
        %s911 = scalar_select %p910, %s909, 127
        %s912 = smul.addr %s911, 4
        %s913 = scalar_lea.vmem %s3, %s912
      $region44: #{bottleneck_block_forward.7} parent=39 // pred_fallthru
        _
    $region40: #{bottleneck_block_forward.7} parent=5 // pred_fallthru
      _
  $region6: #{bottleneck_block_forward.7} parent=0 // loop_footer
    %s13 = sadd.s32 1, %s9
  $region7: #{bottleneck_block_forward.7} parent=0 // loop_footer_branch
    %8 = sbr.rel target = $region3
  $region8: #{bottleneck_block_forward.7} parent=0 // loop_exit
    _

// kernel: bottleneck_block_forward.10
$region0: #{bottleneck_block_forward.10}
  #allocation0 [shape = 'u32[]', space=smem, size = 0x4, offset = 0x4, fixed_abs, tag = 'smem constant byte address 0x4 - core index']
  #allocation1 [shape = 'u32[144,128]{1,0:T(1,128)}', space=vmem, size = 0x12000, scoped, tag = 'internal scratch']
  %s0 = inlined_call_operand.vmem [shape: bf16[1024,128], index: 0, kind: input, shape index: {}]
  %s1 = inlined_call_operand.vmem [shape: bf16[128,128], index: 1, kind: input, shape index: {}]
  %s2 = inlined_call_operand.vmem [shape: f32[1024,128], index: 2, kind: output, shape index: {0}]
  %s3 = inlined_call_operand.vmem [shape: f32[2,8,128], index: 3, kind: output, shape index: {1}]
  %s4 = inlined_call_operand.vmem [shape: f32[2,8,128], index: 4, kind: output, shape index: {2}]
  %5 = xla_tuple %s2, %s3, %s4
  %s6 = sld [smem:[#allocation0]]
  $region57: #{bottleneck_block_forward.10} parent=0
    _
  %s8 = ssub.s32 1, %s6
  %s9 = scalar_select 0, %s8, %s6
  loop: start=0, step=1, limit=4
  $region2: #{bottleneck_block_forward.10} parent=0 // loop_pre_header
    _
  $region3: #{bottleneck_block_forward.10} parent=0 // loop_header
    %s11 = sphi 0, %s15
    %p12 = scmp.ge.s32.totalorder %s11, 4
    %s21 = sphi 0, %s23
    %s24 = sphi 0, %s21
    %s25 = sphi 0, %s24
    %s41 = sphi 0, %s25
    %s45 = sphi 0, %s45
    %s47 = sphi 0, %s45
    %s48 = sphi 0, %s47
    %s62 = sphi 0, %s48
    %s68 = sphi 0, %s70
    %s71 = sphi 0, %s68
    %s72 = sphi 0, %s71
    %s88 = sphi 0, %s72
    %s94 = sphi 0, %s96
    %s97 = sphi 0, %s94
    %s98 = sphi 0, %s97
    %s114 = sphi 0, %s98
    %s120 = sphi 0, %s122
    %s123 = sphi 0, %s120
    %s124 = sphi 0, %s123
    %s140 = sphi 0, %s124
  $region4: #{bottleneck_block_forward.10} parent=0 // loop_header_branch
    %14 = sbr.rel (%p12) target = $region8
  $region5: #{bottleneck_block_forward.10} parent=0 // loop_body
    %s16 = ssub.s32 %s11, 1
    %s17 = ssub.s32 %s11, 2
    %s18 = sadd.s32 %s11, 1
    %s19 = ssub.s32 %s11, %s18
    %p20 = scmp.eq.s32.totalorder %s19, 0
    %s22 = sadd.s32 %s21, 1
    %s23 = scalar_select %p20, %s21, %s22
    %p26 = pneg %p20
    %p27 = scmp.eq.s32.totalorder %s11, 1
    %p28 = por %p26, %p27
    %p29 = scmp.ne.s32.totalorder %s21, %s24
    %p30 = scmp.eq.s32.totalorder %s11, 0
    %p31 = por %p29, %p30
    %p32 = scmp.ne.s32.totalorder %s21, %s24
    %p33 = scmp.eq.s32.totalorder %s16, 1
    %p34 = por %p32, %p33
    %p35 = scmp.ne.s32.totalorder %s24, %s25
    %p36 = scmp.eq.s32.totalorder %s16, 0
    %p37 = por %p35, %p36
    %p38 = scmp.ne.s32.totalorder %s24, %s25
    %p39 = scmp.eq.s32.totalorder %s17, 1
    %p40 = por %p38, %p39
    %p42 = scmp.ne.s32.totalorder %s25, %s41
    %p43 = scmp.eq.s32.totalorder %s17, 0
    %p44 = por %p42, %p43
    %s46 = sadd.s32 %s45, 1
    %p49 = scmp.eq.s32.totalorder %s11, 1
    %p50 = scmp.ne.s32.totalorder %s45, %s47
    %p51 = scmp.eq.s32.totalorder %s11, 0
    %p52 = por %p50, %p51
    %p53 = scmp.ne.s32.totalorder %s45, %s47
    %p54 = scmp.eq.s32.totalorder %s16, 1
    %p55 = por %p53, %p54
    %p56 = scmp.ne.s32.totalorder %s47, %s48
    %p57 = scmp.eq.s32.totalorder %s16, 0
    %p58 = por %p56, %p57
    %p59 = scmp.ne.s32.totalorder %s47, %s48
    %p60 = scmp.eq.s32.totalorder %s17, 1
    %p61 = por %p59, %p60
    %p63 = scmp.ne.s32.totalorder %s48, %s62
    %p64 = scmp.eq.s32.totalorder %s17, 0
    %p65 = por %p63, %p64
    %s66 = ssub.s32 %s11, %s18
    %p67 = scmp.eq.s32.totalorder %s66, 0
    %s69 = sadd.s32 %s68, 1
    %s70 = scalar_select %p67, %s68, %s69
    %p73 = pneg %p67
    %p74 = scmp.eq.s32.totalorder %s11, 1
    %p75 = por %p73, %p74
    %p76 = scmp.ne.s32.totalorder %s68, %s71
    %p77 = scmp.eq.s32.totalorder %s11, 0
    %p78 = por %p76, %p77
    %p79 = scmp.ne.s32.totalorder %s68, %s71
    %p80 = scmp.eq.s32.totalorder %s16, 1
    %p81 = por %p79, %p80
    %p82 = scmp.ne.s32.totalorder %s71, %s72
    %p83 = scmp.eq.s32.totalorder %s16, 0
    %p84 = por %p82, %p83
    %p85 = scmp.ne.s32.totalorder %s71, %s72
    %p86 = scmp.eq.s32.totalorder %s17, 1
    %p87 = por %p85, %p86
    %p89 = scmp.ne.s32.totalorder %s72, %s88
    %p90 = scmp.eq.s32.totalorder %s17, 0
    %p91 = por %p89, %p90
    %s92 = ssub.s32 %s11, %s18
    %p93 = scmp.eq.s32.totalorder %s92, 0
    %s95 = sadd.s32 %s94, 1
    %s96 = scalar_select %p93, %s94, %s95
    %p99 = pneg %p93
    %p100 = scmp.eq.s32.totalorder %s11, 1
    %p101 = por %p99, %p100
    %p102 = scmp.ne.s32.totalorder %s94, %s97
    %p103 = scmp.eq.s32.totalorder %s11, 0
    %p104 = por %p102, %p103
    %p105 = scmp.ne.s32.totalorder %s94, %s97
    %p106 = scmp.eq.s32.totalorder %s16, 1
    %p107 = por %p105, %p106
    %p108 = scmp.ne.s32.totalorder %s97, %s98
    %p109 = scmp.eq.s32.totalorder %s16, 0
    %p110 = por %p108, %p109
    %p111 = scmp.ne.s32.totalorder %s97, %s98
    %p112 = scmp.eq.s32.totalorder %s17, 1
    %p113 = por %p111, %p112
    %p115 = scmp.ne.s32.totalorder %s98, %s114
    %p116 = scmp.eq.s32.totalorder %s17, 0
    %p117 = por %p115, %p116
    %s118 = ssub.s32 %s11, %s18
    %p119 = scmp.eq.s32.totalorder %s118, 0
    %s121 = sadd.s32 %s120, 1
    %s122 = scalar_select %p119, %s120, %s121
    %p125 = pneg %p119
    %p126 = scmp.eq.s32.totalorder %s11, 1
    %p127 = por %p125, %p126
    %p128 = scmp.ne.s32.totalorder %s120, %s123
    %p129 = scmp.eq.s32.totalorder %s11, 0
    %p130 = por %p128, %p129
    %p131 = scmp.ne.s32.totalorder %s120, %s123
    %p132 = scmp.eq.s32.totalorder %s16, 1
    %p133 = por %p131, %p132
    %p134 = scmp.ne.s32.totalorder %s123, %s124
    %p135 = scmp.eq.s32.totalorder %s16, 0
    %p136 = por %p134, %p135
    %p137 = scmp.ne.s32.totalorder %s123, %s124
    %p138 = scmp.eq.s32.totalorder %s17, 1
    %p139 = por %p137, %p138
    %p141 = scmp.ne.s32.totalorder %s124, %s140
    %p142 = scmp.eq.s32.totalorder %s17, 0
    %p143 = por %p141, %p142
    %p144 = scmp.le.s32.totalorder 1, %s11
    %p145 = scmp.lt.s32.totalorder %s11, 3
    %p146 = pnand %p144, %p145
    %p147 = pneg %p146
    // Predicated region
    $region9: #{bottleneck_block_forward.10} parent=5 // pred_check
      _
    $region10: #{bottleneck_block_forward.10} parent=5 // pred_check_branch
      %149 = sbr.rel (%p146) target = $region12
    $region11: #{bottleneck_block_forward.10} parent=5 // pred_region
      %s150 = ssub.s32 %s11, 1
      // Predicated region
      $region13: #{bottleneck_block_forward.10} parent=11 // pred_check
        %p151 = pneg %p58
      $region14: #{bottleneck_block_forward.10} parent=11 // pred_check_branch
        %153 = sbr.rel (%p151) target = $region16
      $region15: #{bottleneck_block_forward.10} parent=11 // pred_region
        _
      $region16: #{bottleneck_block_forward.10} parent=11 // pred_fallthru
        _
    $region12: #{bottleneck_block_forward.10} parent=5 // pred_fallthru
      _
    %p154 = scmp.lt.s32.totalorder %s11, 2
    // Predicated region
    $region17: #{bottleneck_block_forward.10} parent=5 // pred_check
      %p155 = pneg %p154
    $region18: #{bottleneck_block_forward.10} parent=5 // pred_check_branch
      %157 = sbr.rel (%p155) target = $region20
    $region19: #{bottleneck_block_forward.10} parent=5 // pred_region
      // Predicated region
      $region21: #{bottleneck_block_forward.10} parent=19 // pred_check
        %p158 = pneg %p31
      $region22: #{bottleneck_block_forward.10} parent=19 // pred_check_branch
        %160 = sbr.rel (%p158) target = $region24
      $region23: #{bottleneck_block_forward.10} parent=19 // pred_region
        %s161 = smul.u32 64, %s11
        %p162 = scmp.lt.s32.totalorder %s161, 127
        %s163 = scalar_select %p162, %s161, 127
        %s164 = smul.addr %s163, 4
        %s165 = scalar_lea.vmem %s0, %s164
        %s166 = smul.u32 64, %s11
      $region24: #{bottleneck_block_forward.10} parent=19 // pred_fallthru
        _
    $region20: #{bottleneck_block_forward.10} parent=5 // pred_fallthru
      _
    %p167 = scmp.le.s32.totalorder 1, %s11
    %p168 = scmp.lt.s32.totalorder %s11, 3
    %p169 = pnand %p167, %p168
    %p170 = pneg %p169
    // Predicated region
    $region25: #{bottleneck_block_forward.10} parent=5 // pred_check
      _
    $region26: #{bottleneck_block_forward.10} parent=5 // pred_check_branch
      %172 = sbr.rel (%p169) target = $region28
    $region27: #{bottleneck_block_forward.10} parent=5 // pred_region
      %s173 = ssub.s32 %s11, 1
      %s174 = smul.u32 64, %s16
      %p175 = scmp.lt.s32.totalorder %s174, 127
      %s176 = scalar_select %p175, %s174, 127
      %s177 = smul.addr %s176, 4
      %s178 = scalar_lea.vmem %s0, %s177
      %p179 = pneg %p37
      %p180 = pneg %p34
      %p181 = pneg %p58
      %p182 = pneg %p55
      %p183 = pneg %p84
      %p184 = pneg %p81
      %s185 = smul.u32 64, %s16
      %p186 = scmp.lt.s32.totalorder %s185, 127
      %s187 = scalar_select %p186, %s185, 127
      %s188 = smul.addr %s187, 8
      %s189 = scalar_lea.vmem %s2, %s188
      %p190 = pneg %p110
      %p191 = pneg %p107
      %p192 = scmp.lt.s32.totalorder %s16, 1
      %s193 = scalar_select %p192, %s16, 1
      %s194 = smul.addr %s193, 8
      %s195 = scalar_lea.vmem %s3, %s194
      %p196 = pneg %p136
      %p197 = pneg %p133
      %p198 = scmp.lt.s32.totalorder %s16, 1
      %s199 = scalar_select %p198, %s16, 1
      %s200 = smul.addr %s199, 8
      %s201 = scalar_lea.vmem %s4, %s200
      %s202 = smul.u32 64, %s16
      %p203 = scmp.lt.s32.totalorder %s202, 127
      %s204 = scalar_select %p203, %s202, 127
      %s205 = smul.addr %s204, 4
      %s206 = scalar_lea.vmem %s0, %s205
      %s207 = smul.u32 64, %s16
      %s208 = smul.u32 64, %s16
      %p209 = scmp.lt.s32.totalorder %s208, 127
      %s210 = scalar_select %p209, %s208, 127
      %s211 = smul.addr %s210, 8
      %s212 = scalar_lea.vmem %s2, %s211
      %s213 = smul.u32 64, %s16
      %p214 = scmp.lt.s32.totalorder %s16, 1
      %s215 = scalar_select %p214, %s16, 1
      %s216 = smul.addr %s215, 8
      %s217 = scalar_lea.vmem %s3, %s216
      %p218 = scmp.lt.s32.totalorder %s16, 1
      %s219 = scalar_select %p218, %s16, 1
      %s220 = smul.addr %s219, 8
      %s221 = scalar_lea.vmem %s4, %s220
      %v223 = vld [vmem:[%s206] sm:$0xf]
      %v224 = vld [vmem:[%s206 + $0x4] sm:$0xf]
      %v225 = vld [vmem:[%s206 + $0x8] sm:$0xf]
      %v226 = vld [vmem:[%s206 + $0xc] sm:$0xf]
      %v227 = vld [vmem:[%s206 + $0x10] sm:$0xf]
      %v228 = vld [vmem:[%s206 + $0x14] sm:$0xf]
      %v229 = vld [vmem:[%s206 + $0x18] sm:$0xf]
      %v230 = vld [vmem:[%s206 + $0x1c] sm:$0xf]
      %v231 = vld [vmem:[%s206 + $0x20] sm:$0xf]
      %v232 = vld [vmem:[%s206 + $0x24] sm:$0xf]
      %v233 = vld [vmem:[%s206 + $0x28] sm:$0xf]
      %v234 = vld [vmem:[%s206 + $0x2c] sm:$0xf]
      %v235 = vld [vmem:[%s206 + $0x30] sm:$0xf]
      %v236 = vld [vmem:[%s206 + $0x34] sm:$0xf]
      %v237 = vld [vmem:[%s206 + $0x38] sm:$0xf]
      %v238 = vld [vmem:[%s206 + $0x3c] sm:$0xf]
      %v239 = vld [vmem:[%s206 + $0x40] sm:$0xf]
      %v240 = vld [vmem:[%s206 + $0x44] sm:$0xf]
      %v241 = vld [vmem:[%s206 + $0x48] sm:$0xf]
      %v242 = vld [vmem:[%s206 + $0x4c] sm:$0xf]
      %v243 = vld [vmem:[%s206 + $0x50] sm:$0xf]
      %v244 = vld [vmem:[%s206 + $0x54] sm:$0xf]
      %v245 = vld [vmem:[%s206 + $0x58] sm:$0xf]
      %v246 = vld [vmem:[%s206 + $0x5c] sm:$0xf]
      %v247 = vld [vmem:[%s206 + $0x60] sm:$0xf]
      %v248 = vld [vmem:[%s206 + $0x64] sm:$0xf]
      %v249 = vld [vmem:[%s206 + $0x68] sm:$0xf]
      %v250 = vld [vmem:[%s206 + $0x6c] sm:$0xf]
      %v251 = vld [vmem:[%s206 + $0x70] sm:$0xf]
      %v252 = vld [vmem:[%s206 + $0x74] sm:$0xf]
      %v253 = vld [vmem:[%s206 + $0x78] sm:$0xf]
      %v254 = vld [vmem:[%s206 + $0x7c] sm:$0xf]
      %v255 = vld [vmem:[%s206 + $0x80] sm:$0xf]
      %v256 = vld [vmem:[%s206 + $0x84] sm:$0xf]
      %v257 = vld [vmem:[%s206 + $0x88] sm:$0xf]
      %v258 = vld [vmem:[%s206 + $0x8c] sm:$0xf]
      %v259 = vld [vmem:[%s206 + $0x90] sm:$0xf]
      %v260 = vld [vmem:[%s206 + $0x94] sm:$0xf]
      %v261 = vld [vmem:[%s206 + $0x98] sm:$0xf]
      %v262 = vld [vmem:[%s206 + $0x9c] sm:$0xf]
      %v263 = vld [vmem:[%s206 + $0xa0] sm:$0xf]
      %v264 = vld [vmem:[%s206 + $0xa4] sm:$0xf]
      %v265 = vld [vmem:[%s206 + $0xa8] sm:$0xf]
      %v266 = vld [vmem:[%s206 + $0xac] sm:$0xf]
      %v267 = vld [vmem:[%s206 + $0xb0] sm:$0xf]
      %v268 = vld [vmem:[%s206 + $0xb4] sm:$0xf]
      %v269 = vld [vmem:[%s206 + $0xb8] sm:$0xf]
      %v270 = vld [vmem:[%s206 + $0xbc] sm:$0xf]
      %v271 = vld [vmem:[%s206 + $0xc0] sm:$0xf]
      %v272 = vld [vmem:[%s206 + $0xc4] sm:$0xf]
      %v273 = vld [vmem:[%s206 + $0xc8] sm:$0xf]
      %v274 = vld [vmem:[%s206 + $0xcc] sm:$0xf]
      %v275 = vld [vmem:[%s206 + $0xd0] sm:$0xf]
      %v276 = vld [vmem:[%s206 + $0xd4] sm:$0xf]
      %v277 = vld [vmem:[%s206 + $0xd8] sm:$0xf]
      %v278 = vld [vmem:[%s206 + $0xdc] sm:$0xf]
      %v279 = vld [vmem:[%s206 + $0xe0] sm:$0xf]
      %v280 = vld [vmem:[%s206 + $0xe4] sm:$0xf]
      %v281 = vld [vmem:[%s206 + $0xe8] sm:$0xf]
      %v282 = vld [vmem:[%s206 + $0xec] sm:$0xf]
      %v283 = vld [vmem:[%s206 + $0xf0] sm:$0xf]
      %v284 = vld [vmem:[%s206 + $0xf4] sm:$0xf]
      %v285 = vld [vmem:[%s206 + $0xf8] sm:$0xf]
      %v286 = vld [vmem:[%s206 + $0xfc] sm:$0xf]
      %v287 = vld [vmem:[%s1] sm:$0xf]
      %v288 = vld [vmem:[%s1 + $0x4] sm:$0xf]
      %v289 = vld [vmem:[%s1 + $0x8] sm:$0xf]
      %v290 = vld [vmem:[%s1 + $0xc] sm:$0xf]
      %v291 = vld [vmem:[%s1 + $0x10] sm:$0xf]
      %v292 = vld [vmem:[%s1 + $0x14] sm:$0xf]
      %v293 = vld [vmem:[%s1 + $0x18] sm:$0xf]
      %v294 = vld [vmem:[%s1 + $0x1c] sm:$0xf]
      %v295 = vld [vmem:[%s1 + $0x20] sm:$0xf]
      %v296 = vld [vmem:[%s1 + $0x24] sm:$0xf]
      %v297 = vld [vmem:[%s1 + $0x28] sm:$0xf]
      %v298 = vld [vmem:[%s1 + $0x2c] sm:$0xf]
      %v299 = vld [vmem:[%s1 + $0x30] sm:$0xf]
      %v300 = vld [vmem:[%s1 + $0x34] sm:$0xf]
      %v301 = vld [vmem:[%s1 + $0x38] sm:$0xf]
      %v302 = vld [vmem:[%s1 + $0x3c] sm:$0xf]
      %v367 = vunpack.c.l.b16 %v223
      %v368 = vunpack.c.l.b16 %v224
      %v369 = vunpack.c.l.b16 %v225
      %v370 = vunpack.c.l.b16 %v226
      %v371 = vunpack.c.l.b16 %v227
      %v372 = vunpack.c.l.b16 %v228
      %v373 = vunpack.c.l.b16 %v229
      %v374 = vunpack.c.l.b16 %v230
      %v375 = vunpack.c.l.b16 %v231
      %v376 = vunpack.c.l.b16 %v232
      %v377 = vunpack.c.l.b16 %v233
      %v378 = vunpack.c.l.b16 %v234
      %v379 = vunpack.c.l.b16 %v235
      %v380 = vunpack.c.l.b16 %v236
      %v381 = vunpack.c.l.b16 %v237
      %v382 = vunpack.c.l.b16 %v238
      %v383 = vunpack.c.l.b16 %v239
      %v384 = vunpack.c.l.b16 %v240
      %v385 = vunpack.c.l.b16 %v241
      %v386 = vunpack.c.l.b16 %v242
      %v387 = vunpack.c.l.b16 %v243
      %v388 = vunpack.c.l.b16 %v244
      %v389 = vunpack.c.l.b16 %v245
      %v390 = vunpack.c.l.b16 %v246
      %v391 = vunpack.c.l.b16 %v247
      %v392 = vunpack.c.l.b16 %v248
      %v393 = vunpack.c.l.b16 %v249
      %v394 = vunpack.c.l.b16 %v250
      %v395 = vunpack.c.l.b16 %v251
      %v396 = vunpack.c.l.b16 %v252
      %v397 = vunpack.c.l.b16 %v253
      %v398 = vunpack.c.l.b16 %v254
      %v399 = vunpack.c.l.b16 %v255
      %v400 = vunpack.c.l.b16 %v256
      %v401 = vunpack.c.l.b16 %v257
      %v402 = vunpack.c.l.b16 %v258
      %v403 = vunpack.c.l.b16 %v259
      %v404 = vunpack.c.l.b16 %v260
      %v405 = vunpack.c.l.b16 %v261
      %v406 = vunpack.c.l.b16 %v262
      %v407 = vunpack.c.l.b16 %v263
      %v408 = vunpack.c.l.b16 %v264
      %v409 = vunpack.c.l.b16 %v265
      %v410 = vunpack.c.l.b16 %v266
      %v411 = vunpack.c.l.b16 %v267
      %v412 = vunpack.c.l.b16 %v268
      %v413 = vunpack.c.l.b16 %v269
      %v414 = vunpack.c.l.b16 %v270
      %v415 = vunpack.c.l.b16 %v271
      %v416 = vunpack.c.l.b16 %v272
      %v417 = vunpack.c.l.b16 %v273
      %v418 = vunpack.c.l.b16 %v274
      %v419 = vunpack.c.l.b16 %v275
      %v420 = vunpack.c.l.b16 %v276
      %v421 = vunpack.c.l.b16 %v277
      %v422 = vunpack.c.l.b16 %v278
      %v423 = vunpack.c.l.b16 %v279
      %v424 = vunpack.c.l.b16 %v280
      %v425 = vunpack.c.l.b16 %v281
      %v426 = vunpack.c.l.b16 %v282
      %v427 = vunpack.c.l.b16 %v283
      %v428 = vunpack.c.l.b16 %v284
      %v429 = vunpack.c.l.b16 %v285
      %v430 = vunpack.c.l.b16 %v286
      %v431 = vpack.c.b16 %v368, %v367
      %v432 = vpack.c.b16 %v370, %v369
      %v433 = vpack.c.b16 %v372, %v371
      %v434 = vpack.c.b16 %v374, %v373
      %v435 = vpack.c.b16 %v376, %v375
      %v436 = vpack.c.b16 %v378, %v377
      %v437 = vpack.c.b16 %v380, %v379
      %v438 = vpack.c.b16 %v382, %v381
      %v439 = vpack.c.b16 %v384, %v383
      %v440 = vpack.c.b16 %v386, %v385
      %v441 = vpack.c.b16 %v388, %v387
      %v442 = vpack.c.b16 %v390, %v389
      %v443 = vpack.c.b16 %v392, %v391
      %v444 = vpack.c.b16 %v394, %v393
      %v445 = vpack.c.b16 %v396, %v395
      %v446 = vpack.c.b16 %v398, %v397
      %v447 = vpack.c.b16 %v400, %v399
      %v448 = vpack.c.b16 %v402, %v401
      %v449 = vpack.c.b16 %v404, %v403
      %v450 = vpack.c.b16 %v406, %v405
      %v451 = vpack.c.b16 %v408, %v407
      %v452 = vpack.c.b16 %v410, %v409
      %v453 = vpack.c.b16 %v412, %v411
      %v454 = vpack.c.b16 %v414, %v413
      %v455 = vpack.c.b16 %v416, %v415
      %v456 = vpack.c.b16 %v418, %v417
      %v457 = vpack.c.b16 %v420, %v419
      %v458 = vpack.c.b16 %v422, %v421
      %v459 = vpack.c.b16 %v424, %v423
      %v460 = vpack.c.b16 %v426, %v425
      %v461 = vpack.c.b16 %v428, %v427
      %v462 = vpack.c.b16 %v430, %v429
      %v511 = vunpack.c.l.b16 %v287
      %v512 = vunpack.c.l.b16 %v288
      %v513 = vunpack.c.l.b16 %v289
      %v514 = vunpack.c.l.b16 %v290
      %v515 = vunpack.c.l.b16 %v291
      %v516 = vunpack.c.l.b16 %v292
      %v517 = vunpack.c.l.b16 %v293
      %v518 = vunpack.c.l.b16 %v294
      %v519 = vunpack.c.l.b16 %v295
      %v520 = vunpack.c.l.b16 %v296
      %v521 = vunpack.c.l.b16 %v297
      %v522 = vunpack.c.l.b16 %v298
      %v523 = vunpack.c.l.b16 %v299
      %v524 = vunpack.c.l.b16 %v300
      %v525 = vunpack.c.l.b16 %v301
      %v526 = vunpack.c.l.b16 %v302
      %v527 = vpack.c.b16 %v512, %v511
      %v528 = vpack.c.b16 %v514, %v513
      %v529 = vpack.c.b16 %v516, %v515
      %v530 = vpack.c.b16 %v518, %v517
      %v531 = vpack.c.b16 %v520, %v519
      %v532 = vpack.c.b16 %v522, %v521
      %v533 = vpack.c.b16 %v524, %v523
      %v534 = vpack.c.b16 %v526, %v525
      %543 = vmatprep.subr.bf16.mxu0 0
      %544 = vmatpush1.bf16.msra.mxu0 %v534
      %545 = vmatprep.subr.bf16.mxu0 0
      %546 = vmatpush1.bf16.msra.mxu0 %v533
      %547 = vmatprep.subr.bf16.mxu0 0
      %548 = vmatpush1.bf16.msra.mxu0 %v532
      %549 = vmatprep.subr.bf16.mxu0 0
      %550 = vmatpush1.bf16.msra.mxu0 %v531
      %551 = vmatprep.subr.bf16.mxu0 0
      %552 = vmatpush1.bf16.msra.mxu0 %v530
      %553 = vmatprep.subr.bf16.mxu0 0
      %554 = vmatpush1.bf16.msra.mxu0 %v529
      %555 = vmatprep.subr.bf16.mxu0 0
      %556 = vmatpush1.bf16.msra.mxu0 %v528
      %557 = vmatprep.subr.bf16.mxu0 0
      %558 = vmatpush1.bf16.msra.mxu0 %v527
      %559 = vmatprep.subr.bf16.mxu0 0
      %560 = vmatpush2.bf16.msra.mxu0 0
      %561 = vmatprep.subr.bf16.mxu0 0
      %562 = vmatpush2.bf16.msra.mxu0 0
      %563 = vmatprep.subr.bf16.mxu0 0
      %564 = vmatpush2.bf16.msra.mxu0 0
      %565 = vmatprep.subr.bf16.mxu0 0
      %566 = vmatpush2.bf16.msra.mxu0 0
      %567 = vmatprep.subr.bf16.mxu0 0
      %568 = vmatpush2.bf16.msra.mxu0 0
      %569 = vmatprep.subr.bf16.mxu0 0
      %570 = vmatpush2.bf16.msra.mxu0 0
      %571 = vmatprep.subr.bf16.mxu0 0
      %572 = vmatpush2.bf16.msra.mxu0 0
      %573 = vmatprep.subr.bf16.mxu0 0
      %574 = vmatpush2.bf16.msra.mxu0 0
      %575 = vmatprep.mubr.bf16.mxu0 0
      %576 = vmatmul.mubr.bf16.gmra.mxu0 %v431
      %v577 = vpop.f32.mrf.mxu0
      %v578 = vadd.f32 0.0, %v577
      %v579 = vpop.f32.mrf.mxu0
      %v580 = vpop.f32.mrf.mxu0
      %v581 = vadd.f32 0.0, %v580
      %v582 = vpop.f32.mrf.mxu0
      %583 = vmatprep.mubr.bf16.mxu0 0
      %584 = vmatmul.mubr.bf16.gmra.mxu0 %v432
      %v585 = vpop.f32.mrf.mxu0
      %v586 = vadd.f32 0.0, %v585
      %v587 = vpop.f32.mrf.mxu0
      %v588 = vpop.f32.mrf.mxu0
      %v589 = vadd.f32 0.0, %v588
      %v590 = vpop.f32.mrf.mxu0
      %591 = vmatprep.mubr.bf16.mxu0 0
      %592 = vmatmul.mubr.bf16.gmra.mxu0 %v433
      %v593 = vpop.f32.mrf.mxu0
      %v594 = vadd.f32 0.0, %v593
      %v595 = vpop.f32.mrf.mxu0
      %v596 = vpop.f32.mrf.mxu0
      %v597 = vadd.f32 0.0, %v596
      %v598 = vpop.f32.mrf.mxu0
      %599 = vmatprep.mubr.bf16.mxu0 0
      %600 = vmatmul.mubr.bf16.gmra.mxu0 %v434
      %v601 = vpop.f32.mrf.mxu0
      %v602 = vadd.f32 0.0, %v601
      %v603 = vpop.f32.mrf.mxu0
      %v604 = vpop.f32.mrf.mxu0
      %v605 = vadd.f32 0.0, %v604
      %v606 = vpop.f32.mrf.mxu0
      %607 = vmatprep.mubr.bf16.mxu0 0
      %608 = vmatmul.mubr.bf16.gmra.mxu0 %v435
      %v609 = vpop.f32.mrf.mxu0
      %v610 = vadd.f32 0.0, %v609
      %v611 = vpop.f32.mrf.mxu0
      %v612 = vpop.f32.mrf.mxu0
      %v613 = vadd.f32 0.0, %v612
      %v614 = vpop.f32.mrf.mxu0
      %615 = vmatprep.mubr.bf16.mxu0 0
      %616 = vmatmul.mubr.bf16.gmra.mxu0 %v436
      %v617 = vpop.f32.mrf.mxu0
      %v618 = vadd.f32 0.0, %v617
      %v619 = vpop.f32.mrf.mxu0
      %v620 = vpop.f32.mrf.mxu0
      %v621 = vadd.f32 0.0, %v620
      %v622 = vpop.f32.mrf.mxu0
      %623 = vmatprep.mubr.bf16.mxu0 0
      %624 = vmatmul.mubr.bf16.gmra.mxu0 %v437
      %v625 = vpop.f32.mrf.mxu0
      %v626 = vadd.f32 0.0, %v625
      %v627 = vpop.f32.mrf.mxu0
      %v628 = vpop.f32.mrf.mxu0
      %v629 = vadd.f32 0.0, %v628
      %v630 = vpop.f32.mrf.mxu0
      %631 = vmatprep.mubr.bf16.mxu0 0
      %632 = vmatmul.mubr.bf16.gmra.mxu0 %v438
      %v633 = vpop.f32.mrf.mxu0
      %v634 = vadd.f32 0.0, %v633
      %v635 = vpop.f32.mrf.mxu0
      %v636 = vpop.f32.mrf.mxu0
      %v637 = vadd.f32 0.0, %v636
      %v638 = vpop.f32.mrf.mxu0
      %639 = vmatprep.mubr.bf16.mxu0 0
      %640 = vmatmul.mubr.bf16.gmra.mxu0 %v439
      %v641 = vpop.f32.mrf.mxu0
      %v642 = vadd.f32 0.0, %v641
      %v643 = vpop.f32.mrf.mxu0
      %v644 = vpop.f32.mrf.mxu0
      %v645 = vadd.f32 0.0, %v644
      %v646 = vpop.f32.mrf.mxu0
      %647 = vmatprep.mubr.bf16.mxu0 0
      %648 = vmatmul.mubr.bf16.gmra.mxu0 %v440
      %v649 = vpop.f32.mrf.mxu0
      %v650 = vadd.f32 0.0, %v649
      %v651 = vpop.f32.mrf.mxu0
      %v652 = vpop.f32.mrf.mxu0
      %v653 = vadd.f32 0.0, %v652
      %v654 = vpop.f32.mrf.mxu0
      %655 = vmatprep.mubr.bf16.mxu0 0
      %656 = vmatmul.mubr.bf16.gmra.mxu0 %v441
      %v657 = vpop.f32.mrf.mxu0
      %v658 = vadd.f32 0.0, %v657
      %v659 = vpop.f32.mrf.mxu0
      %v660 = vpop.f32.mrf.mxu0
      %v661 = vadd.f32 0.0, %v660
      %v662 = vpop.f32.mrf.mxu0
      %663 = vmatprep.mubr.bf16.mxu0 0
      %664 = vmatmul.mubr.bf16.gmra.mxu0 %v442
      %v665 = vpop.f32.mrf.mxu0
      %v666 = vadd.f32 0.0, %v665
      %v667 = vpop.f32.mrf.mxu0
      %v668 = vpop.f32.mrf.mxu0
      %v669 = vadd.f32 0.0, %v668
      %v670 = vpop.f32.mrf.mxu0
      %671 = vmatprep.mubr.bf16.mxu0 0
      %672 = vmatmul.mubr.bf16.gmra.mxu0 %v443
      %v673 = vpop.f32.mrf.mxu0
      %v674 = vadd.f32 0.0, %v673
      %v675 = vpop.f32.mrf.mxu0
      %v676 = vpop.f32.mrf.mxu0
      %v677 = vadd.f32 0.0, %v676
      %v678 = vpop.f32.mrf.mxu0
      %679 = vmatprep.mubr.bf16.mxu0 0
      %680 = vmatmul.mubr.bf16.gmra.mxu0 %v444
      %v681 = vpop.f32.mrf.mxu0
      %v682 = vadd.f32 0.0, %v681
      %v683 = vpop.f32.mrf.mxu0
      %v684 = vpop.f32.mrf.mxu0
      %v685 = vadd.f32 0.0, %v684
      %v686 = vpop.f32.mrf.mxu0
      %687 = vmatprep.mubr.bf16.mxu0 0
      %688 = vmatmul.mubr.bf16.gmra.mxu0 %v445
      %v689 = vpop.f32.mrf.mxu0
      %v690 = vadd.f32 0.0, %v689
      %v691 = vpop.f32.mrf.mxu0
      %v692 = vpop.f32.mrf.mxu0
      %v693 = vadd.f32 0.0, %v692
      %v694 = vpop.f32.mrf.mxu0
      %695 = vmatprep.mubr.bf16.mxu0 0
      %696 = vmatmul.mubr.bf16.gmra.mxu0 %v446
      %v697 = vpop.f32.mrf.mxu0
      %v698 = vadd.f32 0.0, %v697
      %v699 = vpop.f32.mrf.mxu0
      %v700 = vpop.f32.mrf.mxu0
      %v701 = vadd.f32 0.0, %v700
      %v702 = vpop.f32.mrf.mxu0
      %703 = vmatprep.mubr.bf16.mxu0 0
      %704 = vmatmul.mubr.bf16.gmra.mxu0 %v447
      %v705 = vpop.f32.mrf.mxu0
      %v706 = vadd.f32 0.0, %v705
      %v707 = vpop.f32.mrf.mxu0
      %v708 = vpop.f32.mrf.mxu0
      %v709 = vadd.f32 0.0, %v708
      %v710 = vpop.f32.mrf.mxu0
      %711 = vmatprep.mubr.bf16.mxu0 0
      %712 = vmatmul.mubr.bf16.gmra.mxu0 %v448
      %v713 = vpop.f32.mrf.mxu0
      %v714 = vadd.f32 0.0, %v713
      %v715 = vpop.f32.mrf.mxu0
      %v716 = vpop.f32.mrf.mxu0
      %v717 = vadd.f32 0.0, %v716
      %v718 = vpop.f32.mrf.mxu0
      %719 = vmatprep.mubr.bf16.mxu0 0
      %720 = vmatmul.mubr.bf16.gmra.mxu0 %v449
      %v721 = vpop.f32.mrf.mxu0
      %v722 = vadd.f32 0.0, %v721
      %v723 = vpop.f32.mrf.mxu0
      %v724 = vpop.f32.mrf.mxu0
      %v725 = vadd.f32 0.0, %v724
      %v726 = vpop.f32.mrf.mxu0
      %727 = vmatprep.mubr.bf16.mxu0 0
      %728 = vmatmul.mubr.bf16.gmra.mxu0 %v450
      %v729 = vpop.f32.mrf.mxu0
      %v730 = vadd.f32 0.0, %v729
      %v731 = vpop.f32.mrf.mxu0
      %v732 = vpop.f32.mrf.mxu0
      %v733 = vadd.f32 0.0, %v732
      %v734 = vpop.f32.mrf.mxu0
      %735 = vmatprep.mubr.bf16.mxu0 0
      %736 = vmatmul.mubr.bf16.gmra.mxu0 %v451
      %v737 = vpop.f32.mrf.mxu0
      %v738 = vadd.f32 0.0, %v737
      %v739 = vpop.f32.mrf.mxu0
      %v740 = vpop.f32.mrf.mxu0
      %v741 = vadd.f32 0.0, %v740
      %v742 = vpop.f32.mrf.mxu0
      %743 = vmatprep.mubr.bf16.mxu0 0
      %744 = vmatmul.mubr.bf16.gmra.mxu0 %v452
      %v745 = vpop.f32.mrf.mxu0
      %v746 = vadd.f32 0.0, %v745
      %v747 = vpop.f32.mrf.mxu0
      %v748 = vpop.f32.mrf.mxu0
      %v749 = vadd.f32 0.0, %v748
      %v750 = vpop.f32.mrf.mxu0
      %751 = vmatprep.mubr.bf16.mxu0 0
      %752 = vmatmul.mubr.bf16.gmra.mxu0 %v453
      %v753 = vpop.f32.mrf.mxu0
      %v754 = vadd.f32 0.0, %v753
      %v755 = vpop.f32.mrf.mxu0
      %v756 = vpop.f32.mrf.mxu0
      %v757 = vadd.f32 0.0, %v756
      %v758 = vpop.f32.mrf.mxu0
      %759 = vmatprep.mubr.bf16.mxu0 0
      %760 = vmatmul.mubr.bf16.gmra.mxu0 %v454
      %v761 = vpop.f32.mrf.mxu0
      %v762 = vadd.f32 0.0, %v761
      %v763 = vpop.f32.mrf.mxu0
      %v764 = vpop.f32.mrf.mxu0
      %v765 = vadd.f32 0.0, %v764
      %v766 = vpop.f32.mrf.mxu0
      %767 = vmatprep.mubr.bf16.mxu0 0
      %768 = vmatmul.mubr.bf16.gmra.mxu0 %v455
      %v769 = vpop.f32.mrf.mxu0
      %v770 = vadd.f32 0.0, %v769
      %v771 = vpop.f32.mrf.mxu0
      %v772 = vpop.f32.mrf.mxu0
      %v773 = vadd.f32 0.0, %v772
      %v774 = vpop.f32.mrf.mxu0
      %775 = vmatprep.mubr.bf16.mxu0 0
      %776 = vmatmul.mubr.bf16.gmra.mxu0 %v456
      %v777 = vpop.f32.mrf.mxu0
      %v778 = vadd.f32 0.0, %v777
      %v779 = vpop.f32.mrf.mxu0
      %v780 = vpop.f32.mrf.mxu0
      %v781 = vadd.f32 0.0, %v780
      %v782 = vpop.f32.mrf.mxu0
      %783 = vmatprep.mubr.bf16.mxu0 0
      %784 = vmatmul.mubr.bf16.gmra.mxu0 %v457
      %v785 = vpop.f32.mrf.mxu0
      %v786 = vadd.f32 0.0, %v785
      %v787 = vpop.f32.mrf.mxu0
      %v788 = vpop.f32.mrf.mxu0
      %v789 = vadd.f32 0.0, %v788
      %v790 = vpop.f32.mrf.mxu0
      %791 = vmatprep.mubr.bf16.mxu0 0
      %792 = vmatmul.mubr.bf16.gmra.mxu0 %v458
      %v793 = vpop.f32.mrf.mxu0
      %v794 = vadd.f32 0.0, %v793
      %v795 = vpop.f32.mrf.mxu0
      %v796 = vpop.f32.mrf.mxu0
      %v797 = vadd.f32 0.0, %v796
      %v798 = vpop.f32.mrf.mxu0
      %799 = vmatprep.mubr.bf16.mxu0 0
      %800 = vmatmul.mubr.bf16.gmra.mxu0 %v459
      %v801 = vpop.f32.mrf.mxu0
      %v802 = vadd.f32 0.0, %v801
      %v803 = vpop.f32.mrf.mxu0
      %v804 = vpop.f32.mrf.mxu0
      %v805 = vadd.f32 0.0, %v804
      %v806 = vpop.f32.mrf.mxu0
      %807 = vmatprep.mubr.bf16.mxu0 0
      %808 = vmatmul.mubr.bf16.gmra.mxu0 %v460
      %v809 = vpop.f32.mrf.mxu0
      %v810 = vadd.f32 0.0, %v809
      %v811 = vpop.f32.mrf.mxu0
      %v812 = vpop.f32.mrf.mxu0
      %v813 = vadd.f32 0.0, %v812
      %v814 = vpop.f32.mrf.mxu0
      %815 = vmatprep.mubr.bf16.mxu0 0
      %816 = vmatmul.mubr.bf16.gmra.mxu0 %v461
      %v817 = vpop.f32.mrf.mxu0
      %v818 = vadd.f32 0.0, %v817
      %v819 = vpop.f32.mrf.mxu0
      %v820 = vpop.f32.mrf.mxu0
      %v821 = vadd.f32 0.0, %v820
      %v822 = vpop.f32.mrf.mxu0
      %823 = vmatprep.mubr.bf16.mxu0 0
      %824 = vmatmul.mubr.bf16.gmra.mxu0 %v462
      %v825 = vpop.f32.mrf.mxu0
      %v826 = vadd.f32 0.0, %v825
      %v827 = vpop.f32.mrf.mxu0
      %v828 = vpop.f32.mrf.mxu0
      %v829 = vadd.f32 0.0, %v828
      %v830 = vpop.f32.mrf.mxu0
      %831 = vdwg.mxu0
      %832 = vst [vmem:[%s212] sm:$0xff] %v578
      %833 = vst [vmem:[%s212 + $0x8] sm:$0xff] %v581
      %834 = vst [vmem:[%s212 + $0x10] sm:$0xff] %v586
      %835 = vst [vmem:[%s212 + $0x18] sm:$0xff] %v589
      %836 = vst [vmem:[%s212 + $0x20] sm:$0xff] %v594
      %837 = vst [vmem:[%s212 + $0x28] sm:$0xff] %v597
      %838 = vst [vmem:[%s212 + $0x30] sm:$0xff] %v602
      %839 = vst [vmem:[%s212 + $0x38] sm:$0xff] %v605
      %840 = vst [vmem:[%s212 + $0x40] sm:$0xff] %v610
      %841 = vst [vmem:[%s212 + $0x48] sm:$0xff] %v613
      %842 = vst [vmem:[%s212 + $0x50] sm:$0xff] %v618
      %843 = vst [vmem:[%s212 + $0x58] sm:$0xff] %v621
      %844 = vst [vmem:[%s212 + $0x60] sm:$0xff] %v626
      %845 = vst [vmem:[%s212 + $0x68] sm:$0xff] %v629
      %846 = vst [vmem:[%s212 + $0x70] sm:$0xff] %v634
      %847 = vst [vmem:[%s212 + $0x78] sm:$0xff] %v637
      %848 = vst [vmem:[%s212 + $0x80] sm:$0xff] %v642
      %849 = vst [vmem:[%s212 + $0x88] sm:$0xff] %v645
      %850 = vst [vmem:[%s212 + $0x90] sm:$0xff] %v650
      %851 = vst [vmem:[%s212 + $0x98] sm:$0xff] %v653
      %852 = vst [vmem:[%s212 + $0xa0] sm:$0xff] %v658
      %853 = vst [vmem:[%s212 + $0xa8] sm:$0xff] %v661
      %854 = vst [vmem:[%s212 + $0xb0] sm:$0xff] %v666
      %855 = vst [vmem:[%s212 + $0xb8] sm:$0xff] %v669
      %856 = vst [vmem:[%s212 + $0xc0] sm:$0xff] %v674
      %857 = vst [vmem:[%s212 + $0xc8] sm:$0xff] %v677
      %858 = vst [vmem:[%s212 + $0xd0] sm:$0xff] %v682
      %859 = vst [vmem:[%s212 + $0xd8] sm:$0xff] %v685
      %860 = vst [vmem:[%s212 + $0xe0] sm:$0xff] %v690
      %861 = vst [vmem:[%s212 + $0xe8] sm:$0xff] %v693
      %862 = vst [vmem:[%s212 + $0xf0] sm:$0xff] %v698
      %863 = vst [vmem:[%s212 + $0xf8] sm:$0xff] %v701
      %864 = vst [vmem:[%s212 + $0x100] sm:$0xff] %v706
      %865 = vst [vmem:[%s212 + $0x108] sm:$0xff] %v709
      %866 = vst [vmem:[%s212 + $0x110] sm:$0xff] %v714
      %867 = vst [vmem:[%s212 + $0x118] sm:$0xff] %v717
      %868 = vst [vmem:[%s212 + $0x120] sm:$0xff] %v722
      %869 = vst [vmem:[%s212 + $0x128] sm:$0xff] %v725
      %870 = vst [vmem:[%s212 + $0x130] sm:$0xff] %v730
      %871 = vst [vmem:[%s212 + $0x138] sm:$0xff] %v733
      %872 = vst [vmem:[%s212 + $0x140] sm:$0xff] %v738
      %873 = vst [vmem:[%s212 + $0x148] sm:$0xff] %v741
      %874 = vst [vmem:[%s212 + $0x150] sm:$0xff] %v746
      %875 = vst [vmem:[%s212 + $0x158] sm:$0xff] %v749
      %876 = vst [vmem:[%s212 + $0x160] sm:$0xff] %v754
      %877 = vst [vmem:[%s212 + $0x168] sm:$0xff] %v757
      %878 = vst [vmem:[%s212 + $0x170] sm:$0xff] %v762
      %879 = vst [vmem:[%s212 + $0x178] sm:$0xff] %v765
      %880 = vst [vmem:[%s212 + $0x180] sm:$0xff] %v770
      %881 = vst [vmem:[%s212 + $0x188] sm:$0xff] %v773
      %882 = vst [vmem:[%s212 + $0x190] sm:$0xff] %v778
      %883 = vst [vmem:[%s212 + $0x198] sm:$0xff] %v781
      %884 = vst [vmem:[%s212 + $0x1a0] sm:$0xff] %v786
      %885 = vst [vmem:[%s212 + $0x1a8] sm:$0xff] %v789
      %886 = vst [vmem:[%s212 + $0x1b0] sm:$0xff] %v794
      %887 = vst [vmem:[%s212 + $0x1b8] sm:$0xff] %v797
      %888 = vst [vmem:[%s212 + $0x1c0] sm:$0xff] %v802
      %889 = vst [vmem:[%s212 + $0x1c8] sm:$0xff] %v805
      %890 = vst [vmem:[%s212 + $0x1d0] sm:$0xff] %v810
      %891 = vst [vmem:[%s212 + $0x1d8] sm:$0xff] %v813
      %892 = vst [vmem:[%s212 + $0x1e0] sm:$0xff] %v818
      %893 = vst [vmem:[%s212 + $0x1e8] sm:$0xff] %v821
      %894 = vst [vmem:[%s212 + $0x1f0] sm:$0xff] %v826
      %895 = vst [vmem:[%s212 + $0x1f8] sm:$0xff] %v829
      %v896 = vadd.f32 %v578, %v581
      %v897 = vadd.f32 %v896, %v586
      %v898 = vadd.f32 %v897, %v589
      %v899 = vadd.f32 %v898, %v594
      %v900 = vadd.f32 %v899, %v597
      %v901 = vadd.f32 %v900, %v602
      %v902 = vadd.f32 %v901, %v605
      %v903 = vadd.f32 %v902, %v610
      %v904 = vadd.f32 %v903, %v613
      %v905 = vadd.f32 %v904, %v618
      %v906 = vadd.f32 %v905, %v621
      %v907 = vadd.f32 %v906, %v626
      %v908 = vadd.f32 %v907, %v629
      %v909 = vadd.f32 %v908, %v634
      %v910 = vadd.f32 %v909, %v637
      %v911 = vadd.f32 %v910, %v642
      %v912 = vadd.f32 %v911, %v645
      %v913 = vadd.f32 %v912, %v650
      %v914 = vadd.f32 %v913, %v653
      %v915 = vadd.f32 %v914, %v658
      %v916 = vadd.f32 %v915, %v661
      %v917 = vadd.f32 %v916, %v666
      %v918 = vadd.f32 %v917, %v669
      %v919 = vadd.f32 %v918, %v674
      %v920 = vadd.f32 %v919, %v677
      %v921 = vadd.f32 %v920, %v682
      %v922 = vadd.f32 %v921, %v685
      %v923 = vadd.f32 %v922, %v690
      %v924 = vadd.f32 %v923, %v693
      %v925 = vadd.f32 %v924, %v698
      %v926 = vadd.f32 %v925, %v701
      %v927 = vadd.f32 %v926, %v706
      %v928 = vadd.f32 %v927, %v709
      %v929 = vadd.f32 %v928, %v714
      %v930 = vadd.f32 %v929, %v717
      %v931 = vadd.f32 %v930, %v722
      %v932 = vadd.f32 %v931, %v725
      %v933 = vadd.f32 %v932, %v730
      %v934 = vadd.f32 %v933, %v733
      %v935 = vadd.f32 %v934, %v738
      %v936 = vadd.f32 %v935, %v741
      %v937 = vadd.f32 %v936, %v746
      %v938 = vadd.f32 %v937, %v749
      %v939 = vadd.f32 %v938, %v754
      %v940 = vadd.f32 %v939, %v757
      %v941 = vadd.f32 %v940, %v762
      %v942 = vadd.f32 %v941, %v765
      %v943 = vadd.f32 %v942, %v770
      %v944 = vadd.f32 %v943, %v773
      %v945 = vadd.f32 %v944, %v778
      %v946 = vadd.f32 %v945, %v781
      %v947 = vadd.f32 %v946, %v786
      %v948 = vadd.f32 %v947, %v789
      %v949 = vadd.f32 %v948, %v794
      %v950 = vadd.f32 %v949, %v797
      %v951 = vadd.f32 %v950, %v802
      %v952 = vadd.f32 %v951, %v805
      %v953 = vadd.f32 %v952, %v810
      %v954 = vadd.f32 %v953, %v813
      %v955 = vadd.f32 %v954, %v818
      %v956 = vadd.f32 %v955, %v821
      %v957 = vadd.f32 %v956, %v826
      %v958 = vadd.f32 %v957, %v829
      %v959 = vrot.slane %v958, 4
      %v960 = vadd.f32 %v958, %v959
      %v961 = vrot.slane %v960, 2
      %v962 = vadd.f32 %v960, %v961
      %v963 = vrot.slane %v962, 1
      %v964 = vadd.f32 %v962, %v963
      %v965 = vmul.f32 %v578, %v578
      %v966 = vmul.f32 %v581, %v581
      %v967 = vmul.f32 %v586, %v586
      %v968 = vmul.f32 %v589, %v589
      %v969 = vmul.f32 %v594, %v594
      %v970 = vmul.f32 %v597, %v597
      %v971 = vmul.f32 %v602, %v602
      %v972 = vmul.f32 %v605, %v605
      %v973 = vmul.f32 %v610, %v610
      %v974 = vmul.f32 %v613, %v613
      %v975 = vmul.f32 %v618, %v618
      %v976 = vmul.f32 %v621, %v621
      %v977 = vmul.f32 %v626, %v626
      %v978 = vmul.f32 %v629, %v629
      %v979 = vmul.f32 %v634, %v634
      %v980 = vmul.f32 %v637, %v637
      %v981 = vmul.f32 %v642, %v642
      %v982 = vmul.f32 %v645, %v645
      %v983 = vmul.f32 %v650, %v650
      %v984 = vmul.f32 %v653, %v653
      %v985 = vmul.f32 %v658, %v658
      %v986 = vmul.f32 %v661, %v661
      %v987 = vmul.f32 %v666, %v666
      %v988 = vmul.f32 %v669, %v669
      %v989 = vmul.f32 %v674, %v674
      %v990 = vmul.f32 %v677, %v677
      %v991 = vmul.f32 %v682, %v682
      %v992 = vmul.f32 %v685, %v685
      %v993 = vmul.f32 %v690, %v690
      %v994 = vmul.f32 %v693, %v693
      %v995 = vmul.f32 %v698, %v698
      %v996 = vmul.f32 %v701, %v701
      %v997 = vmul.f32 %v706, %v706
      %v998 = vmul.f32 %v709, %v709
      %v999 = vmul.f32 %v714, %v714
      %v1000 = vmul.f32 %v717, %v717
      %v1001 = vmul.f32 %v722, %v722
      %v1002 = vmul.f32 %v725, %v725
      %v1003 = vmul.f32 %v730, %v730
      %v1004 = vmul.f32 %v733, %v733
      %v1005 = vmul.f32 %v738, %v738
      %v1006 = vmul.f32 %v741, %v741
      %v1007 = vmul.f32 %v746, %v746
      %v1008 = vmul.f32 %v749, %v749
      %v1009 = vmul.f32 %v754, %v754
      %v1010 = vmul.f32 %v757, %v757
      %v1011 = vmul.f32 %v762, %v762
      %v1012 = vmul.f32 %v765, %v765
      %v1013 = vmul.f32 %v770, %v770
      %v1014 = vmul.f32 %v773, %v773
      %v1015 = vmul.f32 %v778, %v778
      %v1016 = vmul.f32 %v781, %v781
      %v1017 = vmul.f32 %v786, %v786
      %v1018 = vmul.f32 %v789, %v789
      %v1019 = vmul.f32 %v794, %v794
      %v1020 = vmul.f32 %v797, %v797
      %v1021 = vmul.f32 %v802, %v802
      %v1022 = vmul.f32 %v805, %v805
      %v1023 = vmul.f32 %v810, %v810
      %v1024 = vmul.f32 %v813, %v813
      %v1025 = vmul.f32 %v818, %v818
      %v1026 = vmul.f32 %v821, %v821
      %v1027 = vmul.f32 %v826, %v826
      %v1028 = vmul.f32 %v829, %v829
      %v1029 = vadd.f32 %v965, %v966
      %v1030 = vadd.f32 %v1029, %v967
      %v1031 = vadd.f32 %v1030, %v968
      %v1032 = vadd.f32 %v1031, %v969
      %v1033 = vadd.f32 %v1032, %v970
      %v1034 = vadd.f32 %v1033, %v971
      %v1035 = vadd.f32 %v1034, %v972
      %v1036 = vadd.f32 %v1035, %v973
      %v1037 = vadd.f32 %v1036, %v974
      %v1038 = vadd.f32 %v1037, %v975
      %v1039 = vadd.f32 %v1038, %v976
      %v1040 = vadd.f32 %v1039, %v977
      %v1041 = vadd.f32 %v1040, %v978
      %v1042 = vadd.f32 %v1041, %v979
      %v1043 = vadd.f32 %v1042, %v980
      %v1044 = vadd.f32 %v1043, %v981
      %v1045 = vadd.f32 %v1044, %v982
      %v1046 = vadd.f32 %v1045, %v983
      %v1047 = vadd.f32 %v1046, %v984
      %v1048 = vadd.f32 %v1047, %v985
      %v1049 = vadd.f32 %v1048, %v986
      %v1050 = vadd.f32 %v1049, %v987
      %v1051 = vadd.f32 %v1050, %v988
      %v1052 = vadd.f32 %v1051, %v989
      %v1053 = vadd.f32 %v1052, %v990
      %v1054 = vadd.f32 %v1053, %v991
      %v1055 = vadd.f32 %v1054, %v992
      %v1056 = vadd.f32 %v1055, %v993
      %v1057 = vadd.f32 %v1056, %v994
      %v1058 = vadd.f32 %v1057, %v995
      %v1059 = vadd.f32 %v1058, %v996
      %v1060 = vadd.f32 %v1059, %v997
      %v1061 = vadd.f32 %v1060, %v998
      %v1062 = vadd.f32 %v1061, %v999
      %v1063 = vadd.f32 %v1062, %v1000
      %v1064 = vadd.f32 %v1063, %v1001
      %v1065 = vadd.f32 %v1064, %v1002
      %v1066 = vadd.f32 %v1065, %v1003
      %v1067 = vadd.f32 %v1066, %v1004
      %v1068 = vadd.f32 %v1067, %v1005
      %v1069 = vadd.f32 %v1068, %v1006
      %v1070 = vadd.f32 %v1069, %v1007
      %v1071 = vadd.f32 %v1070, %v1008
      %v1072 = vadd.f32 %v1071, %v1009
      %v1073 = vadd.f32 %v1072, %v1010
      %v1074 = vadd.f32 %v1073, %v1011
      %v1075 = vadd.f32 %v1074, %v1012
      %v1076 = vadd.f32 %v1075, %v1013
      %v1077 = vadd.f32 %v1076, %v1014
      %v1078 = vadd.f32 %v1077, %v1015
      %v1079 = vadd.f32 %v1078, %v1016
      %v1080 = vadd.f32 %v1079, %v1017
      %v1081 = vadd.f32 %v1080, %v1018
      %v1082 = vadd.f32 %v1081, %v1019
      %v1083 = vadd.f32 %v1082, %v1020
      %v1084 = vadd.f32 %v1083, %v1021
      %v1085 = vadd.f32 %v1084, %v1022
      %v1086 = vadd.f32 %v1085, %v1023
      %v1087 = vadd.f32 %v1086, %v1024
      %v1088 = vadd.f32 %v1087, %v1025
      %v1089 = vadd.f32 %v1088, %v1026
      %v1090 = vadd.f32 %v1089, %v1027
      %v1091 = vadd.f32 %v1090, %v1028
      %v1092 = vrot.slane %v1091, 4
      %v1093 = vadd.f32 %v1091, %v1092
      %v1094 = vrot.slane %v1093, 2
      %v1095 = vadd.f32 %v1093, %v1094
      %v1096 = vrot.slane %v1095, 1
      %v1097 = vadd.f32 %v1095, %v1096
      %1098 = vst [vmem:[%s217] sm:$0xff] %v964
      %1099 = vst [vmem:[%s221] sm:$0xff] %v1097
      %s1100 = smul.u32 64, %s16
      %p1101 = scmp.lt.s32.totalorder %s1100, 127
      %s1102 = scalar_select %p1101, %s1100, 127
      %s1103 = smul.addr %s1102, 8
      %s1104 = scalar_lea.vmem %s2, %s1103
      %p1105 = scmp.lt.s32.totalorder %s16, 1
      %s1106 = scalar_select %p1105, %s16, 1
      %s1107 = smul.addr %s1106, 8
      %s1108 = scalar_lea.vmem %s3, %s1107
      %p1109 = scmp.lt.s32.totalorder %s16, 1
      %s1110 = scalar_select %p1109, %s16, 1
      %s1111 = smul.addr %s1110, 8
      %s1112 = scalar_lea.vmem %s4, %s1111
      // Predicated region
      $region29: #{bottleneck_block_forward.10} parent=27 // pred_check
        %p1113 = pneg %p81
      $region30: #{bottleneck_block_forward.10} parent=27 // pred_check_branch
        %1115 = sbr.rel (%p1113) target = $region32
      $region31: #{bottleneck_block_forward.10} parent=27 // pred_region
        %s1116 = smul.u32 64, %s16
      $region32: #{bottleneck_block_forward.10} parent=27 // pred_fallthru
        _
      // Predicated region
      $region33: #{bottleneck_block_forward.10} parent=27 // pred_check
        %p1117 = pneg %p107
      $region34: #{bottleneck_block_forward.10} parent=27 // pred_check_branch
        %1119 = sbr.rel (%p1117) target = $region36
      $region35: #{bottleneck_block_forward.10} parent=27 // pred_region
        _
      $region36: #{bottleneck_block_forward.10} parent=27 // pred_fallthru
        _
      // Predicated region
      $region37: #{bottleneck_block_forward.10} parent=27 // pred_check
        %p1120 = pneg %p133
      $region38: #{bottleneck_block_forward.10} parent=27 // pred_check_branch
        %1122 = sbr.rel (%p1120) target = $region40
      $region39: #{bottleneck_block_forward.10} parent=27 // pred_region
        _
      $region40: #{bottleneck_block_forward.10} parent=27 // pred_fallthru
        _
    $region28: #{bottleneck_block_forward.10} parent=5 // pred_fallthru
      _
    %p1123 = scmp.le.s32.totalorder 2, %s11
    // Predicated region
    $region41: #{bottleneck_block_forward.10} parent=5 // pred_check
      %p1124 = pneg %p1123
    $region42: #{bottleneck_block_forward.10} parent=5 // pred_check_branch
      %1126 = sbr.rel (%p1124) target = $region44
    $region43: #{bottleneck_block_forward.10} parent=5 // pred_region
      %s1127 = ssub.s32 %s11, 2
      // Predicated region
      $region45: #{bottleneck_block_forward.10} parent=43 // pred_check
        %p1128 = pneg %p87
      $region46: #{bottleneck_block_forward.10} parent=43 // pred_check_branch
        %1130 = sbr.rel (%p1128) target = $region48
      $region47: #{bottleneck_block_forward.10} parent=43 // pred_region
        %s1131 = smul.u32 64, %s17
        %p1132 = scmp.lt.s32.totalorder %s1131, 127
        %s1133 = scalar_select %p1132, %s1131, 127
        %s1134 = smul.addr %s1133, 8
        %s1135 = scalar_lea.vmem %s2, %s1134
      $region48: #{bottleneck_block_forward.10} parent=43 // pred_fallthru
        _
      // Predicated region
      $region49: #{bottleneck_block_forward.10} parent=43 // pred_check
        %p1136 = pneg %p113
      $region50: #{bottleneck_block_forward.10} parent=43 // pred_check_branch
        %1138 = sbr.rel (%p1136) target = $region52
      $region51: #{bottleneck_block_forward.10} parent=43 // pred_region
        %p1139 = scmp.lt.s32.totalorder %s17, 1
        %s1140 = scalar_select %p1139, %s17, 1
        %s1141 = smul.addr %s1140, 8
        %s1142 = scalar_lea.vmem %s3, %s1141
      $region52: #{bottleneck_block_forward.10} parent=43 // pred_fallthru
        _
      // Predicated region
      $region53: #{bottleneck_block_forward.10} parent=43 // pred_check
        %p1143 = pneg %p139
      $region54: #{bottleneck_block_forward.10} parent=43 // pred_check_branch
        %1145 = sbr.rel (%p1143) target = $region56
      $region55: #{bottleneck_block_forward.10} parent=43 // pred_region
        %p1146 = scmp.lt.s32.totalorder %s17, 1
        %s1147 = scalar_select %p1146, %s17, 1
        %s1148 = smul.addr %s1147, 8
        %s1149 = scalar_lea.vmem %s4, %s1148
      $region56: #{bottleneck_block_forward.10} parent=43 // pred_fallthru
        _
    $region44: #{bottleneck_block_forward.10} parent=5 // pred_fallthru
      _
  $region6: #{bottleneck_block_forward.10} parent=0 // loop_footer
    %s15 = sadd.s32 1, %s11
  $region7: #{bottleneck_block_forward.10} parent=0 // loop_footer_branch
    %10 = sbr.rel target = $region3
  $region8: #{bottleneck_block_forward.10} parent=0 // loop_exit
    _

// kernel: bottleneck_block_forward.11
$region0: #{bottleneck_block_forward.11}
  #allocation0 [shape = 'u32[]', space=smem, size = 0x4, offset = 0x4, fixed_abs, tag = 'smem constant byte address 0x4 - core index']
  #allocation1 [shape = 'u32[144,128]{1,0:T(1,128)}', space=vmem, size = 0x12000, scoped, tag = 'internal scratch']
  %s0 = inlined_call_operand.vmem [shape: f32[1024,128], index: 0, kind: input, shape index: {}]
  %s1 = inlined_call_operand.vmem [shape: f32[1,128], index: 1, kind: input, shape index: {}]
  %s2 = inlined_call_operand.vmem [shape: f32[1,128], index: 2, kind: input, shape index: {}]
  %s3 = inlined_call_operand.vmem [shape: f32[1024,128], index: 3, kind: input, shape index: {}]
  %s4 = inlined_call_operand.vmem [shape: f32[1024,256], index: 4, kind: output, shape index: {}]
  %s5 = sld [smem:[#allocation0]]
  $region49: #{bottleneck_block_forward.11} parent=0
    _
  %s7 = ssub.s32 1, %s5
  %s8 = scalar_select 0, %s7, %s5
  loop: start=0, step=1, limit=4
  $region2: #{bottleneck_block_forward.11} parent=0 // loop_pre_header
    _
  $region3: #{bottleneck_block_forward.11} parent=0 // loop_header
    %s10 = sphi 0, %s14
    %p11 = scmp.ge.s32.totalorder %s10, 4
    %s20 = sphi 0, %s22
    %s23 = sphi 0, %s20
    %s24 = sphi 0, %s23
    %s40 = sphi 0, %s24
    %s44 = sphi 0, %s44
    %s46 = sphi 0, %s44
    %s47 = sphi 0, %s46
    %s61 = sphi 0, %s47
    %s65 = sphi 0, %s65
    %s67 = sphi 0, %s65
    %s68 = sphi 0, %s67
    %s82 = sphi 0, %s68
    %s88 = sphi 0, %s90
    %s91 = sphi 0, %s88
    %s92 = sphi 0, %s91
    %s108 = sphi 0, %s92
    %s114 = sphi 0, %s116
    %s117 = sphi 0, %s114
    %s118 = sphi 0, %s117
    %s134 = sphi 0, %s118
  $region4: #{bottleneck_block_forward.11} parent=0 // loop_header_branch
    %13 = sbr.rel (%p11) target = $region8
  $region5: #{bottleneck_block_forward.11} parent=0 // loop_body
    %s15 = ssub.s32 %s10, 1
    %s16 = ssub.s32 %s10, 2
    %s17 = sadd.s32 %s10, 1
    %s18 = ssub.s32 %s10, %s17
    %p19 = scmp.eq.s32.totalorder %s18, 0
    %s21 = sadd.s32 %s20, 1
    %s22 = scalar_select %p19, %s20, %s21
    %p25 = pneg %p19
    %p26 = scmp.eq.s32.totalorder %s10, 1
    %p27 = por %p25, %p26
    %p28 = scmp.ne.s32.totalorder %s20, %s23
    %p29 = scmp.eq.s32.totalorder %s10, 0
    %p30 = por %p28, %p29
    %p31 = scmp.ne.s32.totalorder %s20, %s23
    %p32 = scmp.eq.s32.totalorder %s15, 1
    %p33 = por %p31, %p32
    %p34 = scmp.ne.s32.totalorder %s23, %s24
    %p35 = scmp.eq.s32.totalorder %s15, 0
    %p36 = por %p34, %p35
    %p37 = scmp.ne.s32.totalorder %s23, %s24
    %p38 = scmp.eq.s32.totalorder %s16, 1
    %p39 = por %p37, %p38
    %p41 = scmp.ne.s32.totalorder %s24, %s40
    %p42 = scmp.eq.s32.totalorder %s16, 0
    %p43 = por %p41, %p42
    %s45 = sadd.s32 %s44, 1
    %p48 = scmp.eq.s32.totalorder %s10, 1
    %p49 = scmp.ne.s32.totalorder %s44, %s46
    %p50 = scmp.eq.s32.totalorder %s10, 0
    %p51 = por %p49, %p50
    %p52 = scmp.ne.s32.totalorder %s44, %s46
    %p53 = scmp.eq.s32.totalorder %s15, 1
    %p54 = por %p52, %p53
    %p55 = scmp.ne.s32.totalorder %s46, %s47
    %p56 = scmp.eq.s32.totalorder %s15, 0
    %p57 = por %p55, %p56
    %p58 = scmp.ne.s32.totalorder %s46, %s47
    %p59 = scmp.eq.s32.totalorder %s16, 1
    %p60 = por %p58, %p59
    %p62 = scmp.ne.s32.totalorder %s47, %s61
    %p63 = scmp.eq.s32.totalorder %s16, 0
    %p64 = por %p62, %p63
    %s66 = sadd.s32 %s65, 1
    %p69 = scmp.eq.s32.totalorder %s10, 1
    %p70 = scmp.ne.s32.totalorder %s65, %s67
    %p71 = scmp.eq.s32.totalorder %s10, 0
    %p72 = por %p70, %p71
    %p73 = scmp.ne.s32.totalorder %s65, %s67
    %p74 = scmp.eq.s32.totalorder %s15, 1
    %p75 = por %p73, %p74
    %p76 = scmp.ne.s32.totalorder %s67, %s68
    %p77 = scmp.eq.s32.totalorder %s15, 0
    %p78 = por %p76, %p77
    %p79 = scmp.ne.s32.totalorder %s67, %s68
    %p80 = scmp.eq.s32.totalorder %s16, 1
    %p81 = por %p79, %p80
    %p83 = scmp.ne.s32.totalorder %s68, %s82
    %p84 = scmp.eq.s32.totalorder %s16, 0
    %p85 = por %p83, %p84
    %s86 = ssub.s32 %s10, %s17
    %p87 = scmp.eq.s32.totalorder %s86, 0
    %s89 = sadd.s32 %s88, 1
    %s90 = scalar_select %p87, %s88, %s89
    %p93 = pneg %p87
    %p94 = scmp.eq.s32.totalorder %s10, 1
    %p95 = por %p93, %p94
    %p96 = scmp.ne.s32.totalorder %s88, %s91
    %p97 = scmp.eq.s32.totalorder %s10, 0
    %p98 = por %p96, %p97
    %p99 = scmp.ne.s32.totalorder %s88, %s91
    %p100 = scmp.eq.s32.totalorder %s15, 1
    %p101 = por %p99, %p100
    %p102 = scmp.ne.s32.totalorder %s91, %s92
    %p103 = scmp.eq.s32.totalorder %s15, 0
    %p104 = por %p102, %p103
    %p105 = scmp.ne.s32.totalorder %s91, %s92
    %p106 = scmp.eq.s32.totalorder %s16, 1
    %p107 = por %p105, %p106
    %p109 = scmp.ne.s32.totalorder %s92, %s108
    %p110 = scmp.eq.s32.totalorder %s16, 0
    %p111 = por %p109, %p110
    %s112 = ssub.s32 %s10, %s17
    %p113 = scmp.eq.s32.totalorder %s112, 0
    %s115 = sadd.s32 %s114, 1
    %s116 = scalar_select %p113, %s114, %s115
    %p119 = pneg %p113
    %p120 = scmp.eq.s32.totalorder %s10, 1
    %p121 = por %p119, %p120
    %p122 = scmp.ne.s32.totalorder %s114, %s117
    %p123 = scmp.eq.s32.totalorder %s10, 0
    %p124 = por %p122, %p123
    %p125 = scmp.ne.s32.totalorder %s114, %s117
    %p126 = scmp.eq.s32.totalorder %s15, 1
    %p127 = por %p125, %p126
    %p128 = scmp.ne.s32.totalorder %s117, %s118
    %p129 = scmp.eq.s32.totalorder %s15, 0
    %p130 = por %p128, %p129
    %p131 = scmp.ne.s32.totalorder %s117, %s118
    %p132 = scmp.eq.s32.totalorder %s16, 1
    %p133 = por %p131, %p132
    %p135 = scmp.ne.s32.totalorder %s118, %s134
    %p136 = scmp.eq.s32.totalorder %s16, 0
    %p137 = por %p135, %p136
    %p138 = scmp.le.s32.totalorder 1, %s10
    %p139 = scmp.lt.s32.totalorder %s10, 3
    %p140 = pnand %p138, %p139
    %p141 = pneg %p140
    // Predicated region
    $region9: #{bottleneck_block_forward.11} parent=5 // pred_check
      _
    $region10: #{bottleneck_block_forward.11} parent=5 // pred_check_branch
      %143 = sbr.rel (%p140) target = $region12
    $region11: #{bottleneck_block_forward.11} parent=5 // pred_region
      %s144 = ssub.s32 %s10, 1
      // Predicated region
      $region13: #{bottleneck_block_forward.11} parent=11 // pred_check
        %p145 = pneg %p57
      $region14: #{bottleneck_block_forward.11} parent=11 // pred_check_branch
        %147 = sbr.rel (%p145) target = $region16
      $region15: #{bottleneck_block_forward.11} parent=11 // pred_region
        _
      $region16: #{bottleneck_block_forward.11} parent=11 // pred_fallthru
        _
      // Predicated region
      $region17: #{bottleneck_block_forward.11} parent=11 // pred_check
        %p148 = pneg %p78
      $region18: #{bottleneck_block_forward.11} parent=11 // pred_check_branch
        %150 = sbr.rel (%p148) target = $region20
      $region19: #{bottleneck_block_forward.11} parent=11 // pred_region
        _
      $region20: #{bottleneck_block_forward.11} parent=11 // pred_fallthru
        _
    $region12: #{bottleneck_block_forward.11} parent=5 // pred_fallthru
      _
    %p151 = scmp.lt.s32.totalorder %s10, 2
    // Predicated region
    $region21: #{bottleneck_block_forward.11} parent=5 // pred_check
      %p152 = pneg %p151
    $region22: #{bottleneck_block_forward.11} parent=5 // pred_check_branch
      %154 = sbr.rel (%p152) target = $region24
    $region23: #{bottleneck_block_forward.11} parent=5 // pred_region
      // Predicated region
      $region25: #{bottleneck_block_forward.11} parent=23 // pred_check
        %p155 = pneg %p30
      $region26: #{bottleneck_block_forward.11} parent=23 // pred_check_branch
        %157 = sbr.rel (%p155) target = $region28
      $region27: #{bottleneck_block_forward.11} parent=23 // pred_region
        %s158 = smul.u32 64, %s10
        %p159 = scmp.lt.s32.totalorder %s158, 127
        %s160 = scalar_select %p159, %s158, 127
        %s161 = smul.addr %s160, 8
        %s162 = scalar_lea.vmem %s0, %s161
        %s163 = smul.u32 64, %s10
      $region28: #{bottleneck_block_forward.11} parent=23 // pred_fallthru
        _
      // Predicated region
      $region29: #{bottleneck_block_forward.11} parent=23 // pred_check
        %p164 = pneg %p98
      $region30: #{bottleneck_block_forward.11} parent=23 // pred_check_branch
        %166 = sbr.rel (%p164) target = $region32
      $region31: #{bottleneck_block_forward.11} parent=23 // pred_region
        %s167 = smul.u32 64, %s10
        %p168 = scmp.lt.s32.totalorder %s167, 127
        %s169 = scalar_select %p168, %s167, 127
        %s170 = smul.addr %s169, 8
        %s171 = scalar_lea.vmem %s3, %s170
        %s172 = smul.u32 64, %s10
      $region32: #{bottleneck_block_forward.11} parent=23 // pred_fallthru
        _
    $region24: #{bottleneck_block_forward.11} parent=5 // pred_fallthru
      _
    %p173 = scmp.le.s32.totalorder 1, %s10
    %p174 = scmp.lt.s32.totalorder %s10, 3
    %p175 = pnand %p173, %p174
    %p176 = pneg %p175
    // Predicated region
    $region33: #{bottleneck_block_forward.11} parent=5 // pred_check
      _
    $region34: #{bottleneck_block_forward.11} parent=5 // pred_check_branch
      %178 = sbr.rel (%p175) target = $region36
    $region35: #{bottleneck_block_forward.11} parent=5 // pred_region
      %s179 = ssub.s32 %s10, 1
      %s180 = smul.u32 64, %s15
      %p181 = scmp.lt.s32.totalorder %s180, 127
      %s182 = scalar_select %p181, %s180, 127
      %s183 = smul.addr %s182, 8
      %s184 = scalar_lea.vmem %s0, %s183
      %p185 = pneg %p36
      %p186 = pneg %p33
      %p187 = pneg %p57
      %p188 = pneg %p54
      %p189 = pneg %p78
      %p190 = pneg %p75
      %s191 = smul.u32 64, %s15
      %p192 = scmp.lt.s32.totalorder %s191, 127
      %s193 = scalar_select %p192, %s191, 127
      %s194 = smul.addr %s193, 8
      %s195 = scalar_lea.vmem %s3, %s194
      %p196 = pneg %p104
      %p197 = pneg %p101
      %p198 = pneg %p130
      %p199 = pneg %p127
      %s200 = smul.u32 64, %s15
      %p201 = scmp.lt.s32.totalorder %s200, 127
      %s202 = scalar_select %p201, %s200, 127
      %s203 = smul.addr %s202, 2
      %s204 = smul.addr %s203, 8
      %s205 = scalar_lea.vmem %s4, %s204
      %s206 = smul.u32 64, %s15
      %p207 = scmp.lt.s32.totalorder %s206, 127
      %s208 = scalar_select %p207, %s206, 127
      %s209 = smul.addr %s208, 8
      %s210 = scalar_lea.vmem %s0, %s209
      %s211 = smul.u32 64, %s15
      %s212 = smul.u32 64, %s15
      %p213 = scmp.lt.s32.totalorder %s212, 127
      %s214 = scalar_select %p213, %s212, 127
      %s215 = smul.addr %s214, 8
      %s216 = scalar_lea.vmem %s3, %s215
      %s217 = smul.u32 64, %s15
      %s218 = smul.u32 64, %s15
      %p219 = scmp.lt.s32.totalorder %s218, 127
      %s220 = scalar_select %p219, %s218, 127
      %s221 = smul.addr %s220, 2
      %s222 = smul.addr %s221, 8
      %s223 = scalar_lea.vmem %s4, %s222
      %s224 = smul.u32 64, %s15
      %v225 = vld [vmem:[%s210] sm:$0xff]
      %v226 = vld [vmem:[%s210 + $0x8] sm:$0xff]
      %v227 = vld [vmem:[%s210 + $0x10] sm:$0xff]
      %v228 = vld [vmem:[%s210 + $0x18] sm:$0xff]
      %v229 = vld [vmem:[%s210 + $0x20] sm:$0xff]
      %v230 = vld [vmem:[%s210 + $0x28] sm:$0xff]
      %v231 = vld [vmem:[%s210 + $0x30] sm:$0xff]
      %v232 = vld [vmem:[%s210 + $0x38] sm:$0xff]
      %v233 = vld [vmem:[%s210 + $0x40] sm:$0xff]
      %v234 = vld [vmem:[%s210 + $0x48] sm:$0xff]
      %v235 = vld [vmem:[%s210 + $0x50] sm:$0xff]
      %v236 = vld [vmem:[%s210 + $0x58] sm:$0xff]
      %v237 = vld [vmem:[%s210 + $0x60] sm:$0xff]
      %v238 = vld [vmem:[%s210 + $0x68] sm:$0xff]
      %v239 = vld [vmem:[%s210 + $0x70] sm:$0xff]
      %v240 = vld [vmem:[%s210 + $0x78] sm:$0xff]
      %v241 = vld [vmem:[%s210 + $0x80] sm:$0xff]
      %v242 = vld [vmem:[%s210 + $0x88] sm:$0xff]
      %v243 = vld [vmem:[%s210 + $0x90] sm:$0xff]
      %v244 = vld [vmem:[%s210 + $0x98] sm:$0xff]
      %v245 = vld [vmem:[%s210 + $0xa0] sm:$0xff]
      %v246 = vld [vmem:[%s210 + $0xa8] sm:$0xff]
      %v247 = vld [vmem:[%s210 + $0xb0] sm:$0xff]
      %v248 = vld [vmem:[%s210 + $0xb8] sm:$0xff]
      %v249 = vld [vmem:[%s210 + $0xc0] sm:$0xff]
      %v250 = vld [vmem:[%s210 + $0xc8] sm:$0xff]
      %v251 = vld [vmem:[%s210 + $0xd0] sm:$0xff]
      %v252 = vld [vmem:[%s210 + $0xd8] sm:$0xff]
      %v253 = vld [vmem:[%s210 + $0xe0] sm:$0xff]
      %v254 = vld [vmem:[%s210 + $0xe8] sm:$0xff]
      %v255 = vld [vmem:[%s210 + $0xf0] sm:$0xff]
      %v256 = vld [vmem:[%s210 + $0xf8] sm:$0xff]
      %v257 = vld [vmem:[%s210 + $0x100] sm:$0xff]
      %v258 = vld [vmem:[%s210 + $0x108] sm:$0xff]
      %v259 = vld [vmem:[%s210 + $0x110] sm:$0xff]
      %v260 = vld [vmem:[%s210 + $0x118] sm:$0xff]
      %v261 = vld [vmem:[%s210 + $0x120] sm:$0xff]
      %v262 = vld [vmem:[%s210 + $0x128] sm:$0xff]
      %v263 = vld [vmem:[%s210 + $0x130] sm:$0xff]
      %v264 = vld [vmem:[%s210 + $0x138] sm:$0xff]
      %v265 = vld [vmem:[%s210 + $0x140] sm:$0xff]
      %v266 = vld [vmem:[%s210 + $0x148] sm:$0xff]
      %v267 = vld [vmem:[%s210 + $0x150] sm:$0xff]
      %v268 = vld [vmem:[%s210 + $0x158] sm:$0xff]
      %v269 = vld [vmem:[%s210 + $0x160] sm:$0xff]
      %v270 = vld [vmem:[%s210 + $0x168] sm:$0xff]
      %v271 = vld [vmem:[%s210 + $0x170] sm:$0xff]
      %v272 = vld [vmem:[%s210 + $0x178] sm:$0xff]
      %v273 = vld [vmem:[%s210 + $0x180] sm:$0xff]
      %v274 = vld [vmem:[%s210 + $0x188] sm:$0xff]
      %v275 = vld [vmem:[%s210 + $0x190] sm:$0xff]
      %v276 = vld [vmem:[%s210 + $0x198] sm:$0xff]
      %v277 = vld [vmem:[%s210 + $0x1a0] sm:$0xff]
      %v278 = vld [vmem:[%s210 + $0x1a8] sm:$0xff]
      %v279 = vld [vmem:[%s210 + $0x1b0] sm:$0xff]
      %v280 = vld [vmem:[%s210 + $0x1b8] sm:$0xff]
      %v281 = vld [vmem:[%s210 + $0x1c0] sm:$0xff]
      %v282 = vld [vmem:[%s210 + $0x1c8] sm:$0xff]
      %v283 = vld [vmem:[%s210 + $0x1d0] sm:$0xff]
      %v284 = vld [vmem:[%s210 + $0x1d8] sm:$0xff]
      %v285 = vld [vmem:[%s210 + $0x1e0] sm:$0xff]
      %v286 = vld [vmem:[%s210 + $0x1e8] sm:$0xff]
      %v287 = vld [vmem:[%s210 + $0x1f0] sm:$0xff]
      %v288 = vld [vmem:[%s210 + $0x1f8] sm:$0xff]
      %v289 = vld [vmem:[%s1] sm:$0x1]
      %v291 = vlaneseq
      %v292 = vshrl.u32 %v291, 7
      %v293 = vsub.s32 0, %v292
      %v294 = vrot.slane %v289, %v293
      %v296 = vmul.f32 %v225, %v294
      %v297 = vmul.f32 %v226, %v294
      %v298 = vmul.f32 %v227, %v294
      %v299 = vmul.f32 %v228, %v294
      %v300 = vmul.f32 %v229, %v294
      %v301 = vmul.f32 %v230, %v294
      %v302 = vmul.f32 %v231, %v294
      %v303 = vmul.f32 %v232, %v294
      %v304 = vmul.f32 %v233, %v294
      %v305 = vmul.f32 %v234, %v294
      %v306 = vmul.f32 %v235, %v294
      %v307 = vmul.f32 %v236, %v294
      %v308 = vmul.f32 %v237, %v294
      %v309 = vmul.f32 %v238, %v294
      %v310 = vmul.f32 %v239, %v294
      %v311 = vmul.f32 %v240, %v294
      %v312 = vmul.f32 %v241, %v294
      %v313 = vmul.f32 %v242, %v294
      %v314 = vmul.f32 %v243, %v294
      %v315 = vmul.f32 %v244, %v294
      %v316 = vmul.f32 %v245, %v294
      %v317 = vmul.f32 %v246, %v294
      %v318 = vmul.f32 %v247, %v294
      %v319 = vmul.f32 %v248, %v294
      %v320 = vmul.f32 %v249, %v294
      %v321 = vmul.f32 %v250, %v294
      %v322 = vmul.f32 %v251, %v294
      %v323 = vmul.f32 %v252, %v294
      %v324 = vmul.f32 %v253, %v294
      %v325 = vmul.f32 %v254, %v294
      %v326 = vmul.f32 %v255, %v294
      %v327 = vmul.f32 %v256, %v294
      %v328 = vmul.f32 %v257, %v294
      %v329 = vmul.f32 %v258, %v294
      %v330 = vmul.f32 %v259, %v294
      %v331 = vmul.f32 %v260, %v294
      %v332 = vmul.f32 %v261, %v294
      %v333 = vmul.f32 %v262, %v294
      %v334 = vmul.f32 %v263, %v294
      %v335 = vmul.f32 %v264, %v294
      %v336 = vmul.f32 %v265, %v294
      %v337 = vmul.f32 %v266, %v294
      %v338 = vmul.f32 %v267, %v294
      %v339 = vmul.f32 %v268, %v294
      %v340 = vmul.f32 %v269, %v294
      %v341 = vmul.f32 %v270, %v294
      %v342 = vmul.f32 %v271, %v294
      %v343 = vmul.f32 %v272, %v294
      %v344 = vmul.f32 %v273, %v294
      %v345 = vmul.f32 %v274, %v294
      %v346 = vmul.f32 %v275, %v294
      %v347 = vmul.f32 %v276, %v294
      %v348 = vmul.f32 %v277, %v294
      %v349 = vmul.f32 %v278, %v294
      %v350 = vmul.f32 %v279, %v294
      %v351 = vmul.f32 %v280, %v294
      %v352 = vmul.f32 %v281, %v294
      %v353 = vmul.f32 %v282, %v294
      %v354 = vmul.f32 %v283, %v294
      %v355 = vmul.f32 %v284, %v294
      %v356 = vmul.f32 %v285, %v294
      %v357 = vmul.f32 %v286, %v294
      %v358 = vmul.f32 %v287, %v294
      %v359 = vmul.f32 %v288, %v294
      %v360 = vld [vmem:[%s2] sm:$0x1]
      %v362 = vlaneseq
      %v363 = vshrl.u32 %v362, 7
      %v364 = vsub.s32 0, %v363
      %v365 = vrot.slane %v360, %v364
      %v367 = vadd.f32 %v296, %v365
      %v368 = vadd.f32 %v297, %v365
      %v369 = vadd.f32 %v298, %v365
      %v370 = vadd.f32 %v299, %v365
      %v371 = vadd.f32 %v300, %v365
      %v372 = vadd.f32 %v301, %v365
      %v373 = vadd.f32 %v302, %v365
      %v374 = vadd.f32 %v303, %v365
      %v375 = vadd.f32 %v304, %v365
      %v376 = vadd.f32 %v305, %v365
      %v377 = vadd.f32 %v306, %v365
      %v378 = vadd.f32 %v307, %v365
      %v379 = vadd.f32 %v308, %v365
      %v380 = vadd.f32 %v309, %v365
      %v381 = vadd.f32 %v310, %v365
      %v382 = vadd.f32 %v311, %v365
      %v383 = vadd.f32 %v312, %v365
      %v384 = vadd.f32 %v313, %v365
      %v385 = vadd.f32 %v314, %v365
      %v386 = vadd.f32 %v315, %v365
      %v387 = vadd.f32 %v316, %v365
      %v388 = vadd.f32 %v317, %v365
      %v389 = vadd.f32 %v318, %v365
      %v390 = vadd.f32 %v319, %v365
      %v391 = vadd.f32 %v320, %v365
      %v392 = vadd.f32 %v321, %v365
      %v393 = vadd.f32 %v322, %v365
      %v394 = vadd.f32 %v323, %v365
      %v395 = vadd.f32 %v324, %v365
      %v396 = vadd.f32 %v325, %v365
      %v397 = vadd.f32 %v326, %v365
      %v398 = vadd.f32 %v327, %v365
      %v399 = vadd.f32 %v328, %v365
      %v400 = vadd.f32 %v329, %v365
      %v401 = vadd.f32 %v330, %v365
      %v402 = vadd.f32 %v331, %v365
      %v403 = vadd.f32 %v332, %v365
      %v404 = vadd.f32 %v333, %v365
      %v405 = vadd.f32 %v334, %v365
      %v406 = vadd.f32 %v335, %v365
      %v407 = vadd.f32 %v336, %v365
      %v408 = vadd.f32 %v337, %v365
      %v409 = vadd.f32 %v338, %v365
      %v410 = vadd.f32 %v339, %v365
      %v411 = vadd.f32 %v340, %v365
      %v412 = vadd.f32 %v341, %v365
      %v413 = vadd.f32 %v342, %v365
      %v414 = vadd.f32 %v343, %v365
      %v415 = vadd.f32 %v344, %v365
      %v416 = vadd.f32 %v345, %v365
      %v417 = vadd.f32 %v346, %v365
      %v418 = vadd.f32 %v347, %v365
      %v419 = vadd.f32 %v348, %v365
      %v420 = vadd.f32 %v349, %v365
      %v421 = vadd.f32 %v350, %v365
      %v422 = vadd.f32 %v351, %v365
      %v423 = vadd.f32 %v352, %v365
      %v424 = vadd.f32 %v353, %v365
      %v425 = vadd.f32 %v354, %v365
      %v426 = vadd.f32 %v355, %v365
      %v427 = vadd.f32 %v356, %v365
      %v428 = vadd.f32 %v357, %v365
      %v429 = vadd.f32 %v358, %v365
      %v430 = vadd.f32 %v359, %v365
      %vm431 = vcmp.ge.f32.partialorder %v367, 0.0
      %vm432 = vcmp.ge.f32.partialorder %v368, 0.0
      %vm433 = vcmp.ge.f32.partialorder %v369, 0.0
      %vm434 = vcmp.ge.f32.partialorder %v370, 0.0
      %vm435 = vcmp.ge.f32.partialorder %v371, 0.0
      %vm436 = vcmp.ge.f32.partialorder %v372, 0.0
      %vm437 = vcmp.ge.f32.partialorder %v373, 0.0
      %vm438 = vcmp.ge.f32.partialorder %v374, 0.0
      %vm439 = vcmp.ge.f32.partialorder %v375, 0.0
      %vm440 = vcmp.ge.f32.partialorder %v376, 0.0
      %vm441 = vcmp.ge.f32.partialorder %v377, 0.0
      %vm442 = vcmp.ge.f32.partialorder %v378, 0.0
      %vm443 = vcmp.ge.f32.partialorder %v379, 0.0
      %vm444 = vcmp.ge.f32.partialorder %v380, 0.0
      %vm445 = vcmp.ge.f32.partialorder %v381, 0.0
      %vm446 = vcmp.ge.f32.partialorder %v382, 0.0
      %vm447 = vcmp.ge.f32.partialorder %v383, 0.0
      %vm448 = vcmp.ge.f32.partialorder %v384, 0.0
      %vm449 = vcmp.ge.f32.partialorder %v385, 0.0
      %vm450 = vcmp.ge.f32.partialorder %v386, 0.0
      %vm451 = vcmp.ge.f32.partialorder %v387, 0.0
      %vm452 = vcmp.ge.f32.partialorder %v388, 0.0
      %vm453 = vcmp.ge.f32.partialorder %v389, 0.0
      %vm454 = vcmp.ge.f32.partialorder %v390, 0.0
      %vm455 = vcmp.ge.f32.partialorder %v391, 0.0
      %vm456 = vcmp.ge.f32.partialorder %v392, 0.0
      %vm457 = vcmp.ge.f32.partialorder %v393, 0.0
      %vm458 = vcmp.ge.f32.partialorder %v394, 0.0
      %vm459 = vcmp.ge.f32.partialorder %v395, 0.0
      %vm460 = vcmp.ge.f32.partialorder %v396, 0.0
      %vm461 = vcmp.ge.f32.partialorder %v397, 0.0
      %vm462 = vcmp.ge.f32.partialorder %v398, 0.0
      %vm463 = vcmp.ge.f32.partialorder %v399, 0.0
      %vm464 = vcmp.ge.f32.partialorder %v400, 0.0
      %vm465 = vcmp.ge.f32.partialorder %v401, 0.0
      %vm466 = vcmp.ge.f32.partialorder %v402, 0.0
      %vm467 = vcmp.ge.f32.partialorder %v403, 0.0
      %vm468 = vcmp.ge.f32.partialorder %v404, 0.0
      %vm469 = vcmp.ge.f32.partialorder %v405, 0.0
      %vm470 = vcmp.ge.f32.partialorder %v406, 0.0
      %vm471 = vcmp.ge.f32.partialorder %v407, 0.0
      %vm472 = vcmp.ge.f32.partialorder %v408, 0.0
      %vm473 = vcmp.ge.f32.partialorder %v409, 0.0
      %vm474 = vcmp.ge.f32.partialorder %v410, 0.0
      %vm475 = vcmp.ge.f32.partialorder %v411, 0.0
      %vm476 = vcmp.ge.f32.partialorder %v412, 0.0
      %vm477 = vcmp.ge.f32.partialorder %v413, 0.0
      %vm478 = vcmp.ge.f32.partialorder %v414, 0.0
      %vm479 = vcmp.ge.f32.partialorder %v415, 0.0
      %vm480 = vcmp.ge.f32.partialorder %v416, 0.0
      %vm481 = vcmp.ge.f32.partialorder %v417, 0.0
      %vm482 = vcmp.ge.f32.partialorder %v418, 0.0
      %vm483 = vcmp.ge.f32.partialorder %v419, 0.0
      %vm484 = vcmp.ge.f32.partialorder %v420, 0.0
      %vm485 = vcmp.ge.f32.partialorder %v421, 0.0
      %vm486 = vcmp.ge.f32.partialorder %v422, 0.0
      %vm487 = vcmp.ge.f32.partialorder %v423, 0.0
      %vm488 = vcmp.ge.f32.partialorder %v424, 0.0
      %vm489 = vcmp.ge.f32.partialorder %v425, 0.0
      %vm490 = vcmp.ge.f32.partialorder %v426, 0.0
      %vm491 = vcmp.ge.f32.partialorder %v427, 0.0
      %vm492 = vcmp.ge.f32.partialorder %v428, 0.0
      %vm493 = vcmp.ge.f32.partialorder %v429, 0.0
      %vm494 = vcmp.ge.f32.partialorder %v430, 0.0
      %v495 = vmul.f32 %v367, 0.2
      %v496 = vmul.f32 %v368, 0.2
      %v497 = vmul.f32 %v369, 0.2
      %v498 = vmul.f32 %v370, 0.2
      %v499 = vmul.f32 %v371, 0.2
      %v500 = vmul.f32 %v372, 0.2
      %v501 = vmul.f32 %v373, 0.2
      %v502 = vmul.f32 %v374, 0.2
      %v503 = vmul.f32 %v375, 0.2
      %v504 = vmul.f32 %v376, 0.2
      %v505 = vmul.f32 %v377, 0.2
      %v506 = vmul.f32 %v378, 0.2
      %v507 = vmul.f32 %v379, 0.2
      %v508 = vmul.f32 %v380, 0.2
      %v509 = vmul.f32 %v381, 0.2
      %v510 = vmul.f32 %v382, 0.2
      %v511 = vmul.f32 %v383, 0.2
      %v512 = vmul.f32 %v384, 0.2
      %v513 = vmul.f32 %v385, 0.2
      %v514 = vmul.f32 %v386, 0.2
      %v515 = vmul.f32 %v387, 0.2
      %v516 = vmul.f32 %v388, 0.2
      %v517 = vmul.f32 %v389, 0.2
      %v518 = vmul.f32 %v390, 0.2
      %v519 = vmul.f32 %v391, 0.2
      %v520 = vmul.f32 %v392, 0.2
      %v521 = vmul.f32 %v393, 0.2
      %v522 = vmul.f32 %v394, 0.2
      %v523 = vmul.f32 %v395, 0.2
      %v524 = vmul.f32 %v396, 0.2
      %v525 = vmul.f32 %v397, 0.2
      %v526 = vmul.f32 %v398, 0.2
      %v527 = vmul.f32 %v399, 0.2
      %v528 = vmul.f32 %v400, 0.2
      %v529 = vmul.f32 %v401, 0.2
      %v530 = vmul.f32 %v402, 0.2
      %v531 = vmul.f32 %v403, 0.2
      %v532 = vmul.f32 %v404, 0.2
      %v533 = vmul.f32 %v405, 0.2
      %v534 = vmul.f32 %v406, 0.2
      %v535 = vmul.f32 %v407, 0.2
      %v536 = vmul.f32 %v408, 0.2
      %v537 = vmul.f32 %v409, 0.2
      %v538 = vmul.f32 %v410, 0.2
      %v539 = vmul.f32 %v411, 0.2
      %v540 = vmul.f32 %v412, 0.2
      %v541 = vmul.f32 %v413, 0.2
      %v542 = vmul.f32 %v414, 0.2
      %v543 = vmul.f32 %v415, 0.2
      %v544 = vmul.f32 %v416, 0.2
      %v545 = vmul.f32 %v417, 0.2
      %v546 = vmul.f32 %v418, 0.2
      %v547 = vmul.f32 %v419, 0.2
      %v548 = vmul.f32 %v420, 0.2
      %v549 = vmul.f32 %v421, 0.2
      %v550 = vmul.f32 %v422, 0.2
      %v551 = vmul.f32 %v423, 0.2
      %v552 = vmul.f32 %v424, 0.2
      %v553 = vmul.f32 %v425, 0.2
      %v554 = vmul.f32 %v426, 0.2
      %v555 = vmul.f32 %v427, 0.2
      %v556 = vmul.f32 %v428, 0.2
      %v557 = vmul.f32 %v429, 0.2
      %v558 = vmul.f32 %v430, 0.2
      %v559 = vsel %vm431, %v367, %v495
      %v560 = vsel %vm432, %v368, %v496
      %v561 = vsel %vm433, %v369, %v497
      %v562 = vsel %vm434, %v370, %v498
      %v563 = vsel %vm435, %v371, %v499
      %v564 = vsel %vm436, %v372, %v500
      %v565 = vsel %vm437, %v373, %v501
      %v566 = vsel %vm438, %v374, %v502
      %v567 = vsel %vm439, %v375, %v503
      %v568 = vsel %vm440, %v376, %v504
      %v569 = vsel %vm441, %v377, %v505
      %v570 = vsel %vm442, %v378, %v506
      %v571 = vsel %vm443, %v379, %v507
      %v572 = vsel %vm444, %v380, %v508
      %v573 = vsel %vm445, %v381, %v509
      %v574 = vsel %vm446, %v382, %v510
      %v575 = vsel %vm447, %v383, %v511
      %v576 = vsel %vm448, %v384, %v512
      %v577 = vsel %vm449, %v385, %v513
      %v578 = vsel %vm450, %v386, %v514
      %v579 = vsel %vm451, %v387, %v515
      %v580 = vsel %vm452, %v388, %v516
      %v581 = vsel %vm453, %v389, %v517
      %v582 = vsel %vm454, %v390, %v518
      %v583 = vsel %vm455, %v391, %v519
      %v584 = vsel %vm456, %v392, %v520
      %v585 = vsel %vm457, %v393, %v521
      %v586 = vsel %vm458, %v394, %v522
      %v587 = vsel %vm459, %v395, %v523
      %v588 = vsel %vm460, %v396, %v524
      %v589 = vsel %vm461, %v397, %v525
      %v590 = vsel %vm462, %v398, %v526
      %v591 = vsel %vm463, %v399, %v527
      %v592 = vsel %vm464, %v400, %v528
      %v593 = vsel %vm465, %v401, %v529
      %v594 = vsel %vm466, %v402, %v530
      %v595 = vsel %vm467, %v403, %v531
      %v596 = vsel %vm468, %v404, %v532
      %v597 = vsel %vm469, %v405, %v533
      %v598 = vsel %vm470, %v406, %v534
      %v599 = vsel %vm471, %v407, %v535
      %v600 = vsel %vm472, %v408, %v536
      %v601 = vsel %vm473, %v409, %v537
      %v602 = vsel %vm474, %v410, %v538
      %v603 = vsel %vm475, %v411, %v539
      %v604 = vsel %vm476, %v412, %v540
      %v605 = vsel %vm477, %v413, %v541
      %v606 = vsel %vm478, %v414, %v542
      %v607 = vsel %vm479, %v415, %v543
      %v608 = vsel %vm480, %v416, %v544
      %v609 = vsel %vm481, %v417, %v545
      %v610 = vsel %vm482, %v418, %v546
      %v611 = vsel %vm483, %v419, %v547
      %v612 = vsel %vm484, %v420, %v548
      %v613 = vsel %vm485, %v421, %v549
      %v614 = vsel %vm486, %v422, %v550
      %v615 = vsel %vm487, %v423, %v551
      %v616 = vsel %vm488, %v424, %v552
      %v617 = vsel %vm489, %v425, %v553
      %v618 = vsel %vm490, %v426, %v554
      %v619 = vsel %vm491, %v427, %v555
      %v620 = vsel %vm492, %v428, %v556
      %v621 = vsel %vm493, %v429, %v557
      %v622 = vsel %vm494, %v430, %v558
      %v623 = vld [vmem:[%s216] sm:$0xff]
      %v624 = vld [vmem:[%s216 + $0x8] sm:$0xff]
      %v625 = vld [vmem:[%s216 + $0x10] sm:$0xff]
      %v626 = vld [vmem:[%s216 + $0x18] sm:$0xff]
      %v627 = vld [vmem:[%s216 + $0x20] sm:$0xff]
      %v628 = vld [vmem:[%s216 + $0x28] sm:$0xff]
      %v629 = vld [vmem:[%s216 + $0x30] sm:$0xff]
      %v630 = vld [vmem:[%s216 + $0x38] sm:$0xff]
      %v631 = vld [vmem:[%s216 + $0x40] sm:$0xff]
      %v632 = vld [vmem:[%s216 + $0x48] sm:$0xff]
      %v633 = vld [vmem:[%s216 + $0x50] sm:$0xff]
      %v634 = vld [vmem:[%s216 + $0x58] sm:$0xff]
      %v635 = vld [vmem:[%s216 + $0x60] sm:$0xff]
      %v636 = vld [vmem:[%s216 + $0x68] sm:$0xff]
      %v637 = vld [vmem:[%s216 + $0x70] sm:$0xff]
      %v638 = vld [vmem:[%s216 + $0x78] sm:$0xff]
      %v639 = vld [vmem:[%s216 + $0x80] sm:$0xff]
      %v640 = vld [vmem:[%s216 + $0x88] sm:$0xff]
      %v641 = vld [vmem:[%s216 + $0x90] sm:$0xff]
      %v642 = vld [vmem:[%s216 + $0x98] sm:$0xff]
      %v643 = vld [vmem:[%s216 + $0xa0] sm:$0xff]
      %v644 = vld [vmem:[%s216 + $0xa8] sm:$0xff]
      %v645 = vld [vmem:[%s216 + $0xb0] sm:$0xff]
      %v646 = vld [vmem:[%s216 + $0xb8] sm:$0xff]
      %v647 = vld [vmem:[%s216 + $0xc0] sm:$0xff]
      %v648 = vld [vmem:[%s216 + $0xc8] sm:$0xff]
      %v649 = vld [vmem:[%s216 + $0xd0] sm:$0xff]
      %v650 = vld [vmem:[%s216 + $0xd8] sm:$0xff]
      %v651 = vld [vmem:[%s216 + $0xe0] sm:$0xff]
      %v652 = vld [vmem:[%s216 + $0xe8] sm:$0xff]
      %v653 = vld [vmem:[%s216 + $0xf0] sm:$0xff]
      %v654 = vld [vmem:[%s216 + $0xf8] sm:$0xff]
      %v655 = vld [vmem:[%s216 + $0x100] sm:$0xff]
      %v656 = vld [vmem:[%s216 + $0x108] sm:$0xff]
      %v657 = vld [vmem:[%s216 + $0x110] sm:$0xff]
      %v658 = vld [vmem:[%s216 + $0x118] sm:$0xff]
      %v659 = vld [vmem:[%s216 + $0x120] sm:$0xff]
      %v660 = vld [vmem:[%s216 + $0x128] sm:$0xff]
      %v661 = vld [vmem:[%s216 + $0x130] sm:$0xff]
      %v662 = vld [vmem:[%s216 + $0x138] sm:$0xff]
      %v663 = vld [vmem:[%s216 + $0x140] sm:$0xff]
      %v664 = vld [vmem:[%s216 + $0x148] sm:$0xff]
      %v665 = vld [vmem:[%s216 + $0x150] sm:$0xff]
      %v666 = vld [vmem:[%s216 + $0x158] sm:$0xff]
      %v667 = vld [vmem:[%s216 + $0x160] sm:$0xff]
      %v668 = vld [vmem:[%s216 + $0x168] sm:$0xff]
      %v669 = vld [vmem:[%s216 + $0x170] sm:$0xff]
      %v670 = vld [vmem:[%s216 + $0x178] sm:$0xff]
      %v671 = vld [vmem:[%s216 + $0x180] sm:$0xff]
      %v672 = vld [vmem:[%s216 + $0x188] sm:$0xff]
      %v673 = vld [vmem:[%s216 + $0x190] sm:$0xff]
      %v674 = vld [vmem:[%s216 + $0x198] sm:$0xff]
      %v675 = vld [vmem:[%s216 + $0x1a0] sm:$0xff]
      %v676 = vld [vmem:[%s216 + $0x1a8] sm:$0xff]
      %v677 = vld [vmem:[%s216 + $0x1b0] sm:$0xff]
      %v678 = vld [vmem:[%s216 + $0x1b8] sm:$0xff]
      %v679 = vld [vmem:[%s216 + $0x1c0] sm:$0xff]
      %v680 = vld [vmem:[%s216 + $0x1c8] sm:$0xff]
      %v681 = vld [vmem:[%s216 + $0x1d0] sm:$0xff]
      %v682 = vld [vmem:[%s216 + $0x1d8] sm:$0xff]
      %v683 = vld [vmem:[%s216 + $0x1e0] sm:$0xff]
      %v684 = vld [vmem:[%s216 + $0x1e8] sm:$0xff]
      %v685 = vld [vmem:[%s216 + $0x1f0] sm:$0xff]
      %v686 = vld [vmem:[%s216 + $0x1f8] sm:$0xff]
      %vm687 = vcmp.ge.f32.partialorder %v623, 0.0
      %vm688 = vcmp.ge.f32.partialorder %v624, 0.0
      %vm689 = vcmp.ge.f32.partialorder %v625, 0.0
      %vm690 = vcmp.ge.f32.partialorder %v626, 0.0
      %vm691 = vcmp.ge.f32.partialorder %v627, 0.0
      %vm692 = vcmp.ge.f32.partialorder %v628, 0.0
      %vm693 = vcmp.ge.f32.partialorder %v629, 0.0
      %vm694 = vcmp.ge.f32.partialorder %v630, 0.0
      %vm695 = vcmp.ge.f32.partialorder %v631, 0.0
      %vm696 = vcmp.ge.f32.partialorder %v632, 0.0
      %vm697 = vcmp.ge.f32.partialorder %v633, 0.0
      %vm698 = vcmp.ge.f32.partialorder %v634, 0.0
      %vm699 = vcmp.ge.f32.partialorder %v635, 0.0
      %vm700 = vcmp.ge.f32.partialorder %v636, 0.0
      %vm701 = vcmp.ge.f32.partialorder %v637, 0.0
      %vm702 = vcmp.ge.f32.partialorder %v638, 0.0
      %vm703 = vcmp.ge.f32.partialorder %v639, 0.0
      %vm704 = vcmp.ge.f32.partialorder %v640, 0.0
      %vm705 = vcmp.ge.f32.partialorder %v641, 0.0
      %vm706 = vcmp.ge.f32.partialorder %v642, 0.0
      %vm707 = vcmp.ge.f32.partialorder %v643, 0.0
      %vm708 = vcmp.ge.f32.partialorder %v644, 0.0
      %vm709 = vcmp.ge.f32.partialorder %v645, 0.0
      %vm710 = vcmp.ge.f32.partialorder %v646, 0.0
      %vm711 = vcmp.ge.f32.partialorder %v647, 0.0
      %vm712 = vcmp.ge.f32.partialorder %v648, 0.0
      %vm713 = vcmp.ge.f32.partialorder %v649, 0.0
      %vm714 = vcmp.ge.f32.partialorder %v650, 0.0
      %vm715 = vcmp.ge.f32.partialorder %v651, 0.0
      %vm716 = vcmp.ge.f32.partialorder %v652, 0.0
      %vm717 = vcmp.ge.f32.partialorder %v653, 0.0
      %vm718 = vcmp.ge.f32.partialorder %v654, 0.0
      %vm719 = vcmp.ge.f32.partialorder %v655, 0.0
      %vm720 = vcmp.ge.f32.partialorder %v656, 0.0
      %vm721 = vcmp.ge.f32.partialorder %v657, 0.0
      %vm722 = vcmp.ge.f32.partialorder %v658, 0.0
      %vm723 = vcmp.ge.f32.partialorder %v659, 0.0
      %vm724 = vcmp.ge.f32.partialorder %v660, 0.0
      %vm725 = vcmp.ge.f32.partialorder %v661, 0.0
      %vm726 = vcmp.ge.f32.partialorder %v662, 0.0
      %vm727 = vcmp.ge.f32.partialorder %v663, 0.0
      %vm728 = vcmp.ge.f32.partialorder %v664, 0.0
      %vm729 = vcmp.ge.f32.partialorder %v665, 0.0
      %vm730 = vcmp.ge.f32.partialorder %v666, 0.0
      %vm731 = vcmp.ge.f32.partialorder %v667, 0.0
      %vm732 = vcmp.ge.f32.partialorder %v668, 0.0
      %vm733 = vcmp.ge.f32.partialorder %v669, 0.0
      %vm734 = vcmp.ge.f32.partialorder %v670, 0.0
      %vm735 = vcmp.ge.f32.partialorder %v671, 0.0
      %vm736 = vcmp.ge.f32.partialorder %v672, 0.0
      %vm737 = vcmp.ge.f32.partialorder %v673, 0.0
      %vm738 = vcmp.ge.f32.partialorder %v674, 0.0
      %vm739 = vcmp.ge.f32.partialorder %v675, 0.0
      %vm740 = vcmp.ge.f32.partialorder %v676, 0.0
      %vm741 = vcmp.ge.f32.partialorder %v677, 0.0
      %vm742 = vcmp.ge.f32.partialorder %v678, 0.0
      %vm743 = vcmp.ge.f32.partialorder %v679, 0.0
      %vm744 = vcmp.ge.f32.partialorder %v680, 0.0
      %vm745 = vcmp.ge.f32.partialorder %v681, 0.0
      %vm746 = vcmp.ge.f32.partialorder %v682, 0.0
      %vm747 = vcmp.ge.f32.partialorder %v683, 0.0
      %vm748 = vcmp.ge.f32.partialorder %v684, 0.0
      %vm749 = vcmp.ge.f32.partialorder %v685, 0.0
      %vm750 = vcmp.ge.f32.partialorder %v686, 0.0
      %v751 = vmul.f32 %v623, 0.2
      %v752 = vmul.f32 %v624, 0.2
      %v753 = vmul.f32 %v625, 0.2
      %v754 = vmul.f32 %v626, 0.2
      %v755 = vmul.f32 %v627, 0.2
      %v756 = vmul.f32 %v628, 0.2
      %v757 = vmul.f32 %v629, 0.2
      %v758 = vmul.f32 %v630, 0.2
      %v759 = vmul.f32 %v631, 0.2
      %v760 = vmul.f32 %v632, 0.2
      %v761 = vmul.f32 %v633, 0.2
      %v762 = vmul.f32 %v634, 0.2
      %v763 = vmul.f32 %v635, 0.2
      %v764 = vmul.f32 %v636, 0.2
      %v765 = vmul.f32 %v637, 0.2
      %v766 = vmul.f32 %v638, 0.2
      %v767 = vmul.f32 %v639, 0.2
      %v768 = vmul.f32 %v640, 0.2
      %v769 = vmul.f32 %v641, 0.2
      %v770 = vmul.f32 %v642, 0.2
      %v771 = vmul.f32 %v643, 0.2
      %v772 = vmul.f32 %v644, 0.2
      %v773 = vmul.f32 %v645, 0.2
      %v774 = vmul.f32 %v646, 0.2
      %v775 = vmul.f32 %v647, 0.2
      %v776 = vmul.f32 %v648, 0.2
      %v777 = vmul.f32 %v649, 0.2
      %v778 = vmul.f32 %v650, 0.2
      %v779 = vmul.f32 %v651, 0.2
      %v780 = vmul.f32 %v652, 0.2
      %v781 = vmul.f32 %v653, 0.2
      %v782 = vmul.f32 %v654, 0.2
      %v783 = vmul.f32 %v655, 0.2
      %v784 = vmul.f32 %v656, 0.2
      %v785 = vmul.f32 %v657, 0.2
      %v786 = vmul.f32 %v658, 0.2
      %v787 = vmul.f32 %v659, 0.2
      %v788 = vmul.f32 %v660, 0.2
      %v789 = vmul.f32 %v661, 0.2
      %v790 = vmul.f32 %v662, 0.2
      %v791 = vmul.f32 %v663, 0.2
      %v792 = vmul.f32 %v664, 0.2
      %v793 = vmul.f32 %v665, 0.2
      %v794 = vmul.f32 %v666, 0.2
      %v795 = vmul.f32 %v667, 0.2
      %v796 = vmul.f32 %v668, 0.2
      %v797 = vmul.f32 %v669, 0.2
      %v798 = vmul.f32 %v670, 0.2
      %v799 = vmul.f32 %v671, 0.2
      %v800 = vmul.f32 %v672, 0.2
      %v801 = vmul.f32 %v673, 0.2
      %v802 = vmul.f32 %v674, 0.2
      %v803 = vmul.f32 %v675, 0.2
      %v804 = vmul.f32 %v676, 0.2
      %v805 = vmul.f32 %v677, 0.2
      %v806 = vmul.f32 %v678, 0.2
      %v807 = vmul.f32 %v679, 0.2
      %v808 = vmul.f32 %v680, 0.2
      %v809 = vmul.f32 %v681, 0.2
      %v810 = vmul.f32 %v682, 0.2
      %v811 = vmul.f32 %v683, 0.2
      %v812 = vmul.f32 %v684, 0.2
      %v813 = vmul.f32 %v685, 0.2
      %v814 = vmul.f32 %v686, 0.2
      %v815 = vsel %vm687, %v623, %v751
      %v816 = vsel %vm688, %v624, %v752
      %v817 = vsel %vm689, %v625, %v753
      %v818 = vsel %vm690, %v626, %v754
      %v819 = vsel %vm691, %v627, %v755
      %v820 = vsel %vm692, %v628, %v756
      %v821 = vsel %vm693, %v629, %v757
      %v822 = vsel %vm694, %v630, %v758
      %v823 = vsel %vm695, %v631, %v759
      %v824 = vsel %vm696, %v632, %v760
      %v825 = vsel %vm697, %v633, %v761
      %v826 = vsel %vm698, %v634, %v762
      %v827 = vsel %vm699, %v635, %v763
      %v828 = vsel %vm700, %v636, %v764
      %v829 = vsel %vm701, %v637, %v765
      %v830 = vsel %vm702, %v638, %v766
      %v831 = vsel %vm703, %v639, %v767
      %v832 = vsel %vm704, %v640, %v768
      %v833 = vsel %vm705, %v641, %v769
      %v834 = vsel %vm706, %v642, %v770
      %v835 = vsel %vm707, %v643, %v771
      %v836 = vsel %vm708, %v644, %v772
      %v837 = vsel %vm709, %v645, %v773
      %v838 = vsel %vm710, %v646, %v774
      %v839 = vsel %vm711, %v647, %v775
      %v840 = vsel %vm712, %v648, %v776
      %v841 = vsel %vm713, %v649, %v777
      %v842 = vsel %vm714, %v650, %v778
      %v843 = vsel %vm715, %v651, %v779
      %v844 = vsel %vm716, %v652, %v780
      %v845 = vsel %vm717, %v653, %v781
      %v846 = vsel %vm718, %v654, %v782
      %v847 = vsel %vm719, %v655, %v783
      %v848 = vsel %vm720, %v656, %v784
      %v849 = vsel %vm721, %v657, %v785
      %v850 = vsel %vm722, %v658, %v786
      %v851 = vsel %vm723, %v659, %v787
      %v852 = vsel %vm724, %v660, %v788
      %v853 = vsel %vm725, %v661, %v789
      %v854 = vsel %vm726, %v662, %v790
      %v855 = vsel %vm727, %v663, %v791
      %v856 = vsel %vm728, %v664, %v792
      %v857 = vsel %vm729, %v665, %v793
      %v858 = vsel %vm730, %v666, %v794
      %v859 = vsel %vm731, %v667, %v795
      %v860 = vsel %vm732, %v668, %v796
      %v861 = vsel %vm733, %v669, %v797
      %v862 = vsel %vm734, %v670, %v798
      %v863 = vsel %vm735, %v671, %v799
      %v864 = vsel %vm736, %v672, %v800
      %v865 = vsel %vm737, %v673, %v801
      %v866 = vsel %vm738, %v674, %v802
      %v867 = vsel %vm739, %v675, %v803
      %v868 = vsel %vm740, %v676, %v804
      %v869 = vsel %vm741, %v677, %v805
      %v870 = vsel %vm742, %v678, %v806
      %v871 = vsel %vm743, %v679, %v807
      %v872 = vsel %vm744, %v680, %v808
      %v873 = vsel %vm745, %v681, %v809
      %v874 = vsel %vm746, %v682, %v810
      %v875 = vsel %vm747, %v683, %v811
      %v876 = vsel %vm748, %v684, %v812
      %v877 = vsel %vm749, %v685, %v813
      %v878 = vsel %vm750, %v686, %v814
      %879 = vst [vmem:[%s223] sm:$0xff] %v559
      %880 = vst [vmem:[%s223 + $0x8] sm:$0xff] %v815
      %881 = vst [vmem:[%s223 + $0x10] sm:$0xff] %v560
      %882 = vst [vmem:[%s223 + $0x18] sm:$0xff] %v816
      %883 = vst [vmem:[%s223 + $0x20] sm:$0xff] %v561
      %884 = vst [vmem:[%s223 + $0x28] sm:$0xff] %v817
      %885 = vst [vmem:[%s223 + $0x30] sm:$0xff] %v562
      %886 = vst [vmem:[%s223 + $0x38] sm:$0xff] %v818
      %887 = vst [vmem:[%s223 + $0x40] sm:$0xff] %v563
      %888 = vst [vmem:[%s223 + $0x48] sm:$0xff] %v819
      %889 = vst [vmem:[%s223 + $0x50] sm:$0xff] %v564
      %890 = vst [vmem:[%s223 + $0x58] sm:$0xff] %v820
      %891 = vst [vmem:[%s223 + $0x60] sm:$0xff] %v565
      %892 = vst [vmem:[%s223 + $0x68] sm:$0xff] %v821
      %893 = vst [vmem:[%s223 + $0x70] sm:$0xff] %v566
      %894 = vst [vmem:[%s223 + $0x78] sm:$0xff] %v822
      %895 = vst [vmem:[%s223 + $0x80] sm:$0xff] %v567
      %896 = vst [vmem:[%s223 + $0x88] sm:$0xff] %v823
      %897 = vst [vmem:[%s223 + $0x90] sm:$0xff] %v568
      %898 = vst [vmem:[%s223 + $0x98] sm:$0xff] %v824
      %899 = vst [vmem:[%s223 + $0xa0] sm:$0xff] %v569
      %900 = vst [vmem:[%s223 + $0xa8] sm:$0xff] %v825
      %901 = vst [vmem:[%s223 + $0xb0] sm:$0xff] %v570
      %902 = vst [vmem:[%s223 + $0xb8] sm:$0xff] %v826
      %903 = vst [vmem:[%s223 + $0xc0] sm:$0xff] %v571
      %904 = vst [vmem:[%s223 + $0xc8] sm:$0xff] %v827
      %905 = vst [vmem:[%s223 + $0xd0] sm:$0xff] %v572
      %906 = vst [vmem:[%s223 + $0xd8] sm:$0xff] %v828
      %907 = vst [vmem:[%s223 + $0xe0] sm:$0xff] %v573
      %908 = vst [vmem:[%s223 + $0xe8] sm:$0xff] %v829
      %909 = vst [vmem:[%s223 + $0xf0] sm:$0xff] %v574
      %910 = vst [vmem:[%s223 + $0xf8] sm:$0xff] %v830
      %911 = vst [vmem:[%s223 + $0x100] sm:$0xff] %v575
      %912 = vst [vmem:[%s223 + $0x108] sm:$0xff] %v831
      %913 = vst [vmem:[%s223 + $0x110] sm:$0xff] %v576
      %914 = vst [vmem:[%s223 + $0x118] sm:$0xff] %v832
      %915 = vst [vmem:[%s223 + $0x120] sm:$0xff] %v577
      %916 = vst [vmem:[%s223 + $0x128] sm:$0xff] %v833
      %917 = vst [vmem:[%s223 + $0x130] sm:$0xff] %v578
      %918 = vst [vmem:[%s223 + $0x138] sm:$0xff] %v834
      %919 = vst [vmem:[%s223 + $0x140] sm:$0xff] %v579
      %920 = vst [vmem:[%s223 + $0x148] sm:$0xff] %v835
      %921 = vst [vmem:[%s223 + $0x150] sm:$0xff] %v580
      %922 = vst [vmem:[%s223 + $0x158] sm:$0xff] %v836
      %923 = vst [vmem:[%s223 + $0x160] sm:$0xff] %v581
      %924 = vst [vmem:[%s223 + $0x168] sm:$0xff] %v837
      %925 = vst [vmem:[%s223 + $0x170] sm:$0xff] %v582
      %926 = vst [vmem:[%s223 + $0x178] sm:$0xff] %v838
      %927 = vst [vmem:[%s223 + $0x180] sm:$0xff] %v583
      %928 = vst [vmem:[%s223 + $0x188] sm:$0xff] %v839
      %929 = vst [vmem:[%s223 + $0x190] sm:$0xff] %v584
      %930 = vst [vmem:[%s223 + $0x198] sm:$0xff] %v840
      %931 = vst [vmem:[%s223 + $0x1a0] sm:$0xff] %v585
      %932 = vst [vmem:[%s223 + $0x1a8] sm:$0xff] %v841
      %933 = vst [vmem:[%s223 + $0x1b0] sm:$0xff] %v586
      %934 = vst [vmem:[%s223 + $0x1b8] sm:$0xff] %v842
      %935 = vst [vmem:[%s223 + $0x1c0] sm:$0xff] %v587
      %936 = vst [vmem:[%s223 + $0x1c8] sm:$0xff] %v843
      %937 = vst [vmem:[%s223 + $0x1d0] sm:$0xff] %v588
      %938 = vst [vmem:[%s223 + $0x1d8] sm:$0xff] %v844
      %939 = vst [vmem:[%s223 + $0x1e0] sm:$0xff] %v589
      %940 = vst [vmem:[%s223 + $0x1e8] sm:$0xff] %v845
      %941 = vst [vmem:[%s223 + $0x1f0] sm:$0xff] %v590
      %942 = vst [vmem:[%s223 + $0x1f8] sm:$0xff] %v846
      %943 = vst [vmem:[%s223 + $0x200] sm:$0xff] %v591
      %944 = vst [vmem:[%s223 + $0x208] sm:$0xff] %v847
      %945 = vst [vmem:[%s223 + $0x210] sm:$0xff] %v592
      %946 = vst [vmem:[%s223 + $0x218] sm:$0xff] %v848
      %947 = vst [vmem:[%s223 + $0x220] sm:$0xff] %v593
      %948 = vst [vmem:[%s223 + $0x228] sm:$0xff] %v849
      %949 = vst [vmem:[%s223 + $0x230] sm:$0xff] %v594
      %950 = vst [vmem:[%s223 + $0x238] sm:$0xff] %v850
      %951 = vst [vmem:[%s223 + $0x240] sm:$0xff] %v595
      %952 = vst [vmem:[%s223 + $0x248] sm:$0xff] %v851
      %953 = vst [vmem:[%s223 + $0x250] sm:$0xff] %v596
      %954 = vst [vmem:[%s223 + $0x258] sm:$0xff] %v852
      %955 = vst [vmem:[%s223 + $0x260] sm:$0xff] %v597
      %956 = vst [vmem:[%s223 + $0x268] sm:$0xff] %v853
      %957 = vst [vmem:[%s223 + $0x270] sm:$0xff] %v598
      %958 = vst [vmem:[%s223 + $0x278] sm:$0xff] %v854
      %959 = vst [vmem:[%s223 + $0x280] sm:$0xff] %v599
      %960 = vst [vmem:[%s223 + $0x288] sm:$0xff] %v855
      %961 = vst [vmem:[%s223 + $0x290] sm:$0xff] %v600
      %962 = vst [vmem:[%s223 + $0x298] sm:$0xff] %v856
      %963 = vst [vmem:[%s223 + $0x2a0] sm:$0xff] %v601
      %964 = vst [vmem:[%s223 + $0x2a8] sm:$0xff] %v857
      %965 = vst [vmem:[%s223 + $0x2b0] sm:$0xff] %v602
      %966 = vst [vmem:[%s223 + $0x2b8] sm:$0xff] %v858
      %967 = vst [vmem:[%s223 + $0x2c0] sm:$0xff] %v603
      %968 = vst [vmem:[%s223 + $0x2c8] sm:$0xff] %v859
      %969 = vst [vmem:[%s223 + $0x2d0] sm:$0xff] %v604
      %970 = vst [vmem:[%s223 + $0x2d8] sm:$0xff] %v860
      %971 = vst [vmem:[%s223 + $0x2e0] sm:$0xff] %v605
      %972 = vst [vmem:[%s223 + $0x2e8] sm:$0xff] %v861
      %973 = vst [vmem:[%s223 + $0x2f0] sm:$0xff] %v606
      %974 = vst [vmem:[%s223 + $0x2f8] sm:$0xff] %v862
      %975 = vst [vmem:[%s223 + $0x300] sm:$0xff] %v607
      %976 = vst [vmem:[%s223 + $0x308] sm:$0xff] %v863
      %977 = vst [vmem:[%s223 + $0x310] sm:$0xff] %v608
      %978 = vst [vmem:[%s223 + $0x318] sm:$0xff] %v864
      %979 = vst [vmem:[%s223 + $0x320] sm:$0xff] %v609
      %980 = vst [vmem:[%s223 + $0x328] sm:$0xff] %v865
      %981 = vst [vmem:[%s223 + $0x330] sm:$0xff] %v610
      %982 = vst [vmem:[%s223 + $0x338] sm:$0xff] %v866
      %983 = vst [vmem:[%s223 + $0x340] sm:$0xff] %v611
      %984 = vst [vmem:[%s223 + $0x348] sm:$0xff] %v867
      %985 = vst [vmem:[%s223 + $0x350] sm:$0xff] %v612
      %986 = vst [vmem:[%s223 + $0x358] sm:$0xff] %v868
      %987 = vst [vmem:[%s223 + $0x360] sm:$0xff] %v613
      %988 = vst [vmem:[%s223 + $0x368] sm:$0xff] %v869
      %989 = vst [vmem:[%s223 + $0x370] sm:$0xff] %v614
      %990 = vst [vmem:[%s223 + $0x378] sm:$0xff] %v870
      %991 = vst [vmem:[%s223 + $0x380] sm:$0xff] %v615
      %992 = vst [vmem:[%s223 + $0x388] sm:$0xff] %v871
      %993 = vst [vmem:[%s223 + $0x390] sm:$0xff] %v616
      %994 = vst [vmem:[%s223 + $0x398] sm:$0xff] %v872
      %995 = vst [vmem:[%s223 + $0x3a0] sm:$0xff] %v617
      %996 = vst [vmem:[%s223 + $0x3a8] sm:$0xff] %v873
      %997 = vst [vmem:[%s223 + $0x3b0] sm:$0xff] %v618
      %998 = vst [vmem:[%s223 + $0x3b8] sm:$0xff] %v874
      %999 = vst [vmem:[%s223 + $0x3c0] sm:$0xff] %v619
      %1000 = vst [vmem:[%s223 + $0x3c8] sm:$0xff] %v875
      %1001 = vst [vmem:[%s223 + $0x3d0] sm:$0xff] %v620
      %1002 = vst [vmem:[%s223 + $0x3d8] sm:$0xff] %v876
      %1003 = vst [vmem:[%s223 + $0x3e0] sm:$0xff] %v621
      %1004 = vst [vmem:[%s223 + $0x3e8] sm:$0xff] %v877
      %1005 = vst [vmem:[%s223 + $0x3f0] sm:$0xff] %v622
      %1006 = vst [vmem:[%s223 + $0x3f8] sm:$0xff] %v878
      %s1007 = smul.u32 64, %s15
      %p1008 = scmp.lt.s32.totalorder %s1007, 127
      %s1009 = scalar_select %p1008, %s1007, 127
      %s1010 = smul.addr %s1009, 2
      %s1011 = smul.addr %s1010, 8
      %s1012 = scalar_lea.vmem %s4, %s1011
      // Predicated region
      $region37: #{bottleneck_block_forward.11} parent=35 // pred_check
        %p1013 = pneg %p127
      $region38: #{bottleneck_block_forward.11} parent=35 // pred_check_branch
        %1015 = sbr.rel (%p1013) target = $region40
      $region39: #{bottleneck_block_forward.11} parent=35 // pred_region
        %s1016 = smul.u32 64, %s15
      $region40: #{bottleneck_block_forward.11} parent=35 // pred_fallthru
        _
    $region36: #{bottleneck_block_forward.11} parent=5 // pred_fallthru
      _
    %p1017 = scmp.le.s32.totalorder 2, %s10
    // Predicated region
    $region41: #{bottleneck_block_forward.11} parent=5 // pred_check
      %p1018 = pneg %p1017
    $region42: #{bottleneck_block_forward.11} parent=5 // pred_check_branch
      %1020 = sbr.rel (%p1018) target = $region44
    $region43: #{bottleneck_block_forward.11} parent=5 // pred_region
      %s1021 = ssub.s32 %s10, 2
      // Predicated region
      $region45: #{bottleneck_block_forward.11} parent=43 // pred_check
        %p1022 = pneg %p133
      $region46: #{bottleneck_block_forward.11} parent=43 // pred_check_branch
        %1024 = sbr.rel (%p1022) target = $region48
      $region47: #{bottleneck_block_forward.11} parent=43 // pred_region
        %s1025 = smul.u32 64, %s16
        %p1026 = scmp.lt.s32.totalorder %s1025, 127
        %s1027 = scalar_select %p1026, %s1025, 127
        %s1028 = smul.addr %s1027, 2
        %s1029 = smul.addr %s1028, 8
        %s1030 = scalar_lea.vmem %s4, %s1029
      $region48: #{bottleneck_block_forward.11} parent=43 // pred_fallthru
        _
    $region44: #{bottleneck_block_forward.11} parent=5 // pred_fallthru
      _
  $region6: #{bottleneck_block_forward.11} parent=0 // loop_footer
    %s14 = sadd.s32 1, %s10
  $region7: #{bottleneck_block_forward.11} parent=0 // loop_footer_branch
    %9 = sbr.rel target = $region3
  $region8: #{bottleneck_block_forward.11} parent=0 // loop_exit
    _

// kernel: bottleneck_block_forward.8
$region0: #{bottleneck_block_forward.8}
  #allocation0 [shape = 'u32[]', space=smem, size = 0x4, offset = 0x4, fixed_abs, tag = 'smem constant byte address 0x4 - core index']
  #allocation1 [shape = 'u32[144,128]{1,0:T(1,128)}', space=vmem, size = 0x12000, scoped, tag = 'internal scratch']
  %s0 = inlined_call_operand.vmem [shape: bf16[16,3,10,10,128], index: 0, kind: input, shape index: {}]
  %s1 = inlined_call_operand.vmem [shape: bf16[3,3,3,128,128], index: 1, kind: input, shape index: {}]
  %s2 = inlined_call_operand.vmem [shape: f32[1024,128], index: 2, kind: output, shape index: {0}]
  %s3 = inlined_call_operand.vmem [shape: f32[16,8,128], index: 3, kind: output, shape index: {1}]
  %s4 = inlined_call_operand.vmem [shape: f32[16,8,128], index: 4, kind: output, shape index: {2}]
  %5 = xla_tuple %s2, %s3, %s4
  %s6 = sld [smem:[#allocation0]]
  $region57: #{bottleneck_block_forward.8} parent=0
    _
  %s8 = ssub.s32 1, %s6
  %s9 = scalar_select 0, %s8, %s6
  loop: start=0, step=1, limit=18
  $region2: #{bottleneck_block_forward.8} parent=0 // loop_pre_header
    _
  $region3: #{bottleneck_block_forward.8} parent=0 // loop_header
    %s11 = sphi 0, %s15
    %p12 = scmp.ge.s32.totalorder %s11, 18
    %s21 = sphi 0, %s23
    %s24 = sphi 0, %s21
    %s25 = sphi 0, %s24
    %s41 = sphi 0, %s25
    %s45 = sphi 0, %s45
    %s47 = sphi 0, %s45
    %s48 = sphi 0, %s47
    %s62 = sphi 0, %s48
    %s68 = sphi 0, %s70
    %s71 = sphi 0, %s68
    %s72 = sphi 0, %s71
    %s88 = sphi 0, %s72
    %s94 = sphi 0, %s96
    %s97 = sphi 0, %s94
    %s98 = sphi 0, %s97
    %s114 = sphi 0, %s98
    %s120 = sphi 0, %s122
    %s123 = sphi 0, %s120
    %s124 = sphi 0, %s123
    %s140 = sphi 0, %s124
  $region4: #{bottleneck_block_forward.8} parent=0 // loop_header_branch
    %14 = sbr.rel (%p12) target = $region8
  $region5: #{bottleneck_block_forward.8} parent=0 // loop_body
    %s16 = ssub.s32 %s11, 1
    %s17 = ssub.s32 %s11, 2
    %s18 = sadd.s32 %s11, 1
    %s19 = ssub.s32 %s11, %s18
    %p20 = scmp.eq.s32.totalorder %s19, 0
    %s22 = sadd.s32 %s21, 1
    %s23 = scalar_select %p20, %s21, %s22
    %p26 = pneg %p20
    %p27 = scmp.eq.s32.totalorder %s11, 15
    %p28 = por %p26, %p27
    %p29 = scmp.ne.s32.totalorder %s21, %s24
    %p30 = scmp.eq.s32.totalorder %s11, 0
    %p31 = por %p29, %p30
    %p32 = scmp.ne.s32.totalorder %s21, %s24
    %p33 = scmp.eq.s32.totalorder %s16, 15
    %p34 = por %p32, %p33
    %p35 = scmp.ne.s32.totalorder %s24, %s25
    %p36 = scmp.eq.s32.totalorder %s16, 0
    %p37 = por %p35, %p36
    %p38 = scmp.ne.s32.totalorder %s24, %s25
    %p39 = scmp.eq.s32.totalorder %s17, 15
    %p40 = por %p38, %p39
    %p42 = scmp.ne.s32.totalorder %s25, %s41
    %p43 = scmp.eq.s32.totalorder %s17, 0
    %p44 = por %p42, %p43
    %s46 = sadd.s32 %s45, 1
    %p49 = scmp.eq.s32.totalorder %s11, 15
    %p50 = scmp.ne.s32.totalorder %s45, %s47
    %p51 = scmp.eq.s32.totalorder %s11, 0
    %p52 = por %p50, %p51
    %p53 = scmp.ne.s32.totalorder %s45, %s47
    %p54 = scmp.eq.s32.totalorder %s16, 15
    %p55 = por %p53, %p54
    %p56 = scmp.ne.s32.totalorder %s47, %s48
    %p57 = scmp.eq.s32.totalorder %s16, 0
    %p58 = por %p56, %p57
    %p59 = scmp.ne.s32.totalorder %s47, %s48
    %p60 = scmp.eq.s32.totalorder %s17, 15
    %p61 = por %p59, %p60
    %p63 = scmp.ne.s32.totalorder %s48, %s62
    %p64 = scmp.eq.s32.totalorder %s17, 0
    %p65 = por %p63, %p64
    %s66 = ssub.s32 %s11, %s18
    %p67 = scmp.eq.s32.totalorder %s66, 0
    %s69 = sadd.s32 %s68, 1
    %s70 = scalar_select %p67, %s68, %s69
    %p73 = pneg %p67
    %p74 = scmp.eq.s32.totalorder %s11, 15
    %p75 = por %p73, %p74
    %p76 = scmp.ne.s32.totalorder %s68, %s71
    %p77 = scmp.eq.s32.totalorder %s11, 0
    %p78 = por %p76, %p77
    %p79 = scmp.ne.s32.totalorder %s68, %s71
    %p80 = scmp.eq.s32.totalorder %s16, 15
    %p81 = por %p79, %p80
    %p82 = scmp.ne.s32.totalorder %s71, %s72
    %p83 = scmp.eq.s32.totalorder %s16, 0
    %p84 = por %p82, %p83
    %p85 = scmp.ne.s32.totalorder %s71, %s72
    %p86 = scmp.eq.s32.totalorder %s17, 15
    %p87 = por %p85, %p86
    %p89 = scmp.ne.s32.totalorder %s72, %s88
    %p90 = scmp.eq.s32.totalorder %s17, 0
    %p91 = por %p89, %p90
    %s92 = ssub.s32 %s11, %s18
    %p93 = scmp.eq.s32.totalorder %s92, 0
    %s95 = sadd.s32 %s94, 1
    %s96 = scalar_select %p93, %s94, %s95
    %p99 = pneg %p93
    %p100 = scmp.eq.s32.totalorder %s11, 15
    %p101 = por %p99, %p100
    %p102 = scmp.ne.s32.totalorder %s94, %s97
    %p103 = scmp.eq.s32.totalorder %s11, 0
    %p104 = por %p102, %p103
    %p105 = scmp.ne.s32.totalorder %s94, %s97
    %p106 = scmp.eq.s32.totalorder %s16, 15
    %p107 = por %p105, %p106
    %p108 = scmp.ne.s32.totalorder %s97, %s98
    %p109 = scmp.eq.s32.totalorder %s16, 0
    %p110 = por %p108, %p109
    %p111 = scmp.ne.s32.totalorder %s97, %s98
    %p112 = scmp.eq.s32.totalorder %s17, 15
    %p113 = por %p111, %p112
    %p115 = scmp.ne.s32.totalorder %s98, %s114
    %p116 = scmp.eq.s32.totalorder %s17, 0
    %p117 = por %p115, %p116
    %s118 = ssub.s32 %s11, %s18
    %p119 = scmp.eq.s32.totalorder %s118, 0
    %s121 = sadd.s32 %s120, 1
    %s122 = scalar_select %p119, %s120, %s121
    %p125 = pneg %p119
    %p126 = scmp.eq.s32.totalorder %s11, 15
    %p127 = por %p125, %p126
    %p128 = scmp.ne.s32.totalorder %s120, %s123
    %p129 = scmp.eq.s32.totalorder %s11, 0
    %p130 = por %p128, %p129
    %p131 = scmp.ne.s32.totalorder %s120, %s123
    %p132 = scmp.eq.s32.totalorder %s16, 15
    %p133 = por %p131, %p132
    %p134 = scmp.ne.s32.totalorder %s123, %s124
    %p135 = scmp.eq.s32.totalorder %s16, 0
    %p136 = por %p134, %p135
    %p137 = scmp.ne.s32.totalorder %s123, %s124
    %p138 = scmp.eq.s32.totalorder %s17, 15
    %p139 = por %p137, %p138
    %p141 = scmp.ne.s32.totalorder %s124, %s140
    %p142 = scmp.eq.s32.totalorder %s17, 0
    %p143 = por %p141, %p142
    %p144 = scmp.le.s32.totalorder 1, %s11
    %p145 = scmp.lt.s32.totalorder %s11, 17
    %p146 = pnand %p144, %p145
    %p147 = pneg %p146
    // Predicated region
    $region9: #{bottleneck_block_forward.8} parent=5 // pred_check
      _
    $region10: #{bottleneck_block_forward.8} parent=5 // pred_check_branch
      %149 = sbr.rel (%p146) target = $region12
    $region11: #{bottleneck_block_forward.8} parent=5 // pred_region
      %s150 = ssub.s32 %s11, 1
      // Predicated region
      $region13: #{bottleneck_block_forward.8} parent=11 // pred_check
        %p151 = pneg %p58
      $region14: #{bottleneck_block_forward.8} parent=11 // pred_check_branch
        %153 = sbr.rel (%p151) target = $region16
      $region15: #{bottleneck_block_forward.8} parent=11 // pred_region
        _
      $region16: #{bottleneck_block_forward.8} parent=11 // pred_fallthru
        _
    $region12: #{bottleneck_block_forward.8} parent=5 // pred_fallthru
      _
    %p154 = scmp.lt.s32.totalorder %s11, 16
    // Predicated region
    $region17: #{bottleneck_block_forward.8} parent=5 // pred_check
      %p155 = pneg %p154
    $region18: #{bottleneck_block_forward.8} parent=5 // pred_check_branch
      %157 = sbr.rel (%p155) target = $region20
    $region19: #{bottleneck_block_forward.8} parent=5 // pred_region
      // Predicated region
      $region21: #{bottleneck_block_forward.8} parent=19 // pred_check
        %p158 = pneg %p31
      $region22: #{bottleneck_block_forward.8} parent=19 // pred_check_branch
        %160 = sbr.rel (%p158) target = $region24
      $region23: #{bottleneck_block_forward.8} parent=19 // pred_region
        %p161 = scmp.lt.s32.totalorder %s11, 15
        %s162 = scalar_select %p161, %s11, 15
        %s163 = smul.addr %s162, 60
        %s164 = smul.addr %s163, 4
        %s165 = scalar_lea.vmem %s0, %s164
      $region24: #{bottleneck_block_forward.8} parent=19 // pred_fallthru
        _
    $region20: #{bottleneck_block_forward.8} parent=5 // pred_fallthru
      _
    %p166 = scmp.le.s32.totalorder 1, %s11
    %p167 = scmp.lt.s32.totalorder %s11, 17
    %p168 = pnand %p166, %p167
    %p169 = pneg %p168
    // Predicated region
    $region25: #{bottleneck_block_forward.8} parent=5 // pred_check
      _
    $region26: #{bottleneck_block_forward.8} parent=5 // pred_check_branch
      %171 = sbr.rel (%p168) target = $region28
    $region27: #{bottleneck_block_forward.8} parent=5 // pred_region
      %s172 = ssub.s32 %s11, 1
      %p173 = scmp.lt.s32.totalorder %s16, 15
      %s174 = scalar_select %p173, %s16, 15
      %s175 = smul.addr %s174, 60
      %s176 = smul.addr %s175, 4
      %s177 = scalar_lea.vmem %s0, %s176
      %p178 = pneg %p37
      %p179 = pneg %p34
      %p180 = pneg %p58
      %p181 = pneg %p55
      %p182 = pneg %p84
      %p183 = pneg %p81
      %s184 = smul.u32 8, %s16
      %p185 = scmp.lt.s32.totalorder %s184, 127
      %s186 = scalar_select %p185, %s184, 127
      %s187 = smul.addr %s186, 8
      %s188 = scalar_lea.vmem %s2, %s187
      %p189 = pneg %p110
      %p190 = pneg %p107
      %p191 = scmp.lt.s32.totalorder %s16, 15
      %s192 = scalar_select %p191, %s16, 15
      %s193 = smul.addr %s192, 8
      %s194 = scalar_lea.vmem %s3, %s193
      %p195 = pneg %p136
      %p196 = pneg %p133
      %p197 = scmp.lt.s32.totalorder %s16, 15
      %s198 = scalar_select %p197, %s16, 15
      %s199 = smul.addr %s198, 8
      %s200 = scalar_lea.vmem %s4, %s199
      %p201 = scmp.lt.s32.totalorder %s16, 15
      %s202 = scalar_select %p201, %s16, 15
      %s203 = smul.addr %s202, 60
      %s204 = smul.addr %s203, 4
      %s205 = scalar_lea.vmem %s0, %s204
      %s206 = smul.u32 8, %s16
      %p207 = scmp.lt.s32.totalorder %s206, 127
      %s208 = scalar_select %p207, %s206, 127
      %s209 = smul.addr %s208, 8
      %s210 = scalar_lea.vmem %s2, %s209
      %s211 = smul.u32 8, %s16
      %p212 = scmp.lt.s32.totalorder %s16, 15
      %s213 = scalar_select %p212, %s16, 15
      %s214 = smul.addr %s213, 8
      %s215 = scalar_lea.vmem %s3, %s214
      %p216 = scmp.lt.s32.totalorder %s16, 15
      %s217 = scalar_select %p216, %s16, 15
      %s218 = smul.addr %s217, 8
      %s219 = scalar_lea.vmem %s4, %s218
      %v221 = vld [vmem:[%s205] sm:$0xf]
      %v222 = vld [vmem:[%s205 + $0x8] sm:$0xf]
      %v223 = vld [vmem:[%s205 + $0x10] sm:$0xf]
      %v224 = vld [vmem:[%s205 + $0x18] sm:$0xf]
      %v225 = vld [vmem:[%s205 + $0x20] sm:$0xf]
      %v226 = vld [vmem:[%s205 + $0x28] sm:$0xf]
      %v227 = vld [vmem:[%s205 + $0x30] sm:$0xf]
      %v228 = vld [vmem:[%s205 + $0x38] sm:$0xf]
      %v229 = vld [vmem:[%s1] sm:$0xf]
      %v230 = vld [vmem:[%s1 + $0x4] sm:$0xf]
      %v231 = vld [vmem:[%s1 + $0x8] sm:$0xf]
      %v232 = vld [vmem:[%s1 + $0xc] sm:$0xf]
      %v233 = vld [vmem:[%s1 + $0x10] sm:$0xf]
      %v234 = vld [vmem:[%s1 + $0x14] sm:$0xf]
      %v235 = vld [vmem:[%s1 + $0x18] sm:$0xf]
      %v236 = vld [vmem:[%s1 + $0x1c] sm:$0xf]
      %v237 = vld [vmem:[%s1 + $0x20] sm:$0xf]
      %v238 = vld [vmem:[%s1 + $0x24] sm:$0xf]
      %v239 = vld [vmem:[%s1 + $0x28] sm:$0xf]
      %v240 = vld [vmem:[%s1 + $0x2c] sm:$0xf]
      %v241 = vld [vmem:[%s1 + $0x30] sm:$0xf]
      %v242 = vld [vmem:[%s1 + $0x34] sm:$0xf]
      %v243 = vld [vmem:[%s1 + $0x38] sm:$0xf]
      %v244 = vld [vmem:[%s1 + $0x3c] sm:$0xf]
      %v245 = vld [vmem:[%s205 + $0x4] sm:$0x1]
      %v246 = vld [vmem:[%s205 + $0xc] sm:$0x1]
      %v247 = vld [vmem:[%s205 + $0x14] sm:$0x1]
      %v248 = vld [vmem:[%s205 + $0x1c] sm:$0x1]
      %v249 = vld [vmem:[%s205 + $0x24] sm:$0x1]
      %v250 = vld [vmem:[%s205 + $0x2c] sm:$0x1]
      %v251 = vld [vmem:[%s205 + $0x34] sm:$0x1]
      %v252 = vld [vmem:[%s205 + $0x3c] sm:$0x1]
      %vm253 = vsmask.f32 3328
      %vm254 = vsmask.f32 7440
      %vm255 = vmor %vm253, %vm254
      %v257 = vshrl.u32 %v221, 16
      %v259 = vrot.slane %v257, 4
      %v260 = vshll.u32 %v221, 16
      %v262 = vrot.slane %v260, 5
      %v263 = vor.u32 %v259, %v262
      %v264 = vrot.slane %v263, 4
      %v266 = vshll.u32 %v245, 16
      %v268 = vrot.slane %v266, 5
      %v269 = vsel %vm255, %v264, %v268
      %v271 = vshrl.u32 %v222, 16
      %v273 = vrot.slane %v271, 4
      %v274 = vshll.u32 %v222, 16
      %v276 = vrot.slane %v274, 5
      %v277 = vor.u32 %v273, %v276
      %v278 = vrot.slane %v277, 4
      %v280 = vshll.u32 %v246, 16
      %v282 = vrot.slane %v280, 5
      %v283 = vsel %vm255, %v278, %v282
      %v285 = vshrl.u32 %v223, 16
      %v287 = vrot.slane %v285, 4
      %v288 = vshll.u32 %v223, 16
      %v290 = vrot.slane %v288, 5
      %v291 = vor.u32 %v287, %v290
      %v292 = vrot.slane %v291, 4
      %v294 = vshll.u32 %v247, 16
      %v296 = vrot.slane %v294, 5
      %v297 = vsel %vm255, %v292, %v296
      %v299 = vshrl.u32 %v224, 16
      %v301 = vrot.slane %v299, 4
      %v302 = vshll.u32 %v224, 16
      %v304 = vrot.slane %v302, 5
      %v305 = vor.u32 %v301, %v304
      %v306 = vrot.slane %v305, 4
      %v308 = vshll.u32 %v248, 16
      %v310 = vrot.slane %v308, 5
      %v311 = vsel %vm255, %v306, %v310
      %v313 = vshrl.u32 %v225, 16
      %v315 = vrot.slane %v313, 4
      %v316 = vshll.u32 %v225, 16
      %v318 = vrot.slane %v316, 5
      %v319 = vor.u32 %v315, %v318
      %v320 = vrot.slane %v319, 4
      %v322 = vshll.u32 %v249, 16
      %v324 = vrot.slane %v322, 5
      %v325 = vsel %vm255, %v320, %v324
      %v327 = vshrl.u32 %v226, 16
      %v329 = vrot.slane %v327, 4
      %v330 = vshll.u32 %v226, 16
      %v332 = vrot.slane %v330, 5
      %v333 = vor.u32 %v329, %v332
      %v334 = vrot.slane %v333, 4
      %v336 = vshll.u32 %v250, 16
      %v338 = vrot.slane %v336, 5
      %v339 = vsel %vm255, %v334, %v338
      %v341 = vshrl.u32 %v227, 16
      %v343 = vrot.slane %v341, 4
      %v344 = vshll.u32 %v227, 16
      %v346 = vrot.slane %v344, 5
      %v347 = vor.u32 %v343, %v346
      %v348 = vrot.slane %v347, 4
      %v350 = vshll.u32 %v251, 16
      %v352 = vrot.slane %v350, 5
      %v353 = vsel %vm255, %v348, %v352
      %v355 = vshrl.u32 %v228, 16
      %v357 = vrot.slane %v355, 4
      %v358 = vshll.u32 %v228, 16
      %v360 = vrot.slane %v358, 5
      %v361 = vor.u32 %v357, %v360
      %v362 = vrot.slane %v361, 4
      %v364 = vshll.u32 %v252, 16
      %v366 = vrot.slane %v364, 5
      %v367 = vsel %vm255, %v362, %v366
      %s368 = scalar_lea.vmem %s1, 64
      %v369 = vld [vmem:[%s368] sm:$0xf]
      %v370 = vld [vmem:[%s368 + $0x4] sm:$0xf]
      %v371 = vld [vmem:[%s368 + $0x8] sm:$0xf]
      %v372 = vld [vmem:[%s368 + $0xc] sm:$0xf]
      %v373 = vld [vmem:[%s368 + $0x10] sm:$0xf]
      %v374 = vld [vmem:[%s368 + $0x14] sm:$0xf]
      %v375 = vld [vmem:[%s368 + $0x18] sm:$0xf]
      %v376 = vld [vmem:[%s368 + $0x1c] sm:$0xf]
      %v377 = vld [vmem:[%s368 + $0x20] sm:$0xf]
      %v378 = vld [vmem:[%s368 + $0x24] sm:$0xf]
      %v379 = vld [vmem:[%s368 + $0x28] sm:$0xf]
      %v380 = vld [vmem:[%s368 + $0x2c] sm:$0xf]
      %v381 = vld [vmem:[%s368 + $0x30] sm:$0xf]
      %v382 = vld [vmem:[%s368 + $0x34] sm:$0xf]
      %v383 = vld [vmem:[%s368 + $0x38] sm:$0xf]
      %v384 = vld [vmem:[%s368 + $0x3c] sm:$0xf]
      %v385 = vunpack.c.l.b16 %v269
      %v386 = vunpack.c.l.b16 %v283
      %v387 = vunpack.c.l.b16 %v297
      %v388 = vunpack.c.l.b16 %v311
      %v389 = vunpack.c.l.b16 %v325
      %v390 = vunpack.c.l.b16 %v339
      %v391 = vunpack.c.l.b16 %v353
      %v392 = vunpack.c.l.b16 %v367
      %v393 = vpack.c.b16 %v386, %v385
      %v394 = vpack.c.b16 %v388, %v387
      %v395 = vpack.c.b16 %v390, %v389
      %v396 = vpack.c.b16 %v392, %v391
      %v417 = vunpack.c.l.b16 %v369
      %v418 = vunpack.c.l.b16 %v370
      %v419 = vunpack.c.l.b16 %v371
      %v420 = vunpack.c.l.b16 %v372
      %v421 = vunpack.c.l.b16 %v373
      %v422 = vunpack.c.l.b16 %v374
      %v423 = vunpack.c.l.b16 %v375
      %v424 = vunpack.c.l.b16 %v376
      %v425 = vunpack.c.l.b16 %v377
      %v426 = vunpack.c.l.b16 %v378
      %v427 = vunpack.c.l.b16 %v379
      %v428 = vunpack.c.l.b16 %v380
      %v429 = vunpack.c.l.b16 %v381
      %v430 = vunpack.c.l.b16 %v382
      %v431 = vunpack.c.l.b16 %v383
      %v432 = vunpack.c.l.b16 %v384
      %v433 = vpack.c.b16 %v418, %v417
      %v434 = vpack.c.b16 %v420, %v419
      %v435 = vpack.c.b16 %v422, %v421
      %v436 = vpack.c.b16 %v424, %v423
      %v437 = vpack.c.b16 %v426, %v425
      %v438 = vpack.c.b16 %v428, %v427
      %v439 = vpack.c.b16 %v430, %v429
      %v440 = vpack.c.b16 %v432, %v431
      %449 = vmatprep.subr.bf16.mxu0 0
      %450 = vmatpush1.bf16.msra.mxu0 %v440
      %451 = vmatprep.subr.bf16.mxu0 0
      %452 = vmatpush1.bf16.msra.mxu0 %v439
      %453 = vmatprep.subr.bf16.mxu0 0
      %454 = vmatpush1.bf16.msra.mxu0 %v438
      %455 = vmatprep.subr.bf16.mxu0 0
      %456 = vmatpush1.bf16.msra.mxu0 %v437
      %457 = vmatprep.subr.bf16.mxu0 0
      %458 = vmatpush1.bf16.msra.mxu0 %v436
      %459 = vmatprep.subr.bf16.mxu0 0
      %460 = vmatpush1.bf16.msra.mxu0 %v435
      %461 = vmatprep.subr.bf16.mxu0 0
      %462 = vmatpush1.bf16.msra.mxu0 %v434
      %463 = vmatprep.subr.bf16.mxu0 0
      %464 = vmatpush1.bf16.msra.mxu0 %v433
      %465 = vmatprep.subr.bf16.mxu0 0
      %466 = vmatpush2.bf16.msra.mxu0 0
      %467 = vmatprep.subr.bf16.mxu0 0
      %468 = vmatpush2.bf16.msra.mxu0 0
      %469 = vmatprep.subr.bf16.mxu0 0
      %470 = vmatpush2.bf16.msra.mxu0 0
      %471 = vmatprep.subr.bf16.mxu0 0
      %472 = vmatpush2.bf16.msra.mxu0 0
      %473 = vmatprep.subr.bf16.mxu0 0
      %474 = vmatpush2.bf16.msra.mxu0 0
      %475 = vmatprep.subr.bf16.mxu0 0
      %476 = vmatpush2.bf16.msra.mxu0 0
      %477 = vmatprep.subr.bf16.mxu0 0
      %478 = vmatpush2.bf16.msra.mxu0 0
      %479 = vmatprep.subr.bf16.mxu0 0
      %480 = vmatpush2.bf16.msra.mxu0 0
      %481 = vmatprep.mubr.bf16.mxu0 0
      %482 = vmatmul.mubr.bf16.gmra.mxu0 %v393
      %v483 = vpop.f32.mrf.mxu0
      %v484 = vadd.f32 0.0, %v483
      %v485 = vpop.f32.mrf.mxu0
      %v486 = vpop.f32.mrf.mxu0
      %v487 = vadd.f32 0.0, %v486
      %v488 = vpop.f32.mrf.mxu0
      %489 = vmatprep.mubr.bf16.mxu0 0
      %490 = vmatmul.mubr.bf16.gmra.mxu0 %v394
      %v491 = vpop.f32.mrf.mxu0
      %v492 = vadd.f32 0.0, %v491
      %v493 = vpop.f32.mrf.mxu0
      %v494 = vpop.f32.mrf.mxu0
      %v495 = vadd.f32 0.0, %v494
      %v496 = vpop.f32.mrf.mxu0
      %497 = vmatprep.mubr.bf16.mxu0 0
      %498 = vmatmul.mubr.bf16.gmra.mxu0 %v395
      %v499 = vpop.f32.mrf.mxu0
      %v500 = vadd.f32 0.0, %v499
      %v501 = vpop.f32.mrf.mxu0
      %v502 = vpop.f32.mrf.mxu0
      %v503 = vadd.f32 0.0, %v502
      %v504 = vpop.f32.mrf.mxu0
      %505 = vmatprep.mubr.bf16.mxu0 0
      %506 = vmatmul.mubr.bf16.gmra.mxu0 %v396
      %v507 = vpop.f32.mrf.mxu0
      %v508 = vadd.f32 0.0, %v507
      %v509 = vpop.f32.mrf.mxu0
      %v510 = vpop.f32.mrf.mxu0
      %v511 = vadd.f32 0.0, %v510
      %v512 = vpop.f32.mrf.mxu0
      %513 = vdwg.mxu0
      %v522 = vunpack.c.l.b16 %v221
      %v523 = vunpack.c.l.b16 %v222
      %v524 = vunpack.c.l.b16 %v223
      %v525 = vunpack.c.l.b16 %v224
      %v526 = vunpack.c.l.b16 %v225
      %v527 = vunpack.c.l.b16 %v226
      %v528 = vunpack.c.l.b16 %v227
      %v529 = vunpack.c.l.b16 %v228
      %v530 = vpack.c.b16 %v523, %v522
      %v531 = vpack.c.b16 %v525, %v524
      %v532 = vpack.c.b16 %v527, %v526
      %v533 = vpack.c.b16 %v529, %v528
      %v554 = vunpack.c.l.b16 %v229
      %v555 = vunpack.c.l.b16 %v230
      %v556 = vunpack.c.l.b16 %v231
      %v557 = vunpack.c.l.b16 %v232
      %v558 = vunpack.c.l.b16 %v233
      %v559 = vunpack.c.l.b16 %v234
      %v560 = vunpack.c.l.b16 %v235
      %v561 = vunpack.c.l.b16 %v236
      %v562 = vunpack.c.l.b16 %v237
      %v563 = vunpack.c.l.b16 %v238
      %v564 = vunpack.c.l.b16 %v239
      %v565 = vunpack.c.l.b16 %v240
      %v566 = vunpack.c.l.b16 %v241
      %v567 = vunpack.c.l.b16 %v242
      %v568 = vunpack.c.l.b16 %v243
      %v569 = vunpack.c.l.b16 %v244
      %v570 = vpack.c.b16 %v555, %v554
      %v571 = vpack.c.b16 %v557, %v556
      %v572 = vpack.c.b16 %v559, %v558
      %v573 = vpack.c.b16 %v561, %v560
      %v574 = vpack.c.b16 %v563, %v562
      %v575 = vpack.c.b16 %v565, %v564
      %v576 = vpack.c.b16 %v567, %v566
      %v577 = vpack.c.b16 %v569, %v568
      %586 = vmatprep.subr.bf16.mxu0 0
      %587 = vmatpush1.bf16.msra.mxu0 %v577
      %588 = vmatprep.subr.bf16.mxu0 0
      %589 = vmatpush1.bf16.msra.mxu0 %v576
      %590 = vmatprep.subr.bf16.mxu0 0
      %591 = vmatpush1.bf16.msra.mxu0 %v575
      %592 = vmatprep.subr.bf16.mxu0 0
      %593 = vmatpush1.bf16.msra.mxu0 %v574
      %594 = vmatprep.subr.bf16.mxu0 0
      %595 = vmatpush1.bf16.msra.mxu0 %v573
      %596 = vmatprep.subr.bf16.mxu0 0
      %597 = vmatpush1.bf16.msra.mxu0 %v572
      %598 = vmatprep.subr.bf16.mxu0 0
      %599 = vmatpush1.bf16.msra.mxu0 %v571
      %600 = vmatprep.subr.bf16.mxu0 0
      %601 = vmatpush1.bf16.msra.mxu0 %v570
      %602 = vmatprep.subr.bf16.mxu0 0
      %603 = vmatpush2.bf16.msra.mxu0 0
      %604 = vmatprep.subr.bf16.mxu0 0
      %605 = vmatpush2.bf16.msra.mxu0 0
      %606 = vmatprep.subr.bf16.mxu0 0
      %607 = vmatpush2.bf16.msra.mxu0 0
      %608 = vmatprep.subr.bf16.mxu0 0
      %609 = vmatpush2.bf16.msra.mxu0 0
      %610 = vmatprep.subr.bf16.mxu0 0
      %611 = vmatpush2.bf16.msra.mxu0 0
      %612 = vmatprep.subr.bf16.mxu0 0
      %613 = vmatpush2.bf16.msra.mxu0 0
      %614 = vmatprep.subr.bf16.mxu0 0
      %615 = vmatpush2.bf16.msra.mxu0 0
      %616 = vmatprep.subr.bf16.mxu0 0
      %617 = vmatpush2.bf16.msra.mxu0 0
      %618 = vmatprep.mubr.bf16.mxu0 0
      %619 = vmatmul.mubr.bf16.gmra.mxu0 %v530
      %v620 = vpop.f32.mrf.mxu0
      %v621 = vadd.f32 %v484, %v620
      %v622 = vpop.f32.mrf.mxu0
      %v623 = vpop.f32.mrf.mxu0
      %v624 = vadd.f32 %v487, %v623
      %v625 = vpop.f32.mrf.mxu0
      %626 = vmatprep.mubr.bf16.mxu0 0
      %627 = vmatmul.mubr.bf16.gmra.mxu0 %v531
      %v628 = vpop.f32.mrf.mxu0
      %v629 = vadd.f32 %v492, %v628
      %v630 = vpop.f32.mrf.mxu0
      %v631 = vpop.f32.mrf.mxu0
      %v632 = vadd.f32 %v495, %v631
      %v633 = vpop.f32.mrf.mxu0
      %634 = vmatprep.mubr.bf16.mxu0 0
      %635 = vmatmul.mubr.bf16.gmra.mxu0 %v532
      %v636 = vpop.f32.mrf.mxu0
      %v637 = vadd.f32 %v500, %v636
      %v638 = vpop.f32.mrf.mxu0
      %v639 = vpop.f32.mrf.mxu0
      %v640 = vadd.f32 %v503, %v639
      %v641 = vpop.f32.mrf.mxu0
      %642 = vmatprep.mubr.bf16.mxu0 0
      %643 = vmatmul.mubr.bf16.gmra.mxu0 %v533
      %v644 = vpop.f32.mrf.mxu0
      %v645 = vadd.f32 %v508, %v644
      %v646 = vpop.f32.mrf.mxu0
      %v647 = vpop.f32.mrf.mxu0
      %v648 = vadd.f32 %v511, %v647
      %v649 = vpop.f32.mrf.mxu0
      %650 = vdwg.mxu0
      %v651 = vld [vmem:[%s205] sm:$0xe]
      %v652 = vld [vmem:[%s205 + $0x8] sm:$0xe]
      %v653 = vld [vmem:[%s205 + $0x10] sm:$0xe]
      %v654 = vld [vmem:[%s205 + $0x18] sm:$0xe]
      %v655 = vld [vmem:[%s205 + $0x20] sm:$0xe]
      %v656 = vld [vmem:[%s205 + $0x28] sm:$0xe]
      %v657 = vld [vmem:[%s205 + $0x30] sm:$0xe]
      %v658 = vld [vmem:[%s205 + $0x38] sm:$0xe]
      %vm675 = vcmask 1042432
      %vm676 = vcmask 1046532
      %vm677 = vmor %vm675, %vm676
      %v678 = vrot.slane %v651, 5
      %v679 = vrot.slane %v678, 4
      %v680 = vrot.slane %v245, 5
      %v681 = vsel %vm677, %v679, %v680
      %v682 = vrot.slane %v652, 5
      %v683 = vrot.slane %v682, 4
      %v684 = vrot.slane %v246, 5
      %v685 = vsel %vm677, %v683, %v684
      %v686 = vrot.slane %v653, 5
      %v687 = vrot.slane %v686, 4
      %v688 = vrot.slane %v247, 5
      %v689 = vsel %vm677, %v687, %v688
      %v690 = vrot.slane %v654, 5
      %v691 = vrot.slane %v690, 4
      %v692 = vrot.slane %v248, 5
      %v693 = vsel %vm677, %v691, %v692
      %v694 = vrot.slane %v655, 5
      %v695 = vrot.slane %v694, 4
      %v696 = vrot.slane %v249, 5
      %v697 = vsel %vm677, %v695, %v696
      %v698 = vrot.slane %v656, 5
      %v699 = vrot.slane %v698, 4
      %v700 = vrot.slane %v250, 5
      %v701 = vsel %vm677, %v699, %v700
      %v702 = vrot.slane %v657, 5
      %v703 = vrot.slane %v702, 4
      %v704 = vrot.slane %v251, 5
      %v705 = vsel %vm677, %v703, %v704
      %v706 = vrot.slane %v658, 5
      %v707 = vrot.slane %v706, 4
      %v708 = vrot.slane %v252, 5
      %v709 = vsel %vm677, %v707, %v708
      %s710 = scalar_lea.vmem %s1, 128
      %v711 = vld [vmem:[%s710] sm:$0xf]
      %v712 = vld [vmem:[%s710 + $0x4] sm:$0xf]
      %v713 = vld [vmem:[%s710 + $0x8] sm:$0xf]
      %v714 = vld [vmem:[%s710 + $0xc] sm:$0xf]
      %v715 = vld [vmem:[%s710 + $0x10] sm:$0xf]
      %v716 = vld [vmem:[%s710 + $0x14] sm:$0xf]
      %v717 = vld [vmem:[%s710 + $0x18] sm:$0xf]
      %v718 = vld [vmem:[%s710 + $0x1c] sm:$0xf]
      %v719 = vld [vmem:[%s710 + $0x20] sm:$0xf]
      %v720 = vld [vmem:[%s710 + $0x24] sm:$0xf]
      %v721 = vld [vmem:[%s710 + $0x28] sm:$0xf]
      %v722 = vld [vmem:[%s710 + $0x2c] sm:$0xf]
      %v723 = vld [vmem:[%s710 + $0x30] sm:$0xf]
      %v724 = vld [vmem:[%s710 + $0x34] sm:$0xf]
      %v725 = vld [vmem:[%s710 + $0x38] sm:$0xf]
      %v726 = vld [vmem:[%s710 + $0x3c] sm:$0xf]
      %v727 = vunpack.c.l.b16 %v681
      %v728 = vunpack.c.l.b16 %v685
      %v729 = vunpack.c.l.b16 %v689
      %v730 = vunpack.c.l.b16 %v693
      %v731 = vunpack.c.l.b16 %v697
      %v732 = vunpack.c.l.b16 %v701
      %v733 = vunpack.c.l.b16 %v705
      %v734 = vunpack.c.l.b16 %v709
      %v735 = vpack.c.b16 %v728, %v727
      %v736 = vpack.c.b16 %v730, %v729
      %v737 = vpack.c.b16 %v732, %v731
      %v738 = vpack.c.b16 %v734, %v733
      %v759 = vunpack.c.l.b16 %v711
      %v760 = vunpack.c.l.b16 %v712
      %v761 = vunpack.c.l.b16 %v713
      %v762 = vunpack.c.l.b16 %v714
      %v763 = vunpack.c.l.b16 %v715
      %v764 = vunpack.c.l.b16 %v716
      %v765 = vunpack.c.l.b16 %v717
      %v766 = vunpack.c.l.b16 %v718
      %v767 = vunpack.c.l.b16 %v719
      %v768 = vunpack.c.l.b16 %v720
      %v769 = vunpack.c.l.b16 %v721
      %v770 = vunpack.c.l.b16 %v722
      %v771 = vunpack.c.l.b16 %v723
      %v772 = vunpack.c.l.b16 %v724
      %v773 = vunpack.c.l.b16 %v725
      %v774 = vunpack.c.l.b16 %v726
      %v775 = vpack.c.b16 %v760, %v759
      %v776 = vpack.c.b16 %v762, %v761
      %v777 = vpack.c.b16 %v764, %v763
      %v778 = vpack.c.b16 %v766, %v765
      %v779 = vpack.c.b16 %v768, %v767
      %v780 = vpack.c.b16 %v770, %v769
      %v781 = vpack.c.b16 %v772, %v771
      %v782 = vpack.c.b16 %v774, %v773
      %791 = vmatprep.subr.bf16.mxu0 0
      %792 = vmatpush1.bf16.msra.mxu0 %v782
      %793 = vmatprep.subr.bf16.mxu0 0
      %794 = vmatpush1.bf16.msra.mxu0 %v781
      %795 = vmatprep.subr.bf16.mxu0 0
      %796 = vmatpush1.bf16.msra.mxu0 %v780
      %797 = vmatprep.subr.bf16.mxu0 0
      %798 = vmatpush1.bf16.msra.mxu0 %v779
      %799 = vmatprep.subr.bf16.mxu0 0
      %800 = vmatpush1.bf16.msra.mxu0 %v778
      %801 = vmatprep.subr.bf16.mxu0 0
      %802 = vmatpush1.bf16.msra.mxu0 %v777
      %803 = vmatprep.subr.bf16.mxu0 0
      %804 = vmatpush1.bf16.msra.mxu0 %v776
      %805 = vmatprep.subr.bf16.mxu0 0
      %806 = vmatpush1.bf16.msra.mxu0 %v775
      %807 = vmatprep.subr.bf16.mxu0 0
      %808 = vmatpush2.bf16.msra.mxu0 0
      %809 = vmatprep.subr.bf16.mxu0 0
      %810 = vmatpush2.bf16.msra.mxu0 0
      %811 = vmatprep.subr.bf16.mxu0 0
      %812 = vmatpush2.bf16.msra.mxu0 0
      %813 = vmatprep.subr.bf16.mxu0 0
      %814 = vmatpush2.bf16.msra.mxu0 0
      %815 = vmatprep.subr.bf16.mxu0 0
      %816 = vmatpush2.bf16.msra.mxu0 0
      %817 = vmatprep.subr.bf16.mxu0 0
      %818 = vmatpush2.bf16.msra.mxu0 0
      %819 = vmatprep.subr.bf16.mxu0 0
      %820 = vmatpush2.bf16.msra.mxu0 0
      %821 = vmatprep.subr.bf16.mxu0 0
      %822 = vmatpush2.bf16.msra.mxu0 0
      %823 = vmatprep.mubr.bf16.mxu0 0
      %824 = vmatmul.mubr.bf16.gmra.mxu0 %v735
      %v825 = vpop.f32.mrf.mxu0
      %v826 = vadd.f32 0.0, %v825
      %v827 = vpop.f32.mrf.mxu0
      %v828 = vpop.f32.mrf.mxu0
      %v829 = vadd.f32 0.0, %v828
      %v830 = vpop.f32.mrf.mxu0
      %831 = vmatprep.mubr.bf16.mxu0 0
      %832 = vmatmul.mubr.bf16.gmra.mxu0 %v736
      %v833 = vpop.f32.mrf.mxu0
      %v834 = vadd.f32 0.0, %v833
      %v835 = vpop.f32.mrf.mxu0
      %v836 = vpop.f32.mrf.mxu0
      %v837 = vadd.f32 0.0, %v836
      %v838 = vpop.f32.mrf.mxu0
      %839 = vmatprep.mubr.bf16.mxu0 0
      %840 = vmatmul.mubr.bf16.gmra.mxu0 %v737
      %v841 = vpop.f32.mrf.mxu0
      %v842 = vadd.f32 0.0, %v841
      %v843 = vpop.f32.mrf.mxu0
      %v844 = vpop.f32.mrf.mxu0
      %v845 = vadd.f32 0.0, %v844
      %v846 = vpop.f32.mrf.mxu0
      %847 = vmatprep.mubr.bf16.mxu0 0
      %848 = vmatmul.mubr.bf16.gmra.mxu0 %v738
      %v849 = vpop.f32.mrf.mxu0
      %v850 = vadd.f32 0.0, %v849
      %v851 = vpop.f32.mrf.mxu0
      %v852 = vpop.f32.mrf.mxu0
      %v853 = vadd.f32 0.0, %v852
      %v854 = vpop.f32.mrf.mxu0
      %855 = vdwg.mxu0
      %v856 = vadd.f32 %v621, %v826
      %v857 = vadd.f32 %v624, %v829
      %v858 = vadd.f32 %v629, %v834
      %v859 = vadd.f32 %v632, %v837
      %v860 = vadd.f32 %v637, %v842
      %v861 = vadd.f32 %v640, %v845
      %v862 = vadd.f32 %v645, %v850
      %v863 = vadd.f32 %v648, %v853
      %s864 = scalar_lea.vmem %s205, 8
      %v865 = vld [vmem:[%s864] sm:$0xf]
      %v866 = vld [vmem:[%s864 + $0x8] sm:$0xf]
      %v867 = vld [vmem:[%s864 + $0x10] sm:$0xf]
      %v868 = vld [vmem:[%s864 + $0x18] sm:$0xf]
      %v869 = vld [vmem:[%s864 + $0x20] sm:$0xf]
      %v870 = vld [vmem:[%s864 + $0x28] sm:$0xf]
      %v871 = vld [vmem:[%s864 + $0x30] sm:$0xf]
      %v872 = vld [vmem:[%s864 + $0x38] sm:$0xf]
      %s873 = scalar_lea.vmem %s1, 192
      %v874 = vld [vmem:[%s873] sm:$0xf]
      %v875 = vld [vmem:[%s873 + $0x4] sm:$0xf]
      %v876 = vld [vmem:[%s873 + $0x8] sm:$0xf]
      %v877 = vld [vmem:[%s873 + $0xc] sm:$0xf]
      %v878 = vld [vmem:[%s873 + $0x10] sm:$0xf]
      %v879 = vld [vmem:[%s873 + $0x14] sm:$0xf]
      %v880 = vld [vmem:[%s873 + $0x18] sm:$0xf]
      %v881 = vld [vmem:[%s873 + $0x1c] sm:$0xf]
      %v882 = vld [vmem:[%s873 + $0x20] sm:$0xf]
      %v883 = vld [vmem:[%s873 + $0x24] sm:$0xf]
      %v884 = vld [vmem:[%s873 + $0x28] sm:$0xf]
      %v885 = vld [vmem:[%s873 + $0x2c] sm:$0xf]
      %v886 = vld [vmem:[%s873 + $0x30] sm:$0xf]
      %v887 = vld [vmem:[%s873 + $0x34] sm:$0xf]
      %v888 = vld [vmem:[%s873 + $0x38] sm:$0xf]
      %v889 = vld [vmem:[%s873 + $0x3c] sm:$0xf]
      %v898 = vunpack.c.l.b16 %v865
      %v899 = vunpack.c.l.b16 %v866
      %v900 = vunpack.c.l.b16 %v867
      %v901 = vunpack.c.l.b16 %v868
      %v902 = vunpack.c.l.b16 %v869
      %v903 = vunpack.c.l.b16 %v870
      %v904 = vunpack.c.l.b16 %v871
      %v905 = vunpack.c.l.b16 %v872
      %v906 = vpack.c.b16 %v899, %v898
      %v907 = vpack.c.b16 %v901, %v900
      %v908 = vpack.c.b16 %v903, %v902
      %v909 = vpack.c.b16 %v905, %v904
      %v930 = vunpack.c.l.b16 %v874
      %v931 = vunpack.c.l.b16 %v875
      %v932 = vunpack.c.l.b16 %v876
      %v933 = vunpack.c.l.b16 %v877
      %v934 = vunpack.c.l.b16 %v878
      %v935 = vunpack.c.l.b16 %v879
      %v936 = vunpack.c.l.b16 %v880
      %v937 = vunpack.c.l.b16 %v881
      %v938 = vunpack.c.l.b16 %v882
      %v939 = vunpack.c.l.b16 %v883
      %v940 = vunpack.c.l.b16 %v884
      %v941 = vunpack.c.l.b16 %v885
      %v942 = vunpack.c.l.b16 %v886
      %v943 = vunpack.c.l.b16 %v887
      %v944 = vunpack.c.l.b16 %v888
      %v945 = vunpack.c.l.b16 %v889
      %v946 = vpack.c.b16 %v931, %v930
      %v947 = vpack.c.b16 %v933, %v932
      %v948 = vpack.c.b16 %v935, %v934
      %v949 = vpack.c.b16 %v937, %v936
      %v950 = vpack.c.b16 %v939, %v938
      %v951 = vpack.c.b16 %v941, %v940
      %v952 = vpack.c.b16 %v943, %v942
      %v953 = vpack.c.b16 %v945, %v944
      %962 = vmatprep.subr.bf16.mxu0 0
      %963 = vmatpush1.bf16.msra.mxu0 %v953
      %964 = vmatprep.subr.bf16.mxu0 0
      %965 = vmatpush1.bf16.msra.mxu0 %v952
      %966 = vmatprep.subr.bf16.mxu0 0
      %967 = vmatpush1.bf16.msra.mxu0 %v951
      %968 = vmatprep.subr.bf16.mxu0 0
      %969 = vmatpush1.bf16.msra.mxu0 %v950
      %970 = vmatprep.subr.bf16.mxu0 0
      %971 = vmatpush1.bf16.msra.mxu0 %v949
      %972 = vmatprep.subr.bf16.mxu0 0
      %973 = vmatpush1.bf16.msra.mxu0 %v948
      %974 = vmatprep.subr.bf16.mxu0 0
      %975 = vmatpush1.bf16.msra.mxu0 %v947
      %976 = vmatprep.subr.bf16.mxu0 0
      %977 = vmatpush1.bf16.msra.mxu0 %v946
      %978 = vmatprep.subr.bf16.mxu0 0
      %979 = vmatpush2.bf16.msra.mxu0 0
      %980 = vmatprep.subr.bf16.mxu0 0
      %981 = vmatpush2.bf16.msra.mxu0 0
      %982 = vmatprep.subr.bf16.mxu0 0
      %983 = vmatpush2.bf16.msra.mxu0 0
      %984 = vmatprep.subr.bf16.mxu0 0
      %985 = vmatpush2.bf16.msra.mxu0 0
      %986 = vmatprep.subr.bf16.mxu0 0
      %987 = vmatpush2.bf16.msra.mxu0 0
      %988 = vmatprep.subr.bf16.mxu0 0
      %989 = vmatpush2.bf16.msra.mxu0 0
      %990 = vmatprep.subr.bf16.mxu0 0
      %991 = vmatpush2.bf16.msra.mxu0 0
      %992 = vmatprep.subr.bf16.mxu0 0
      %993 = vmatpush2.bf16.msra.mxu0 0
      %994 = vmatprep.mubr.bf16.mxu0 0
      %995 = vmatmul.mubr.bf16.gmra.mxu0 %v906
      %v996 = vpop.f32.mrf.mxu0
      %v997 = vadd.f32 0.0, %v996
      %v998 = vpop.f32.mrf.mxu0
      %v999 = vpop.f32.mrf.mxu0
      %v1000 = vadd.f32 0.0, %v999
      %v1001 = vpop.f32.mrf.mxu0
      %1002 = vmatprep.mubr.bf16.mxu0 0
      %1003 = vmatmul.mubr.bf16.gmra.mxu0 %v907
      %v1004 = vpop.f32.mrf.mxu0
      %v1005 = vadd.f32 0.0, %v1004
      %v1006 = vpop.f32.mrf.mxu0
      %v1007 = vpop.f32.mrf.mxu0
      %v1008 = vadd.f32 0.0, %v1007
      %v1009 = vpop.f32.mrf.mxu0
      %1010 = vmatprep.mubr.bf16.mxu0 0
      %1011 = vmatmul.mubr.bf16.gmra.mxu0 %v908
      %v1012 = vpop.f32.mrf.mxu0
      %v1013 = vadd.f32 0.0, %v1012
      %v1014 = vpop.f32.mrf.mxu0
      %v1015 = vpop.f32.mrf.mxu0
      %v1016 = vadd.f32 0.0, %v1015
      %v1017 = vpop.f32.mrf.mxu0
      %1018 = vmatprep.mubr.bf16.mxu0 0
      %1019 = vmatmul.mubr.bf16.gmra.mxu0 %v909
      %v1020 = vpop.f32.mrf.mxu0
      %v1021 = vadd.f32 0.0, %v1020
      %v1022 = vpop.f32.mrf.mxu0
      %v1023 = vpop.f32.mrf.mxu0
      %v1024 = vadd.f32 0.0, %v1023
      %v1025 = vpop.f32.mrf.mxu0
      %1026 = vdwg.mxu0
      %v1027 = vadd.f32 %v856, %v997
      %v1028 = vadd.f32 %v857, %v1000
      %v1029 = vadd.f32 %v858, %v1005
      %v1030 = vadd.f32 %v859, %v1008
      %v1031 = vadd.f32 %v860, %v1013
      %v1032 = vadd.f32 %v861, %v1016
      %v1033 = vadd.f32 %v862, %v1021
      %v1034 = vadd.f32 %v863, %v1024
      %v1035 = vld [vmem:[%s864] sm:$0xf]
      %v1036 = vld [vmem:[%s864 + $0x4] sm:$0x1]
      %v1037 = vld [vmem:[%s864 + $0x8] sm:$0xf]
      %v1038 = vld [vmem:[%s864 + $0xc] sm:$0x1]
      %v1039 = vld [vmem:[%s864 + $0x10] sm:$0xf]
      %v1040 = vld [vmem:[%s864 + $0x14] sm:$0x1]
      %v1041 = vld [vmem:[%s864 + $0x18] sm:$0xf]
      %v1042 = vld [vmem:[%s864 + $0x1c] sm:$0x1]
      %v1043 = vld [vmem:[%s864 + $0x20] sm:$0xf]
      %v1044 = vld [vmem:[%s864 + $0x24] sm:$0x1]
      %v1045 = vld [vmem:[%s864 + $0x28] sm:$0xf]
      %v1046 = vld [vmem:[%s864 + $0x2c] sm:$0x1]
      %v1047 = vld [vmem:[%s864 + $0x30] sm:$0xf]
      %v1048 = vld [vmem:[%s864 + $0x34] sm:$0x1]
      %v1049 = vld [vmem:[%s864 + $0x38] sm:$0xf]
      %v1050 = vld [vmem:[%s864 + $0x3c] sm:$0x1]
      %v1052 = vshrl.u32 %v1035, 16
      %v1054 = vrot.slane %v1052, 4
      %v1055 = vshll.u32 %v1035, 16
      %v1057 = vrot.slane %v1055, 5
      %v1058 = vor.u32 %v1054, %v1057
      %v1059 = vrot.slane %v1058, 4
      %v1061 = vshll.u32 %v1036, 16
      %v1063 = vrot.slane %v1061, 5
      %v1064 = vsel %vm255, %v1059, %v1063
      %v1066 = vshrl.u32 %v1037, 16
      %v1068 = vrot.slane %v1066, 4
      %v1069 = vshll.u32 %v1037, 16
      %v1071 = vrot.slane %v1069, 5
      %v1072 = vor.u32 %v1068, %v1071
      %v1073 = vrot.slane %v1072, 4
      %v1075 = vshll.u32 %v1038, 16
      %v1077 = vrot.slane %v1075, 5
      %v1078 = vsel %vm255, %v1073, %v1077
      %v1080 = vshrl.u32 %v1039, 16
      %v1082 = vrot.slane %v1080, 4
      %v1083 = vshll.u32 %v1039, 16
      %v1085 = vrot.slane %v1083, 5
      %v1086 = vor.u32 %v1082, %v1085
      %v1087 = vrot.slane %v1086, 4
      %v1089 = vshll.u32 %v1040, 16
      %v1091 = vrot.slane %v1089, 5
      %v1092 = vsel %vm255, %v1087, %v1091
      %v1094 = vshrl.u32 %v1041, 16
      %v1096 = vrot.slane %v1094, 4
      %v1097 = vshll.u32 %v1041, 16
      %v1099 = vrot.slane %v1097, 5
      %v1100 = vor.u32 %v1096, %v1099
      %v1101 = vrot.slane %v1100, 4
      %v1103 = vshll.u32 %v1042, 16
      %v1105 = vrot.slane %v1103, 5
      %v1106 = vsel %vm255, %v1101, %v1105
      %v1108 = vshrl.u32 %v1043, 16
      %v1110 = vrot.slane %v1108, 4
      %v1111 = vshll.u32 %v1043, 16
      %v1113 = vrot.slane %v1111, 5
      %v1114 = vor.u32 %v1110, %v1113
      %v1115 = vrot.slane %v1114, 4
      %v1117 = vshll.u32 %v1044, 16
      %v1119 = vrot.slane %v1117, 5
      %v1120 = vsel %vm255, %v1115, %v1119
      %v1122 = vshrl.u32 %v1045, 16
      %v1124 = vrot.slane %v1122, 4
      %v1125 = vshll.u32 %v1045, 16
      %v1127 = vrot.slane %v1125, 5
      %v1128 = vor.u32 %v1124, %v1127
      %v1129 = vrot.slane %v1128, 4
      %v1131 = vshll.u32 %v1046, 16
      %v1133 = vrot.slane %v1131, 5
      %v1134 = vsel %vm255, %v1129, %v1133
      %v1136 = vshrl.u32 %v1047, 16
      %v1138 = vrot.slane %v1136, 4
      %v1139 = vshll.u32 %v1047, 16
      %v1141 = vrot.slane %v1139, 5
      %v1142 = vor.u32 %v1138, %v1141
      %v1143 = vrot.slane %v1142, 4
      %v1145 = vshll.u32 %v1048, 16
      %v1147 = vrot.slane %v1145, 5
      %v1148 = vsel %vm255, %v1143, %v1147
      %v1150 = vshrl.u32 %v1049, 16
      %v1152 = vrot.slane %v1150, 4
      %v1153 = vshll.u32 %v1049, 16
      %v1155 = vrot.slane %v1153, 5
      %v1156 = vor.u32 %v1152, %v1155
      %v1157 = vrot.slane %v1156, 4
      %v1159 = vshll.u32 %v1050, 16
      %v1161 = vrot.slane %v1159, 5
      %v1162 = vsel %vm255, %v1157, %v1161
      %s1163 = scalar_lea.vmem %s1, 256
      %v1164 = vld [vmem:[%s1163] sm:$0xf]
      %v1165 = vld [vmem:[%s1163 + $0x4] sm:$0xf]
      %v1166 = vld [vmem:[%s1163 + $0x8] sm:$0xf]
      %v1167 = vld [vmem:[%s1163 + $0xc] sm:$0xf]
      %v1168 = vld [vmem:[%s1163 + $0x10] sm:$0xf]
      %v1169 = vld [vmem:[%s1163 + $0x14] sm:$0xf]
      %v1170 = vld [vmem:[%s1163 + $0x18] sm:$0xf]
      %v1171 = vld [vmem:[%s1163 + $0x1c] sm:$0xf]
      %v1172 = vld [vmem:[%s1163 + $0x20] sm:$0xf]
      %v1173 = vld [vmem:[%s1163 + $0x24] sm:$0xf]
      %v1174 = vld [vmem:[%s1163 + $0x28] sm:$0xf]
      %v1175 = vld [vmem:[%s1163 + $0x2c] sm:$0xf]
      %v1176 = vld [vmem:[%s1163 + $0x30] sm:$0xf]
      %v1177 = vld [vmem:[%s1163 + $0x34] sm:$0xf]
      %v1178 = vld [vmem:[%s1163 + $0x38] sm:$0xf]
      %v1179 = vld [vmem:[%s1163 + $0x3c] sm:$0xf]
      %v1180 = vunpack.c.l.b16 %v1064
      %v1181 = vunpack.c.l.b16 %v1078
      %v1182 = vunpack.c.l.b16 %v1092
      %v1183 = vunpack.c.l.b16 %v1106
      %v1184 = vunpack.c.l.b16 %v1120
      %v1185 = vunpack.c.l.b16 %v1134
      %v1186 = vunpack.c.l.b16 %v1148
      %v1187 = vunpack.c.l.b16 %v1162
      %v1188 = vpack.c.b16 %v1181, %v1180
      %v1189 = vpack.c.b16 %v1183, %v1182
      %v1190 = vpack.c.b16 %v1185, %v1184
      %v1191 = vpack.c.b16 %v1187, %v1186
      %v1212 = vunpack.c.l.b16 %v1164
      %v1213 = vunpack.c.l.b16 %v1165
      %v1214 = vunpack.c.l.b16 %v1166
      %v1215 = vunpack.c.l.b16 %v1167
      %v1216 = vunpack.c.l.b16 %v1168
      %v1217 = vunpack.c.l.b16 %v1169
      %v1218 = vunpack.c.l.b16 %v1170
      %v1219 = vunpack.c.l.b16 %v1171
      %v1220 = vunpack.c.l.b16 %v1172
      %v1221 = vunpack.c.l.b16 %v1173
      %v1222 = vunpack.c.l.b16 %v1174
      %v1223 = vunpack.c.l.b16 %v1175
      %v1224 = vunpack.c.l.b16 %v1176
      %v1225 = vunpack.c.l.b16 %v1177
      %v1226 = vunpack.c.l.b16 %v1178
      %v1227 = vunpack.c.l.b16 %v1179
      %v1228 = vpack.c.b16 %v1213, %v1212
      %v1229 = vpack.c.b16 %v1215, %v1214
      %v1230 = vpack.c.b16 %v1217, %v1216
      %v1231 = vpack.c.b16 %v1219, %v1218
      %v1232 = vpack.c.b16 %v1221, %v1220
      %v1233 = vpack.c.b16 %v1223, %v1222
      %v1234 = vpack.c.b16 %v1225, %v1224
      %v1235 = vpack.c.b16 %v1227, %v1226
      %1244 = vmatprep.subr.bf16.mxu0 0
      %1245 = vmatpush1.bf16.msra.mxu0 %v1235
      %1246 = vmatprep.subr.bf16.mxu0 0
      %1247 = vmatpush1.bf16.msra.mxu0 %v1234
      %1248 = vmatprep.subr.bf16.mxu0 0
      %1249 = vmatpush1.bf16.msra.mxu0 %v1233
      %1250 = vmatprep.subr.bf16.mxu0 0
      %1251 = vmatpush1.bf16.msra.mxu0 %v1232
      %1252 = vmatprep.subr.bf16.mxu0 0
      %1253 = vmatpush1.bf16.msra.mxu0 %v1231
      %1254 = vmatprep.subr.bf16.mxu0 0
      %1255 = vmatpush1.bf16.msra.mxu0 %v1230
      %1256 = vmatprep.subr.bf16.mxu0 0
      %1257 = vmatpush1.bf16.msra.mxu0 %v1229
      %1258 = vmatprep.subr.bf16.mxu0 0
      %1259 = vmatpush1.bf16.msra.mxu0 %v1228
      %1260 = vmatprep.subr.bf16.mxu0 0
      %1261 = vmatpush2.bf16.msra.mxu0 0
      %1262 = vmatprep.subr.bf16.mxu0 0
      %1263 = vmatpush2.bf16.msra.mxu0 0
      %1264 = vmatprep.subr.bf16.mxu0 0
      %1265 = vmatpush2.bf16.msra.mxu0 0
      %1266 = vmatprep.subr.bf16.mxu0 0
      %1267 = vmatpush2.bf16.msra.mxu0 0
      %1268 = vmatprep.subr.bf16.mxu0 0
      %1269 = vmatpush2.bf16.msra.mxu0 0
      %1270 = vmatprep.subr.bf16.mxu0 0
      %1271 = vmatpush2.bf16.msra.mxu0 0
      %1272 = vmatprep.subr.bf16.mxu0 0
      %1273 = vmatpush2.bf16.msra.mxu0 0
      %1274 = vmatprep.subr.bf16.mxu0 0
      %1275 = vmatpush2.bf16.msra.mxu0 0
      %1276 = vmatprep.mubr.bf16.mxu0 0
      %1277 = vmatmul.mubr.bf16.gmra.mxu0 %v1188
      %v1278 = vpop.f32.mrf.mxu0
      %v1279 = vadd.f32 0.0, %v1278
      %v1280 = vpop.f32.mrf.mxu0
      %v1281 = vpop.f32.mrf.mxu0
      %v1282 = vadd.f32 0.0, %v1281
      %v1283 = vpop.f32.mrf.mxu0
      %1284 = vmatprep.mubr.bf16.mxu0 0
      %1285 = vmatmul.mubr.bf16.gmra.mxu0 %v1189
      %v1286 = vpop.f32.mrf.mxu0
      %v1287 = vadd.f32 0.0, %v1286
      %v1288 = vpop.f32.mrf.mxu0
      %v1289 = vpop.f32.mrf.mxu0
      %v1290 = vadd.f32 0.0, %v1289
      %v1291 = vpop.f32.mrf.mxu0
      %1292 = vmatprep.mubr.bf16.mxu0 0
      %1293 = vmatmul.mubr.bf16.gmra.mxu0 %v1190
      %v1294 = vpop.f32.mrf.mxu0
      %v1295 = vadd.f32 0.0, %v1294
      %v1296 = vpop.f32.mrf.mxu0
      %v1297 = vpop.f32.mrf.mxu0
      %v1298 = vadd.f32 0.0, %v1297
      %v1299 = vpop.f32.mrf.mxu0
      %1300 = vmatprep.mubr.bf16.mxu0 0
      %1301 = vmatmul.mubr.bf16.gmra.mxu0 %v1191
      %v1302 = vpop.f32.mrf.mxu0
      %v1303 = vadd.f32 0.0, %v1302
      %v1304 = vpop.f32.mrf.mxu0
      %v1305 = vpop.f32.mrf.mxu0
      %v1306 = vadd.f32 0.0, %v1305
      %v1307 = vpop.f32.mrf.mxu0
      %1308 = vdwg.mxu0
      %v1309 = vadd.f32 %v1027, %v1279
      %v1310 = vadd.f32 %v1028, %v1282
      %v1311 = vadd.f32 %v1029, %v1287
      %v1312 = vadd.f32 %v1030, %v1290
      %v1313 = vadd.f32 %v1031, %v1295
      %v1314 = vadd.f32 %v1032, %v1298
      %v1315 = vadd.f32 %v1033, %v1303
      %v1316 = vadd.f32 %v1034, %v1306
      %v1317 = vld [vmem:[%s864] sm:$0xe]
      %v1318 = vld [vmem:[%s864 + $0x8] sm:$0xe]
      %v1319 = vld [vmem:[%s864 + $0x10] sm:$0xe]
      %v1320 = vld [vmem:[%s864 + $0x18] sm:$0xe]
      %v1321 = vld [vmem:[%s864 + $0x20] sm:$0xe]
      %v1322 = vld [vmem:[%s864 + $0x28] sm:$0xe]
      %v1323 = vld [vmem:[%s864 + $0x30] sm:$0xe]
      %v1324 = vld [vmem:[%s864 + $0x38] sm:$0xe]
      %v1341 = vrot.slane %v1317, 5
      %v1342 = vrot.slane %v1341, 4
      %v1343 = vrot.slane %v1036, 5
      %v1344 = vsel %vm677, %v1342, %v1343
      %v1345 = vrot.slane %v1318, 5
      %v1346 = vrot.slane %v1345, 4
      %v1347 = vrot.slane %v1038, 5
      %v1348 = vsel %vm677, %v1346, %v1347
      %v1349 = vrot.slane %v1319, 5
      %v1350 = vrot.slane %v1349, 4
      %v1351 = vrot.slane %v1040, 5
      %v1352 = vsel %vm677, %v1350, %v1351
      %v1353 = vrot.slane %v1320, 5
      %v1354 = vrot.slane %v1353, 4
      %v1355 = vrot.slane %v1042, 5
      %v1356 = vsel %vm677, %v1354, %v1355
      %v1357 = vrot.slane %v1321, 5
      %v1358 = vrot.slane %v1357, 4
      %v1359 = vrot.slane %v1044, 5
      %v1360 = vsel %vm677, %v1358, %v1359
      %v1361 = vrot.slane %v1322, 5
      %v1362 = vrot.slane %v1361, 4
      %v1363 = vrot.slane %v1046, 5
      %v1364 = vsel %vm677, %v1362, %v1363
      %v1365 = vrot.slane %v1323, 5
      %v1366 = vrot.slane %v1365, 4
      %v1367 = vrot.slane %v1048, 5
      %v1368 = vsel %vm677, %v1366, %v1367
      %v1369 = vrot.slane %v1324, 5
      %v1370 = vrot.slane %v1369, 4
      %v1371 = vrot.slane %v1050, 5
      %v1372 = vsel %vm677, %v1370, %v1371
      %s1373 = scalar_lea.vmem %s1, 320
      %v1374 = vld [vmem:[%s1373] sm:$0xf]
      %v1375 = vld [vmem:[%s1373 + $0x4] sm:$0xf]
      %v1376 = vld [vmem:[%s1373 + $0x8] sm:$0xf]
      %v1377 = vld [vmem:[%s1373 + $0xc] sm:$0xf]
      %v1378 = vld [vmem:[%s1373 + $0x10] sm:$0xf]
      %v1379 = vld [vmem:[%s1373 + $0x14] sm:$0xf]
      %v1380 = vld [vmem:[%s1373 + $0x18] sm:$0xf]
      %v1381 = vld [vmem:[%s1373 + $0x1c] sm:$0xf]
      %v1382 = vld [vmem:[%s1373 + $0x20] sm:$0xf]
      %v1383 = vld [vmem:[%s1373 + $0x24] sm:$0xf]
      %v1384 = vld [vmem:[%s1373 + $0x28] sm:$0xf]
      %v1385 = vld [vmem:[%s1373 + $0x2c] sm:$0xf]
      %v1386 = vld [vmem:[%s1373 + $0x30] sm:$0xf]
      %v1387 = vld [vmem:[%s1373 + $0x34] sm:$0xf]
      %v1388 = vld [vmem:[%s1373 + $0x38] sm:$0xf]
      %v1389 = vld [vmem:[%s1373 + $0x3c] sm:$0xf]
      %v1390 = vunpack.c.l.b16 %v1344
      %v1391 = vunpack.c.l.b16 %v1348
      %v1392 = vunpack.c.l.b16 %v1352
      %v1393 = vunpack.c.l.b16 %v1356
      %v1394 = vunpack.c.l.b16 %v1360
      %v1395 = vunpack.c.l.b16 %v1364
      %v1396 = vunpack.c.l.b16 %v1368
      %v1397 = vunpack.c.l.b16 %v1372
      %v1398 = vpack.c.b16 %v1391, %v1390
      %v1399 = vpack.c.b16 %v1393, %v1392
      %v1400 = vpack.c.b16 %v1395, %v1394
      %v1401 = vpack.c.b16 %v1397, %v1396
      %v1422 = vunpack.c.l.b16 %v1374
      %v1423 = vunpack.c.l.b16 %v1375
      %v1424 = vunpack.c.l.b16 %v1376
      %v1425 = vunpack.c.l.b16 %v1377
      %v1426 = vunpack.c.l.b16 %v1378
      %v1427 = vunpack.c.l.b16 %v1379
      %v1428 = vunpack.c.l.b16 %v1380
      %v1429 = vunpack.c.l.b16 %v1381
      %v1430 = vunpack.c.l.b16 %v1382
      %v1431 = vunpack.c.l.b16 %v1383
      %v1432 = vunpack.c.l.b16 %v1384
      %v1433 = vunpack.c.l.b16 %v1385
      %v1434 = vunpack.c.l.b16 %v1386
      %v1435 = vunpack.c.l.b16 %v1387
      %v1436 = vunpack.c.l.b16 %v1388
      %v1437 = vunpack.c.l.b16 %v1389
      %v1438 = vpack.c.b16 %v1423, %v1422
      %v1439 = vpack.c.b16 %v1425, %v1424
      %v1440 = vpack.c.b16 %v1427, %v1426
      %v1441 = vpack.c.b16 %v1429, %v1428
      %v1442 = vpack.c.b16 %v1431, %v1430
      %v1443 = vpack.c.b16 %v1433, %v1432
      %v1444 = vpack.c.b16 %v1435, %v1434
      %v1445 = vpack.c.b16 %v1437, %v1436
      %1454 = vmatprep.subr.bf16.mxu0 0
      %1455 = vmatpush1.bf16.msra.mxu0 %v1445
      %1456 = vmatprep.subr.bf16.mxu0 0
      %1457 = vmatpush1.bf16.msra.mxu0 %v1444
      %1458 = vmatprep.subr.bf16.mxu0 0
      %1459 = vmatpush1.bf16.msra.mxu0 %v1443
      %1460 = vmatprep.subr.bf16.mxu0 0
      %1461 = vmatpush1.bf16.msra.mxu0 %v1442
      %1462 = vmatprep.subr.bf16.mxu0 0
      %1463 = vmatpush1.bf16.msra.mxu0 %v1441
      %1464 = vmatprep.subr.bf16.mxu0 0
      %1465 = vmatpush1.bf16.msra.mxu0 %v1440
      %1466 = vmatprep.subr.bf16.mxu0 0
      %1467 = vmatpush1.bf16.msra.mxu0 %v1439
      %1468 = vmatprep.subr.bf16.mxu0 0
      %1469 = vmatpush1.bf16.msra.mxu0 %v1438
      %1470 = vmatprep.subr.bf16.mxu0 0
      %1471 = vmatpush2.bf16.msra.mxu0 0
      %1472 = vmatprep.subr.bf16.mxu0 0
      %1473 = vmatpush2.bf16.msra.mxu0 0
      %1474 = vmatprep.subr.bf16.mxu0 0
      %1475 = vmatpush2.bf16.msra.mxu0 0
      %1476 = vmatprep.subr.bf16.mxu0 0
      %1477 = vmatpush2.bf16.msra.mxu0 0
      %1478 = vmatprep.subr.bf16.mxu0 0
      %1479 = vmatpush2.bf16.msra.mxu0 0
      %1480 = vmatprep.subr.bf16.mxu0 0
      %1481 = vmatpush2.bf16.msra.mxu0 0
      %1482 = vmatprep.subr.bf16.mxu0 0
      %1483 = vmatpush2.bf16.msra.mxu0 0
      %1484 = vmatprep.subr.bf16.mxu0 0
      %1485 = vmatpush2.bf16.msra.mxu0 0
      %1486 = vmatprep.mubr.bf16.mxu0 0
      %1487 = vmatmul.mubr.bf16.gmra.mxu0 %v1398
      %v1488 = vpop.f32.mrf.mxu0
      %v1489 = vadd.f32 0.0, %v1488
      %v1490 = vpop.f32.mrf.mxu0
      %v1491 = vpop.f32.mrf.mxu0
      %v1492 = vadd.f32 0.0, %v1491
      %v1493 = vpop.f32.mrf.mxu0
      %1494 = vmatprep.mubr.bf16.mxu0 0
      %1495 = vmatmul.mubr.bf16.gmra.mxu0 %v1399
      %v1496 = vpop.f32.mrf.mxu0
      %v1497 = vadd.f32 0.0, %v1496
      %v1498 = vpop.f32.mrf.mxu0
      %v1499 = vpop.f32.mrf.mxu0
      %v1500 = vadd.f32 0.0, %v1499
      %v1501 = vpop.f32.mrf.mxu0
      %1502 = vmatprep.mubr.bf16.mxu0 0
      %1503 = vmatmul.mubr.bf16.gmra.mxu0 %v1400
      %v1504 = vpop.f32.mrf.mxu0
      %v1505 = vadd.f32 0.0, %v1504
      %v1506 = vpop.f32.mrf.mxu0
      %v1507 = vpop.f32.mrf.mxu0
      %v1508 = vadd.f32 0.0, %v1507
      %v1509 = vpop.f32.mrf.mxu0
      %1510 = vmatprep.mubr.bf16.mxu0 0
      %1511 = vmatmul.mubr.bf16.gmra.mxu0 %v1401
      %v1512 = vpop.f32.mrf.mxu0
      %v1513 = vadd.f32 0.0, %v1512
      %v1514 = vpop.f32.mrf.mxu0
      %v1515 = vpop.f32.mrf.mxu0
      %v1516 = vadd.f32 0.0, %v1515
      %v1517 = vpop.f32.mrf.mxu0
      %1518 = vdwg.mxu0
      %v1519 = vadd.f32 %v1309, %v1489
      %v1520 = vadd.f32 %v1310, %v1492
      %v1521 = vadd.f32 %v1311, %v1497
      %v1522 = vadd.f32 %v1312, %v1500
      %v1523 = vadd.f32 %v1313, %v1505
      %v1524 = vadd.f32 %v1314, %v1508
      %v1525 = vadd.f32 %v1315, %v1513
      %v1526 = vadd.f32 %v1316, %v1516
      %s1527 = scalar_lea.vmem %s205, 16
      %v1528 = vld [vmem:[%s1527] sm:$0xf]
      %v1529 = vld [vmem:[%s1527 + $0x8] sm:$0xf]
      %v1530 = vld [vmem:[%s1527 + $0x10] sm:$0xf]
      %v1531 = vld [vmem:[%s1527 + $0x18] sm:$0xf]
      %v1532 = vld [vmem:[%s1527 + $0x20] sm:$0xf]
      %v1533 = vld [vmem:[%s1527 + $0x28] sm:$0xf]
      %v1534 = vld [vmem:[%s1527 + $0x30] sm:$0xf]
      %v1535 = vld [vmem:[%s1527 + $0x38] sm:$0xf]
      %s1536 = scalar_lea.vmem %s1, 384
      %v1537 = vld [vmem:[%s1536] sm:$0xf]
      %v1538 = vld [vmem:[%s1536 + $0x4] sm:$0xf]
      %v1539 = vld [vmem:[%s1536 + $0x8] sm:$0xf]
      %v1540 = vld [vmem:[%s1536 + $0xc] sm:$0xf]
      %v1541 = vld [vmem:[%s1536 + $0x10] sm:$0xf]
      %v1542 = vld [vmem:[%s1536 + $0x14] sm:$0xf]
      %v1543 = vld [vmem:[%s1536 + $0x18] sm:$0xf]
      %v1544 = vld [vmem:[%s1536 + $0x1c] sm:$0xf]
      %v1545 = vld [vmem:[%s1536 + $0x20] sm:$0xf]
      %v1546 = vld [vmem:[%s1536 + $0x24] sm:$0xf]
      %v1547 = vld [vmem:[%s1536 + $0x28] sm:$0xf]
      %v1548 = vld [vmem:[%s1536 + $0x2c] sm:$0xf]
      %v1549 = vld [vmem:[%s1536 + $0x30] sm:$0xf]
      %v1550 = vld [vmem:[%s1536 + $0x34] sm:$0xf]
      %v1551 = vld [vmem:[%s1536 + $0x38] sm:$0xf]
      %v1552 = vld [vmem:[%s1536 + $0x3c] sm:$0xf]
      %v1561 = vunpack.c.l.b16 %v1528
      %v1562 = vunpack.c.l.b16 %v1529
      %v1563 = vunpack.c.l.b16 %v1530
      %v1564 = vunpack.c.l.b16 %v1531
      %v1565 = vunpack.c.l.b16 %v1532
      %v1566 = vunpack.c.l.b16 %v1533
      %v1567 = vunpack.c.l.b16 %v1534
      %v1568 = vunpack.c.l.b16 %v1535
      %v1569 = vpack.c.b16 %v1562, %v1561
      %v1570 = vpack.c.b16 %v1564, %v1563
      %v1571 = vpack.c.b16 %v1566, %v1565
      %v1572 = vpack.c.b16 %v1568, %v1567
      %v1593 = vunpack.c.l.b16 %v1537
      %v1594 = vunpack.c.l.b16 %v1538
      %v1595 = vunpack.c.l.b16 %v1539
      %v1596 = vunpack.c.l.b16 %v1540
      %v1597 = vunpack.c.l.b16 %v1541
      %v1598 = vunpack.c.l.b16 %v1542
      %v1599 = vunpack.c.l.b16 %v1543
      %v1600 = vunpack.c.l.b16 %v1544
      %v1601 = vunpack.c.l.b16 %v1545
      %v1602 = vunpack.c.l.b16 %v1546
      %v1603 = vunpack.c.l.b16 %v1547
      %v1604 = vunpack.c.l.b16 %v1548
      %v1605 = vunpack.c.l.b16 %v1549
      %v1606 = vunpack.c.l.b16 %v1550
      %v1607 = vunpack.c.l.b16 %v1551
      %v1608 = vunpack.c.l.b16 %v1552
      %v1609 = vpack.c.b16 %v1594, %v1593
      %v1610 = vpack.c.b16 %v1596, %v1595
      %v1611 = vpack.c.b16 %v1598, %v1597
      %v1612 = vpack.c.b16 %v1600, %v1599
      %v1613 = vpack.c.b16 %v1602, %v1601
      %v1614 = vpack.c.b16 %v1604, %v1603
      %v1615 = vpack.c.b16 %v1606, %v1605
      %v1616 = vpack.c.b16 %v1608, %v1607
      %1625 = vmatprep.subr.bf16.mxu0 0
      %1626 = vmatpush1.bf16.msra.mxu0 %v1616
      %1627 = vmatprep.subr.bf16.mxu0 0
      %1628 = vmatpush1.bf16.msra.mxu0 %v1615
      %1629 = vmatprep.subr.bf16.mxu0 0
      %1630 = vmatpush1.bf16.msra.mxu0 %v1614
      %1631 = vmatprep.subr.bf16.mxu0 0
      %1632 = vmatpush1.bf16.msra.mxu0 %v1613
      %1633 = vmatprep.subr.bf16.mxu0 0
      %1634 = vmatpush1.bf16.msra.mxu0 %v1612
      %1635 = vmatprep.subr.bf16.mxu0 0
      %1636 = vmatpush1.bf16.msra.mxu0 %v1611
      %1637 = vmatprep.subr.bf16.mxu0 0
      %1638 = vmatpush1.bf16.msra.mxu0 %v1610
      %1639 = vmatprep.subr.bf16.mxu0 0
      %1640 = vmatpush1.bf16.msra.mxu0 %v1609
      %1641 = vmatprep.subr.bf16.mxu0 0
      %1642 = vmatpush2.bf16.msra.mxu0 0
      %1643 = vmatprep.subr.bf16.mxu0 0
      %1644 = vmatpush2.bf16.msra.mxu0 0
      %1645 = vmatprep.subr.bf16.mxu0 0
      %1646 = vmatpush2.bf16.msra.mxu0 0
      %1647 = vmatprep.subr.bf16.mxu0 0
      %1648 = vmatpush2.bf16.msra.mxu0 0
      %1649 = vmatprep.subr.bf16.mxu0 0
      %1650 = vmatpush2.bf16.msra.mxu0 0
      %1651 = vmatprep.subr.bf16.mxu0 0
      %1652 = vmatpush2.bf16.msra.mxu0 0
      %1653 = vmatprep.subr.bf16.mxu0 0
      %1654 = vmatpush2.bf16.msra.mxu0 0
      %1655 = vmatprep.subr.bf16.mxu0 0
      %1656 = vmatpush2.bf16.msra.mxu0 0
      %1657 = vmatprep.mubr.bf16.mxu0 0
      %1658 = vmatmul.mubr.bf16.gmra.mxu0 %v1569
      %v1659 = vpop.f32.mrf.mxu0
      %v1660 = vadd.f32 0.0, %v1659
      %v1661 = vpop.f32.mrf.mxu0
      %v1662 = vpop.f32.mrf.mxu0
      %v1663 = vadd.f32 0.0, %v1662
      %v1664 = vpop.f32.mrf.mxu0
      %1665 = vmatprep.mubr.bf16.mxu0 0
      %1666 = vmatmul.mubr.bf16.gmra.mxu0 %v1570
      %v1667 = vpop.f32.mrf.mxu0
      %v1668 = vadd.f32 0.0, %v1667
      %v1669 = vpop.f32.mrf.mxu0
      %v1670 = vpop.f32.mrf.mxu0
      %v1671 = vadd.f32 0.0, %v1670
      %v1672 = vpop.f32.mrf.mxu0
      %1673 = vmatprep.mubr.bf16.mxu0 0
      %1674 = vmatmul.mubr.bf16.gmra.mxu0 %v1571
      %v1675 = vpop.f32.mrf.mxu0
      %v1676 = vadd.f32 0.0, %v1675
      %v1677 = vpop.f32.mrf.mxu0
      %v1678 = vpop.f32.mrf.mxu0
      %v1679 = vadd.f32 0.0, %v1678
      %v1680 = vpop.f32.mrf.mxu0
      %1681 = vmatprep.mubr.bf16.mxu0 0
      %1682 = vmatmul.mubr.bf16.gmra.mxu0 %v1572
      %v1683 = vpop.f32.mrf.mxu0
      %v1684 = vadd.f32 0.0, %v1683
      %v1685 = vpop.f32.mrf.mxu0
      %v1686 = vpop.f32.mrf.mxu0
      %v1687 = vadd.f32 0.0, %v1686
      %v1688 = vpop.f32.mrf.mxu0
      %1689 = vdwg.mxu0
      %v1690 = vadd.f32 %v1519, %v1660
      %v1691 = vadd.f32 %v1520, %v1663
      %v1692 = vadd.f32 %v1521, %v1668
      %v1693 = vadd.f32 %v1522, %v1671
      %v1694 = vadd.f32 %v1523, %v1676
      %v1695 = vadd.f32 %v1524, %v1679
      %v1696 = vadd.f32 %v1525, %v1684
      %v1697 = vadd.f32 %v1526, %v1687
      %v1698 = vld [vmem:[%s1527] sm:$0xf]
      %v1699 = vld [vmem:[%s1527 + $0x4] sm:$0x1]
      %v1700 = vld [vmem:[%s1527 + $0x8] sm:$0xf]
      %v1701 = vld [vmem:[%s1527 + $0xc] sm:$0x1]
      %v1702 = vld [vmem:[%s1527 + $0x10] sm:$0xf]
      %v1703 = vld [vmem:[%s1527 + $0x14] sm:$0x1]
      %v1704 = vld [vmem:[%s1527 + $0x18] sm:$0xf]
      %v1705 = vld [vmem:[%s1527 + $0x1c] sm:$0x1]
      %v1706 = vld [vmem:[%s1527 + $0x20] sm:$0xf]
      %v1707 = vld [vmem:[%s1527 + $0x24] sm:$0x1]
      %v1708 = vld [vmem:[%s1527 + $0x28] sm:$0xf]
      %v1709 = vld [vmem:[%s1527 + $0x2c] sm:$0x1]
      %v1710 = vld [vmem:[%s1527 + $0x30] sm:$0xf]
      %v1711 = vld [vmem:[%s1527 + $0x34] sm:$0x1]
      %v1712 = vld [vmem:[%s1527 + $0x38] sm:$0xf]
      %v1713 = vld [vmem:[%s1527 + $0x3c] sm:$0x1]
      %v1715 = vshrl.u32 %v1698, 16
      %v1717 = vrot.slane %v1715, 4
      %v1718 = vshll.u32 %v1698, 16
      %v1720 = vrot.slane %v1718, 5
      %v1721 = vor.u32 %v1717, %v1720
      %v1722 = vrot.slane %v1721, 4
      %v1724 = vshll.u32 %v1699, 16
      %v1726 = vrot.slane %v1724, 5
      %v1727 = vsel %vm255, %v1722, %v1726
      %v1729 = vshrl.u32 %v1700, 16
      %v1731 = vrot.slane %v1729, 4
      %v1732 = vshll.u32 %v1700, 16
      %v1734 = vrot.slane %v1732, 5
      %v1735 = vor.u32 %v1731, %v1734
      %v1736 = vrot.slane %v1735, 4
      %v1738 = vshll.u32 %v1701, 16
      %v1740 = vrot.slane %v1738, 5
      %v1741 = vsel %vm255, %v1736, %v1740
      %v1743 = vshrl.u32 %v1702, 16
      %v1745 = vrot.slane %v1743, 4
      %v1746 = vshll.u32 %v1702, 16
      %v1748 = vrot.slane %v1746, 5
      %v1749 = vor.u32 %v1745, %v1748
      %v1750 = vrot.slane %v1749, 4
      %v1752 = vshll.u32 %v1703, 16
      %v1754 = vrot.slane %v1752, 5
      %v1755 = vsel %vm255, %v1750, %v1754
      %v1757 = vshrl.u32 %v1704, 16
      %v1759 = vrot.slane %v1757, 4
      %v1760 = vshll.u32 %v1704, 16
      %v1762 = vrot.slane %v1760, 5
      %v1763 = vor.u32 %v1759, %v1762
      %v1764 = vrot.slane %v1763, 4
      %v1766 = vshll.u32 %v1705, 16
      %v1768 = vrot.slane %v1766, 5
      %v1769 = vsel %vm255, %v1764, %v1768
      %v1771 = vshrl.u32 %v1706, 16
      %v1773 = vrot.slane %v1771, 4
      %v1774 = vshll.u32 %v1706, 16
      %v1776 = vrot.slane %v1774, 5
      %v1777 = vor.u32 %v1773, %v1776
      %v1778 = vrot.slane %v1777, 4
      %v1780 = vshll.u32 %v1707, 16
      %v1782 = vrot.slane %v1780, 5
      %v1783 = vsel %vm255, %v1778, %v1782
      %v1785 = vshrl.u32 %v1708, 16
      %v1787 = vrot.slane %v1785, 4
      %v1788 = vshll.u32 %v1708, 16
      %v1790 = vrot.slane %v1788, 5
      %v1791 = vor.u32 %v1787, %v1790
      %v1792 = vrot.slane %v1791, 4
      %v1794 = vshll.u32 %v1709, 16
      %v1796 = vrot.slane %v1794, 5
      %v1797 = vsel %vm255, %v1792, %v1796
      %v1799 = vshrl.u32 %v1710, 16
      %v1801 = vrot.slane %v1799, 4
      %v1802 = vshll.u32 %v1710, 16
      %v1804 = vrot.slane %v1802, 5
      %v1805 = vor.u32 %v1801, %v1804
      %v1806 = vrot.slane %v1805, 4
      %v1808 = vshll.u32 %v1711, 16
      %v1810 = vrot.slane %v1808, 5
      %v1811 = vsel %vm255, %v1806, %v1810
      %v1813 = vshrl.u32 %v1712, 16
      %v1815 = vrot.slane %v1813, 4
      %v1816 = vshll.u32 %v1712, 16
      %v1818 = vrot.slane %v1816, 5
      %v1819 = vor.u32 %v1815, %v1818
      %v1820 = vrot.slane %v1819, 4
      %v1822 = vshll.u32 %v1713, 16
      %v1824 = vrot.slane %v1822, 5
      %v1825 = vsel %vm255, %v1820, %v1824
      %s1826 = scalar_lea.vmem %s1, 448
      %v1827 = vld [vmem:[%s1826] sm:$0xf]
      %v1828 = vld [vmem:[%s1826 + $0x4] sm:$0xf]
      %v1829 = vld [vmem:[%s1826 + $0x8] sm:$0xf]
      %v1830 = vld [vmem:[%s1826 + $0xc] sm:$0xf]
      %v1831 = vld [vmem:[%s1826 + $0x10] sm:$0xf]
      %v1832 = vld [vmem:[%s1826 + $0x14] sm:$0xf]
      %v1833 = vld [vmem:[%s1826 + $0x18] sm:$0xf]
      %v1834 = vld [vmem:[%s1826 + $0x1c] sm:$0xf]
      %v1835 = vld [vmem:[%s1826 + $0x20] sm:$0xf]
      %v1836 = vld [vmem:[%s1826 + $0x24] sm:$0xf]
      %v1837 = vld [vmem:[%s1826 + $0x28] sm:$0xf]
      %v1838 = vld [vmem:[%s1826 + $0x2c] sm:$0xf]
      %v1839 = vld [vmem:[%s1826 + $0x30] sm:$0xf]
      %v1840 = vld [vmem:[%s1826 + $0x34] sm:$0xf]
      %v1841 = vld [vmem:[%s1826 + $0x38] sm:$0xf]
      %v1842 = vld [vmem:[%s1826 + $0x3c] sm:$0xf]
      %v1843 = vunpack.c.l.b16 %v1727
      %v1844 = vunpack.c.l.b16 %v1741
      %v1845 = vunpack.c.l.b16 %v1755
      %v1846 = vunpack.c.l.b16 %v1769
      %v1847 = vunpack.c.l.b16 %v1783
      %v1848 = vunpack.c.l.b16 %v1797
      %v1849 = vunpack.c.l.b16 %v1811
      %v1850 = vunpack.c.l.b16 %v1825
      %v1851 = vpack.c.b16 %v1844, %v1843
      %v1852 = vpack.c.b16 %v1846, %v1845
      %v1853 = vpack.c.b16 %v1848, %v1847
      %v1854 = vpack.c.b16 %v1850, %v1849
      %v1875 = vunpack.c.l.b16 %v1827
      %v1876 = vunpack.c.l.b16 %v1828
      %v1877 = vunpack.c.l.b16 %v1829
      %v1878 = vunpack.c.l.b16 %v1830
      %v1879 = vunpack.c.l.b16 %v1831
      %v1880 = vunpack.c.l.b16 %v1832
      %v1881 = vunpack.c.l.b16 %v1833
      %v1882 = vunpack.c.l.b16 %v1834
      %v1883 = vunpack.c.l.b16 %v1835
      %v1884 = vunpack.c.l.b16 %v1836
      %v1885 = vunpack.c.l.b16 %v1837
      %v1886 = vunpack.c.l.b16 %v1838
      %v1887 = vunpack.c.l.b16 %v1839
      %v1888 = vunpack.c.l.b16 %v1840
      %v1889 = vunpack.c.l.b16 %v1841
      %v1890 = vunpack.c.l.b16 %v1842
      %v1891 = vpack.c.b16 %v1876, %v1875
      %v1892 = vpack.c.b16 %v1878, %v1877
      %v1893 = vpack.c.b16 %v1880, %v1879
      %v1894 = vpack.c.b16 %v1882, %v1881
      %v1895 = vpack.c.b16 %v1884, %v1883
      %v1896 = vpack.c.b16 %v1886, %v1885
      %v1897 = vpack.c.b16 %v1888, %v1887
      %v1898 = vpack.c.b16 %v1890, %v1889
      %1907 = vmatprep.subr.bf16.mxu0 0
      %1908 = vmatpush1.bf16.msra.mxu0 %v1898
      %1909 = vmatprep.subr.bf16.mxu0 0
      %1910 = vmatpush1.bf16.msra.mxu0 %v1897
      %1911 = vmatprep.subr.bf16.mxu0 0
      %1912 = vmatpush1.bf16.msra.mxu0 %v1896
      %1913 = vmatprep.subr.bf16.mxu0 0
      %1914 = vmatpush1.bf16.msra.mxu0 %v1895
      %1915 = vmatprep.subr.bf16.mxu0 0
      %1916 = vmatpush1.bf16.msra.mxu0 %v1894
      %1917 = vmatprep.subr.bf16.mxu0 0
      %1918 = vmatpush1.bf16.msra.mxu0 %v1893
      %1919 = vmatprep.subr.bf16.mxu0 0
      %1920 = vmatpush1.bf16.msra.mxu0 %v1892
      %1921 = vmatprep.subr.bf16.mxu0 0
      %1922 = vmatpush1.bf16.msra.mxu0 %v1891
      %1923 = vmatprep.subr.bf16.mxu0 0
      %1924 = vmatpush2.bf16.msra.mxu0 0
      %1925 = vmatprep.subr.bf16.mxu0 0
      %1926 = vmatpush2.bf16.msra.mxu0 0
      %1927 = vmatprep.subr.bf16.mxu0 0
      %1928 = vmatpush2.bf16.msra.mxu0 0
      %1929 = vmatprep.subr.bf16.mxu0 0
      %1930 = vmatpush2.bf16.msra.mxu0 0
      %1931 = vmatprep.subr.bf16.mxu0 0
      %1932 = vmatpush2.bf16.msra.mxu0 0
      %1933 = vmatprep.subr.bf16.mxu0 0
      %1934 = vmatpush2.bf16.msra.mxu0 0
      %1935 = vmatprep.subr.bf16.mxu0 0
      %1936 = vmatpush2.bf16.msra.mxu0 0
      %1937 = vmatprep.subr.bf16.mxu0 0
      %1938 = vmatpush2.bf16.msra.mxu0 0
      %1939 = vmatprep.mubr.bf16.mxu0 0
      %1940 = vmatmul.mubr.bf16.gmra.mxu0 %v1851
      %v1941 = vpop.f32.mrf.mxu0
      %v1942 = vadd.f32 0.0, %v1941
      %v1943 = vpop.f32.mrf.mxu0
      %v1944 = vpop.f32.mrf.mxu0
      %v1945 = vadd.f32 0.0, %v1944
      %v1946 = vpop.f32.mrf.mxu0
      %1947 = vmatprep.mubr.bf16.mxu0 0
      %1948 = vmatmul.mubr.bf16.gmra.mxu0 %v1852
      %v1949 = vpop.f32.mrf.mxu0
      %v1950 = vadd.f32 0.0, %v1949
      %v1951 = vpop.f32.mrf.mxu0
      %v1952 = vpop.f32.mrf.mxu0
      %v1953 = vadd.f32 0.0, %v1952
      %v1954 = vpop.f32.mrf.mxu0
      %1955 = vmatprep.mubr.bf16.mxu0 0
      %1956 = vmatmul.mubr.bf16.gmra.mxu0 %v1853
      %v1957 = vpop.f32.mrf.mxu0
      %v1958 = vadd.f32 0.0, %v1957
      %v1959 = vpop.f32.mrf.mxu0
      %v1960 = vpop.f32.mrf.mxu0
      %v1961 = vadd.f32 0.0, %v1960
      %v1962 = vpop.f32.mrf.mxu0
      %1963 = vmatprep.mubr.bf16.mxu0 0
      %1964 = vmatmul.mubr.bf16.gmra.mxu0 %v1854
      %v1965 = vpop.f32.mrf.mxu0
      %v1966 = vadd.f32 0.0, %v1965
      %v1967 = vpop.f32.mrf.mxu0
      %v1968 = vpop.f32.mrf.mxu0
      %v1969 = vadd.f32 0.0, %v1968
      %v1970 = vpop.f32.mrf.mxu0
      %1971 = vdwg.mxu0
      %v1972 = vadd.f32 %v1690, %v1942
      %v1973 = vadd.f32 %v1691, %v1945
      %v1974 = vadd.f32 %v1692, %v1950
      %v1975 = vadd.f32 %v1693, %v1953
      %v1976 = vadd.f32 %v1694, %v1958
      %v1977 = vadd.f32 %v1695, %v1961
      %v1978 = vadd.f32 %v1696, %v1966
      %v1979 = vadd.f32 %v1697, %v1969
      %v1980 = vld [vmem:[%s1527] sm:$0xe]
      %v1981 = vld [vmem:[%s1527 + $0x8] sm:$0xe]
      %v1982 = vld [vmem:[%s1527 + $0x10] sm:$0xe]
      %v1983 = vld [vmem:[%s1527 + $0x18] sm:$0xe]
      %v1984 = vld [vmem:[%s1527 + $0x20] sm:$0xe]
      %v1985 = vld [vmem:[%s1527 + $0x28] sm:$0xe]
      %v1986 = vld [vmem:[%s1527 + $0x30] sm:$0xe]
      %v1987 = vld [vmem:[%s1527 + $0x38] sm:$0xe]
      %v2004 = vrot.slane %v1980, 5
      %v2005 = vrot.slane %v2004, 4
      %v2006 = vrot.slane %v1699, 5
      %v2007 = vsel %vm677, %v2005, %v2006
      %v2008 = vrot.slane %v1981, 5
      %v2009 = vrot.slane %v2008, 4
      %v2010 = vrot.slane %v1701, 5
      %v2011 = vsel %vm677, %v2009, %v2010
      %v2012 = vrot.slane %v1982, 5
      %v2013 = vrot.slane %v2012, 4
      %v2014 = vrot.slane %v1703, 5
      %v2015 = vsel %vm677, %v2013, %v2014
      %v2016 = vrot.slane %v1983, 5
      %v2017 = vrot.slane %v2016, 4
      %v2018 = vrot.slane %v1705, 5
      %v2019 = vsel %vm677, %v2017, %v2018
      %v2020 = vrot.slane %v1984, 5
      %v2021 = vrot.slane %v2020, 4
      %v2022 = vrot.slane %v1707, 5
      %v2023 = vsel %vm677, %v2021, %v2022
      %v2024 = vrot.slane %v1985, 5
      %v2025 = vrot.slane %v2024, 4
      %v2026 = vrot.slane %v1709, 5
      %v2027 = vsel %vm677, %v2025, %v2026
      %v2028 = vrot.slane %v1986, 5
      %v2029 = vrot.slane %v2028, 4
      %v2030 = vrot.slane %v1711, 5
      %v2031 = vsel %vm677, %v2029, %v2030
      %v2032 = vrot.slane %v1987, 5
      %v2033 = vrot.slane %v2032, 4
      %v2034 = vrot.slane %v1713, 5
      %v2035 = vsel %vm677, %v2033, %v2034
      %s2036 = scalar_lea.vmem %s1, 512
      %v2037 = vld [vmem:[%s2036] sm:$0xf]
      %v2038 = vld [vmem:[%s2036 + $0x4] sm:$0xf]
      %v2039 = vld [vmem:[%s2036 + $0x8] sm:$0xf]
      %v2040 = vld [vmem:[%s2036 + $0xc] sm:$0xf]
      %v2041 = vld [vmem:[%s2036 + $0x10] sm:$0xf]
      %v2042 = vld [vmem:[%s2036 + $0x14] sm:$0xf]
      %v2043 = vld [vmem:[%s2036 + $0x18] sm:$0xf]
      %v2044 = vld [vmem:[%s2036 + $0x1c] sm:$0xf]
      %v2045 = vld [vmem:[%s2036 + $0x20] sm:$0xf]
      %v2046 = vld [vmem:[%s2036 + $0x24] sm:$0xf]
      %v2047 = vld [vmem:[%s2036 + $0x28] sm:$0xf]
      %v2048 = vld [vmem:[%s2036 + $0x2c] sm:$0xf]
      %v2049 = vld [vmem:[%s2036 + $0x30] sm:$0xf]
      %v2050 = vld [vmem:[%s2036 + $0x34] sm:$0xf]
      %v2051 = vld [vmem:[%s2036 + $0x38] sm:$0xf]
      %v2052 = vld [vmem:[%s2036 + $0x3c] sm:$0xf]
      %v2053 = vunpack.c.l.b16 %v2007
      %v2054 = vunpack.c.l.b16 %v2011
      %v2055 = vunpack.c.l.b16 %v2015
      %v2056 = vunpack.c.l.b16 %v2019
      %v2057 = vunpack.c.l.b16 %v2023
      %v2058 = vunpack.c.l.b16 %v2027
      %v2059 = vunpack.c.l.b16 %v2031
      %v2060 = vunpack.c.l.b16 %v2035
      %v2061 = vpack.c.b16 %v2054, %v2053
      %v2062 = vpack.c.b16 %v2056, %v2055
      %v2063 = vpack.c.b16 %v2058, %v2057
      %v2064 = vpack.c.b16 %v2060, %v2059
      %v2085 = vunpack.c.l.b16 %v2037
      %v2086 = vunpack.c.l.b16 %v2038
      %v2087 = vunpack.c.l.b16 %v2039
      %v2088 = vunpack.c.l.b16 %v2040
      %v2089 = vunpack.c.l.b16 %v2041
      %v2090 = vunpack.c.l.b16 %v2042
      %v2091 = vunpack.c.l.b16 %v2043
      %v2092 = vunpack.c.l.b16 %v2044
      %v2093 = vunpack.c.l.b16 %v2045
      %v2094 = vunpack.c.l.b16 %v2046
      %v2095 = vunpack.c.l.b16 %v2047
      %v2096 = vunpack.c.l.b16 %v2048
      %v2097 = vunpack.c.l.b16 %v2049
      %v2098 = vunpack.c.l.b16 %v2050
      %v2099 = vunpack.c.l.b16 %v2051
      %v2100 = vunpack.c.l.b16 %v2052
      %v2101 = vpack.c.b16 %v2086, %v2085
      %v2102 = vpack.c.b16 %v2088, %v2087
      %v2103 = vpack.c.b16 %v2090, %v2089
      %v2104 = vpack.c.b16 %v2092, %v2091
      %v2105 = vpack.c.b16 %v2094, %v2093
      %v2106 = vpack.c.b16 %v2096, %v2095
      %v2107 = vpack.c.b16 %v2098, %v2097
      %v2108 = vpack.c.b16 %v2100, %v2099
      %2117 = vmatprep.subr.bf16.mxu0 0
      %2118 = vmatpush1.bf16.msra.mxu0 %v2108
      %2119 = vmatprep.subr.bf16.mxu0 0
      %2120 = vmatpush1.bf16.msra.mxu0 %v2107
      %2121 = vmatprep.subr.bf16.mxu0 0
      %2122 = vmatpush1.bf16.msra.mxu0 %v2106
      %2123 = vmatprep.subr.bf16.mxu0 0
      %2124 = vmatpush1.bf16.msra.mxu0 %v2105
      %2125 = vmatprep.subr.bf16.mxu0 0
      %2126 = vmatpush1.bf16.msra.mxu0 %v2104
      %2127 = vmatprep.subr.bf16.mxu0 0
      %2128 = vmatpush1.bf16.msra.mxu0 %v2103
      %2129 = vmatprep.subr.bf16.mxu0 0
      %2130 = vmatpush1.bf16.msra.mxu0 %v2102
      %2131 = vmatprep.subr.bf16.mxu0 0
      %2132 = vmatpush1.bf16.msra.mxu0 %v2101
      %2133 = vmatprep.subr.bf16.mxu0 0
      %2134 = vmatpush2.bf16.msra.mxu0 0
      %2135 = vmatprep.subr.bf16.mxu0 0
      %2136 = vmatpush2.bf16.msra.mxu0 0
      %2137 = vmatprep.subr.bf16.mxu0 0
      %2138 = vmatpush2.bf16.msra.mxu0 0
      %2139 = vmatprep.subr.bf16.mxu0 0
      %2140 = vmatpush2.bf16.msra.mxu0 0
      %2141 = vmatprep.subr.bf16.mxu0 0
      %2142 = vmatpush2.bf16.msra.mxu0 0
      %2143 = vmatprep.subr.bf16.mxu0 0
      %2144 = vmatpush2.bf16.msra.mxu0 0
      %2145 = vmatprep.subr.bf16.mxu0 0
      %2146 = vmatpush2.bf16.msra.mxu0 0
      %2147 = vmatprep.subr.bf16.mxu0 0
      %2148 = vmatpush2.bf16.msra.mxu0 0
      %2149 = vmatprep.mubr.bf16.mxu0 0
      %2150 = vmatmul.mubr.bf16.gmra.mxu0 %v2061
      %v2151 = vpop.f32.mrf.mxu0
      %v2152 = vadd.f32 0.0, %v2151
      %v2153 = vpop.f32.mrf.mxu0
      %v2154 = vpop.f32.mrf.mxu0
      %v2155 = vadd.f32 0.0, %v2154
      %v2156 = vpop.f32.mrf.mxu0
      %2157 = vmatprep.mubr.bf16.mxu0 0
      %2158 = vmatmul.mubr.bf16.gmra.mxu0 %v2062
      %v2159 = vpop.f32.mrf.mxu0
      %v2160 = vadd.f32 0.0, %v2159
      %v2161 = vpop.f32.mrf.mxu0
      %v2162 = vpop.f32.mrf.mxu0
      %v2163 = vadd.f32 0.0, %v2162
      %v2164 = vpop.f32.mrf.mxu0
      %2165 = vmatprep.mubr.bf16.mxu0 0
      %2166 = vmatmul.mubr.bf16.gmra.mxu0 %v2063
      %v2167 = vpop.f32.mrf.mxu0
      %v2168 = vadd.f32 0.0, %v2167
      %v2169 = vpop.f32.mrf.mxu0
      %v2170 = vpop.f32.mrf.mxu0
      %v2171 = vadd.f32 0.0, %v2170
      %v2172 = vpop.f32.mrf.mxu0
      %2173 = vmatprep.mubr.bf16.mxu0 0
      %2174 = vmatmul.mubr.bf16.gmra.mxu0 %v2064
      %v2175 = vpop.f32.mrf.mxu0
      %v2176 = vadd.f32 0.0, %v2175
      %v2177 = vpop.f32.mrf.mxu0
      %v2178 = vpop.f32.mrf.mxu0
      %v2179 = vadd.f32 0.0, %v2178
      %v2180 = vpop.f32.mrf.mxu0
      %2181 = vdwg.mxu0
      %v2182 = vadd.f32 %v1972, %v2152
      %v2183 = vadd.f32 %v1973, %v2155
      %v2184 = vadd.f32 %v1974, %v2160
      %v2185 = vadd.f32 %v1975, %v2163
      %v2186 = vadd.f32 %v1976, %v2168
      %v2187 = vadd.f32 %v1977, %v2171
      %v2188 = vadd.f32 %v1978, %v2176
      %v2189 = vadd.f32 %v1979, %v2179
      %s2190 = scalar_lea.vmem %s205, 80
      %v2191 = vld [vmem:[%s2190] sm:$0xf]
      %v2192 = vld [vmem:[%s2190 + $0x8] sm:$0xf]
      %v2193 = vld [vmem:[%s2190 + $0x10] sm:$0xf]
      %v2194 = vld [vmem:[%s2190 + $0x18] sm:$0xf]
      %v2195 = vld [vmem:[%s2190 + $0x20] sm:$0xf]
      %v2196 = vld [vmem:[%s2190 + $0x28] sm:$0xf]
      %v2197 = vld [vmem:[%s2190 + $0x30] sm:$0xf]
      %v2198 = vld [vmem:[%s2190 + $0x38] sm:$0xf]
      %s2199 = scalar_lea.vmem %s1, 576
      %v2200 = vld [vmem:[%s2199] sm:$0xf]
      %v2201 = vld [vmem:[%s2199 + $0x4] sm:$0xf]
      %v2202 = vld [vmem:[%s2199 + $0x8] sm:$0xf]
      %v2203 = vld [vmem:[%s2199 + $0xc] sm:$0xf]
      %v2204 = vld [vmem:[%s2199 + $0x10] sm:$0xf]
      %v2205 = vld [vmem:[%s2199 + $0x14] sm:$0xf]
      %v2206 = vld [vmem:[%s2199 + $0x18] sm:$0xf]
      %v2207 = vld [vmem:[%s2199 + $0x1c] sm:$0xf]
      %v2208 = vld [vmem:[%s2199 + $0x20] sm:$0xf]
      %v2209 = vld [vmem:[%s2199 + $0x24] sm:$0xf]
      %v2210 = vld [vmem:[%s2199 + $0x28] sm:$0xf]
      %v2211 = vld [vmem:[%s2199 + $0x2c] sm:$0xf]
      %v2212 = vld [vmem:[%s2199 + $0x30] sm:$0xf]
      %v2213 = vld [vmem:[%s2199 + $0x34] sm:$0xf]
      %v2214 = vld [vmem:[%s2199 + $0x38] sm:$0xf]
      %v2215 = vld [vmem:[%s2199 + $0x3c] sm:$0xf]
      %v2224 = vunpack.c.l.b16 %v2191
      %v2225 = vunpack.c.l.b16 %v2192
      %v2226 = vunpack.c.l.b16 %v2193
      %v2227 = vunpack.c.l.b16 %v2194
      %v2228 = vunpack.c.l.b16 %v2195
      %v2229 = vunpack.c.l.b16 %v2196
      %v2230 = vunpack.c.l.b16 %v2197
      %v2231 = vunpack.c.l.b16 %v2198
      %v2232 = vpack.c.b16 %v2225, %v2224
      %v2233 = vpack.c.b16 %v2227, %v2226
      %v2234 = vpack.c.b16 %v2229, %v2228
      %v2235 = vpack.c.b16 %v2231, %v2230
      %v2256 = vunpack.c.l.b16 %v2200
      %v2257 = vunpack.c.l.b16 %v2201
      %v2258 = vunpack.c.l.b16 %v2202
      %v2259 = vunpack.c.l.b16 %v2203
      %v2260 = vunpack.c.l.b16 %v2204
      %v2261 = vunpack.c.l.b16 %v2205
      %v2262 = vunpack.c.l.b16 %v2206
      %v2263 = vunpack.c.l.b16 %v2207
      %v2264 = vunpack.c.l.b16 %v2208
      %v2265 = vunpack.c.l.b16 %v2209
      %v2266 = vunpack.c.l.b16 %v2210
      %v2267 = vunpack.c.l.b16 %v2211
      %v2268 = vunpack.c.l.b16 %v2212
      %v2269 = vunpack.c.l.b16 %v2213
      %v2270 = vunpack.c.l.b16 %v2214
      %v2271 = vunpack.c.l.b16 %v2215
      %v2272 = vpack.c.b16 %v2257, %v2256
      %v2273 = vpack.c.b16 %v2259, %v2258
      %v2274 = vpack.c.b16 %v2261, %v2260
      %v2275 = vpack.c.b16 %v2263, %v2262
      %v2276 = vpack.c.b16 %v2265, %v2264
      %v2277 = vpack.c.b16 %v2267, %v2266
      %v2278 = vpack.c.b16 %v2269, %v2268
      %v2279 = vpack.c.b16 %v2271, %v2270
      %2288 = vmatprep.subr.bf16.mxu0 0
      %2289 = vmatpush1.bf16.msra.mxu0 %v2279
      %2290 = vmatprep.subr.bf16.mxu0 0
      %2291 = vmatpush1.bf16.msra.mxu0 %v2278
      %2292 = vmatprep.subr.bf16.mxu0 0
      %2293 = vmatpush1.bf16.msra.mxu0 %v2277
      %2294 = vmatprep.subr.bf16.mxu0 0
      %2295 = vmatpush1.bf16.msra.mxu0 %v2276
      %2296 = vmatprep.subr.bf16.mxu0 0
      %2297 = vmatpush1.bf16.msra.mxu0 %v2275
      %2298 = vmatprep.subr.bf16.mxu0 0
      %2299 = vmatpush1.bf16.msra.mxu0 %v2274
      %2300 = vmatprep.subr.bf16.mxu0 0
      %2301 = vmatpush1.bf16.msra.mxu0 %v2273
      %2302 = vmatprep.subr.bf16.mxu0 0
      %2303 = vmatpush1.bf16.msra.mxu0 %v2272
      %2304 = vmatprep.subr.bf16.mxu0 0
      %2305 = vmatpush2.bf16.msra.mxu0 0
      %2306 = vmatprep.subr.bf16.mxu0 0
      %2307 = vmatpush2.bf16.msra.mxu0 0
      %2308 = vmatprep.subr.bf16.mxu0 0
      %2309 = vmatpush2.bf16.msra.mxu0 0
      %2310 = vmatprep.subr.bf16.mxu0 0
      %2311 = vmatpush2.bf16.msra.mxu0 0
      %2312 = vmatprep.subr.bf16.mxu0 0
      %2313 = vmatpush2.bf16.msra.mxu0 0
      %2314 = vmatprep.subr.bf16.mxu0 0
      %2315 = vmatpush2.bf16.msra.mxu0 0
      %2316 = vmatprep.subr.bf16.mxu0 0
      %2317 = vmatpush2.bf16.msra.mxu0 0
      %2318 = vmatprep.subr.bf16.mxu0 0
      %2319 = vmatpush2.bf16.msra.mxu0 0
      %2320 = vmatprep.mubr.bf16.mxu0 0
      %2321 = vmatmul.mubr.bf16.gmra.mxu0 %v2232
      %v2322 = vpop.f32.mrf.mxu0
      %v2323 = vadd.f32 0.0, %v2322
      %v2324 = vpop.f32.mrf.mxu0
      %v2325 = vpop.f32.mrf.mxu0
      %v2326 = vadd.f32 0.0, %v2325
      %v2327 = vpop.f32.mrf.mxu0
      %2328 = vmatprep.mubr.bf16.mxu0 0
      %2329 = vmatmul.mubr.bf16.gmra.mxu0 %v2233
      %v2330 = vpop.f32.mrf.mxu0
      %v2331 = vadd.f32 0.0, %v2330
      %v2332 = vpop.f32.mrf.mxu0
      %v2333 = vpop.f32.mrf.mxu0
      %v2334 = vadd.f32 0.0, %v2333
      %v2335 = vpop.f32.mrf.mxu0
      %2336 = vmatprep.mubr.bf16.mxu0 0
      %2337 = vmatmul.mubr.bf16.gmra.mxu0 %v2234
      %v2338 = vpop.f32.mrf.mxu0
      %v2339 = vadd.f32 0.0, %v2338
      %v2340 = vpop.f32.mrf.mxu0
      %v2341 = vpop.f32.mrf.mxu0
      %v2342 = vadd.f32 0.0, %v2341
      %v2343 = vpop.f32.mrf.mxu0
      %2344 = vmatprep.mubr.bf16.mxu0 0
      %2345 = vmatmul.mubr.bf16.gmra.mxu0 %v2235
      %v2346 = vpop.f32.mrf.mxu0
      %v2347 = vadd.f32 0.0, %v2346
      %v2348 = vpop.f32.mrf.mxu0
      %v2349 = vpop.f32.mrf.mxu0
      %v2350 = vadd.f32 0.0, %v2349
      %v2351 = vpop.f32.mrf.mxu0
      %2352 = vdwg.mxu0
      %v2353 = vadd.f32 %v2182, %v2323
      %v2354 = vadd.f32 %v2183, %v2326
      %v2355 = vadd.f32 %v2184, %v2331
      %v2356 = vadd.f32 %v2185, %v2334
      %v2357 = vadd.f32 %v2186, %v2339
      %v2358 = vadd.f32 %v2187, %v2342
      %v2359 = vadd.f32 %v2188, %v2347
      %v2360 = vadd.f32 %v2189, %v2350
      %v2361 = vld [vmem:[%s2190] sm:$0xf]
      %v2362 = vld [vmem:[%s2190 + $0x4] sm:$0x1]
      %v2363 = vld [vmem:[%s2190 + $0x8] sm:$0xf]
      %v2364 = vld [vmem:[%s2190 + $0xc] sm:$0x1]
      %v2365 = vld [vmem:[%s2190 + $0x10] sm:$0xf]
      %v2366 = vld [vmem:[%s2190 + $0x14] sm:$0x1]
      %v2367 = vld [vmem:[%s2190 + $0x18] sm:$0xf]
      %v2368 = vld [vmem:[%s2190 + $0x1c] sm:$0x1]
      %v2369 = vld [vmem:[%s2190 + $0x20] sm:$0xf]
      %v2370 = vld [vmem:[%s2190 + $0x24] sm:$0x1]
      %v2371 = vld [vmem:[%s2190 + $0x28] sm:$0xf]
      %v2372 = vld [vmem:[%s2190 + $0x2c] sm:$0x1]
      %v2373 = vld [vmem:[%s2190 + $0x30] sm:$0xf]
      %v2374 = vld [vmem:[%s2190 + $0x34] sm:$0x1]
      %v2375 = vld [vmem:[%s2190 + $0x38] sm:$0xf]
      %v2376 = vld [vmem:[%s2190 + $0x3c] sm:$0x1]
      %v2378 = vshrl.u32 %v2361, 16
      %v2380 = vrot.slane %v2378, 4
      %v2381 = vshll.u32 %v2361, 16
      %v2383 = vrot.slane %v2381, 5
      %v2384 = vor.u32 %v2380, %v2383
      %v2385 = vrot.slane %v2384, 4
      %v2387 = vshll.u32 %v2362, 16
      %v2389 = vrot.slane %v2387, 5
      %v2390 = vsel %vm255, %v2385, %v2389
      %v2392 = vshrl.u32 %v2363, 16
      %v2394 = vrot.slane %v2392, 4
      %v2395 = vshll.u32 %v2363, 16
      %v2397 = vrot.slane %v2395, 5
      %v2398 = vor.u32 %v2394, %v2397
      %v2399 = vrot.slane %v2398, 4
      %v2401 = vshll.u32 %v2364, 16
      %v2403 = vrot.slane %v2401, 5
      %v2404 = vsel %vm255, %v2399, %v2403
      %v2406 = vshrl.u32 %v2365, 16
      %v2408 = vrot.slane %v2406, 4
      %v2409 = vshll.u32 %v2365, 16
      %v2411 = vrot.slane %v2409, 5
      %v2412 = vor.u32 %v2408, %v2411
      %v2413 = vrot.slane %v2412, 4
      %v2415 = vshll.u32 %v2366, 16
      %v2417 = vrot.slane %v2415, 5
      %v2418 = vsel %vm255, %v2413, %v2417
      %v2420 = vshrl.u32 %v2367, 16
      %v2422 = vrot.slane %v2420, 4
      %v2423 = vshll.u32 %v2367, 16
      %v2425 = vrot.slane %v2423, 5
      %v2426 = vor.u32 %v2422, %v2425
      %v2427 = vrot.slane %v2426, 4
      %v2429 = vshll.u32 %v2368, 16
      %v2431 = vrot.slane %v2429, 5
      %v2432 = vsel %vm255, %v2427, %v2431
      %v2434 = vshrl.u32 %v2369, 16
      %v2436 = vrot.slane %v2434, 4
      %v2437 = vshll.u32 %v2369, 16
      %v2439 = vrot.slane %v2437, 5
      %v2440 = vor.u32 %v2436, %v2439
      %v2441 = vrot.slane %v2440, 4
      %v2443 = vshll.u32 %v2370, 16
      %v2445 = vrot.slane %v2443, 5
      %v2446 = vsel %vm255, %v2441, %v2445
      %v2448 = vshrl.u32 %v2371, 16
      %v2450 = vrot.slane %v2448, 4
      %v2451 = vshll.u32 %v2371, 16
      %v2453 = vrot.slane %v2451, 5
      %v2454 = vor.u32 %v2450, %v2453
      %v2455 = vrot.slane %v2454, 4
      %v2457 = vshll.u32 %v2372, 16
      %v2459 = vrot.slane %v2457, 5
      %v2460 = vsel %vm255, %v2455, %v2459
      %v2462 = vshrl.u32 %v2373, 16
      %v2464 = vrot.slane %v2462, 4
      %v2465 = vshll.u32 %v2373, 16
      %v2467 = vrot.slane %v2465, 5
      %v2468 = vor.u32 %v2464, %v2467
      %v2469 = vrot.slane %v2468, 4
      %v2471 = vshll.u32 %v2374, 16
      %v2473 = vrot.slane %v2471, 5
      %v2474 = vsel %vm255, %v2469, %v2473
      %v2476 = vshrl.u32 %v2375, 16
      %v2478 = vrot.slane %v2476, 4
      %v2479 = vshll.u32 %v2375, 16
      %v2481 = vrot.slane %v2479, 5
      %v2482 = vor.u32 %v2478, %v2481
      %v2483 = vrot.slane %v2482, 4
      %v2485 = vshll.u32 %v2376, 16
      %v2487 = vrot.slane %v2485, 5
      %v2488 = vsel %vm255, %v2483, %v2487
      %s2489 = scalar_lea.vmem %s1, 640
      %v2490 = vld [vmem:[%s2489] sm:$0xf]
      %v2491 = vld [vmem:[%s2489 + $0x4] sm:$0xf]
      %v2492 = vld [vmem:[%s2489 + $0x8] sm:$0xf]
      %v2493 = vld [vmem:[%s2489 + $0xc] sm:$0xf]
      %v2494 = vld [vmem:[%s2489 + $0x10] sm:$0xf]
      %v2495 = vld [vmem:[%s2489 + $0x14] sm:$0xf]
      %v2496 = vld [vmem:[%s2489 + $0x18] sm:$0xf]
      %v2497 = vld [vmem:[%s2489 + $0x1c] sm:$0xf]
      %v2498 = vld [vmem:[%s2489 + $0x20] sm:$0xf]
      %v2499 = vld [vmem:[%s2489 + $0x24] sm:$0xf]
      %v2500 = vld [vmem:[%s2489 + $0x28] sm:$0xf]
      %v2501 = vld [vmem:[%s2489 + $0x2c] sm:$0xf]
      %v2502 = vld [vmem:[%s2489 + $0x30] sm:$0xf]
      %v2503 = vld [vmem:[%s2489 + $0x34] sm:$0xf]
      %v2504 = vld [vmem:[%s2489 + $0x38] sm:$0xf]
      %v2505 = vld [vmem:[%s2489 + $0x3c] sm:$0xf]
      %v2506 = vunpack.c.l.b16 %v2390
      %v2507 = vunpack.c.l.b16 %v2404
      %v2508 = vunpack.c.l.b16 %v2418
      %v2509 = vunpack.c.l.b16 %v2432
      %v2510 = vunpack.c.l.b16 %v2446
      %v2511 = vunpack.c.l.b16 %v2460
      %v2512 = vunpack.c.l.b16 %v2474
      %v2513 = vunpack.c.l.b16 %v2488
      %v2514 = vpack.c.b16 %v2507, %v2506
      %v2515 = vpack.c.b16 %v2509, %v2508
      %v2516 = vpack.c.b16 %v2511, %v2510
      %v2517 = vpack.c.b16 %v2513, %v2512
      %v2538 = vunpack.c.l.b16 %v2490
      %v2539 = vunpack.c.l.b16 %v2491
      %v2540 = vunpack.c.l.b16 %v2492
      %v2541 = vunpack.c.l.b16 %v2493
      %v2542 = vunpack.c.l.b16 %v2494
      %v2543 = vunpack.c.l.b16 %v2495
      %v2544 = vunpack.c.l.b16 %v2496
      %v2545 = vunpack.c.l.b16 %v2497
      %v2546 = vunpack.c.l.b16 %v2498
      %v2547 = vunpack.c.l.b16 %v2499
      %v2548 = vunpack.c.l.b16 %v2500
      %v2549 = vunpack.c.l.b16 %v2501
      %v2550 = vunpack.c.l.b16 %v2502
      %v2551 = vunpack.c.l.b16 %v2503
      %v2552 = vunpack.c.l.b16 %v2504
      %v2553 = vunpack.c.l.b16 %v2505
      %v2554 = vpack.c.b16 %v2539, %v2538
      %v2555 = vpack.c.b16 %v2541, %v2540
      %v2556 = vpack.c.b16 %v2543, %v2542
      %v2557 = vpack.c.b16 %v2545, %v2544
      %v2558 = vpack.c.b16 %v2547, %v2546
      %v2559 = vpack.c.b16 %v2549, %v2548
      %v2560 = vpack.c.b16 %v2551, %v2550
      %v2561 = vpack.c.b16 %v2553, %v2552
      %2570 = vmatprep.subr.bf16.mxu0 0
      %2571 = vmatpush1.bf16.msra.mxu0 %v2561
      %2572 = vmatprep.subr.bf16.mxu0 0
      %2573 = vmatpush1.bf16.msra.mxu0 %v2560
      %2574 = vmatprep.subr.bf16.mxu0 0
      %2575 = vmatpush1.bf16.msra.mxu0 %v2559
      %2576 = vmatprep.subr.bf16.mxu0 0
      %2577 = vmatpush1.bf16.msra.mxu0 %v2558
      %2578 = vmatprep.subr.bf16.mxu0 0
      %2579 = vmatpush1.bf16.msra.mxu0 %v2557
      %2580 = vmatprep.subr.bf16.mxu0 0
      %2581 = vmatpush1.bf16.msra.mxu0 %v2556
      %2582 = vmatprep.subr.bf16.mxu0 0
      %2583 = vmatpush1.bf16.msra.mxu0 %v2555
      %2584 = vmatprep.subr.bf16.mxu0 0
      %2585 = vmatpush1.bf16.msra.mxu0 %v2554
      %2586 = vmatprep.subr.bf16.mxu0 0
      %2587 = vmatpush2.bf16.msra.mxu0 0
      %2588 = vmatprep.subr.bf16.mxu0 0
      %2589 = vmatpush2.bf16.msra.mxu0 0
      %2590 = vmatprep.subr.bf16.mxu0 0
      %2591 = vmatpush2.bf16.msra.mxu0 0
      %2592 = vmatprep.subr.bf16.mxu0 0
      %2593 = vmatpush2.bf16.msra.mxu0 0
      %2594 = vmatprep.subr.bf16.mxu0 0
      %2595 = vmatpush2.bf16.msra.mxu0 0
      %2596 = vmatprep.subr.bf16.mxu0 0
      %2597 = vmatpush2.bf16.msra.mxu0 0
      %2598 = vmatprep.subr.bf16.mxu0 0
      %2599 = vmatpush2.bf16.msra.mxu0 0
      %2600 = vmatprep.subr.bf16.mxu0 0
      %2601 = vmatpush2.bf16.msra.mxu0 0
      %2602 = vmatprep.mubr.bf16.mxu0 0
      %2603 = vmatmul.mubr.bf16.gmra.mxu0 %v2514
      %v2604 = vpop.f32.mrf.mxu0
      %v2605 = vadd.f32 0.0, %v2604
      %v2606 = vpop.f32.mrf.mxu0
      %v2607 = vpop.f32.mrf.mxu0
      %v2608 = vadd.f32 0.0, %v2607
      %v2609 = vpop.f32.mrf.mxu0
      %2610 = vmatprep.mubr.bf16.mxu0 0
      %2611 = vmatmul.mubr.bf16.gmra.mxu0 %v2515
      %v2612 = vpop.f32.mrf.mxu0
      %v2613 = vadd.f32 0.0, %v2612
      %v2614 = vpop.f32.mrf.mxu0
      %v2615 = vpop.f32.mrf.mxu0
      %v2616 = vadd.f32 0.0, %v2615
      %v2617 = vpop.f32.mrf.mxu0
      %2618 = vmatprep.mubr.bf16.mxu0 0
      %2619 = vmatmul.mubr.bf16.gmra.mxu0 %v2516
      %v2620 = vpop.f32.mrf.mxu0
      %v2621 = vadd.f32 0.0, %v2620
      %v2622 = vpop.f32.mrf.mxu0
      %v2623 = vpop.f32.mrf.mxu0
      %v2624 = vadd.f32 0.0, %v2623
      %v2625 = vpop.f32.mrf.mxu0
      %2626 = vmatprep.mubr.bf16.mxu0 0
      %2627 = vmatmul.mubr.bf16.gmra.mxu0 %v2517
      %v2628 = vpop.f32.mrf.mxu0
      %v2629 = vadd.f32 0.0, %v2628
      %v2630 = vpop.f32.mrf.mxu0
      %v2631 = vpop.f32.mrf.mxu0
      %v2632 = vadd.f32 0.0, %v2631
      %v2633 = vpop.f32.mrf.mxu0
      %2634 = vdwg.mxu0
      %v2635 = vadd.f32 %v2353, %v2605
      %v2636 = vadd.f32 %v2354, %v2608
      %v2637 = vadd.f32 %v2355, %v2613
      %v2638 = vadd.f32 %v2356, %v2616
      %v2639 = vadd.f32 %v2357, %v2621
      %v2640 = vadd.f32 %v2358, %v2624
      %v2641 = vadd.f32 %v2359, %v2629
      %v2642 = vadd.f32 %v2360, %v2632
      %v2643 = vld [vmem:[%s2190] sm:$0xe]
      %v2644 = vld [vmem:[%s2190 + $0x8] sm:$0xe]
      %v2645 = vld [vmem:[%s2190 + $0x10] sm:$0xe]
      %v2646 = vld [vmem:[%s2190 + $0x18] sm:$0xe]
      %v2647 = vld [vmem:[%s2190 + $0x20] sm:$0xe]
      %v2648 = vld [vmem:[%s2190 + $0x28] sm:$0xe]
      %v2649 = vld [vmem:[%s2190 + $0x30] sm:$0xe]
      %v2650 = vld [vmem:[%s2190 + $0x38] sm:$0xe]
      %v2667 = vrot.slane %v2643, 5
      %v2668 = vrot.slane %v2667, 4
      %v2669 = vrot.slane %v2362, 5
      %v2670 = vsel %vm677, %v2668, %v2669
      %v2671 = vrot.slane %v2644, 5
      %v2672 = vrot.slane %v2671, 4
      %v2673 = vrot.slane %v2364, 5
      %v2674 = vsel %vm677, %v2672, %v2673
      %v2675 = vrot.slane %v2645, 5
      %v2676 = vrot.slane %v2675, 4
      %v2677 = vrot.slane %v2366, 5
      %v2678 = vsel %vm677, %v2676, %v2677
      %v2679 = vrot.slane %v2646, 5
      %v2680 = vrot.slane %v2679, 4
      %v2681 = vrot.slane %v2368, 5
      %v2682 = vsel %vm677, %v2680, %v2681
      %v2683 = vrot.slane %v2647, 5
      %v2684 = vrot.slane %v2683, 4
      %v2685 = vrot.slane %v2370, 5
      %v2686 = vsel %vm677, %v2684, %v2685
      %v2687 = vrot.slane %v2648, 5
      %v2688 = vrot.slane %v2687, 4
      %v2689 = vrot.slane %v2372, 5
      %v2690 = vsel %vm677, %v2688, %v2689
      %v2691 = vrot.slane %v2649, 5
      %v2692 = vrot.slane %v2691, 4
      %v2693 = vrot.slane %v2374, 5
      %v2694 = vsel %vm677, %v2692, %v2693
      %v2695 = vrot.slane %v2650, 5
      %v2696 = vrot.slane %v2695, 4
      %v2697 = vrot.slane %v2376, 5
      %v2698 = vsel %vm677, %v2696, %v2697
      %s2699 = scalar_lea.vmem %s1, 704
      %v2700 = vld [vmem:[%s2699] sm:$0xf]
      %v2701 = vld [vmem:[%s2699 + $0x4] sm:$0xf]
      %v2702 = vld [vmem:[%s2699 + $0x8] sm:$0xf]
      %v2703 = vld [vmem:[%s2699 + $0xc] sm:$0xf]
      %v2704 = vld [vmem:[%s2699 + $0x10] sm:$0xf]
      %v2705 = vld [vmem:[%s2699 + $0x14] sm:$0xf]
      %v2706 = vld [vmem:[%s2699 + $0x18] sm:$0xf]
      %v2707 = vld [vmem:[%s2699 + $0x1c] sm:$0xf]
      %v2708 = vld [vmem:[%s2699 + $0x20] sm:$0xf]
      %v2709 = vld [vmem:[%s2699 + $0x24] sm:$0xf]
      %v2710 = vld [vmem:[%s2699 + $0x28] sm:$0xf]
      %v2711 = vld [vmem:[%s2699 + $0x2c] sm:$0xf]
      %v2712 = vld [vmem:[%s2699 + $0x30] sm:$0xf]
      %v2713 = vld [vmem:[%s2699 + $0x34] sm:$0xf]
      %v2714 = vld [vmem:[%s2699 + $0x38] sm:$0xf]
      %v2715 = vld [vmem:[%s2699 + $0x3c] sm:$0xf]
      %v2716 = vunpack.c.l.b16 %v2670
      %v2717 = vunpack.c.l.b16 %v2674
      %v2718 = vunpack.c.l.b16 %v2678
      %v2719 = vunpack.c.l.b16 %v2682
      %v2720 = vunpack.c.l.b16 %v2686
      %v2721 = vunpack.c.l.b16 %v2690
      %v2722 = vunpack.c.l.b16 %v2694
      %v2723 = vunpack.c.l.b16 %v2698
      %v2724 = vpack.c.b16 %v2717, %v2716
      %v2725 = vpack.c.b16 %v2719, %v2718
      %v2726 = vpack.c.b16 %v2721, %v2720
      %v2727 = vpack.c.b16 %v2723, %v2722
      %v2748 = vunpack.c.l.b16 %v2700
      %v2749 = vunpack.c.l.b16 %v2701
      %v2750 = vunpack.c.l.b16 %v2702
      %v2751 = vunpack.c.l.b16 %v2703
      %v2752 = vunpack.c.l.b16 %v2704
      %v2753 = vunpack.c.l.b16 %v2705
      %v2754 = vunpack.c.l.b16 %v2706
      %v2755 = vunpack.c.l.b16 %v2707
      %v2756 = vunpack.c.l.b16 %v2708
      %v2757 = vunpack.c.l.b16 %v2709
      %v2758 = vunpack.c.l.b16 %v2710
      %v2759 = vunpack.c.l.b16 %v2711
      %v2760 = vunpack.c.l.b16 %v2712
      %v2761 = vunpack.c.l.b16 %v2713
      %v2762 = vunpack.c.l.b16 %v2714
      %v2763 = vunpack.c.l.b16 %v2715
      %v2764 = vpack.c.b16 %v2749, %v2748
      %v2765 = vpack.c.b16 %v2751, %v2750
      %v2766 = vpack.c.b16 %v2753, %v2752
      %v2767 = vpack.c.b16 %v2755, %v2754
      %v2768 = vpack.c.b16 %v2757, %v2756
      %v2769 = vpack.c.b16 %v2759, %v2758
      %v2770 = vpack.c.b16 %v2761, %v2760
      %v2771 = vpack.c.b16 %v2763, %v2762
      %2780 = vmatprep.subr.bf16.mxu0 0
      %2781 = vmatpush1.bf16.msra.mxu0 %v2771
      %2782 = vmatprep.subr.bf16.mxu0 0
      %2783 = vmatpush1.bf16.msra.mxu0 %v2770
      %2784 = vmatprep.subr.bf16.mxu0 0
      %2785 = vmatpush1.bf16.msra.mxu0 %v2769
      %2786 = vmatprep.subr.bf16.mxu0 0
      %2787 = vmatpush1.bf16.msra.mxu0 %v2768
      %2788 = vmatprep.subr.bf16.mxu0 0
      %2789 = vmatpush1.bf16.msra.mxu0 %v2767
      %2790 = vmatprep.subr.bf16.mxu0 0
      %2791 = vmatpush1.bf16.msra.mxu0 %v2766
      %2792 = vmatprep.subr.bf16.mxu0 0
      %2793 = vmatpush1.bf16.msra.mxu0 %v2765
      %2794 = vmatprep.subr.bf16.mxu0 0
      %2795 = vmatpush1.bf16.msra.mxu0 %v2764
      %2796 = vmatprep.subr.bf16.mxu0 0
      %2797 = vmatpush2.bf16.msra.mxu0 0
      %2798 = vmatprep.subr.bf16.mxu0 0
      %2799 = vmatpush2.bf16.msra.mxu0 0
      %2800 = vmatprep.subr.bf16.mxu0 0
      %2801 = vmatpush2.bf16.msra.mxu0 0
      %2802 = vmatprep.subr.bf16.mxu0 0
      %2803 = vmatpush2.bf16.msra.mxu0 0
      %2804 = vmatprep.subr.bf16.mxu0 0
      %2805 = vmatpush2.bf16.msra.mxu0 0
      %2806 = vmatprep.subr.bf16.mxu0 0
      %2807 = vmatpush2.bf16.msra.mxu0 0
      %2808 = vmatprep.subr.bf16.mxu0 0
      %2809 = vmatpush2.bf16.msra.mxu0 0
      %2810 = vmatprep.subr.bf16.mxu0 0
      %2811 = vmatpush2.bf16.msra.mxu0 0
      %2812 = vmatprep.mubr.bf16.mxu0 0
      %2813 = vmatmul.mubr.bf16.gmra.mxu0 %v2724
      %v2814 = vpop.f32.mrf.mxu0
      %v2815 = vadd.f32 0.0, %v2814
      %v2816 = vpop.f32.mrf.mxu0
      %v2817 = vpop.f32.mrf.mxu0
      %v2818 = vadd.f32 0.0, %v2817
      %v2819 = vpop.f32.mrf.mxu0
      %2820 = vmatprep.mubr.bf16.mxu0 0
      %2821 = vmatmul.mubr.bf16.gmra.mxu0 %v2725
      %v2822 = vpop.f32.mrf.mxu0
      %v2823 = vadd.f32 0.0, %v2822
      %v2824 = vpop.f32.mrf.mxu0
      %v2825 = vpop.f32.mrf.mxu0
      %v2826 = vadd.f32 0.0, %v2825
      %v2827 = vpop.f32.mrf.mxu0
      %2828 = vmatprep.mubr.bf16.mxu0 0
      %2829 = vmatmul.mubr.bf16.gmra.mxu0 %v2726
      %v2830 = vpop.f32.mrf.mxu0
      %v2831 = vadd.f32 0.0, %v2830
      %v2832 = vpop.f32.mrf.mxu0
      %v2833 = vpop.f32.mrf.mxu0
      %v2834 = vadd.f32 0.0, %v2833
      %v2835 = vpop.f32.mrf.mxu0
      %2836 = vmatprep.mubr.bf16.mxu0 0
      %2837 = vmatmul.mubr.bf16.gmra.mxu0 %v2727
      %v2838 = vpop.f32.mrf.mxu0
      %v2839 = vadd.f32 0.0, %v2838
      %v2840 = vpop.f32.mrf.mxu0
      %v2841 = vpop.f32.mrf.mxu0
      %v2842 = vadd.f32 0.0, %v2841
      %v2843 = vpop.f32.mrf.mxu0
      %2844 = vdwg.mxu0
      %v2845 = vadd.f32 %v2635, %v2815
      %v2846 = vadd.f32 %v2636, %v2818
      %v2847 = vadd.f32 %v2637, %v2823
      %v2848 = vadd.f32 %v2638, %v2826
      %v2849 = vadd.f32 %v2639, %v2831
      %v2850 = vadd.f32 %v2640, %v2834
      %v2851 = vadd.f32 %v2641, %v2839
      %v2852 = vadd.f32 %v2642, %v2842
      %s2853 = scalar_lea.vmem %s205, 88
      %v2854 = vld [vmem:[%s2853] sm:$0xf]
      %v2855 = vld [vmem:[%s2853 + $0x8] sm:$0xf]
      %v2856 = vld [vmem:[%s2853 + $0x10] sm:$0xf]
      %v2857 = vld [vmem:[%s2853 + $0x18] sm:$0xf]
      %v2858 = vld [vmem:[%s2853 + $0x20] sm:$0xf]
      %v2859 = vld [vmem:[%s2853 + $0x28] sm:$0xf]
      %v2860 = vld [vmem:[%s2853 + $0x30] sm:$0xf]
      %v2861 = vld [vmem:[%s2853 + $0x38] sm:$0xf]
      %s2862 = scalar_lea.vmem %s1, 768
      %v2863 = vld [vmem:[%s2862] sm:$0xf]
      %v2864 = vld [vmem:[%s2862 + $0x4] sm:$0xf]
      %v2865 = vld [vmem:[%s2862 + $0x8] sm:$0xf]
      %v2866 = vld [vmem:[%s2862 + $0xc] sm:$0xf]
      %v2867 = vld [vmem:[%s2862 + $0x10] sm:$0xf]
      %v2868 = vld [vmem:[%s2862 + $0x14] sm:$0xf]
      %v2869 = vld [vmem:[%s2862 + $0x18] sm:$0xf]
      %v2870 = vld [vmem:[%s2862 + $0x1c] sm:$0xf]
      %v2871 = vld [vmem:[%s2862 + $0x20] sm:$0xf]
      %v2872 = vld [vmem:[%s2862 + $0x24] sm:$0xf]
      %v2873 = vld [vmem:[%s2862 + $0x28] sm:$0xf]
      %v2874 = vld [vmem:[%s2862 + $0x2c] sm:$0xf]
      %v2875 = vld [vmem:[%s2862 + $0x30] sm:$0xf]
      %v2876 = vld [vmem:[%s2862 + $0x34] sm:$0xf]
      %v2877 = vld [vmem:[%s2862 + $0x38] sm:$0xf]
      %v2878 = vld [vmem:[%s2862 + $0x3c] sm:$0xf]
      %v2887 = vunpack.c.l.b16 %v2854
      %v2888 = vunpack.c.l.b16 %v2855
      %v2889 = vunpack.c.l.b16 %v2856
      %v2890 = vunpack.c.l.b16 %v2857
      %v2891 = vunpack.c.l.b16 %v2858
      %v2892 = vunpack.c.l.b16 %v2859
      %v2893 = vunpack.c.l.b16 %v2860
      %v2894 = vunpack.c.l.b16 %v2861
      %v2895 = vpack.c.b16 %v2888, %v2887
      %v2896 = vpack.c.b16 %v2890, %v2889
      %v2897 = vpack.c.b16 %v2892, %v2891
      %v2898 = vpack.c.b16 %v2894, %v2893
      %v2919 = vunpack.c.l.b16 %v2863
      %v2920 = vunpack.c.l.b16 %v2864
      %v2921 = vunpack.c.l.b16 %v2865
      %v2922 = vunpack.c.l.b16 %v2866
      %v2923 = vunpack.c.l.b16 %v2867
      %v2924 = vunpack.c.l.b16 %v2868
      %v2925 = vunpack.c.l.b16 %v2869
      %v2926 = vunpack.c.l.b16 %v2870
      %v2927 = vunpack.c.l.b16 %v2871
      %v2928 = vunpack.c.l.b16 %v2872
      %v2929 = vunpack.c.l.b16 %v2873
      %v2930 = vunpack.c.l.b16 %v2874
      %v2931 = vunpack.c.l.b16 %v2875
      %v2932 = vunpack.c.l.b16 %v2876
      %v2933 = vunpack.c.l.b16 %v2877
      %v2934 = vunpack.c.l.b16 %v2878
      %v2935 = vpack.c.b16 %v2920, %v2919
      %v2936 = vpack.c.b16 %v2922, %v2921
      %v2937 = vpack.c.b16 %v2924, %v2923
      %v2938 = vpack.c.b16 %v2926, %v2925
      %v2939 = vpack.c.b16 %v2928, %v2927
      %v2940 = vpack.c.b16 %v2930, %v2929
      %v2941 = vpack.c.b16 %v2932, %v2931
      %v2942 = vpack.c.b16 %v2934, %v2933
      %2951 = vmatprep.subr.bf16.mxu0 0
      %2952 = vmatpush1.bf16.msra.mxu0 %v2942
      %2953 = vmatprep.subr.bf16.mxu0 0
      %2954 = vmatpush1.bf16.msra.mxu0 %v2941
      %2955 = vmatprep.subr.bf16.mxu0 0
      %2956 = vmatpush1.bf16.msra.mxu0 %v2940
      %2957 = vmatprep.subr.bf16.mxu0 0
      %2958 = vmatpush1.bf16.msra.mxu0 %v2939
      %2959 = vmatprep.subr.bf16.mxu0 0
      %2960 = vmatpush1.bf16.msra.mxu0 %v2938
      %2961 = vmatprep.subr.bf16.mxu0 0
      %2962 = vmatpush1.bf16.msra.mxu0 %v2937
      %2963 = vmatprep.subr.bf16.mxu0 0
      %2964 = vmatpush1.bf16.msra.mxu0 %v2936
      %2965 = vmatprep.subr.bf16.mxu0 0
      %2966 = vmatpush1.bf16.msra.mxu0 %v2935
      %2967 = vmatprep.subr.bf16.mxu0 0
      %2968 = vmatpush2.bf16.msra.mxu0 0
      %2969 = vmatprep.subr.bf16.mxu0 0
      %2970 = vmatpush2.bf16.msra.mxu0 0
      %2971 = vmatprep.subr.bf16.mxu0 0
      %2972 = vmatpush2.bf16.msra.mxu0 0
      %2973 = vmatprep.subr.bf16.mxu0 0
      %2974 = vmatpush2.bf16.msra.mxu0 0
      %2975 = vmatprep.subr.bf16.mxu0 0
      %2976 = vmatpush2.bf16.msra.mxu0 0
      %2977 = vmatprep.subr.bf16.mxu0 0
      %2978 = vmatpush2.bf16.msra.mxu0 0
      %2979 = vmatprep.subr.bf16.mxu0 0
      %2980 = vmatpush2.bf16.msra.mxu0 0
      %2981 = vmatprep.subr.bf16.mxu0 0
      %2982 = vmatpush2.bf16.msra.mxu0 0
      %2983 = vmatprep.mubr.bf16.mxu0 0
      %2984 = vmatmul.mubr.bf16.gmra.mxu0 %v2895
      %v2985 = vpop.f32.mrf.mxu0
      %v2986 = vadd.f32 0.0, %v2985
      %v2987 = vpop.f32.mrf.mxu0
      %v2988 = vpop.f32.mrf.mxu0
      %v2989 = vadd.f32 0.0, %v2988
      %v2990 = vpop.f32.mrf.mxu0
      %2991 = vmatprep.mubr.bf16.mxu0 0
      %2992 = vmatmul.mubr.bf16.gmra.mxu0 %v2896
      %v2993 = vpop.f32.mrf.mxu0
      %v2994 = vadd.f32 0.0, %v2993
      %v2995 = vpop.f32.mrf.mxu0
      %v2996 = vpop.f32.mrf.mxu0
      %v2997 = vadd.f32 0.0, %v2996
      %v2998 = vpop.f32.mrf.mxu0
      %2999 = vmatprep.mubr.bf16.mxu0 0
      %3000 = vmatmul.mubr.bf16.gmra.mxu0 %v2897
      %v3001 = vpop.f32.mrf.mxu0
      %v3002 = vadd.f32 0.0, %v3001
      %v3003 = vpop.f32.mrf.mxu0
      %v3004 = vpop.f32.mrf.mxu0
      %v3005 = vadd.f32 0.0, %v3004
      %v3006 = vpop.f32.mrf.mxu0
      %3007 = vmatprep.mubr.bf16.mxu0 0
      %3008 = vmatmul.mubr.bf16.gmra.mxu0 %v2898
      %v3009 = vpop.f32.mrf.mxu0
      %v3010 = vadd.f32 0.0, %v3009
      %v3011 = vpop.f32.mrf.mxu0
      %v3012 = vpop.f32.mrf.mxu0
      %v3013 = vadd.f32 0.0, %v3012
      %v3014 = vpop.f32.mrf.mxu0
      %3015 = vdwg.mxu0
      %v3016 = vadd.f32 %v2845, %v2986
      %v3017 = vadd.f32 %v2846, %v2989
      %v3018 = vadd.f32 %v2847, %v2994
      %v3019 = vadd.f32 %v2848, %v2997
      %v3020 = vadd.f32 %v2849, %v3002
      %v3021 = vadd.f32 %v2850, %v3005
      %v3022 = vadd.f32 %v2851, %v3010
      %v3023 = vadd.f32 %v2852, %v3013
      %v3024 = vld [vmem:[%s2853] sm:$0xf]
      %v3025 = vld [vmem:[%s2853 + $0x4] sm:$0x1]
      %v3026 = vld [vmem:[%s2853 + $0x8] sm:$0xf]
      %v3027 = vld [vmem:[%s2853 + $0xc] sm:$0x1]
      %v3028 = vld [vmem:[%s2853 + $0x10] sm:$0xf]
      %v3029 = vld [vmem:[%s2853 + $0x14] sm:$0x1]
      %v3030 = vld [vmem:[%s2853 + $0x18] sm:$0xf]
      %v3031 = vld [vmem:[%s2853 + $0x1c] sm:$0x1]
      %v3032 = vld [vmem:[%s2853 + $0x20] sm:$0xf]
      %v3033 = vld [vmem:[%s2853 + $0x24] sm:$0x1]
      %v3034 = vld [vmem:[%s2853 + $0x28] sm:$0xf]
      %v3035 = vld [vmem:[%s2853 + $0x2c] sm:$0x1]
      %v3036 = vld [vmem:[%s2853 + $0x30] sm:$0xf]
      %v3037 = vld [vmem:[%s2853 + $0x34] sm:$0x1]
      %v3038 = vld [vmem:[%s2853 + $0x38] sm:$0xf]
      %v3039 = vld [vmem:[%s2853 + $0x3c] sm:$0x1]
      %v3041 = vshrl.u32 %v3024, 16
      %v3043 = vrot.slane %v3041, 4
      %v3044 = vshll.u32 %v3024, 16
      %v3046 = vrot.slane %v3044, 5
      %v3047 = vor.u32 %v3043, %v3046
      %v3048 = vrot.slane %v3047, 4
      %v3050 = vshll.u32 %v3025, 16
      %v3052 = vrot.slane %v3050, 5
      %v3053 = vsel %vm255, %v3048, %v3052
      %v3055 = vshrl.u32 %v3026, 16
      %v3057 = vrot.slane %v3055, 4
      %v3058 = vshll.u32 %v3026, 16
      %v3060 = vrot.slane %v3058, 5
      %v3061 = vor.u32 %v3057, %v3060
      %v3062 = vrot.slane %v3061, 4
      %v3064 = vshll.u32 %v3027, 16
      %v3066 = vrot.slane %v3064, 5
      %v3067 = vsel %vm255, %v3062, %v3066
      %v3069 = vshrl.u32 %v3028, 16
      %v3071 = vrot.slane %v3069, 4
      %v3072 = vshll.u32 %v3028, 16
      %v3074 = vrot.slane %v3072, 5
      %v3075 = vor.u32 %v3071, %v3074
      %v3076 = vrot.slane %v3075, 4
      %v3078 = vshll.u32 %v3029, 16
      %v3080 = vrot.slane %v3078, 5
      %v3081 = vsel %vm255, %v3076, %v3080
      %v3083 = vshrl.u32 %v3030, 16
      %v3085 = vrot.slane %v3083, 4
      %v3086 = vshll.u32 %v3030, 16
      %v3088 = vrot.slane %v3086, 5
      %v3089 = vor.u32 %v3085, %v3088
      %v3090 = vrot.slane %v3089, 4
      %v3092 = vshll.u32 %v3031, 16
      %v3094 = vrot.slane %v3092, 5
      %v3095 = vsel %vm255, %v3090, %v3094
      %v3097 = vshrl.u32 %v3032, 16
      %v3099 = vrot.slane %v3097, 4
      %v3100 = vshll.u32 %v3032, 16
      %v3102 = vrot.slane %v3100, 5
      %v3103 = vor.u32 %v3099, %v3102
      %v3104 = vrot.slane %v3103, 4
      %v3106 = vshll.u32 %v3033, 16
      %v3108 = vrot.slane %v3106, 5
      %v3109 = vsel %vm255, %v3104, %v3108
      %v3111 = vshrl.u32 %v3034, 16
      %v3113 = vrot.slane %v3111, 4
      %v3114 = vshll.u32 %v3034, 16
      %v3116 = vrot.slane %v3114, 5
      %v3117 = vor.u32 %v3113, %v3116
      %v3118 = vrot.slane %v3117, 4
      %v3120 = vshll.u32 %v3035, 16
      %v3122 = vrot.slane %v3120, 5
      %v3123 = vsel %vm255, %v3118, %v3122
      %v3125 = vshrl.u32 %v3036, 16
      %v3127 = vrot.slane %v3125, 4
      %v3128 = vshll.u32 %v3036, 16
      %v3130 = vrot.slane %v3128, 5
      %v3131 = vor.u32 %v3127, %v3130
      %v3132 = vrot.slane %v3131, 4
      %v3134 = vshll.u32 %v3037, 16
      %v3136 = vrot.slane %v3134, 5
      %v3137 = vsel %vm255, %v3132, %v3136
      %v3139 = vshrl.u32 %v3038, 16
      %v3141 = vrot.slane %v3139, 4
      %v3142 = vshll.u32 %v3038, 16
      %v3144 = vrot.slane %v3142, 5
      %v3145 = vor.u32 %v3141, %v3144
      %v3146 = vrot.slane %v3145, 4
      %v3148 = vshll.u32 %v3039, 16
      %v3150 = vrot.slane %v3148, 5
      %v3151 = vsel %vm255, %v3146, %v3150
      %s3152 = scalar_lea.vmem %s1, 832
      %v3153 = vld [vmem:[%s3152] sm:$0xf]
      %v3154 = vld [vmem:[%s3152 + $0x4] sm:$0xf]
      %v3155 = vld [vmem:[%s3152 + $0x8] sm:$0xf]
      %v3156 = vld [vmem:[%s3152 + $0xc] sm:$0xf]
      %v3157 = vld [vmem:[%s3152 + $0x10] sm:$0xf]
      %v3158 = vld [vmem:[%s3152 + $0x14] sm:$0xf]
      %v3159 = vld [vmem:[%s3152 + $0x18] sm:$0xf]
      %v3160 = vld [vmem:[%s3152 + $0x1c] sm:$0xf]
      %v3161 = vld [vmem:[%s3152 + $0x20] sm:$0xf]
      %v3162 = vld [vmem:[%s3152 + $0x24] sm:$0xf]
      %v3163 = vld [vmem:[%s3152 + $0x28] sm:$0xf]
      %v3164 = vld [vmem:[%s3152 + $0x2c] sm:$0xf]
      %v3165 = vld [vmem:[%s3152 + $0x30] sm:$0xf]
      %v3166 = vld [vmem:[%s3152 + $0x34] sm:$0xf]
      %v3167 = vld [vmem:[%s3152 + $0x38] sm:$0xf]
      %v3168 = vld [vmem:[%s3152 + $0x3c] sm:$0xf]
      %v3169 = vunpack.c.l.b16 %v3053
      %v3170 = vunpack.c.l.b16 %v3067
      %v3171 = vunpack.c.l.b16 %v3081
      %v3172 = vunpack.c.l.b16 %v3095
      %v3173 = vunpack.c.l.b16 %v3109
      %v3174 = vunpack.c.l.b16 %v3123
      %v3175 = vunpack.c.l.b16 %v3137
      %v3176 = vunpack.c.l.b16 %v3151
      %v3177 = vpack.c.b16 %v3170, %v3169
      %v3178 = vpack.c.b16 %v3172, %v3171
      %v3179 = vpack.c.b16 %v3174, %v3173
      %v3180 = vpack.c.b16 %v3176, %v3175
      %v3201 = vunpack.c.l.b16 %v3153
      %v3202 = vunpack.c.l.b16 %v3154
      %v3203 = vunpack.c.l.b16 %v3155
      %v3204 = vunpack.c.l.b16 %v3156
      %v3205 = vunpack.c.l.b16 %v3157
      %v3206 = vunpack.c.l.b16 %v3158
      %v3207 = vunpack.c.l.b16 %v3159
      %v3208 = vunpack.c.l.b16 %v3160
      %v3209 = vunpack.c.l.b16 %v3161
      %v3210 = vunpack.c.l.b16 %v3162
      %v3211 = vunpack.c.l.b16 %v3163
      %v3212 = vunpack.c.l.b16 %v3164
      %v3213 = vunpack.c.l.b16 %v3165
      %v3214 = vunpack.c.l.b16 %v3166
      %v3215 = vunpack.c.l.b16 %v3167
      %v3216 = vunpack.c.l.b16 %v3168
      %v3217 = vpack.c.b16 %v3202, %v3201
      %v3218 = vpack.c.b16 %v3204, %v3203
      %v3219 = vpack.c.b16 %v3206, %v3205
      %v3220 = vpack.c.b16 %v3208, %v3207
      %v3221 = vpack.c.b16 %v3210, %v3209
      %v3222 = vpack.c.b16 %v3212, %v3211
      %v3223 = vpack.c.b16 %v3214, %v3213
      %v3224 = vpack.c.b16 %v3216, %v3215
      %3233 = vmatprep.subr.bf16.mxu0 0
      %3234 = vmatpush1.bf16.msra.mxu0 %v3224
      %3235 = vmatprep.subr.bf16.mxu0 0
      %3236 = vmatpush1.bf16.msra.mxu0 %v3223
      %3237 = vmatprep.subr.bf16.mxu0 0
      %3238 = vmatpush1.bf16.msra.mxu0 %v3222
      %3239 = vmatprep.subr.bf16.mxu0 0
      %3240 = vmatpush1.bf16.msra.mxu0 %v3221
      %3241 = vmatprep.subr.bf16.mxu0 0
      %3242 = vmatpush1.bf16.msra.mxu0 %v3220
      %3243 = vmatprep.subr.bf16.mxu0 0
      %3244 = vmatpush1.bf16.msra.mxu0 %v3219
      %3245 = vmatprep.subr.bf16.mxu0 0
      %3246 = vmatpush1.bf16.msra.mxu0 %v3218
      %3247 = vmatprep.subr.bf16.mxu0 0
      %3248 = vmatpush1.bf16.msra.mxu0 %v3217
      %3249 = vmatprep.subr.bf16.mxu0 0
      %3250 = vmatpush2.bf16.msra.mxu0 0
      %3251 = vmatprep.subr.bf16.mxu0 0
      %3252 = vmatpush2.bf16.msra.mxu0 0
      %3253 = vmatprep.subr.bf16.mxu0 0
      %3254 = vmatpush2.bf16.msra.mxu0 0
      %3255 = vmatprep.subr.bf16.mxu0 0
      %3256 = vmatpush2.bf16.msra.mxu0 0
      %3257 = vmatprep.subr.bf16.mxu0 0
      %3258 = vmatpush2.bf16.msra.mxu0 0
      %3259 = vmatprep.subr.bf16.mxu0 0
      %3260 = vmatpush2.bf16.msra.mxu0 0
      %3261 = vmatprep.subr.bf16.mxu0 0
      %3262 = vmatpush2.bf16.msra.mxu0 0
      %3263 = vmatprep.subr.bf16.mxu0 0
      %3264 = vmatpush2.bf16.msra.mxu0 0
      %3265 = vmatprep.mubr.bf16.mxu0 0
      %3266 = vmatmul.mubr.bf16.gmra.mxu0 %v3177
      %v3267 = vpop.f32.mrf.mxu0
      %v3268 = vadd.f32 0.0, %v3267
      %v3269 = vpop.f32.mrf.mxu0
      %v3270 = vpop.f32.mrf.mxu0
      %v3271 = vadd.f32 0.0, %v3270
      %v3272 = vpop.f32.mrf.mxu0
      %3273 = vmatprep.mubr.bf16.mxu0 0
      %3274 = vmatmul.mubr.bf16.gmra.mxu0 %v3178
      %v3275 = vpop.f32.mrf.mxu0
      %v3276 = vadd.f32 0.0, %v3275
      %v3277 = vpop.f32.mrf.mxu0
      %v3278 = vpop.f32.mrf.mxu0
      %v3279 = vadd.f32 0.0, %v3278
      %v3280 = vpop.f32.mrf.mxu0
      %3281 = vmatprep.mubr.bf16.mxu0 0
      %3282 = vmatmul.mubr.bf16.gmra.mxu0 %v3179
      %v3283 = vpop.f32.mrf.mxu0
      %v3284 = vadd.f32 0.0, %v3283
      %v3285 = vpop.f32.mrf.mxu0
      %v3286 = vpop.f32.mrf.mxu0
      %v3287 = vadd.f32 0.0, %v3286
      %v3288 = vpop.f32.mrf.mxu0
      %3289 = vmatprep.mubr.bf16.mxu0 0
      %3290 = vmatmul.mubr.bf16.gmra.mxu0 %v3180
      %v3291 = vpop.f32.mrf.mxu0
      %v3292 = vadd.f32 0.0, %v3291
      %v3293 = vpop.f32.mrf.mxu0
      %v3294 = vpop.f32.mrf.mxu0
      %v3295 = vadd.f32 0.0, %v3294
      %v3296 = vpop.f32.mrf.mxu0
      %3297 = vdwg.mxu0
      %v3298 = vadd.f32 %v3016, %v3268
      %v3299 = vadd.f32 %v3017, %v3271
      %v3300 = vadd.f32 %v3018, %v3276
      %v3301 = vadd.f32 %v3019, %v3279
      %v3302 = vadd.f32 %v3020, %v3284
      %v3303 = vadd.f32 %v3021, %v3287
      %v3304 = vadd.f32 %v3022, %v3292
      %v3305 = vadd.f32 %v3023, %v3295
      %v3306 = vld [vmem:[%s2853] sm:$0xe]
      %v3307 = vld [vmem:[%s2853 + $0x8] sm:$0xe]
      %v3308 = vld [vmem:[%s2853 + $0x10] sm:$0xe]
      %v3309 = vld [vmem:[%s2853 + $0x18] sm:$0xe]
      %v3310 = vld [vmem:[%s2853 + $0x20] sm:$0xe]
      %v3311 = vld [vmem:[%s2853 + $0x28] sm:$0xe]
      %v3312 = vld [vmem:[%s2853 + $0x30] sm:$0xe]
      %v3313 = vld [vmem:[%s2853 + $0x38] sm:$0xe]
      %v3330 = vrot.slane %v3306, 5
      %v3331 = vrot.slane %v3330, 4
      %v3332 = vrot.slane %v3025, 5
      %v3333 = vsel %vm677, %v3331, %v3332
      %v3334 = vrot.slane %v3307, 5
      %v3335 = vrot.slane %v3334, 4
      %v3336 = vrot.slane %v3027, 5
      %v3337 = vsel %vm677, %v3335, %v3336
      %v3338 = vrot.slane %v3308, 5
      %v3339 = vrot.slane %v3338, 4
      %v3340 = vrot.slane %v3029, 5
      %v3341 = vsel %vm677, %v3339, %v3340
      %v3342 = vrot.slane %v3309, 5
      %v3343 = vrot.slane %v3342, 4
      %v3344 = vrot.slane %v3031, 5
      %v3345 = vsel %vm677, %v3343, %v3344
      %v3346 = vrot.slane %v3310, 5
      %v3347 = vrot.slane %v3346, 4
      %v3348 = vrot.slane %v3033, 5
      %v3349 = vsel %vm677, %v3347, %v3348
      %v3350 = vrot.slane %v3311, 5
      %v3351 = vrot.slane %v3350, 4
      %v3352 = vrot.slane %v3035, 5
      %v3353 = vsel %vm677, %v3351, %v3352
      %v3354 = vrot.slane %v3312, 5
      %v3355 = vrot.slane %v3354, 4
      %v3356 = vrot.slane %v3037, 5
      %v3357 = vsel %vm677, %v3355, %v3356
      %v3358 = vrot.slane %v3313, 5
      %v3359 = vrot.slane %v3358, 4
      %v3360 = vrot.slane %v3039, 5
      %v3361 = vsel %vm677, %v3359, %v3360
      %s3362 = scalar_lea.vmem %s1, 896
      %v3363 = vld [vmem:[%s3362] sm:$0xf]
      %v3364 = vld [vmem:[%s3362 + $0x4] sm:$0xf]
      %v3365 = vld [vmem:[%s3362 + $0x8] sm:$0xf]
      %v3366 = vld [vmem:[%s3362 + $0xc] sm:$0xf]
      %v3367 = vld [vmem:[%s3362 + $0x10] sm:$0xf]
      %v3368 = vld [vmem:[%s3362 + $0x14] sm:$0xf]
      %v3369 = vld [vmem:[%s3362 + $0x18] sm:$0xf]
      %v3370 = vld [vmem:[%s3362 + $0x1c] sm:$0xf]
      %v3371 = vld [vmem:[%s3362 + $0x20] sm:$0xf]
      %v3372 = vld [vmem:[%s3362 + $0x24] sm:$0xf]
      %v3373 = vld [vmem:[%s3362 + $0x28] sm:$0xf]
      %v3374 = vld [vmem:[%s3362 + $0x2c] sm:$0xf]
      %v3375 = vld [vmem:[%s3362 + $0x30] sm:$0xf]
      %v3376 = vld [vmem:[%s3362 + $0x34] sm:$0xf]
      %v3377 = vld [vmem:[%s3362 + $0x38] sm:$0xf]
      %v3378 = vld [vmem:[%s3362 + $0x3c] sm:$0xf]
      %v3379 = vunpack.c.l.b16 %v3333
      %v3380 = vunpack.c.l.b16 %v3337
      %v3381 = vunpack.c.l.b16 %v3341
      %v3382 = vunpack.c.l.b16 %v3345
      %v3383 = vunpack.c.l.b16 %v3349
      %v3384 = vunpack.c.l.b16 %v3353
      %v3385 = vunpack.c.l.b16 %v3357
      %v3386 = vunpack.c.l.b16 %v3361
      %v3387 = vpack.c.b16 %v3380, %v3379
      %v3388 = vpack.c.b16 %v3382, %v3381
      %v3389 = vpack.c.b16 %v3384, %v3383
      %v3390 = vpack.c.b16 %v3386, %v3385
      %v3411 = vunpack.c.l.b16 %v3363
      %v3412 = vunpack.c.l.b16 %v3364
      %v3413 = vunpack.c.l.b16 %v3365
      %v3414 = vunpack.c.l.b16 %v3366
      %v3415 = vunpack.c.l.b16 %v3367
      %v3416 = vunpack.c.l.b16 %v3368
      %v3417 = vunpack.c.l.b16 %v3369
      %v3418 = vunpack.c.l.b16 %v3370
      %v3419 = vunpack.c.l.b16 %v3371
      %v3420 = vunpack.c.l.b16 %v3372
      %v3421 = vunpack.c.l.b16 %v3373
      %v3422 = vunpack.c.l.b16 %v3374
      %v3423 = vunpack.c.l.b16 %v3375
      %v3424 = vunpack.c.l.b16 %v3376
      %v3425 = vunpack.c.l.b16 %v3377
      %v3426 = vunpack.c.l.b16 %v3378
      %v3427 = vpack.c.b16 %v3412, %v3411
      %v3428 = vpack.c.b16 %v3414, %v3413
      %v3429 = vpack.c.b16 %v3416, %v3415
      %v3430 = vpack.c.b16 %v3418, %v3417
      %v3431 = vpack.c.b16 %v3420, %v3419
      %v3432 = vpack.c.b16 %v3422, %v3421
      %v3433 = vpack.c.b16 %v3424, %v3423
      %v3434 = vpack.c.b16 %v3426, %v3425
      %3443 = vmatprep.subr.bf16.mxu0 0
      %3444 = vmatpush1.bf16.msra.mxu0 %v3434
      %3445 = vmatprep.subr.bf16.mxu0 0
      %3446 = vmatpush1.bf16.msra.mxu0 %v3433
      %3447 = vmatprep.subr.bf16.mxu0 0
      %3448 = vmatpush1.bf16.msra.mxu0 %v3432
      %3449 = vmatprep.subr.bf16.mxu0 0
      %3450 = vmatpush1.bf16.msra.mxu0 %v3431
      %3451 = vmatprep.subr.bf16.mxu0 0
      %3452 = vmatpush1.bf16.msra.mxu0 %v3430
      %3453 = vmatprep.subr.bf16.mxu0 0
      %3454 = vmatpush1.bf16.msra.mxu0 %v3429
      %3455 = vmatprep.subr.bf16.mxu0 0
      %3456 = vmatpush1.bf16.msra.mxu0 %v3428
      %3457 = vmatprep.subr.bf16.mxu0 0
      %3458 = vmatpush1.bf16.msra.mxu0 %v3427
      %3459 = vmatprep.subr.bf16.mxu0 0
      %3460 = vmatpush2.bf16.msra.mxu0 0
      %3461 = vmatprep.subr.bf16.mxu0 0
      %3462 = vmatpush2.bf16.msra.mxu0 0
      %3463 = vmatprep.subr.bf16.mxu0 0
      %3464 = vmatpush2.bf16.msra.mxu0 0
      %3465 = vmatprep.subr.bf16.mxu0 0
      %3466 = vmatpush2.bf16.msra.mxu0 0
      %3467 = vmatprep.subr.bf16.mxu0 0
      %3468 = vmatpush2.bf16.msra.mxu0 0
      %3469 = vmatprep.subr.bf16.mxu0 0
      %3470 = vmatpush2.bf16.msra.mxu0 0
      %3471 = vmatprep.subr.bf16.mxu0 0
      %3472 = vmatpush2.bf16.msra.mxu0 0
      %3473 = vmatprep.subr.bf16.mxu0 0
      %3474 = vmatpush2.bf16.msra.mxu0 0
      %3475 = vmatprep.mubr.bf16.mxu0 0
      %3476 = vmatmul.mubr.bf16.gmra.mxu0 %v3387
      %v3477 = vpop.f32.mrf.mxu0
      %v3478 = vadd.f32 0.0, %v3477
      %v3479 = vpop.f32.mrf.mxu0
      %v3480 = vpop.f32.mrf.mxu0
      %v3481 = vadd.f32 0.0, %v3480
      %v3482 = vpop.f32.mrf.mxu0
      %3483 = vmatprep.mubr.bf16.mxu0 0
      %3484 = vmatmul.mubr.bf16.gmra.mxu0 %v3388
      %v3485 = vpop.f32.mrf.mxu0
      %v3486 = vadd.f32 0.0, %v3485
      %v3487 = vpop.f32.mrf.mxu0
      %v3488 = vpop.f32.mrf.mxu0
      %v3489 = vadd.f32 0.0, %v3488
      %v3490 = vpop.f32.mrf.mxu0
      %3491 = vmatprep.mubr.bf16.mxu0 0
      %3492 = vmatmul.mubr.bf16.gmra.mxu0 %v3389
      %v3493 = vpop.f32.mrf.mxu0
      %v3494 = vadd.f32 0.0, %v3493
      %v3495 = vpop.f32.mrf.mxu0
      %v3496 = vpop.f32.mrf.mxu0
      %v3497 = vadd.f32 0.0, %v3496
      %v3498 = vpop.f32.mrf.mxu0
      %3499 = vmatprep.mubr.bf16.mxu0 0
      %3500 = vmatmul.mubr.bf16.gmra.mxu0 %v3390
      %v3501 = vpop.f32.mrf.mxu0
      %v3502 = vadd.f32 0.0, %v3501
      %v3503 = vpop.f32.mrf.mxu0
      %v3504 = vpop.f32.mrf.mxu0
      %v3505 = vadd.f32 0.0, %v3504
      %v3506 = vpop.f32.mrf.mxu0
      %3507 = vdwg.mxu0
      %v3508 = vadd.f32 %v3298, %v3478
      %v3509 = vadd.f32 %v3299, %v3481
      %v3510 = vadd.f32 %v3300, %v3486
      %v3511 = vadd.f32 %v3301, %v3489
      %v3512 = vadd.f32 %v3302, %v3494
      %v3513 = vadd.f32 %v3303, %v3497
      %v3514 = vadd.f32 %v3304, %v3502
      %v3515 = vadd.f32 %v3305, %v3505
      %s3516 = scalar_lea.vmem %s205, 96
      %v3517 = vld [vmem:[%s3516] sm:$0xf]
      %v3518 = vld [vmem:[%s3516 + $0x8] sm:$0xf]
      %v3519 = vld [vmem:[%s3516 + $0x10] sm:$0xf]
      %v3520 = vld [vmem:[%s3516 + $0x18] sm:$0xf]
      %v3521 = vld [vmem:[%s3516 + $0x20] sm:$0xf]
      %v3522 = vld [vmem:[%s3516 + $0x28] sm:$0xf]
      %v3523 = vld [vmem:[%s3516 + $0x30] sm:$0xf]
      %v3524 = vld [vmem:[%s3516 + $0x38] sm:$0xf]
      %s3525 = scalar_lea.vmem %s1, 960
      %v3526 = vld [vmem:[%s3525] sm:$0xf]
      %v3527 = vld [vmem:[%s3525 + $0x4] sm:$0xf]
      %v3528 = vld [vmem:[%s3525 + $0x8] sm:$0xf]
      %v3529 = vld [vmem:[%s3525 + $0xc] sm:$0xf]
      %v3530 = vld [vmem:[%s3525 + $0x10] sm:$0xf]
      %v3531 = vld [vmem:[%s3525 + $0x14] sm:$0xf]
      %v3532 = vld [vmem:[%s3525 + $0x18] sm:$0xf]
      %v3533 = vld [vmem:[%s3525 + $0x1c] sm:$0xf]
      %v3534 = vld [vmem:[%s3525 + $0x20] sm:$0xf]
      %v3535 = vld [vmem:[%s3525 + $0x24] sm:$0xf]
      %v3536 = vld [vmem:[%s3525 + $0x28] sm:$0xf]
      %v3537 = vld [vmem:[%s3525 + $0x2c] sm:$0xf]
      %v3538 = vld [vmem:[%s3525 + $0x30] sm:$0xf]
      %v3539 = vld [vmem:[%s3525 + $0x34] sm:$0xf]
      %v3540 = vld [vmem:[%s3525 + $0x38] sm:$0xf]
      %v3541 = vld [vmem:[%s3525 + $0x3c] sm:$0xf]
      %v3550 = vunpack.c.l.b16 %v3517
      %v3551 = vunpack.c.l.b16 %v3518
      %v3552 = vunpack.c.l.b16 %v3519
      %v3553 = vunpack.c.l.b16 %v3520
      %v3554 = vunpack.c.l.b16 %v3521
      %v3555 = vunpack.c.l.b16 %v3522
      %v3556 = vunpack.c.l.b16 %v3523
      %v3557 = vunpack.c.l.b16 %v3524
      %v3558 = vpack.c.b16 %v3551, %v3550
      %v3559 = vpack.c.b16 %v3553, %v3552
      %v3560 = vpack.c.b16 %v3555, %v3554
      %v3561 = vpack.c.b16 %v3557, %v3556
      %v3582 = vunpack.c.l.b16 %v3526
      %v3583 = vunpack.c.l.b16 %v3527
      %v3584 = vunpack.c.l.b16 %v3528
      %v3585 = vunpack.c.l.b16 %v3529
      %v3586 = vunpack.c.l.b16 %v3530
      %v3587 = vunpack.c.l.b16 %v3531
      %v3588 = vunpack.c.l.b16 %v3532
      %v3589 = vunpack.c.l.b16 %v3533
      %v3590 = vunpack.c.l.b16 %v3534
      %v3591 = vunpack.c.l.b16 %v3535
      %v3592 = vunpack.c.l.b16 %v3536
      %v3593 = vunpack.c.l.b16 %v3537
      %v3594 = vunpack.c.l.b16 %v3538
      %v3595 = vunpack.c.l.b16 %v3539
      %v3596 = vunpack.c.l.b16 %v3540
      %v3597 = vunpack.c.l.b16 %v3541
      %v3598 = vpack.c.b16 %v3583, %v3582
      %v3599 = vpack.c.b16 %v3585, %v3584
      %v3600 = vpack.c.b16 %v3587, %v3586
      %v3601 = vpack.c.b16 %v3589, %v3588
      %v3602 = vpack.c.b16 %v3591, %v3590
      %v3603 = vpack.c.b16 %v3593, %v3592
      %v3604 = vpack.c.b16 %v3595, %v3594
      %v3605 = vpack.c.b16 %v3597, %v3596
      %3614 = vmatprep.subr.bf16.mxu0 0
      %3615 = vmatpush1.bf16.msra.mxu0 %v3605
      %3616 = vmatprep.subr.bf16.mxu0 0
      %3617 = vmatpush1.bf16.msra.mxu0 %v3604
      %3618 = vmatprep.subr.bf16.mxu0 0
      %3619 = vmatpush1.bf16.msra.mxu0 %v3603
      %3620 = vmatprep.subr.bf16.mxu0 0
      %3621 = vmatpush1.bf16.msra.mxu0 %v3602
      %3622 = vmatprep.subr.bf16.mxu0 0
      %3623 = vmatpush1.bf16.msra.mxu0 %v3601
      %3624 = vmatprep.subr.bf16.mxu0 0
      %3625 = vmatpush1.bf16.msra.mxu0 %v3600
      %3626 = vmatprep.subr.bf16.mxu0 0
      %3627 = vmatpush1.bf16.msra.mxu0 %v3599
      %3628 = vmatprep.subr.bf16.mxu0 0
      %3629 = vmatpush1.bf16.msra.mxu0 %v3598
      %3630 = vmatprep.subr.bf16.mxu0 0
      %3631 = vmatpush2.bf16.msra.mxu0 0
      %3632 = vmatprep.subr.bf16.mxu0 0
      %3633 = vmatpush2.bf16.msra.mxu0 0
      %3634 = vmatprep.subr.bf16.mxu0 0
      %3635 = vmatpush2.bf16.msra.mxu0 0
      %3636 = vmatprep.subr.bf16.mxu0 0
      %3637 = vmatpush2.bf16.msra.mxu0 0
      %3638 = vmatprep.subr.bf16.mxu0 0
      %3639 = vmatpush2.bf16.msra.mxu0 0
      %3640 = vmatprep.subr.bf16.mxu0 0
      %3641 = vmatpush2.bf16.msra.mxu0 0
      %3642 = vmatprep.subr.bf16.mxu0 0
      %3643 = vmatpush2.bf16.msra.mxu0 0
      %3644 = vmatprep.subr.bf16.mxu0 0
      %3645 = vmatpush2.bf16.msra.mxu0 0
      %3646 = vmatprep.mubr.bf16.mxu0 0
      %3647 = vmatmul.mubr.bf16.gmra.mxu0 %v3558
      %v3648 = vpop.f32.mrf.mxu0
      %v3649 = vadd.f32 0.0, %v3648
      %v3650 = vpop.f32.mrf.mxu0
      %v3651 = vpop.f32.mrf.mxu0
      %v3652 = vadd.f32 0.0, %v3651
      %v3653 = vpop.f32.mrf.mxu0
      %3654 = vmatprep.mubr.bf16.mxu0 0
      %3655 = vmatmul.mubr.bf16.gmra.mxu0 %v3559
      %v3656 = vpop.f32.mrf.mxu0
      %v3657 = vadd.f32 0.0, %v3656
      %v3658 = vpop.f32.mrf.mxu0
      %v3659 = vpop.f32.mrf.mxu0
      %v3660 = vadd.f32 0.0, %v3659
      %v3661 = vpop.f32.mrf.mxu0
      %3662 = vmatprep.mubr.bf16.mxu0 0
      %3663 = vmatmul.mubr.bf16.gmra.mxu0 %v3560
      %v3664 = vpop.f32.mrf.mxu0
      %v3665 = vadd.f32 0.0, %v3664
      %v3666 = vpop.f32.mrf.mxu0
      %v3667 = vpop.f32.mrf.mxu0
      %v3668 = vadd.f32 0.0, %v3667
      %v3669 = vpop.f32.mrf.mxu0
      %3670 = vmatprep.mubr.bf16.mxu0 0
      %3671 = vmatmul.mubr.bf16.gmra.mxu0 %v3561
      %v3672 = vpop.f32.mrf.mxu0
      %v3673 = vadd.f32 0.0, %v3672
      %v3674 = vpop.f32.mrf.mxu0
      %v3675 = vpop.f32.mrf.mxu0
      %v3676 = vadd.f32 0.0, %v3675
      %v3677 = vpop.f32.mrf.mxu0
      %3678 = vdwg.mxu0
      %v3679 = vadd.f32 %v3508, %v3649
      %v3680 = vadd.f32 %v3509, %v3652
      %v3681 = vadd.f32 %v3510, %v3657
      %v3682 = vadd.f32 %v3511, %v3660
      %v3683 = vadd.f32 %v3512, %v3665
      %v3684 = vadd.f32 %v3513, %v3668
      %v3685 = vadd.f32 %v3514, %v3673
      %v3686 = vadd.f32 %v3515, %v3676
      %v3687 = vld [vmem:[%s3516] sm:$0xf]
      %v3688 = vld [vmem:[%s3516 + $0x4] sm:$0x1]
      %v3689 = vld [vmem:[%s3516 + $0x8] sm:$0xf]
      %v3690 = vld [vmem:[%s3516 + $0xc] sm:$0x1]
      %v3691 = vld [vmem:[%s3516 + $0x10] sm:$0xf]
      %v3692 = vld [vmem:[%s3516 + $0x14] sm:$0x1]
      %v3693 = vld [vmem:[%s3516 + $0x18] sm:$0xf]
      %v3694 = vld [vmem:[%s3516 + $0x1c] sm:$0x1]
      %v3695 = vld [vmem:[%s3516 + $0x20] sm:$0xf]
      %v3696 = vld [vmem:[%s3516 + $0x24] sm:$0x1]
      %v3697 = vld [vmem:[%s3516 + $0x28] sm:$0xf]
      %v3698 = vld [vmem:[%s3516 + $0x2c] sm:$0x1]
      %v3699 = vld [vmem:[%s3516 + $0x30] sm:$0xf]
      %v3700 = vld [vmem:[%s3516 + $0x34] sm:$0x1]
      %v3701 = vld [vmem:[%s3516 + $0x38] sm:$0xf]
      %v3702 = vld [vmem:[%s3516 + $0x3c] sm:$0x1]
      %v3704 = vshrl.u32 %v3687, 16
      %v3706 = vrot.slane %v3704, 4
      %v3707 = vshll.u32 %v3687, 16
      %v3709 = vrot.slane %v3707, 5
      %v3710 = vor.u32 %v3706, %v3709
      %v3711 = vrot.slane %v3710, 4
      %v3713 = vshll.u32 %v3688, 16
      %v3715 = vrot.slane %v3713, 5
      %v3716 = vsel %vm255, %v3711, %v3715
      %v3718 = vshrl.u32 %v3689, 16
      %v3720 = vrot.slane %v3718, 4
      %v3721 = vshll.u32 %v3689, 16
      %v3723 = vrot.slane %v3721, 5
      %v3724 = vor.u32 %v3720, %v3723
      %v3725 = vrot.slane %v3724, 4
      %v3727 = vshll.u32 %v3690, 16
      %v3729 = vrot.slane %v3727, 5
      %v3730 = vsel %vm255, %v3725, %v3729
      %v3732 = vshrl.u32 %v3691, 16
      %v3734 = vrot.slane %v3732, 4
      %v3735 = vshll.u32 %v3691, 16
      %v3737 = vrot.slane %v3735, 5
      %v3738 = vor.u32 %v3734, %v3737
      %v3739 = vrot.slane %v3738, 4
      %v3741 = vshll.u32 %v3692, 16
      %v3743 = vrot.slane %v3741, 5
      %v3744 = vsel %vm255, %v3739, %v3743
      %v3746 = vshrl.u32 %v3693, 16
      %v3748 = vrot.slane %v3746, 4
      %v3749 = vshll.u32 %v3693, 16
      %v3751 = vrot.slane %v3749, 5
      %v3752 = vor.u32 %v3748, %v3751
      %v3753 = vrot.slane %v3752, 4
      %v3755 = vshll.u32 %v3694, 16
      %v3757 = vrot.slane %v3755, 5
      %v3758 = vsel %vm255, %v3753, %v3757
      %v3760 = vshrl.u32 %v3695, 16
      %v3762 = vrot.slane %v3760, 4
      %v3763 = vshll.u32 %v3695, 16
      %v3765 = vrot.slane %v3763, 5
      %v3766 = vor.u32 %v3762, %v3765
      %v3767 = vrot.slane %v3766, 4
      %v3769 = vshll.u32 %v3696, 16
      %v3771 = vrot.slane %v3769, 5
      %v3772 = vsel %vm255, %v3767, %v3771
      %v3774 = vshrl.u32 %v3697, 16
      %v3776 = vrot.slane %v3774, 4
      %v3777 = vshll.u32 %v3697, 16
      %v3779 = vrot.slane %v3777, 5
      %v3780 = vor.u32 %v3776, %v3779
      %v3781 = vrot.slane %v3780, 4
      %v3783 = vshll.u32 %v3698, 16
      %v3785 = vrot.slane %v3783, 5
      %v3786 = vsel %vm255, %v3781, %v3785
      %v3788 = vshrl.u32 %v3699, 16
      %v3790 = vrot.slane %v3788, 4
      %v3791 = vshll.u32 %v3699, 16
      %v3793 = vrot.slane %v3791, 5
      %v3794 = vor.u32 %v3790, %v3793
      %v3795 = vrot.slane %v3794, 4
      %v3797 = vshll.u32 %v3700, 16
      %v3799 = vrot.slane %v3797, 5
      %v3800 = vsel %vm255, %v3795, %v3799
      %v3802 = vshrl.u32 %v3701, 16
      %v3804 = vrot.slane %v3802, 4
      %v3805 = vshll.u32 %v3701, 16
      %v3807 = vrot.slane %v3805, 5
      %v3808 = vor.u32 %v3804, %v3807
      %v3809 = vrot.slane %v3808, 4
      %v3811 = vshll.u32 %v3702, 16
      %v3813 = vrot.slane %v3811, 5
      %v3814 = vsel %vm255, %v3809, %v3813
      %s3815 = scalar_lea.vmem %s1, 1024
      %v3816 = vld [vmem:[%s3815] sm:$0xf]
      %v3817 = vld [vmem:[%s3815 + $0x4] sm:$0xf]
      %v3818 = vld [vmem:[%s3815 + $0x8] sm:$0xf]
      %v3819 = vld [vmem:[%s3815 + $0xc] sm:$0xf]
      %v3820 = vld [vmem:[%s3815 + $0x10] sm:$0xf]
      %v3821 = vld [vmem:[%s3815 + $0x14] sm:$0xf]
      %v3822 = vld [vmem:[%s3815 + $0x18] sm:$0xf]
      %v3823 = vld [vmem:[%s3815 + $0x1c] sm:$0xf]
      %v3824 = vld [vmem:[%s3815 + $0x20] sm:$0xf]
      %v3825 = vld [vmem:[%s3815 + $0x24] sm:$0xf]
      %v3826 = vld [vmem:[%s3815 + $0x28] sm:$0xf]
      %v3827 = vld [vmem:[%s3815 + $0x2c] sm:$0xf]
      %v3828 = vld [vmem:[%s3815 + $0x30] sm:$0xf]
      %v3829 = vld [vmem:[%s3815 + $0x34] sm:$0xf]
      %v3830 = vld [vmem:[%s3815 + $0x38] sm:$0xf]
      %v3831 = vld [vmem:[%s3815 + $0x3c] sm:$0xf]
      %v3832 = vunpack.c.l.b16 %v3716
      %v3833 = vunpack.c.l.b16 %v3730
      %v3834 = vunpack.c.l.b16 %v3744
      %v3835 = vunpack.c.l.b16 %v3758
      %v3836 = vunpack.c.l.b16 %v3772
      %v3837 = vunpack.c.l.b16 %v3786
      %v3838 = vunpack.c.l.b16 %v3800
      %v3839 = vunpack.c.l.b16 %v3814
      %v3840 = vpack.c.b16 %v3833, %v3832
      %v3841 = vpack.c.b16 %v3835, %v3834
      %v3842 = vpack.c.b16 %v3837, %v3836
      %v3843 = vpack.c.b16 %v3839, %v3838
      %v3864 = vunpack.c.l.b16 %v3816
      %v3865 = vunpack.c.l.b16 %v3817
      %v3866 = vunpack.c.l.b16 %v3818
      %v3867 = vunpack.c.l.b16 %v3819
      %v3868 = vunpack.c.l.b16 %v3820
      %v3869 = vunpack.c.l.b16 %v3821
      %v3870 = vunpack.c.l.b16 %v3822
      %v3871 = vunpack.c.l.b16 %v3823
      %v3872 = vunpack.c.l.b16 %v3824
      %v3873 = vunpack.c.l.b16 %v3825
      %v3874 = vunpack.c.l.b16 %v3826
      %v3875 = vunpack.c.l.b16 %v3827
      %v3876 = vunpack.c.l.b16 %v3828
      %v3877 = vunpack.c.l.b16 %v3829
      %v3878 = vunpack.c.l.b16 %v3830
      %v3879 = vunpack.c.l.b16 %v3831
      %v3880 = vpack.c.b16 %v3865, %v3864
      %v3881 = vpack.c.b16 %v3867, %v3866
      %v3882 = vpack.c.b16 %v3869, %v3868
      %v3883 = vpack.c.b16 %v3871, %v3870
      %v3884 = vpack.c.b16 %v3873, %v3872
      %v3885 = vpack.c.b16 %v3875, %v3874
      %v3886 = vpack.c.b16 %v3877, %v3876
      %v3887 = vpack.c.b16 %v3879, %v3878
      %3896 = vmatprep.subr.bf16.mxu0 0
      %3897 = vmatpush1.bf16.msra.mxu0 %v3887
      %3898 = vmatprep.subr.bf16.mxu0 0
      %3899 = vmatpush1.bf16.msra.mxu0 %v3886
      %3900 = vmatprep.subr.bf16.mxu0 0
      %3901 = vmatpush1.bf16.msra.mxu0 %v3885
      %3902 = vmatprep.subr.bf16.mxu0 0
      %3903 = vmatpush1.bf16.msra.mxu0 %v3884
      %3904 = vmatprep.subr.bf16.mxu0 0
      %3905 = vmatpush1.bf16.msra.mxu0 %v3883
      %3906 = vmatprep.subr.bf16.mxu0 0
      %3907 = vmatpush1.bf16.msra.mxu0 %v3882
      %3908 = vmatprep.subr.bf16.mxu0 0
      %3909 = vmatpush1.bf16.msra.mxu0 %v3881
      %3910 = vmatprep.subr.bf16.mxu0 0
      %3911 = vmatpush1.bf16.msra.mxu0 %v3880
      %3912 = vmatprep.subr.bf16.mxu0 0
      %3913 = vmatpush2.bf16.msra.mxu0 0
      %3914 = vmatprep.subr.bf16.mxu0 0
      %3915 = vmatpush2.bf16.msra.mxu0 0
      %3916 = vmatprep.subr.bf16.mxu0 0
      %3917 = vmatpush2.bf16.msra.mxu0 0
      %3918 = vmatprep.subr.bf16.mxu0 0
      %3919 = vmatpush2.bf16.msra.mxu0 0
      %3920 = vmatprep.subr.bf16.mxu0 0
      %3921 = vmatpush2.bf16.msra.mxu0 0
      %3922 = vmatprep.subr.bf16.mxu0 0
      %3923 = vmatpush2.bf16.msra.mxu0 0
      %3924 = vmatprep.subr.bf16.mxu0 0
      %3925 = vmatpush2.bf16.msra.mxu0 0
      %3926 = vmatprep.subr.bf16.mxu0 0
      %3927 = vmatpush2.bf16.msra.mxu0 0
      %3928 = vmatprep.mubr.bf16.mxu0 0
      %3929 = vmatmul.mubr.bf16.gmra.mxu0 %v3840
      %v3930 = vpop.f32.mrf.mxu0
      %v3931 = vadd.f32 0.0, %v3930
      %v3932 = vpop.f32.mrf.mxu0
      %v3933 = vpop.f32.mrf.mxu0
      %v3934 = vadd.f32 0.0, %v3933
      %v3935 = vpop.f32.mrf.mxu0
      %3936 = vmatprep.mubr.bf16.mxu0 0
      %3937 = vmatmul.mubr.bf16.gmra.mxu0 %v3841
      %v3938 = vpop.f32.mrf.mxu0
      %v3939 = vadd.f32 0.0, %v3938
      %v3940 = vpop.f32.mrf.mxu0
      %v3941 = vpop.f32.mrf.mxu0
      %v3942 = vadd.f32 0.0, %v3941
      %v3943 = vpop.f32.mrf.mxu0
      %3944 = vmatprep.mubr.bf16.mxu0 0
      %3945 = vmatmul.mubr.bf16.gmra.mxu0 %v3842
      %v3946 = vpop.f32.mrf.mxu0
      %v3947 = vadd.f32 0.0, %v3946
      %v3948 = vpop.f32.mrf.mxu0
      %v3949 = vpop.f32.mrf.mxu0
      %v3950 = vadd.f32 0.0, %v3949
      %v3951 = vpop.f32.mrf.mxu0
      %3952 = vmatprep.mubr.bf16.mxu0 0
      %3953 = vmatmul.mubr.bf16.gmra.mxu0 %v3843
      %v3954 = vpop.f32.mrf.mxu0
      %v3955 = vadd.f32 0.0, %v3954
      %v3956 = vpop.f32.mrf.mxu0
      %v3957 = vpop.f32.mrf.mxu0
      %v3958 = vadd.f32 0.0, %v3957
      %v3959 = vpop.f32.mrf.mxu0
      %3960 = vdwg.mxu0
      %v3961 = vadd.f32 %v3679, %v3931
      %v3962 = vadd.f32 %v3680, %v3934
      %v3963 = vadd.f32 %v3681, %v3939
      %v3964 = vadd.f32 %v3682, %v3942
      %v3965 = vadd.f32 %v3683, %v3947
      %v3966 = vadd.f32 %v3684, %v3950
      %v3967 = vadd.f32 %v3685, %v3955
      %v3968 = vadd.f32 %v3686, %v3958
      %v3969 = vld [vmem:[%s3516] sm:$0xe]
      %v3970 = vld [vmem:[%s3516 + $0x8] sm:$0xe]
      %v3971 = vld [vmem:[%s3516 + $0x10] sm:$0xe]
      %v3972 = vld [vmem:[%s3516 + $0x18] sm:$0xe]
      %v3973 = vld [vmem:[%s3516 + $0x20] sm:$0xe]
      %v3974 = vld [vmem:[%s3516 + $0x28] sm:$0xe]
      %v3975 = vld [vmem:[%s3516 + $0x30] sm:$0xe]
      %v3976 = vld [vmem:[%s3516 + $0x38] sm:$0xe]
      %v3993 = vrot.slane %v3969, 5
      %v3994 = vrot.slane %v3993, 4
      %v3995 = vrot.slane %v3688, 5
      %v3996 = vsel %vm677, %v3994, %v3995
      %v3997 = vrot.slane %v3970, 5
      %v3998 = vrot.slane %v3997, 4
      %v3999 = vrot.slane %v3690, 5
      %v4000 = vsel %vm677, %v3998, %v3999
      %v4001 = vrot.slane %v3971, 5
      %v4002 = vrot.slane %v4001, 4
      %v4003 = vrot.slane %v3692, 5
      %v4004 = vsel %vm677, %v4002, %v4003
      %v4005 = vrot.slane %v3972, 5
      %v4006 = vrot.slane %v4005, 4
      %v4007 = vrot.slane %v3694, 5
      %v4008 = vsel %vm677, %v4006, %v4007
      %v4009 = vrot.slane %v3973, 5
      %v4010 = vrot.slane %v4009, 4
      %v4011 = vrot.slane %v3696, 5
      %v4012 = vsel %vm677, %v4010, %v4011
      %v4013 = vrot.slane %v3974, 5
      %v4014 = vrot.slane %v4013, 4
      %v4015 = vrot.slane %v3698, 5
      %v4016 = vsel %vm677, %v4014, %v4015
      %v4017 = vrot.slane %v3975, 5
      %v4018 = vrot.slane %v4017, 4
      %v4019 = vrot.slane %v3700, 5
      %v4020 = vsel %vm677, %v4018, %v4019
      %v4021 = vrot.slane %v3976, 5
      %v4022 = vrot.slane %v4021, 4
      %v4023 = vrot.slane %v3702, 5
      %v4024 = vsel %vm677, %v4022, %v4023
      %s4025 = scalar_lea.vmem %s1, 1088
      %v4026 = vld [vmem:[%s4025] sm:$0xf]
      %v4027 = vld [vmem:[%s4025 + $0x4] sm:$0xf]
      %v4028 = vld [vmem:[%s4025 + $0x8] sm:$0xf]
      %v4029 = vld [vmem:[%s4025 + $0xc] sm:$0xf]
      %v4030 = vld [vmem:[%s4025 + $0x10] sm:$0xf]
      %v4031 = vld [vmem:[%s4025 + $0x14] sm:$0xf]
      %v4032 = vld [vmem:[%s4025 + $0x18] sm:$0xf]
      %v4033 = vld [vmem:[%s4025 + $0x1c] sm:$0xf]
      %v4034 = vld [vmem:[%s4025 + $0x20] sm:$0xf]
      %v4035 = vld [vmem:[%s4025 + $0x24] sm:$0xf]
      %v4036 = vld [vmem:[%s4025 + $0x28] sm:$0xf]
      %v4037 = vld [vmem:[%s4025 + $0x2c] sm:$0xf]
      %v4038 = vld [vmem:[%s4025 + $0x30] sm:$0xf]
      %v4039 = vld [vmem:[%s4025 + $0x34] sm:$0xf]
      %v4040 = vld [vmem:[%s4025 + $0x38] sm:$0xf]
      %v4041 = vld [vmem:[%s4025 + $0x3c] sm:$0xf]
      %v4042 = vunpack.c.l.b16 %v3996
      %v4043 = vunpack.c.l.b16 %v4000
      %v4044 = vunpack.c.l.b16 %v4004
      %v4045 = vunpack.c.l.b16 %v4008
      %v4046 = vunpack.c.l.b16 %v4012
      %v4047 = vunpack.c.l.b16 %v4016
      %v4048 = vunpack.c.l.b16 %v4020
      %v4049 = vunpack.c.l.b16 %v4024
      %v4050 = vpack.c.b16 %v4043, %v4042
      %v4051 = vpack.c.b16 %v4045, %v4044
      %v4052 = vpack.c.b16 %v4047, %v4046
      %v4053 = vpack.c.b16 %v4049, %v4048
      %v4074 = vunpack.c.l.b16 %v4026
      %v4075 = vunpack.c.l.b16 %v4027
      %v4076 = vunpack.c.l.b16 %v4028
      %v4077 = vunpack.c.l.b16 %v4029
      %v4078 = vunpack.c.l.b16 %v4030
      %v4079 = vunpack.c.l.b16 %v4031
      %v4080 = vunpack.c.l.b16 %v4032
      %v4081 = vunpack.c.l.b16 %v4033
      %v4082 = vunpack.c.l.b16 %v4034
      %v4083 = vunpack.c.l.b16 %v4035
      %v4084 = vunpack.c.l.b16 %v4036
      %v4085 = vunpack.c.l.b16 %v4037
      %v4086 = vunpack.c.l.b16 %v4038
      %v4087 = vunpack.c.l.b16 %v4039
      %v4088 = vunpack.c.l.b16 %v4040
      %v4089 = vunpack.c.l.b16 %v4041
      %v4090 = vpack.c.b16 %v4075, %v4074
      %v4091 = vpack.c.b16 %v4077, %v4076
      %v4092 = vpack.c.b16 %v4079, %v4078
      %v4093 = vpack.c.b16 %v4081, %v4080
      %v4094 = vpack.c.b16 %v4083, %v4082
      %v4095 = vpack.c.b16 %v4085, %v4084
      %v4096 = vpack.c.b16 %v4087, %v4086
      %v4097 = vpack.c.b16 %v4089, %v4088
      %4106 = vmatprep.subr.bf16.mxu0 0
      %4107 = vmatpush1.bf16.msra.mxu0 %v4097
      %4108 = vmatprep.subr.bf16.mxu0 0
      %4109 = vmatpush1.bf16.msra.mxu0 %v4096
      %4110 = vmatprep.subr.bf16.mxu0 0
      %4111 = vmatpush1.bf16.msra.mxu0 %v4095
      %4112 = vmatprep.subr.bf16.mxu0 0
      %4113 = vmatpush1.bf16.msra.mxu0 %v4094
      %4114 = vmatprep.subr.bf16.mxu0 0
      %4115 = vmatpush1.bf16.msra.mxu0 %v4093
      %4116 = vmatprep.subr.bf16.mxu0 0
      %4117 = vmatpush1.bf16.msra.mxu0 %v4092
      %4118 = vmatprep.subr.bf16.mxu0 0
      %4119 = vmatpush1.bf16.msra.mxu0 %v4091
      %4120 = vmatprep.subr.bf16.mxu0 0
      %4121 = vmatpush1.bf16.msra.mxu0 %v4090
      %4122 = vmatprep.subr.bf16.mxu0 0
      %4123 = vmatpush2.bf16.msra.mxu0 0
      %4124 = vmatprep.subr.bf16.mxu0 0
      %4125 = vmatpush2.bf16.msra.mxu0 0
      %4126 = vmatprep.subr.bf16.mxu0 0
      %4127 = vmatpush2.bf16.msra.mxu0 0
      %4128 = vmatprep.subr.bf16.mxu0 0
      %4129 = vmatpush2.bf16.msra.mxu0 0
      %4130 = vmatprep.subr.bf16.mxu0 0
      %4131 = vmatpush2.bf16.msra.mxu0 0
      %4132 = vmatprep.subr.bf16.mxu0 0
      %4133 = vmatpush2.bf16.msra.mxu0 0
      %4134 = vmatprep.subr.bf16.mxu0 0
      %4135 = vmatpush2.bf16.msra.mxu0 0
      %4136 = vmatprep.subr.bf16.mxu0 0
      %4137 = vmatpush2.bf16.msra.mxu0 0
      %4138 = vmatprep.mubr.bf16.mxu0 0
      %4139 = vmatmul.mubr.bf16.gmra.mxu0 %v4050
      %v4140 = vpop.f32.mrf.mxu0
      %v4141 = vadd.f32 0.0, %v4140
      %v4142 = vpop.f32.mrf.mxu0
      %v4143 = vpop.f32.mrf.mxu0
      %v4144 = vadd.f32 0.0, %v4143
      %v4145 = vpop.f32.mrf.mxu0
      %4146 = vmatprep.mubr.bf16.mxu0 0
      %4147 = vmatmul.mubr.bf16.gmra.mxu0 %v4051
      %v4148 = vpop.f32.mrf.mxu0
      %v4149 = vadd.f32 0.0, %v4148
      %v4150 = vpop.f32.mrf.mxu0
      %v4151 = vpop.f32.mrf.mxu0
      %v4152 = vadd.f32 0.0, %v4151
      %v4153 = vpop.f32.mrf.mxu0
      %4154 = vmatprep.mubr.bf16.mxu0 0
      %4155 = vmatmul.mubr.bf16.gmra.mxu0 %v4052
      %v4156 = vpop.f32.mrf.mxu0
      %v4157 = vadd.f32 0.0, %v4156
      %v4158 = vpop.f32.mrf.mxu0
      %v4159 = vpop.f32.mrf.mxu0
      %v4160 = vadd.f32 0.0, %v4159
      %v4161 = vpop.f32.mrf.mxu0
      %4162 = vmatprep.mubr.bf16.mxu0 0
      %4163 = vmatmul.mubr.bf16.gmra.mxu0 %v4053
      %v4164 = vpop.f32.mrf.mxu0
      %v4165 = vadd.f32 0.0, %v4164
      %v4166 = vpop.f32.mrf.mxu0
      %v4167 = vpop.f32.mrf.mxu0
      %v4168 = vadd.f32 0.0, %v4167
      %v4169 = vpop.f32.mrf.mxu0
      %4170 = vdwg.mxu0
      %v4171 = vadd.f32 %v3961, %v4141
      %v4172 = vadd.f32 %v3962, %v4144
      %v4173 = vadd.f32 %v3963, %v4149
      %v4174 = vadd.f32 %v3964, %v4152
      %v4175 = vadd.f32 %v3965, %v4157
      %v4176 = vadd.f32 %v3966, %v4160
      %v4177 = vadd.f32 %v3967, %v4165
      %v4178 = vadd.f32 %v3968, %v4168
      %s4179 = scalar_lea.vmem %s205, 160
      %v4180 = vld [vmem:[%s4179] sm:$0xf]
      %v4181 = vld [vmem:[%s4179 + $0x8] sm:$0xf]
      %v4182 = vld [vmem:[%s4179 + $0x10] sm:$0xf]
      %v4183 = vld [vmem:[%s4179 + $0x18] sm:$0xf]
      %v4184 = vld [vmem:[%s4179 + $0x20] sm:$0xf]
      %v4185 = vld [vmem:[%s4179 + $0x28] sm:$0xf]
      %v4186 = vld [vmem:[%s4179 + $0x30] sm:$0xf]
      %v4187 = vld [vmem:[%s4179 + $0x38] sm:$0xf]
      %s4188 = scalar_lea.vmem %s1, 1152
      %v4189 = vld [vmem:[%s4188] sm:$0xf]
      %v4190 = vld [vmem:[%s4188 + $0x4] sm:$0xf]
      %v4191 = vld [vmem:[%s4188 + $0x8] sm:$0xf]
      %v4192 = vld [vmem:[%s4188 + $0xc] sm:$0xf]
      %v4193 = vld [vmem:[%s4188 + $0x10] sm:$0xf]
      %v4194 = vld [vmem:[%s4188 + $0x14] sm:$0xf]
      %v4195 = vld [vmem:[%s4188 + $0x18] sm:$0xf]
      %v4196 = vld [vmem:[%s4188 + $0x1c] sm:$0xf]
      %v4197 = vld [vmem:[%s4188 + $0x20] sm:$0xf]
      %v4198 = vld [vmem:[%s4188 + $0x24] sm:$0xf]
      %v4199 = vld [vmem:[%s4188 + $0x28] sm:$0xf]
      %v4200 = vld [vmem:[%s4188 + $0x2c] sm:$0xf]
      %v4201 = vld [vmem:[%s4188 + $0x30] sm:$0xf]
      %v4202 = vld [vmem:[%s4188 + $0x34] sm:$0xf]
      %v4203 = vld [vmem:[%s4188 + $0x38] sm:$0xf]
      %v4204 = vld [vmem:[%s4188 + $0x3c] sm:$0xf]
      %v4213 = vunpack.c.l.b16 %v4180
      %v4214 = vunpack.c.l.b16 %v4181
      %v4215 = vunpack.c.l.b16 %v4182
      %v4216 = vunpack.c.l.b16 %v4183
      %v4217 = vunpack.c.l.b16 %v4184
      %v4218 = vunpack.c.l.b16 %v4185
      %v4219 = vunpack.c.l.b16 %v4186
      %v4220 = vunpack.c.l.b16 %v4187
      %v4221 = vpack.c.b16 %v4214, %v4213
      %v4222 = vpack.c.b16 %v4216, %v4215
      %v4223 = vpack.c.b16 %v4218, %v4217
      %v4224 = vpack.c.b16 %v4220, %v4219
      %v4245 = vunpack.c.l.b16 %v4189
      %v4246 = vunpack.c.l.b16 %v4190
      %v4247 = vunpack.c.l.b16 %v4191
      %v4248 = vunpack.c.l.b16 %v4192
      %v4249 = vunpack.c.l.b16 %v4193
      %v4250 = vunpack.c.l.b16 %v4194
      %v4251 = vunpack.c.l.b16 %v4195
      %v4252 = vunpack.c.l.b16 %v4196
      %v4253 = vunpack.c.l.b16 %v4197
      %v4254 = vunpack.c.l.b16 %v4198
      %v4255 = vunpack.c.l.b16 %v4199
      %v4256 = vunpack.c.l.b16 %v4200
      %v4257 = vunpack.c.l.b16 %v4201
      %v4258 = vunpack.c.l.b16 %v4202
      %v4259 = vunpack.c.l.b16 %v4203
      %v4260 = vunpack.c.l.b16 %v4204
      %v4261 = vpack.c.b16 %v4246, %v4245
      %v4262 = vpack.c.b16 %v4248, %v4247
      %v4263 = vpack.c.b16 %v4250, %v4249
      %v4264 = vpack.c.b16 %v4252, %v4251
      %v4265 = vpack.c.b16 %v4254, %v4253
      %v4266 = vpack.c.b16 %v4256, %v4255
      %v4267 = vpack.c.b16 %v4258, %v4257
      %v4268 = vpack.c.b16 %v4260, %v4259
      %4277 = vmatprep.subr.bf16.mxu0 0
      %4278 = vmatpush1.bf16.msra.mxu0 %v4268
      %4279 = vmatprep.subr.bf16.mxu0 0
      %4280 = vmatpush1.bf16.msra.mxu0 %v4267
      %4281 = vmatprep.subr.bf16.mxu0 0
      %4282 = vmatpush1.bf16.msra.mxu0 %v4266
      %4283 = vmatprep.subr.bf16.mxu0 0
      %4284 = vmatpush1.bf16.msra.mxu0 %v4265
      %4285 = vmatprep.subr.bf16.mxu0 0
      %4286 = vmatpush1.bf16.msra.mxu0 %v4264
      %4287 = vmatprep.subr.bf16.mxu0 0
      %4288 = vmatpush1.bf16.msra.mxu0 %v4263
      %4289 = vmatprep.subr.bf16.mxu0 0
      %4290 = vmatpush1.bf16.msra.mxu0 %v4262
      %4291 = vmatprep.subr.bf16.mxu0 0
      %4292 = vmatpush1.bf16.msra.mxu0 %v4261
      %4293 = vmatprep.subr.bf16.mxu0 0
      %4294 = vmatpush2.bf16.msra.mxu0 0
      %4295 = vmatprep.subr.bf16.mxu0 0
      %4296 = vmatpush2.bf16.msra.mxu0 0
      %4297 = vmatprep.subr.bf16.mxu0 0
      %4298 = vmatpush2.bf16.msra.mxu0 0
      %4299 = vmatprep.subr.bf16.mxu0 0
      %4300 = vmatpush2.bf16.msra.mxu0 0
      %4301 = vmatprep.subr.bf16.mxu0 0
      %4302 = vmatpush2.bf16.msra.mxu0 0
      %4303 = vmatprep.subr.bf16.mxu0 0
      %4304 = vmatpush2.bf16.msra.mxu0 0
      %4305 = vmatprep.subr.bf16.mxu0 0
      %4306 = vmatpush2.bf16.msra.mxu0 0
      %4307 = vmatprep.subr.bf16.mxu0 0
      %4308 = vmatpush2.bf16.msra.mxu0 0
      %4309 = vmatprep.mubr.bf16.mxu0 0
      %4310 = vmatmul.mubr.bf16.gmra.mxu0 %v4221
      %v4311 = vpop.f32.mrf.mxu0
      %v4312 = vadd.f32 0.0, %v4311
      %v4313 = vpop.f32.mrf.mxu0
      %v4314 = vpop.f32.mrf.mxu0
      %v4315 = vadd.f32 0.0, %v4314
      %v4316 = vpop.f32.mrf.mxu0
      %4317 = vmatprep.mubr.bf16.mxu0 0
      %4318 = vmatmul.mubr.bf16.gmra.mxu0 %v4222
      %v4319 = vpop.f32.mrf.mxu0
      %v4320 = vadd.f32 0.0, %v4319
      %v4321 = vpop.f32.mrf.mxu0
      %v4322 = vpop.f32.mrf.mxu0
      %v4323 = vadd.f32 0.0, %v4322
      %v4324 = vpop.f32.mrf.mxu0
      %4325 = vmatprep.mubr.bf16.mxu0 0
      %4326 = vmatmul.mubr.bf16.gmra.mxu0 %v4223
      %v4327 = vpop.f32.mrf.mxu0
      %v4328 = vadd.f32 0.0, %v4327
      %v4329 = vpop.f32.mrf.mxu0
      %v4330 = vpop.f32.mrf.mxu0
      %v4331 = vadd.f32 0.0, %v4330
      %v4332 = vpop.f32.mrf.mxu0
      %4333 = vmatprep.mubr.bf16.mxu0 0
      %4334 = vmatmul.mubr.bf16.gmra.mxu0 %v4224
      %v4335 = vpop.f32.mrf.mxu0
      %v4336 = vadd.f32 0.0, %v4335
      %v4337 = vpop.f32.mrf.mxu0
      %v4338 = vpop.f32.mrf.mxu0
      %v4339 = vadd.f32 0.0, %v4338
      %v4340 = vpop.f32.mrf.mxu0
      %4341 = vdwg.mxu0
      %v4342 = vadd.f32 %v4171, %v4312
      %v4343 = vadd.f32 %v4172, %v4315
      %v4344 = vadd.f32 %v4173, %v4320
      %v4345 = vadd.f32 %v4174, %v4323
      %v4346 = vadd.f32 %v4175, %v4328
      %v4347 = vadd.f32 %v4176, %v4331
      %v4348 = vadd.f32 %v4177, %v4336
      %v4349 = vadd.f32 %v4178, %v4339
      %v4350 = vld [vmem:[%s4179] sm:$0xf]
      %v4351 = vld [vmem:[%s4179 + $0x4] sm:$0x1]
      %v4352 = vld [vmem:[%s4179 + $0x8] sm:$0xf]
      %v4353 = vld [vmem:[%s4179 + $0xc] sm:$0x1]
      %v4354 = vld [vmem:[%s4179 + $0x10] sm:$0xf]
      %v4355 = vld [vmem:[%s4179 + $0x14] sm:$0x1]
      %v4356 = vld [vmem:[%s4179 + $0x18] sm:$0xf]
      %v4357 = vld [vmem:[%s4179 + $0x1c] sm:$0x1]
      %v4358 = vld [vmem:[%s4179 + $0x20] sm:$0xf]
      %v4359 = vld [vmem:[%s4179 + $0x24] sm:$0x1]
      %v4360 = vld [vmem:[%s4179 + $0x28] sm:$0xf]
      %v4361 = vld [vmem:[%s4179 + $0x2c] sm:$0x1]
      %v4362 = vld [vmem:[%s4179 + $0x30] sm:$0xf]
      %v4363 = vld [vmem:[%s4179 + $0x34] sm:$0x1]
      %v4364 = vld [vmem:[%s4179 + $0x38] sm:$0xf]
      %v4365 = vld [vmem:[%s4179 + $0x3c] sm:$0x1]
      %v4367 = vshrl.u32 %v4350, 16
      %v4369 = vrot.slane %v4367, 4
      %v4370 = vshll.u32 %v4350, 16
      %v4372 = vrot.slane %v4370, 5
      %v4373 = vor.u32 %v4369, %v4372
      %v4374 = vrot.slane %v4373, 4
      %v4376 = vshll.u32 %v4351, 16
      %v4378 = vrot.slane %v4376, 5
      %v4379 = vsel %vm255, %v4374, %v4378
      %v4381 = vshrl.u32 %v4352, 16
      %v4383 = vrot.slane %v4381, 4
      %v4384 = vshll.u32 %v4352, 16
      %v4386 = vrot.slane %v4384, 5
      %v4387 = vor.u32 %v4383, %v4386
      %v4388 = vrot.slane %v4387, 4
      %v4390 = vshll.u32 %v4353, 16
      %v4392 = vrot.slane %v4390, 5
      %v4393 = vsel %vm255, %v4388, %v4392
      %v4395 = vshrl.u32 %v4354, 16
      %v4397 = vrot.slane %v4395, 4
      %v4398 = vshll.u32 %v4354, 16
      %v4400 = vrot.slane %v4398, 5
      %v4401 = vor.u32 %v4397, %v4400
      %v4402 = vrot.slane %v4401, 4
      %v4404 = vshll.u32 %v4355, 16
      %v4406 = vrot.slane %v4404, 5
      %v4407 = vsel %vm255, %v4402, %v4406
      %v4409 = vshrl.u32 %v4356, 16
      %v4411 = vrot.slane %v4409, 4
      %v4412 = vshll.u32 %v4356, 16
      %v4414 = vrot.slane %v4412, 5
      %v4415 = vor.u32 %v4411, %v4414
      %v4416 = vrot.slane %v4415, 4
      %v4418 = vshll.u32 %v4357, 16
      %v4420 = vrot.slane %v4418, 5
      %v4421 = vsel %vm255, %v4416, %v4420
      %v4423 = vshrl.u32 %v4358, 16
      %v4425 = vrot.slane %v4423, 4
      %v4426 = vshll.u32 %v4358, 16
      %v4428 = vrot.slane %v4426, 5
      %v4429 = vor.u32 %v4425, %v4428
      %v4430 = vrot.slane %v4429, 4
      %v4432 = vshll.u32 %v4359, 16
      %v4434 = vrot.slane %v4432, 5
      %v4435 = vsel %vm255, %v4430, %v4434
      %v4437 = vshrl.u32 %v4360, 16
      %v4439 = vrot.slane %v4437, 4
      %v4440 = vshll.u32 %v4360, 16
      %v4442 = vrot.slane %v4440, 5
      %v4443 = vor.u32 %v4439, %v4442
      %v4444 = vrot.slane %v4443, 4
      %v4446 = vshll.u32 %v4361, 16
      %v4448 = vrot.slane %v4446, 5
      %v4449 = vsel %vm255, %v4444, %v4448
      %v4451 = vshrl.u32 %v4362, 16
      %v4453 = vrot.slane %v4451, 4
      %v4454 = vshll.u32 %v4362, 16
      %v4456 = vrot.slane %v4454, 5
      %v4457 = vor.u32 %v4453, %v4456
      %v4458 = vrot.slane %v4457, 4
      %v4460 = vshll.u32 %v4363, 16
      %v4462 = vrot.slane %v4460, 5
      %v4463 = vsel %vm255, %v4458, %v4462
      %v4465 = vshrl.u32 %v4364, 16
      %v4467 = vrot.slane %v4465, 4
      %v4468 = vshll.u32 %v4364, 16
      %v4470 = vrot.slane %v4468, 5
      %v4471 = vor.u32 %v4467, %v4470
      %v4472 = vrot.slane %v4471, 4
      %v4474 = vshll.u32 %v4365, 16
      %v4476 = vrot.slane %v4474, 5
      %v4477 = vsel %vm255, %v4472, %v4476
      %s4478 = scalar_lea.vmem %s1, 1216
      %v4479 = vld [vmem:[%s4478] sm:$0xf]
      %v4480 = vld [vmem:[%s4478 + $0x4] sm:$0xf]
      %v4481 = vld [vmem:[%s4478 + $0x8] sm:$0xf]
      %v4482 = vld [vmem:[%s4478 + $0xc] sm:$0xf]
      %v4483 = vld [vmem:[%s4478 + $0x10] sm:$0xf]
      %v4484 = vld [vmem:[%s4478 + $0x14] sm:$0xf]
      %v4485 = vld [vmem:[%s4478 + $0x18] sm:$0xf]
      %v4486 = vld [vmem:[%s4478 + $0x1c] sm:$0xf]
      %v4487 = vld [vmem:[%s4478 + $0x20] sm:$0xf]
      %v4488 = vld [vmem:[%s4478 + $0x24] sm:$0xf]
      %v4489 = vld [vmem:[%s4478 + $0x28] sm:$0xf]
      %v4490 = vld [vmem:[%s4478 + $0x2c] sm:$0xf]
      %v4491 = vld [vmem:[%s4478 + $0x30] sm:$0xf]
      %v4492 = vld [vmem:[%s4478 + $0x34] sm:$0xf]
      %v4493 = vld [vmem:[%s4478 + $0x38] sm:$0xf]
      %v4494 = vld [vmem:[%s4478 + $0x3c] sm:$0xf]
      %v4495 = vunpack.c.l.b16 %v4379
      %v4496 = vunpack.c.l.b16 %v4393
      %v4497 = vunpack.c.l.b16 %v4407
      %v4498 = vunpack.c.l.b16 %v4421
      %v4499 = vunpack.c.l.b16 %v4435
      %v4500 = vunpack.c.l.b16 %v4449
      %v4501 = vunpack.c.l.b16 %v4463
      %v4502 = vunpack.c.l.b16 %v4477
      %v4503 = vpack.c.b16 %v4496, %v4495
      %v4504 = vpack.c.b16 %v4498, %v4497
      %v4505 = vpack.c.b16 %v4500, %v4499
      %v4506 = vpack.c.b16 %v4502, %v4501
      %v4527 = vunpack.c.l.b16 %v4479
      %v4528 = vunpack.c.l.b16 %v4480
      %v4529 = vunpack.c.l.b16 %v4481
      %v4530 = vunpack.c.l.b16 %v4482
      %v4531 = vunpack.c.l.b16 %v4483
      %v4532 = vunpack.c.l.b16 %v4484
      %v4533 = vunpack.c.l.b16 %v4485
      %v4534 = vunpack.c.l.b16 %v4486
      %v4535 = vunpack.c.l.b16 %v4487
      %v4536 = vunpack.c.l.b16 %v4488
      %v4537 = vunpack.c.l.b16 %v4489
      %v4538 = vunpack.c.l.b16 %v4490
      %v4539 = vunpack.c.l.b16 %v4491
      %v4540 = vunpack.c.l.b16 %v4492
      %v4541 = vunpack.c.l.b16 %v4493
      %v4542 = vunpack.c.l.b16 %v4494
      %v4543 = vpack.c.b16 %v4528, %v4527
      %v4544 = vpack.c.b16 %v4530, %v4529
      %v4545 = vpack.c.b16 %v4532, %v4531
      %v4546 = vpack.c.b16 %v4534, %v4533
      %v4547 = vpack.c.b16 %v4536, %v4535
      %v4548 = vpack.c.b16 %v4538, %v4537
      %v4549 = vpack.c.b16 %v4540, %v4539
      %v4550 = vpack.c.b16 %v4542, %v4541
      %4559 = vmatprep.subr.bf16.mxu0 0
      %4560 = vmatpush1.bf16.msra.mxu0 %v4550
      %4561 = vmatprep.subr.bf16.mxu0 0
      %4562 = vmatpush1.bf16.msra.mxu0 %v4549
      %4563 = vmatprep.subr.bf16.mxu0 0
      %4564 = vmatpush1.bf16.msra.mxu0 %v4548
      %4565 = vmatprep.subr.bf16.mxu0 0
      %4566 = vmatpush1.bf16.msra.mxu0 %v4547
      %4567 = vmatprep.subr.bf16.mxu0 0
      %4568 = vmatpush1.bf16.msra.mxu0 %v4546
      %4569 = vmatprep.subr.bf16.mxu0 0
      %4570 = vmatpush1.bf16.msra.mxu0 %v4545
      %4571 = vmatprep.subr.bf16.mxu0 0
      %4572 = vmatpush1.bf16.msra.mxu0 %v4544
      %4573 = vmatprep.subr.bf16.mxu0 0
      %4574 = vmatpush1.bf16.msra.mxu0 %v4543
      %4575 = vmatprep.subr.bf16.mxu0 0
      %4576 = vmatpush2.bf16.msra.mxu0 0
      %4577 = vmatprep.subr.bf16.mxu0 0
      %4578 = vmatpush2.bf16.msra.mxu0 0
      %4579 = vmatprep.subr.bf16.mxu0 0
      %4580 = vmatpush2.bf16.msra.mxu0 0
      %4581 = vmatprep.subr.bf16.mxu0 0
      %4582 = vmatpush2.bf16.msra.mxu0 0
      %4583 = vmatprep.subr.bf16.mxu0 0
      %4584 = vmatpush2.bf16.msra.mxu0 0
      %4585 = vmatprep.subr.bf16.mxu0 0
      %4586 = vmatpush2.bf16.msra.mxu0 0
      %4587 = vmatprep.subr.bf16.mxu0 0
      %4588 = vmatpush2.bf16.msra.mxu0 0
      %4589 = vmatprep.subr.bf16.mxu0 0
      %4590 = vmatpush2.bf16.msra.mxu0 0
      %4591 = vmatprep.mubr.bf16.mxu0 0
      %4592 = vmatmul.mubr.bf16.gmra.mxu0 %v4503
      %v4593 = vpop.f32.mrf.mxu0
      %v4594 = vadd.f32 0.0, %v4593
      %v4595 = vpop.f32.mrf.mxu0
      %v4596 = vpop.f32.mrf.mxu0
      %v4597 = vadd.f32 0.0, %v4596
      %v4598 = vpop.f32.mrf.mxu0
      %4599 = vmatprep.mubr.bf16.mxu0 0
      %4600 = vmatmul.mubr.bf16.gmra.mxu0 %v4504
      %v4601 = vpop.f32.mrf.mxu0
      %v4602 = vadd.f32 0.0, %v4601
      %v4603 = vpop.f32.mrf.mxu0
      %v4604 = vpop.f32.mrf.mxu0
      %v4605 = vadd.f32 0.0, %v4604
      %v4606 = vpop.f32.mrf.mxu0
      %4607 = vmatprep.mubr.bf16.mxu0 0
      %4608 = vmatmul.mubr.bf16.gmra.mxu0 %v4505
      %v4609 = vpop.f32.mrf.mxu0
      %v4610 = vadd.f32 0.0, %v4609
      %v4611 = vpop.f32.mrf.mxu0
      %v4612 = vpop.f32.mrf.mxu0
      %v4613 = vadd.f32 0.0, %v4612
      %v4614 = vpop.f32.mrf.mxu0
      %4615 = vmatprep.mubr.bf16.mxu0 0
      %4616 = vmatmul.mubr.bf16.gmra.mxu0 %v4506
      %v4617 = vpop.f32.mrf.mxu0
      %v4618 = vadd.f32 0.0, %v4617
      %v4619 = vpop.f32.mrf.mxu0
      %v4620 = vpop.f32.mrf.mxu0
      %v4621 = vadd.f32 0.0, %v4620
      %v4622 = vpop.f32.mrf.mxu0
      %4623 = vdwg.mxu0
      %v4624 = vadd.f32 %v4342, %v4594
      %v4625 = vadd.f32 %v4343, %v4597
      %v4626 = vadd.f32 %v4344, %v4602
      %v4627 = vadd.f32 %v4345, %v4605
      %v4628 = vadd.f32 %v4346, %v4610
      %v4629 = vadd.f32 %v4347, %v4613
      %v4630 = vadd.f32 %v4348, %v4618
      %v4631 = vadd.f32 %v4349, %v4621
      %v4632 = vld [vmem:[%s4179] sm:$0xe]
      %v4633 = vld [vmem:[%s4179 + $0x8] sm:$0xe]
      %v4634 = vld [vmem:[%s4179 + $0x10] sm:$0xe]
      %v4635 = vld [vmem:[%s4179 + $0x18] sm:$0xe]
      %v4636 = vld [vmem:[%s4179 + $0x20] sm:$0xe]
      %v4637 = vld [vmem:[%s4179 + $0x28] sm:$0xe]
      %v4638 = vld [vmem:[%s4179 + $0x30] sm:$0xe]
      %v4639 = vld [vmem:[%s4179 + $0x38] sm:$0xe]
      %v4656 = vrot.slane %v4632, 5
      %v4657 = vrot.slane %v4656, 4
      %v4658 = vrot.slane %v4351, 5
      %v4659 = vsel %vm677, %v4657, %v4658
      %v4660 = vrot.slane %v4633, 5
      %v4661 = vrot.slane %v4660, 4
      %v4662 = vrot.slane %v4353, 5
      %v4663 = vsel %vm677, %v4661, %v4662
      %v4664 = vrot.slane %v4634, 5
      %v4665 = vrot.slane %v4664, 4
      %v4666 = vrot.slane %v4355, 5
      %v4667 = vsel %vm677, %v4665, %v4666
      %v4668 = vrot.slane %v4635, 5
      %v4669 = vrot.slane %v4668, 4
      %v4670 = vrot.slane %v4357, 5
      %v4671 = vsel %vm677, %v4669, %v4670
      %v4672 = vrot.slane %v4636, 5
      %v4673 = vrot.slane %v4672, 4
      %v4674 = vrot.slane %v4359, 5
      %v4675 = vsel %vm677, %v4673, %v4674
      %v4676 = vrot.slane %v4637, 5
      %v4677 = vrot.slane %v4676, 4
      %v4678 = vrot.slane %v4361, 5
      %v4679 = vsel %vm677, %v4677, %v4678
      %v4680 = vrot.slane %v4638, 5
      %v4681 = vrot.slane %v4680, 4
      %v4682 = vrot.slane %v4363, 5
      %v4683 = vsel %vm677, %v4681, %v4682
      %v4684 = vrot.slane %v4639, 5
      %v4685 = vrot.slane %v4684, 4
      %v4686 = vrot.slane %v4365, 5
      %v4687 = vsel %vm677, %v4685, %v4686
      %s4688 = scalar_lea.vmem %s1, 1280
      %v4689 = vld [vmem:[%s4688] sm:$0xf]
      %v4690 = vld [vmem:[%s4688 + $0x4] sm:$0xf]
      %v4691 = vld [vmem:[%s4688 + $0x8] sm:$0xf]
      %v4692 = vld [vmem:[%s4688 + $0xc] sm:$0xf]
      %v4693 = vld [vmem:[%s4688 + $0x10] sm:$0xf]
      %v4694 = vld [vmem:[%s4688 + $0x14] sm:$0xf]
      %v4695 = vld [vmem:[%s4688 + $0x18] sm:$0xf]
      %v4696 = vld [vmem:[%s4688 + $0x1c] sm:$0xf]
      %v4697 = vld [vmem:[%s4688 + $0x20] sm:$0xf]
      %v4698 = vld [vmem:[%s4688 + $0x24] sm:$0xf]
      %v4699 = vld [vmem:[%s4688 + $0x28] sm:$0xf]
      %v4700 = vld [vmem:[%s4688 + $0x2c] sm:$0xf]
      %v4701 = vld [vmem:[%s4688 + $0x30] sm:$0xf]
      %v4702 = vld [vmem:[%s4688 + $0x34] sm:$0xf]
      %v4703 = vld [vmem:[%s4688 + $0x38] sm:$0xf]
      %v4704 = vld [vmem:[%s4688 + $0x3c] sm:$0xf]
      %v4705 = vunpack.c.l.b16 %v4659
      %v4706 = vunpack.c.l.b16 %v4663
      %v4707 = vunpack.c.l.b16 %v4667
      %v4708 = vunpack.c.l.b16 %v4671
      %v4709 = vunpack.c.l.b16 %v4675
      %v4710 = vunpack.c.l.b16 %v4679
      %v4711 = vunpack.c.l.b16 %v4683
      %v4712 = vunpack.c.l.b16 %v4687
      %v4713 = vpack.c.b16 %v4706, %v4705
      %v4714 = vpack.c.b16 %v4708, %v4707
      %v4715 = vpack.c.b16 %v4710, %v4709
      %v4716 = vpack.c.b16 %v4712, %v4711
      %v4737 = vunpack.c.l.b16 %v4689
      %v4738 = vunpack.c.l.b16 %v4690
      %v4739 = vunpack.c.l.b16 %v4691
      %v4740 = vunpack.c.l.b16 %v4692
      %v4741 = vunpack.c.l.b16 %v4693
      %v4742 = vunpack.c.l.b16 %v4694
      %v4743 = vunpack.c.l.b16 %v4695
      %v4744 = vunpack.c.l.b16 %v4696
      %v4745 = vunpack.c.l.b16 %v4697
      %v4746 = vunpack.c.l.b16 %v4698
      %v4747 = vunpack.c.l.b16 %v4699
      %v4748 = vunpack.c.l.b16 %v4700
      %v4749 = vunpack.c.l.b16 %v4701
      %v4750 = vunpack.c.l.b16 %v4702
      %v4751 = vunpack.c.l.b16 %v4703
      %v4752 = vunpack.c.l.b16 %v4704
      %v4753 = vpack.c.b16 %v4738, %v4737
      %v4754 = vpack.c.b16 %v4740, %v4739
      %v4755 = vpack.c.b16 %v4742, %v4741
      %v4756 = vpack.c.b16 %v4744, %v4743
      %v4757 = vpack.c.b16 %v4746, %v4745
      %v4758 = vpack.c.b16 %v4748, %v4747
      %v4759 = vpack.c.b16 %v4750, %v4749
      %v4760 = vpack.c.b16 %v4752, %v4751
      %4769 = vmatprep.subr.bf16.mxu0 0
      %4770 = vmatpush1.bf16.msra.mxu0 %v4760
      %4771 = vmatprep.subr.bf16.mxu0 0
      %4772 = vmatpush1.bf16.msra.mxu0 %v4759
      %4773 = vmatprep.subr.bf16.mxu0 0
      %4774 = vmatpush1.bf16.msra.mxu0 %v4758
      %4775 = vmatprep.subr.bf16.mxu0 0
      %4776 = vmatpush1.bf16.msra.mxu0 %v4757
      %4777 = vmatprep.subr.bf16.mxu0 0
      %4778 = vmatpush1.bf16.msra.mxu0 %v4756
      %4779 = vmatprep.subr.bf16.mxu0 0
      %4780 = vmatpush1.bf16.msra.mxu0 %v4755
      %4781 = vmatprep.subr.bf16.mxu0 0
      %4782 = vmatpush1.bf16.msra.mxu0 %v4754
      %4783 = vmatprep.subr.bf16.mxu0 0
      %4784 = vmatpush1.bf16.msra.mxu0 %v4753
      %4785 = vmatprep.subr.bf16.mxu0 0
      %4786 = vmatpush2.bf16.msra.mxu0 0
      %4787 = vmatprep.subr.bf16.mxu0 0
      %4788 = vmatpush2.bf16.msra.mxu0 0
      %4789 = vmatprep.subr.bf16.mxu0 0
      %4790 = vmatpush2.bf16.msra.mxu0 0
      %4791 = vmatprep.subr.bf16.mxu0 0
      %4792 = vmatpush2.bf16.msra.mxu0 0
      %4793 = vmatprep.subr.bf16.mxu0 0
      %4794 = vmatpush2.bf16.msra.mxu0 0
      %4795 = vmatprep.subr.bf16.mxu0 0
      %4796 = vmatpush2.bf16.msra.mxu0 0
      %4797 = vmatprep.subr.bf16.mxu0 0
      %4798 = vmatpush2.bf16.msra.mxu0 0
      %4799 = vmatprep.subr.bf16.mxu0 0
      %4800 = vmatpush2.bf16.msra.mxu0 0
      %4801 = vmatprep.mubr.bf16.mxu0 0
      %4802 = vmatmul.mubr.bf16.gmra.mxu0 %v4713
      %v4803 = vpop.f32.mrf.mxu0
      %v4804 = vadd.f32 0.0, %v4803
      %v4805 = vpop.f32.mrf.mxu0
      %v4806 = vpop.f32.mrf.mxu0
      %v4807 = vadd.f32 0.0, %v4806
      %v4808 = vpop.f32.mrf.mxu0
      %4809 = vmatprep.mubr.bf16.mxu0 0
      %4810 = vmatmul.mubr.bf16.gmra.mxu0 %v4714
      %v4811 = vpop.f32.mrf.mxu0
      %v4812 = vadd.f32 0.0, %v4811
      %v4813 = vpop.f32.mrf.mxu0
      %v4814 = vpop.f32.mrf.mxu0
      %v4815 = vadd.f32 0.0, %v4814
      %v4816 = vpop.f32.mrf.mxu0
      %4817 = vmatprep.mubr.bf16.mxu0 0
      %4818 = vmatmul.mubr.bf16.gmra.mxu0 %v4715
      %v4819 = vpop.f32.mrf.mxu0
      %v4820 = vadd.f32 0.0, %v4819
      %v4821 = vpop.f32.mrf.mxu0
      %v4822 = vpop.f32.mrf.mxu0
      %v4823 = vadd.f32 0.0, %v4822
      %v4824 = vpop.f32.mrf.mxu0
      %4825 = vmatprep.mubr.bf16.mxu0 0
      %4826 = vmatmul.mubr.bf16.gmra.mxu0 %v4716
      %v4827 = vpop.f32.mrf.mxu0
      %v4828 = vadd.f32 0.0, %v4827
      %v4829 = vpop.f32.mrf.mxu0
      %v4830 = vpop.f32.mrf.mxu0
      %v4831 = vadd.f32 0.0, %v4830
      %v4832 = vpop.f32.mrf.mxu0
      %4833 = vdwg.mxu0
      %v4834 = vadd.f32 %v4624, %v4804
      %v4835 = vadd.f32 %v4625, %v4807
      %v4836 = vadd.f32 %v4626, %v4812
      %v4837 = vadd.f32 %v4627, %v4815
      %v4838 = vadd.f32 %v4628, %v4820
      %v4839 = vadd.f32 %v4629, %v4823
      %v4840 = vadd.f32 %v4630, %v4828
      %v4841 = vadd.f32 %v4631, %v4831
      %s4842 = scalar_lea.vmem %s205, 168
      %v4843 = vld [vmem:[%s4842] sm:$0xf]
      %v4844 = vld [vmem:[%s4842 + $0x8] sm:$0xf]
      %v4845 = vld [vmem:[%s4842 + $0x10] sm:$0xf]
      %v4846 = vld [vmem:[%s4842 + $0x18] sm:$0xf]
      %v4847 = vld [vmem:[%s4842 + $0x20] sm:$0xf]
      %v4848 = vld [vmem:[%s4842 + $0x28] sm:$0xf]
      %v4849 = vld [vmem:[%s4842 + $0x30] sm:$0xf]
      %v4850 = vld [vmem:[%s4842 + $0x38] sm:$0xf]
      %s4851 = scalar_lea.vmem %s1, 1344
      %v4852 = vld [vmem:[%s4851] sm:$0xf]
      %v4853 = vld [vmem:[%s4851 + $0x4] sm:$0xf]
      %v4854 = vld [vmem:[%s4851 + $0x8] sm:$0xf]
      %v4855 = vld [vmem:[%s4851 + $0xc] sm:$0xf]
      %v4856 = vld [vmem:[%s4851 + $0x10] sm:$0xf]
      %v4857 = vld [vmem:[%s4851 + $0x14] sm:$0xf]
      %v4858 = vld [vmem:[%s4851 + $0x18] sm:$0xf]
      %v4859 = vld [vmem:[%s4851 + $0x1c] sm:$0xf]
      %v4860 = vld [vmem:[%s4851 + $0x20] sm:$0xf]
      %v4861 = vld [vmem:[%s4851 + $0x24] sm:$0xf]
      %v4862 = vld [vmem:[%s4851 + $0x28] sm:$0xf]
      %v4863 = vld [vmem:[%s4851 + $0x2c] sm:$0xf]
      %v4864 = vld [vmem:[%s4851 + $0x30] sm:$0xf]
      %v4865 = vld [vmem:[%s4851 + $0x34] sm:$0xf]
      %v4866 = vld [vmem:[%s4851 + $0x38] sm:$0xf]
      %v4867 = vld [vmem:[%s4851 + $0x3c] sm:$0xf]
      %v4876 = vunpack.c.l.b16 %v4843
      %v4877 = vunpack.c.l.b16 %v4844
      %v4878 = vunpack.c.l.b16 %v4845
      %v4879 = vunpack.c.l.b16 %v4846
      %v4880 = vunpack.c.l.b16 %v4847
      %v4881 = vunpack.c.l.b16 %v4848
      %v4882 = vunpack.c.l.b16 %v4849
      %v4883 = vunpack.c.l.b16 %v4850
      %v4884 = vpack.c.b16 %v4877, %v4876
      %v4885 = vpack.c.b16 %v4879, %v4878
      %v4886 = vpack.c.b16 %v4881, %v4880
      %v4887 = vpack.c.b16 %v4883, %v4882
      %v4908 = vunpack.c.l.b16 %v4852
      %v4909 = vunpack.c.l.b16 %v4853
      %v4910 = vunpack.c.l.b16 %v4854
      %v4911 = vunpack.c.l.b16 %v4855
      %v4912 = vunpack.c.l.b16 %v4856
      %v4913 = vunpack.c.l.b16 %v4857
      %v4914 = vunpack.c.l.b16 %v4858
      %v4915 = vunpack.c.l.b16 %v4859
      %v4916 = vunpack.c.l.b16 %v4860
      %v4917 = vunpack.c.l.b16 %v4861
      %v4918 = vunpack.c.l.b16 %v4862
      %v4919 = vunpack.c.l.b16 %v4863
      %v4920 = vunpack.c.l.b16 %v4864
      %v4921 = vunpack.c.l.b16 %v4865
      %v4922 = vunpack.c.l.b16 %v4866
      %v4923 = vunpack.c.l.b16 %v4867
      %v4924 = vpack.c.b16 %v4909, %v4908
      %v4925 = vpack.c.b16 %v4911, %v4910
      %v4926 = vpack.c.b16 %v4913, %v4912
      %v4927 = vpack.c.b16 %v4915, %v4914
      %v4928 = vpack.c.b16 %v4917, %v4916
      %v4929 = vpack.c.b16 %v4919, %v4918
      %v4930 = vpack.c.b16 %v4921, %v4920
      %v4931 = vpack.c.b16 %v4923, %v4922
      %4940 = vmatprep.subr.bf16.mxu0 0
      %4941 = vmatpush1.bf16.msra.mxu0 %v4931
      %4942 = vmatprep.subr.bf16.mxu0 0
      %4943 = vmatpush1.bf16.msra.mxu0 %v4930
      %4944 = vmatprep.subr.bf16.mxu0 0
      %4945 = vmatpush1.bf16.msra.mxu0 %v4929
      %4946 = vmatprep.subr.bf16.mxu0 0
      %4947 = vmatpush1.bf16.msra.mxu0 %v4928
      %4948 = vmatprep.subr.bf16.mxu0 0
      %4949 = vmatpush1.bf16.msra.mxu0 %v4927
      %4950 = vmatprep.subr.bf16.mxu0 0
      %4951 = vmatpush1.bf16.msra.mxu0 %v4926
      %4952 = vmatprep.subr.bf16.mxu0 0
      %4953 = vmatpush1.bf16.msra.mxu0 %v4925
      %4954 = vmatprep.subr.bf16.mxu0 0
      %4955 = vmatpush1.bf16.msra.mxu0 %v4924
      %4956 = vmatprep.subr.bf16.mxu0 0
      %4957 = vmatpush2.bf16.msra.mxu0 0
      %4958 = vmatprep.subr.bf16.mxu0 0
      %4959 = vmatpush2.bf16.msra.mxu0 0
      %4960 = vmatprep.subr.bf16.mxu0 0
      %4961 = vmatpush2.bf16.msra.mxu0 0
      %4962 = vmatprep.subr.bf16.mxu0 0
      %4963 = vmatpush2.bf16.msra.mxu0 0
      %4964 = vmatprep.subr.bf16.mxu0 0
      %4965 = vmatpush2.bf16.msra.mxu0 0
      %4966 = vmatprep.subr.bf16.mxu0 0
      %4967 = vmatpush2.bf16.msra.mxu0 0
      %4968 = vmatprep.subr.bf16.mxu0 0
      %4969 = vmatpush2.bf16.msra.mxu0 0
      %4970 = vmatprep.subr.bf16.mxu0 0
      %4971 = vmatpush2.bf16.msra.mxu0 0
      %4972 = vmatprep.mubr.bf16.mxu0 0
      %4973 = vmatmul.mubr.bf16.gmra.mxu0 %v4884
      %v4974 = vpop.f32.mrf.mxu0
      %v4975 = vadd.f32 0.0, %v4974
      %v4976 = vpop.f32.mrf.mxu0
      %v4977 = vpop.f32.mrf.mxu0
      %v4978 = vadd.f32 0.0, %v4977
      %v4979 = vpop.f32.mrf.mxu0
      %4980 = vmatprep.mubr.bf16.mxu0 0
      %4981 = vmatmul.mubr.bf16.gmra.mxu0 %v4885
      %v4982 = vpop.f32.mrf.mxu0
      %v4983 = vadd.f32 0.0, %v4982
      %v4984 = vpop.f32.mrf.mxu0
      %v4985 = vpop.f32.mrf.mxu0
      %v4986 = vadd.f32 0.0, %v4985
      %v4987 = vpop.f32.mrf.mxu0
      %4988 = vmatprep.mubr.bf16.mxu0 0
      %4989 = vmatmul.mubr.bf16.gmra.mxu0 %v4886
      %v4990 = vpop.f32.mrf.mxu0
      %v4991 = vadd.f32 0.0, %v4990
      %v4992 = vpop.f32.mrf.mxu0
      %v4993 = vpop.f32.mrf.mxu0
      %v4994 = vadd.f32 0.0, %v4993
      %v4995 = vpop.f32.mrf.mxu0
      %4996 = vmatprep.mubr.bf16.mxu0 0
      %4997 = vmatmul.mubr.bf16.gmra.mxu0 %v4887
      %v4998 = vpop.f32.mrf.mxu0
      %v4999 = vadd.f32 0.0, %v4998
      %v5000 = vpop.f32.mrf.mxu0
      %v5001 = vpop.f32.mrf.mxu0
      %v5002 = vadd.f32 0.0, %v5001
      %v5003 = vpop.f32.mrf.mxu0
      %5004 = vdwg.mxu0
      %v5005 = vadd.f32 %v4834, %v4975
      %v5006 = vadd.f32 %v4835, %v4978
      %v5007 = vadd.f32 %v4836, %v4983
      %v5008 = vadd.f32 %v4837, %v4986
      %v5009 = vadd.f32 %v4838, %v4991
      %v5010 = vadd.f32 %v4839, %v4994
      %v5011 = vadd.f32 %v4840, %v4999
      %v5012 = vadd.f32 %v4841, %v5002
      %v5013 = vld [vmem:[%s4842] sm:$0xf]
      %v5014 = vld [vmem:[%s4842 + $0x4] sm:$0x1]
      %v5015 = vld [vmem:[%s4842 + $0x8] sm:$0xf]
      %v5016 = vld [vmem:[%s4842 + $0xc] sm:$0x1]
      %v5017 = vld [vmem:[%s4842 + $0x10] sm:$0xf]
      %v5018 = vld [vmem:[%s4842 + $0x14] sm:$0x1]
      %v5019 = vld [vmem:[%s4842 + $0x18] sm:$0xf]
      %v5020 = vld [vmem:[%s4842 + $0x1c] sm:$0x1]
      %v5021 = vld [vmem:[%s4842 + $0x20] sm:$0xf]
      %v5022 = vld [vmem:[%s4842 + $0x24] sm:$0x1]
      %v5023 = vld [vmem:[%s4842 + $0x28] sm:$0xf]
      %v5024 = vld [vmem:[%s4842 + $0x2c] sm:$0x1]
      %v5025 = vld [vmem:[%s4842 + $0x30] sm:$0xf]
      %v5026 = vld [vmem:[%s4842 + $0x34] sm:$0x1]
      %v5027 = vld [vmem:[%s4842 + $0x38] sm:$0xf]
      %v5028 = vld [vmem:[%s4842 + $0x3c] sm:$0x1]
      %v5030 = vshrl.u32 %v5013, 16
      %v5032 = vrot.slane %v5030, 4
      %v5033 = vshll.u32 %v5013, 16
      %v5035 = vrot.slane %v5033, 5
      %v5036 = vor.u32 %v5032, %v5035
      %v5037 = vrot.slane %v5036, 4
      %v5039 = vshll.u32 %v5014, 16
      %v5041 = vrot.slane %v5039, 5
      %v5042 = vsel %vm255, %v5037, %v5041
      %v5044 = vshrl.u32 %v5015, 16
      %v5046 = vrot.slane %v5044, 4
      %v5047 = vshll.u32 %v5015, 16
      %v5049 = vrot.slane %v5047, 5
      %v5050 = vor.u32 %v5046, %v5049
      %v5051 = vrot.slane %v5050, 4
      %v5053 = vshll.u32 %v5016, 16
      %v5055 = vrot.slane %v5053, 5
      %v5056 = vsel %vm255, %v5051, %v5055
      %v5058 = vshrl.u32 %v5017, 16
      %v5060 = vrot.slane %v5058, 4
      %v5061 = vshll.u32 %v5017, 16
      %v5063 = vrot.slane %v5061, 5
      %v5064 = vor.u32 %v5060, %v5063
      %v5065 = vrot.slane %v5064, 4
      %v5067 = vshll.u32 %v5018, 16
      %v5069 = vrot.slane %v5067, 5
      %v5070 = vsel %vm255, %v5065, %v5069
      %v5072 = vshrl.u32 %v5019, 16
      %v5074 = vrot.slane %v5072, 4
      %v5075 = vshll.u32 %v5019, 16
      %v5077 = vrot.slane %v5075, 5
      %v5078 = vor.u32 %v5074, %v5077
      %v5079 = vrot.slane %v5078, 4
      %v5081 = vshll.u32 %v5020, 16
      %v5083 = vrot.slane %v5081, 5
      %v5084 = vsel %vm255, %v5079, %v5083
      %v5086 = vshrl.u32 %v5021, 16
      %v5088 = vrot.slane %v5086, 4
      %v5089 = vshll.u32 %v5021, 16
      %v5091 = vrot.slane %v5089, 5
      %v5092 = vor.u32 %v5088, %v5091
      %v5093 = vrot.slane %v5092, 4
      %v5095 = vshll.u32 %v5022, 16
      %v5097 = vrot.slane %v5095, 5
      %v5098 = vsel %vm255, %v5093, %v5097
      %v5100 = vshrl.u32 %v5023, 16
      %v5102 = vrot.slane %v5100, 4
      %v5103 = vshll.u32 %v5023, 16
      %v5105 = vrot.slane %v5103, 5
      %v5106 = vor.u32 %v5102, %v5105
      %v5107 = vrot.slane %v5106, 4
      %v5109 = vshll.u32 %v5024, 16
      %v5111 = vrot.slane %v5109, 5
      %v5112 = vsel %vm255, %v5107, %v5111
      %v5114 = vshrl.u32 %v5025, 16
      %v5116 = vrot.slane %v5114, 4
      %v5117 = vshll.u32 %v5025, 16
      %v5119 = vrot.slane %v5117, 5
      %v5120 = vor.u32 %v5116, %v5119
      %v5121 = vrot.slane %v5120, 4
      %v5123 = vshll.u32 %v5026, 16
      %v5125 = vrot.slane %v5123, 5
      %v5126 = vsel %vm255, %v5121, %v5125
      %v5128 = vshrl.u32 %v5027, 16
      %v5130 = vrot.slane %v5128, 4
      %v5131 = vshll.u32 %v5027, 16
      %v5133 = vrot.slane %v5131, 5
      %v5134 = vor.u32 %v5130, %v5133
      %v5135 = vrot.slane %v5134, 4
      %v5137 = vshll.u32 %v5028, 16
      %v5139 = vrot.slane %v5137, 5
      %v5140 = vsel %vm255, %v5135, %v5139
      %s5141 = scalar_lea.vmem %s1, 1408
      %v5142 = vld [vmem:[%s5141] sm:$0xf]
      %v5143 = vld [vmem:[%s5141 + $0x4] sm:$0xf]
      %v5144 = vld [vmem:[%s5141 + $0x8] sm:$0xf]
      %v5145 = vld [vmem:[%s5141 + $0xc] sm:$0xf]
      %v5146 = vld [vmem:[%s5141 + $0x10] sm:$0xf]
      %v5147 = vld [vmem:[%s5141 + $0x14] sm:$0xf]
      %v5148 = vld [vmem:[%s5141 + $0x18] sm:$0xf]
      %v5149 = vld [vmem:[%s5141 + $0x1c] sm:$0xf]
      %v5150 = vld [vmem:[%s5141 + $0x20] sm:$0xf]
      %v5151 = vld [vmem:[%s5141 + $0x24] sm:$0xf]
      %v5152 = vld [vmem:[%s5141 + $0x28] sm:$0xf]
      %v5153 = vld [vmem:[%s5141 + $0x2c] sm:$0xf]
      %v5154 = vld [vmem:[%s5141 + $0x30] sm:$0xf]
      %v5155 = vld [vmem:[%s5141 + $0x34] sm:$0xf]
      %v5156 = vld [vmem:[%s5141 + $0x38] sm:$0xf]
      %v5157 = vld [vmem:[%s5141 + $0x3c] sm:$0xf]
      %v5158 = vunpack.c.l.b16 %v5042
      %v5159 = vunpack.c.l.b16 %v5056
      %v5160 = vunpack.c.l.b16 %v5070
      %v5161 = vunpack.c.l.b16 %v5084
      %v5162 = vunpack.c.l.b16 %v5098
      %v5163 = vunpack.c.l.b16 %v5112
      %v5164 = vunpack.c.l.b16 %v5126
      %v5165 = vunpack.c.l.b16 %v5140
      %v5166 = vpack.c.b16 %v5159, %v5158
      %v5167 = vpack.c.b16 %v5161, %v5160
      %v5168 = vpack.c.b16 %v5163, %v5162
      %v5169 = vpack.c.b16 %v5165, %v5164
      %v5190 = vunpack.c.l.b16 %v5142
      %v5191 = vunpack.c.l.b16 %v5143
      %v5192 = vunpack.c.l.b16 %v5144
      %v5193 = vunpack.c.l.b16 %v5145
      %v5194 = vunpack.c.l.b16 %v5146
      %v5195 = vunpack.c.l.b16 %v5147
      %v5196 = vunpack.c.l.b16 %v5148
      %v5197 = vunpack.c.l.b16 %v5149
      %v5198 = vunpack.c.l.b16 %v5150
      %v5199 = vunpack.c.l.b16 %v5151
      %v5200 = vunpack.c.l.b16 %v5152
      %v5201 = vunpack.c.l.b16 %v5153
      %v5202 = vunpack.c.l.b16 %v5154
      %v5203 = vunpack.c.l.b16 %v5155
      %v5204 = vunpack.c.l.b16 %v5156
      %v5205 = vunpack.c.l.b16 %v5157
      %v5206 = vpack.c.b16 %v5191, %v5190
      %v5207 = vpack.c.b16 %v5193, %v5192
      %v5208 = vpack.c.b16 %v5195, %v5194
      %v5209 = vpack.c.b16 %v5197, %v5196
      %v5210 = vpack.c.b16 %v5199, %v5198
      %v5211 = vpack.c.b16 %v5201, %v5200
      %v5212 = vpack.c.b16 %v5203, %v5202
      %v5213 = vpack.c.b16 %v5205, %v5204
      %5222 = vmatprep.subr.bf16.mxu0 0
      %5223 = vmatpush1.bf16.msra.mxu0 %v5213
      %5224 = vmatprep.subr.bf16.mxu0 0
      %5225 = vmatpush1.bf16.msra.mxu0 %v5212
      %5226 = vmatprep.subr.bf16.mxu0 0
      %5227 = vmatpush1.bf16.msra.mxu0 %v5211
      %5228 = vmatprep.subr.bf16.mxu0 0
      %5229 = vmatpush1.bf16.msra.mxu0 %v5210
      %5230 = vmatprep.subr.bf16.mxu0 0
      %5231 = vmatpush1.bf16.msra.mxu0 %v5209
      %5232 = vmatprep.subr.bf16.mxu0 0
      %5233 = vmatpush1.bf16.msra.mxu0 %v5208
      %5234 = vmatprep.subr.bf16.mxu0 0
      %5235 = vmatpush1.bf16.msra.mxu0 %v5207
      %5236 = vmatprep.subr.bf16.mxu0 0
      %5237 = vmatpush1.bf16.msra.mxu0 %v5206
      %5238 = vmatprep.subr.bf16.mxu0 0
      %5239 = vmatpush2.bf16.msra.mxu0 0
      %5240 = vmatprep.subr.bf16.mxu0 0
      %5241 = vmatpush2.bf16.msra.mxu0 0
      %5242 = vmatprep.subr.bf16.mxu0 0
      %5243 = vmatpush2.bf16.msra.mxu0 0
      %5244 = vmatprep.subr.bf16.mxu0 0
      %5245 = vmatpush2.bf16.msra.mxu0 0
      %5246 = vmatprep.subr.bf16.mxu0 0
      %5247 = vmatpush2.bf16.msra.mxu0 0
      %5248 = vmatprep.subr.bf16.mxu0 0
      %5249 = vmatpush2.bf16.msra.mxu0 0
      %5250 = vmatprep.subr.bf16.mxu0 0
      %5251 = vmatpush2.bf16.msra.mxu0 0
      %5252 = vmatprep.subr.bf16.mxu0 0
      %5253 = vmatpush2.bf16.msra.mxu0 0
      %5254 = vmatprep.mubr.bf16.mxu0 0
      %5255 = vmatmul.mubr.bf16.gmra.mxu0 %v5166
      %v5256 = vpop.f32.mrf.mxu0
      %v5257 = vadd.f32 0.0, %v5256
      %v5258 = vpop.f32.mrf.mxu0
      %v5259 = vpop.f32.mrf.mxu0
      %v5260 = vadd.f32 0.0, %v5259
      %v5261 = vpop.f32.mrf.mxu0
      %5262 = vmatprep.mubr.bf16.mxu0 0
      %5263 = vmatmul.mubr.bf16.gmra.mxu0 %v5167
      %v5264 = vpop.f32.mrf.mxu0
      %v5265 = vadd.f32 0.0, %v5264
      %v5266 = vpop.f32.mrf.mxu0
      %v5267 = vpop.f32.mrf.mxu0
      %v5268 = vadd.f32 0.0, %v5267
      %v5269 = vpop.f32.mrf.mxu0
      %5270 = vmatprep.mubr.bf16.mxu0 0
      %5271 = vmatmul.mubr.bf16.gmra.mxu0 %v5168
      %v5272 = vpop.f32.mrf.mxu0
      %v5273 = vadd.f32 0.0, %v5272
      %v5274 = vpop.f32.mrf.mxu0
      %v5275 = vpop.f32.mrf.mxu0
      %v5276 = vadd.f32 0.0, %v5275
      %v5277 = vpop.f32.mrf.mxu0
      %5278 = vmatprep.mubr.bf16.mxu0 0
      %5279 = vmatmul.mubr.bf16.gmra.mxu0 %v5169
      %v5280 = vpop.f32.mrf.mxu0
      %v5281 = vadd.f32 0.0, %v5280
      %v5282 = vpop.f32.mrf.mxu0
      %v5283 = vpop.f32.mrf.mxu0
      %v5284 = vadd.f32 0.0, %v5283
      %v5285 = vpop.f32.mrf.mxu0
      %5286 = vdwg.mxu0
      %v5287 = vadd.f32 %v5005, %v5257
      %v5288 = vadd.f32 %v5006, %v5260
      %v5289 = vadd.f32 %v5007, %v5265
      %v5290 = vadd.f32 %v5008, %v5268
      %v5291 = vadd.f32 %v5009, %v5273
      %v5292 = vadd.f32 %v5010, %v5276
      %v5293 = vadd.f32 %v5011, %v5281
      %v5294 = vadd.f32 %v5012, %v5284
      %v5295 = vld [vmem:[%s4842] sm:$0xe]
      %v5296 = vld [vmem:[%s4842 + $0x8] sm:$0xe]
      %v5297 = vld [vmem:[%s4842 + $0x10] sm:$0xe]
      %v5298 = vld [vmem:[%s4842 + $0x18] sm:$0xe]
      %v5299 = vld [vmem:[%s4842 + $0x20] sm:$0xe]
      %v5300 = vld [vmem:[%s4842 + $0x28] sm:$0xe]
      %v5301 = vld [vmem:[%s4842 + $0x30] sm:$0xe]
      %v5302 = vld [vmem:[%s4842 + $0x38] sm:$0xe]
      %v5319 = vrot.slane %v5295, 5
      %v5320 = vrot.slane %v5319, 4
      %v5321 = vrot.slane %v5014, 5
      %v5322 = vsel %vm677, %v5320, %v5321
      %v5323 = vrot.slane %v5296, 5
      %v5324 = vrot.slane %v5323, 4
      %v5325 = vrot.slane %v5016, 5
      %v5326 = vsel %vm677, %v5324, %v5325
      %v5327 = vrot.slane %v5297, 5
      %v5328 = vrot.slane %v5327, 4
      %v5329 = vrot.slane %v5018, 5
      %v5330 = vsel %vm677, %v5328, %v5329
      %v5331 = vrot.slane %v5298, 5
      %v5332 = vrot.slane %v5331, 4
      %v5333 = vrot.slane %v5020, 5
      %v5334 = vsel %vm677, %v5332, %v5333
      %v5335 = vrot.slane %v5299, 5
      %v5336 = vrot.slane %v5335, 4
      %v5337 = vrot.slane %v5022, 5
      %v5338 = vsel %vm677, %v5336, %v5337
      %v5339 = vrot.slane %v5300, 5
      %v5340 = vrot.slane %v5339, 4
      %v5341 = vrot.slane %v5024, 5
      %v5342 = vsel %vm677, %v5340, %v5341
      %v5343 = vrot.slane %v5301, 5
      %v5344 = vrot.slane %v5343, 4
      %v5345 = vrot.slane %v5026, 5
      %v5346 = vsel %vm677, %v5344, %v5345
      %v5347 = vrot.slane %v5302, 5
      %v5348 = vrot.slane %v5347, 4
      %v5349 = vrot.slane %v5028, 5
      %v5350 = vsel %vm677, %v5348, %v5349
      %s5351 = scalar_lea.vmem %s1, 1472
      %v5352 = vld [vmem:[%s5351] sm:$0xf]
      %v5353 = vld [vmem:[%s5351 + $0x4] sm:$0xf]
      %v5354 = vld [vmem:[%s5351 + $0x8] sm:$0xf]
      %v5355 = vld [vmem:[%s5351 + $0xc] sm:$0xf]
      %v5356 = vld [vmem:[%s5351 + $0x10] sm:$0xf]
      %v5357 = vld [vmem:[%s5351 + $0x14] sm:$0xf]
      %v5358 = vld [vmem:[%s5351 + $0x18] sm:$0xf]
      %v5359 = vld [vmem:[%s5351 + $0x1c] sm:$0xf]
      %v5360 = vld [vmem:[%s5351 + $0x20] sm:$0xf]
      %v5361 = vld [vmem:[%s5351 + $0x24] sm:$0xf]
      %v5362 = vld [vmem:[%s5351 + $0x28] sm:$0xf]
      %v5363 = vld [vmem:[%s5351 + $0x2c] sm:$0xf]
      %v5364 = vld [vmem:[%s5351 + $0x30] sm:$0xf]
      %v5365 = vld [vmem:[%s5351 + $0x34] sm:$0xf]
      %v5366 = vld [vmem:[%s5351 + $0x38] sm:$0xf]
      %v5367 = vld [vmem:[%s5351 + $0x3c] sm:$0xf]
      %v5368 = vunpack.c.l.b16 %v5322
      %v5369 = vunpack.c.l.b16 %v5326
      %v5370 = vunpack.c.l.b16 %v5330
      %v5371 = vunpack.c.l.b16 %v5334
      %v5372 = vunpack.c.l.b16 %v5338
      %v5373 = vunpack.c.l.b16 %v5342
      %v5374 = vunpack.c.l.b16 %v5346
      %v5375 = vunpack.c.l.b16 %v5350
      %v5376 = vpack.c.b16 %v5369, %v5368
      %v5377 = vpack.c.b16 %v5371, %v5370
      %v5378 = vpack.c.b16 %v5373, %v5372
      %v5379 = vpack.c.b16 %v5375, %v5374
      %v5400 = vunpack.c.l.b16 %v5352
      %v5401 = vunpack.c.l.b16 %v5353
      %v5402 = vunpack.c.l.b16 %v5354
      %v5403 = vunpack.c.l.b16 %v5355
      %v5404 = vunpack.c.l.b16 %v5356
      %v5405 = vunpack.c.l.b16 %v5357
      %v5406 = vunpack.c.l.b16 %v5358
      %v5407 = vunpack.c.l.b16 %v5359
      %v5408 = vunpack.c.l.b16 %v5360
      %v5409 = vunpack.c.l.b16 %v5361
      %v5410 = vunpack.c.l.b16 %v5362
      %v5411 = vunpack.c.l.b16 %v5363
      %v5412 = vunpack.c.l.b16 %v5364
      %v5413 = vunpack.c.l.b16 %v5365
      %v5414 = vunpack.c.l.b16 %v5366
      %v5415 = vunpack.c.l.b16 %v5367
      %v5416 = vpack.c.b16 %v5401, %v5400
      %v5417 = vpack.c.b16 %v5403, %v5402
      %v5418 = vpack.c.b16 %v5405, %v5404
      %v5419 = vpack.c.b16 %v5407, %v5406
      %v5420 = vpack.c.b16 %v5409, %v5408
      %v5421 = vpack.c.b16 %v5411, %v5410
      %v5422 = vpack.c.b16 %v5413, %v5412
      %v5423 = vpack.c.b16 %v5415, %v5414
      %5432 = vmatprep.subr.bf16.mxu0 0
      %5433 = vmatpush1.bf16.msra.mxu0 %v5423
      %5434 = vmatprep.subr.bf16.mxu0 0
      %5435 = vmatpush1.bf16.msra.mxu0 %v5422
      %5436 = vmatprep.subr.bf16.mxu0 0
      %5437 = vmatpush1.bf16.msra.mxu0 %v5421
      %5438 = vmatprep.subr.bf16.mxu0 0
      %5439 = vmatpush1.bf16.msra.mxu0 %v5420
      %5440 = vmatprep.subr.bf16.mxu0 0
      %5441 = vmatpush1.bf16.msra.mxu0 %v5419
      %5442 = vmatprep.subr.bf16.mxu0 0
      %5443 = vmatpush1.bf16.msra.mxu0 %v5418
      %5444 = vmatprep.subr.bf16.mxu0 0
      %5445 = vmatpush1.bf16.msra.mxu0 %v5417
      %5446 = vmatprep.subr.bf16.mxu0 0
      %5447 = vmatpush1.bf16.msra.mxu0 %v5416
      %5448 = vmatprep.subr.bf16.mxu0 0
      %5449 = vmatpush2.bf16.msra.mxu0 0
      %5450 = vmatprep.subr.bf16.mxu0 0
      %5451 = vmatpush2.bf16.msra.mxu0 0
      %5452 = vmatprep.subr.bf16.mxu0 0
      %5453 = vmatpush2.bf16.msra.mxu0 0
      %5454 = vmatprep.subr.bf16.mxu0 0
      %5455 = vmatpush2.bf16.msra.mxu0 0
      %5456 = vmatprep.subr.bf16.mxu0 0
      %5457 = vmatpush2.bf16.msra.mxu0 0
      %5458 = vmatprep.subr.bf16.mxu0 0
      %5459 = vmatpush2.bf16.msra.mxu0 0
      %5460 = vmatprep.subr.bf16.mxu0 0
      %5461 = vmatpush2.bf16.msra.mxu0 0
      %5462 = vmatprep.subr.bf16.mxu0 0
      %5463 = vmatpush2.bf16.msra.mxu0 0
      %5464 = vmatprep.mubr.bf16.mxu0 0
      %5465 = vmatmul.mubr.bf16.gmra.mxu0 %v5376
      %v5466 = vpop.f32.mrf.mxu0
      %v5467 = vadd.f32 0.0, %v5466
      %v5468 = vpop.f32.mrf.mxu0
      %v5469 = vpop.f32.mrf.mxu0
      %v5470 = vadd.f32 0.0, %v5469
      %v5471 = vpop.f32.mrf.mxu0
      %5472 = vmatprep.mubr.bf16.mxu0 0
      %5473 = vmatmul.mubr.bf16.gmra.mxu0 %v5377
      %v5474 = vpop.f32.mrf.mxu0
      %v5475 = vadd.f32 0.0, %v5474
      %v5476 = vpop.f32.mrf.mxu0
      %v5477 = vpop.f32.mrf.mxu0
      %v5478 = vadd.f32 0.0, %v5477
      %v5479 = vpop.f32.mrf.mxu0
      %5480 = vmatprep.mubr.bf16.mxu0 0
      %5481 = vmatmul.mubr.bf16.gmra.mxu0 %v5378
      %v5482 = vpop.f32.mrf.mxu0
      %v5483 = vadd.f32 0.0, %v5482
      %v5484 = vpop.f32.mrf.mxu0
      %v5485 = vpop.f32.mrf.mxu0
      %v5486 = vadd.f32 0.0, %v5485
      %v5487 = vpop.f32.mrf.mxu0
      %5488 = vmatprep.mubr.bf16.mxu0 0
      %5489 = vmatmul.mubr.bf16.gmra.mxu0 %v5379
      %v5490 = vpop.f32.mrf.mxu0
      %v5491 = vadd.f32 0.0, %v5490
      %v5492 = vpop.f32.mrf.mxu0
      %v5493 = vpop.f32.mrf.mxu0
      %v5494 = vadd.f32 0.0, %v5493
      %v5495 = vpop.f32.mrf.mxu0
      %5496 = vdwg.mxu0
      %v5497 = vadd.f32 %v5287, %v5467
      %v5498 = vadd.f32 %v5288, %v5470
      %v5499 = vadd.f32 %v5289, %v5475
      %v5500 = vadd.f32 %v5290, %v5478
      %v5501 = vadd.f32 %v5291, %v5483
      %v5502 = vadd.f32 %v5292, %v5486
      %v5503 = vadd.f32 %v5293, %v5491
      %v5504 = vadd.f32 %v5294, %v5494
      %s5505 = scalar_lea.vmem %s205, 176
      %v5506 = vld [vmem:[%s5505] sm:$0xf]
      %v5507 = vld [vmem:[%s5505 + $0x8] sm:$0xf]
      %v5508 = vld [vmem:[%s5505 + $0x10] sm:$0xf]
      %v5509 = vld [vmem:[%s5505 + $0x18] sm:$0xf]
      %v5510 = vld [vmem:[%s5505 + $0x20] sm:$0xf]
      %v5511 = vld [vmem:[%s5505 + $0x28] sm:$0xf]
      %v5512 = vld [vmem:[%s5505 + $0x30] sm:$0xf]
      %v5513 = vld [vmem:[%s5505 + $0x38] sm:$0xf]
      %s5514 = scalar_lea.vmem %s1, 1536
      %v5515 = vld [vmem:[%s5514] sm:$0xf]
      %v5516 = vld [vmem:[%s5514 + $0x4] sm:$0xf]
      %v5517 = vld [vmem:[%s5514 + $0x8] sm:$0xf]
      %v5518 = vld [vmem:[%s5514 + $0xc] sm:$0xf]
      %v5519 = vld [vmem:[%s5514 + $0x10] sm:$0xf]
      %v5520 = vld [vmem:[%s5514 + $0x14] sm:$0xf]
      %v5521 = vld [vmem:[%s5514 + $0x18] sm:$0xf]
      %v5522 = vld [vmem:[%s5514 + $0x1c] sm:$0xf]
      %v5523 = vld [vmem:[%s5514 + $0x20] sm:$0xf]
      %v5524 = vld [vmem:[%s5514 + $0x24] sm:$0xf]
      %v5525 = vld [vmem:[%s5514 + $0x28] sm:$0xf]
      %v5526 = vld [vmem:[%s5514 + $0x2c] sm:$0xf]
      %v5527 = vld [vmem:[%s5514 + $0x30] sm:$0xf]
      %v5528 = vld [vmem:[%s5514 + $0x34] sm:$0xf]
      %v5529 = vld [vmem:[%s5514 + $0x38] sm:$0xf]
      %v5530 = vld [vmem:[%s5514 + $0x3c] sm:$0xf]
      %v5539 = vunpack.c.l.b16 %v5506
      %v5540 = vunpack.c.l.b16 %v5507
      %v5541 = vunpack.c.l.b16 %v5508
      %v5542 = vunpack.c.l.b16 %v5509
      %v5543 = vunpack.c.l.b16 %v5510
      %v5544 = vunpack.c.l.b16 %v5511
      %v5545 = vunpack.c.l.b16 %v5512
      %v5546 = vunpack.c.l.b16 %v5513
      %v5547 = vpack.c.b16 %v5540, %v5539
      %v5548 = vpack.c.b16 %v5542, %v5541
      %v5549 = vpack.c.b16 %v5544, %v5543
      %v5550 = vpack.c.b16 %v5546, %v5545
      %v5571 = vunpack.c.l.b16 %v5515
      %v5572 = vunpack.c.l.b16 %v5516
      %v5573 = vunpack.c.l.b16 %v5517
      %v5574 = vunpack.c.l.b16 %v5518
      %v5575 = vunpack.c.l.b16 %v5519
      %v5576 = vunpack.c.l.b16 %v5520
      %v5577 = vunpack.c.l.b16 %v5521
      %v5578 = vunpack.c.l.b16 %v5522
      %v5579 = vunpack.c.l.b16 %v5523
      %v5580 = vunpack.c.l.b16 %v5524
      %v5581 = vunpack.c.l.b16 %v5525
      %v5582 = vunpack.c.l.b16 %v5526
      %v5583 = vunpack.c.l.b16 %v5527
      %v5584 = vunpack.c.l.b16 %v5528
      %v5585 = vunpack.c.l.b16 %v5529
      %v5586 = vunpack.c.l.b16 %v5530
      %v5587 = vpack.c.b16 %v5572, %v5571
      %v5588 = vpack.c.b16 %v5574, %v5573
      %v5589 = vpack.c.b16 %v5576, %v5575
      %v5590 = vpack.c.b16 %v5578, %v5577
      %v5591 = vpack.c.b16 %v5580, %v5579
      %v5592 = vpack.c.b16 %v5582, %v5581
      %v5593 = vpack.c.b16 %v5584, %v5583
      %v5594 = vpack.c.b16 %v5586, %v5585
      %5603 = vmatprep.subr.bf16.mxu0 0
      %5604 = vmatpush1.bf16.msra.mxu0 %v5594
      %5605 = vmatprep.subr.bf16.mxu0 0
      %5606 = vmatpush1.bf16.msra.mxu0 %v5593
      %5607 = vmatprep.subr.bf16.mxu0 0
      %5608 = vmatpush1.bf16.msra.mxu0 %v5592
      %5609 = vmatprep.subr.bf16.mxu0 0
      %5610 = vmatpush1.bf16.msra.mxu0 %v5591
      %5611 = vmatprep.subr.bf16.mxu0 0
      %5612 = vmatpush1.bf16.msra.mxu0 %v5590
      %5613 = vmatprep.subr.bf16.mxu0 0
      %5614 = vmatpush1.bf16.msra.mxu0 %v5589
      %5615 = vmatprep.subr.bf16.mxu0 0
      %5616 = vmatpush1.bf16.msra.mxu0 %v5588
      %5617 = vmatprep.subr.bf16.mxu0 0
      %5618 = vmatpush1.bf16.msra.mxu0 %v5587
      %5619 = vmatprep.subr.bf16.mxu0 0
      %5620 = vmatpush2.bf16.msra.mxu0 0
      %5621 = vmatprep.subr.bf16.mxu0 0
      %5622 = vmatpush2.bf16.msra.mxu0 0
      %5623 = vmatprep.subr.bf16.mxu0 0
      %5624 = vmatpush2.bf16.msra.mxu0 0
      %5625 = vmatprep.subr.bf16.mxu0 0
      %5626 = vmatpush2.bf16.msra.mxu0 0
      %5627 = vmatprep.subr.bf16.mxu0 0
      %5628 = vmatpush2.bf16.msra.mxu0 0
      %5629 = vmatprep.subr.bf16.mxu0 0
      %5630 = vmatpush2.bf16.msra.mxu0 0
      %5631 = vmatprep.subr.bf16.mxu0 0
      %5632 = vmatpush2.bf16.msra.mxu0 0
      %5633 = vmatprep.subr.bf16.mxu0 0
      %5634 = vmatpush2.bf16.msra.mxu0 0
      %5635 = vmatprep.mubr.bf16.mxu0 0
      %5636 = vmatmul.mubr.bf16.gmra.mxu0 %v5547
      %v5637 = vpop.f32.mrf.mxu0
      %v5638 = vadd.f32 0.0, %v5637
      %v5639 = vpop.f32.mrf.mxu0
      %v5640 = vpop.f32.mrf.mxu0
      %v5641 = vadd.f32 0.0, %v5640
      %v5642 = vpop.f32.mrf.mxu0
      %5643 = vmatprep.mubr.bf16.mxu0 0
      %5644 = vmatmul.mubr.bf16.gmra.mxu0 %v5548
      %v5645 = vpop.f32.mrf.mxu0
      %v5646 = vadd.f32 0.0, %v5645
      %v5647 = vpop.f32.mrf.mxu0
      %v5648 = vpop.f32.mrf.mxu0
      %v5649 = vadd.f32 0.0, %v5648
      %v5650 = vpop.f32.mrf.mxu0
      %5651 = vmatprep.mubr.bf16.mxu0 0
      %5652 = vmatmul.mubr.bf16.gmra.mxu0 %v5549
      %v5653 = vpop.f32.mrf.mxu0
      %v5654 = vadd.f32 0.0, %v5653
      %v5655 = vpop.f32.mrf.mxu0
      %v5656 = vpop.f32.mrf.mxu0
      %v5657 = vadd.f32 0.0, %v5656
      %v5658 = vpop.f32.mrf.mxu0
      %5659 = vmatprep.mubr.bf16.mxu0 0
      %5660 = vmatmul.mubr.bf16.gmra.mxu0 %v5550
      %v5661 = vpop.f32.mrf.mxu0
      %v5662 = vadd.f32 0.0, %v5661
      %v5663 = vpop.f32.mrf.mxu0
      %v5664 = vpop.f32.mrf.mxu0
      %v5665 = vadd.f32 0.0, %v5664
      %v5666 = vpop.f32.mrf.mxu0
      %5667 = vdwg.mxu0
      %v5668 = vadd.f32 %v5497, %v5638
      %v5669 = vadd.f32 %v5498, %v5641
      %v5670 = vadd.f32 %v5499, %v5646
      %v5671 = vadd.f32 %v5500, %v5649
      %v5672 = vadd.f32 %v5501, %v5654
      %v5673 = vadd.f32 %v5502, %v5657
      %v5674 = vadd.f32 %v5503, %v5662
      %v5675 = vadd.f32 %v5504, %v5665
      %v5676 = vld [vmem:[%s5505] sm:$0xf]
      %v5677 = vld [vmem:[%s5505 + $0x4] sm:$0x1]
      %v5678 = vld [vmem:[%s5505 + $0x8] sm:$0xf]
      %v5679 = vld [vmem:[%s5505 + $0xc] sm:$0x1]
      %v5680 = vld [vmem:[%s5505 + $0x10] sm:$0xf]
      %v5681 = vld [vmem:[%s5505 + $0x14] sm:$0x1]
      %v5682 = vld [vmem:[%s5505 + $0x18] sm:$0xf]
      %v5683 = vld [vmem:[%s5505 + $0x1c] sm:$0x1]
      %v5684 = vld [vmem:[%s5505 + $0x20] sm:$0xf]
      %v5685 = vld [vmem:[%s5505 + $0x24] sm:$0x1]
      %v5686 = vld [vmem:[%s5505 + $0x28] sm:$0xf]
      %v5687 = vld [vmem:[%s5505 + $0x2c] sm:$0x1]
      %v5688 = vld [vmem:[%s5505 + $0x30] sm:$0xf]
      %v5689 = vld [vmem:[%s5505 + $0x34] sm:$0x1]
      %v5690 = vld [vmem:[%s5505 + $0x38] sm:$0xf]
      %v5691 = vld [vmem:[%s5505 + $0x3c] sm:$0x1]
      %v5693 = vshrl.u32 %v5676, 16
      %v5695 = vrot.slane %v5693, 4
      %v5696 = vshll.u32 %v5676, 16
      %v5698 = vrot.slane %v5696, 5
      %v5699 = vor.u32 %v5695, %v5698
      %v5700 = vrot.slane %v5699, 4
      %v5702 = vshll.u32 %v5677, 16
      %v5704 = vrot.slane %v5702, 5
      %v5705 = vsel %vm255, %v5700, %v5704
      %v5707 = vshrl.u32 %v5678, 16
      %v5709 = vrot.slane %v5707, 4
      %v5710 = vshll.u32 %v5678, 16
      %v5712 = vrot.slane %v5710, 5
      %v5713 = vor.u32 %v5709, %v5712
      %v5714 = vrot.slane %v5713, 4
      %v5716 = vshll.u32 %v5679, 16
      %v5718 = vrot.slane %v5716, 5
      %v5719 = vsel %vm255, %v5714, %v5718
      %v5721 = vshrl.u32 %v5680, 16
      %v5723 = vrot.slane %v5721, 4
      %v5724 = vshll.u32 %v5680, 16
      %v5726 = vrot.slane %v5724, 5
      %v5727 = vor.u32 %v5723, %v5726
      %v5728 = vrot.slane %v5727, 4
      %v5730 = vshll.u32 %v5681, 16
      %v5732 = vrot.slane %v5730, 5
      %v5733 = vsel %vm255, %v5728, %v5732
      %v5735 = vshrl.u32 %v5682, 16
      %v5737 = vrot.slane %v5735, 4
      %v5738 = vshll.u32 %v5682, 16
      %v5740 = vrot.slane %v5738, 5
      %v5741 = vor.u32 %v5737, %v5740
      %v5742 = vrot.slane %v5741, 4
      %v5744 = vshll.u32 %v5683, 16
      %v5746 = vrot.slane %v5744, 5
      %v5747 = vsel %vm255, %v5742, %v5746
      %v5749 = vshrl.u32 %v5684, 16
      %v5751 = vrot.slane %v5749, 4
      %v5752 = vshll.u32 %v5684, 16
      %v5754 = vrot.slane %v5752, 5
      %v5755 = vor.u32 %v5751, %v5754
      %v5756 = vrot.slane %v5755, 4
      %v5758 = vshll.u32 %v5685, 16
      %v5760 = vrot.slane %v5758, 5
      %v5761 = vsel %vm255, %v5756, %v5760
      %v5763 = vshrl.u32 %v5686, 16
      %v5765 = vrot.slane %v5763, 4
      %v5766 = vshll.u32 %v5686, 16
      %v5768 = vrot.slane %v5766, 5
      %v5769 = vor.u32 %v5765, %v5768
      %v5770 = vrot.slane %v5769, 4
      %v5772 = vshll.u32 %v5687, 16
      %v5774 = vrot.slane %v5772, 5
      %v5775 = vsel %vm255, %v5770, %v5774
      %v5777 = vshrl.u32 %v5688, 16
      %v5779 = vrot.slane %v5777, 4
      %v5780 = vshll.u32 %v5688, 16
      %v5782 = vrot.slane %v5780, 5
      %v5783 = vor.u32 %v5779, %v5782
      %v5784 = vrot.slane %v5783, 4
      %v5786 = vshll.u32 %v5689, 16
      %v5788 = vrot.slane %v5786, 5
      %v5789 = vsel %vm255, %v5784, %v5788
      %v5791 = vshrl.u32 %v5690, 16
      %v5793 = vrot.slane %v5791, 4
      %v5794 = vshll.u32 %v5690, 16
      %v5796 = vrot.slane %v5794, 5
      %v5797 = vor.u32 %v5793, %v5796
      %v5798 = vrot.slane %v5797, 4
      %v5800 = vshll.u32 %v5691, 16
      %v5802 = vrot.slane %v5800, 5
      %v5803 = vsel %vm255, %v5798, %v5802
      %s5804 = scalar_lea.vmem %s1, 1600
      %v5805 = vld [vmem:[%s5804] sm:$0xf]
      %v5806 = vld [vmem:[%s5804 + $0x4] sm:$0xf]
      %v5807 = vld [vmem:[%s5804 + $0x8] sm:$0xf]
      %v5808 = vld [vmem:[%s5804 + $0xc] sm:$0xf]
      %v5809 = vld [vmem:[%s5804 + $0x10] sm:$0xf]
      %v5810 = vld [vmem:[%s5804 + $0x14] sm:$0xf]
      %v5811 = vld [vmem:[%s5804 + $0x18] sm:$0xf]
      %v5812 = vld [vmem:[%s5804 + $0x1c] sm:$0xf]
      %v5813 = vld [vmem:[%s5804 + $0x20] sm:$0xf]
      %v5814 = vld [vmem:[%s5804 + $0x24] sm:$0xf]
      %v5815 = vld [vmem:[%s5804 + $0x28] sm:$0xf]
      %v5816 = vld [vmem:[%s5804 + $0x2c] sm:$0xf]
      %v5817 = vld [vmem:[%s5804 + $0x30] sm:$0xf]
      %v5818 = vld [vmem:[%s5804 + $0x34] sm:$0xf]
      %v5819 = vld [vmem:[%s5804 + $0x38] sm:$0xf]
      %v5820 = vld [vmem:[%s5804 + $0x3c] sm:$0xf]
      %v5821 = vunpack.c.l.b16 %v5705
      %v5822 = vunpack.c.l.b16 %v5719
      %v5823 = vunpack.c.l.b16 %v5733
      %v5824 = vunpack.c.l.b16 %v5747
      %v5825 = vunpack.c.l.b16 %v5761
      %v5826 = vunpack.c.l.b16 %v5775
      %v5827 = vunpack.c.l.b16 %v5789
      %v5828 = vunpack.c.l.b16 %v5803
      %v5829 = vpack.c.b16 %v5822, %v5821
      %v5830 = vpack.c.b16 %v5824, %v5823
      %v5831 = vpack.c.b16 %v5826, %v5825
      %v5832 = vpack.c.b16 %v5828, %v5827
      %v5853 = vunpack.c.l.b16 %v5805
      %v5854 = vunpack.c.l.b16 %v5806
      %v5855 = vunpack.c.l.b16 %v5807
      %v5856 = vunpack.c.l.b16 %v5808
      %v5857 = vunpack.c.l.b16 %v5809
      %v5858 = vunpack.c.l.b16 %v5810
      %v5859 = vunpack.c.l.b16 %v5811
      %v5860 = vunpack.c.l.b16 %v5812
      %v5861 = vunpack.c.l.b16 %v5813
      %v5862 = vunpack.c.l.b16 %v5814
      %v5863 = vunpack.c.l.b16 %v5815
      %v5864 = vunpack.c.l.b16 %v5816
      %v5865 = vunpack.c.l.b16 %v5817
      %v5866 = vunpack.c.l.b16 %v5818
      %v5867 = vunpack.c.l.b16 %v5819
      %v5868 = vunpack.c.l.b16 %v5820
      %v5869 = vpack.c.b16 %v5854, %v5853
      %v5870 = vpack.c.b16 %v5856, %v5855
      %v5871 = vpack.c.b16 %v5858, %v5857
      %v5872 = vpack.c.b16 %v5860, %v5859
      %v5873 = vpack.c.b16 %v5862, %v5861
      %v5874 = vpack.c.b16 %v5864, %v5863
      %v5875 = vpack.c.b16 %v5866, %v5865
      %v5876 = vpack.c.b16 %v5868, %v5867
      %5885 = vmatprep.subr.bf16.mxu0 0
      %5886 = vmatpush1.bf16.msra.mxu0 %v5876
      %5887 = vmatprep.subr.bf16.mxu0 0
      %5888 = vmatpush1.bf16.msra.mxu0 %v5875
      %5889 = vmatprep.subr.bf16.mxu0 0
      %5890 = vmatpush1.bf16.msra.mxu0 %v5874
      %5891 = vmatprep.subr.bf16.mxu0 0
      %5892 = vmatpush1.bf16.msra.mxu0 %v5873
      %5893 = vmatprep.subr.bf16.mxu0 0
      %5894 = vmatpush1.bf16.msra.mxu0 %v5872
      %5895 = vmatprep.subr.bf16.mxu0 0
      %5896 = vmatpush1.bf16.msra.mxu0 %v5871
      %5897 = vmatprep.subr.bf16.mxu0 0
      %5898 = vmatpush1.bf16.msra.mxu0 %v5870
      %5899 = vmatprep.subr.bf16.mxu0 0
      %5900 = vmatpush1.bf16.msra.mxu0 %v5869
      %5901 = vmatprep.subr.bf16.mxu0 0
      %5902 = vmatpush2.bf16.msra.mxu0 0
      %5903 = vmatprep.subr.bf16.mxu0 0
      %5904 = vmatpush2.bf16.msra.mxu0 0
      %5905 = vmatprep.subr.bf16.mxu0 0
      %5906 = vmatpush2.bf16.msra.mxu0 0
      %5907 = vmatprep.subr.bf16.mxu0 0
      %5908 = vmatpush2.bf16.msra.mxu0 0
      %5909 = vmatprep.subr.bf16.mxu0 0
      %5910 = vmatpush2.bf16.msra.mxu0 0
      %5911 = vmatprep.subr.bf16.mxu0 0
      %5912 = vmatpush2.bf16.msra.mxu0 0
      %5913 = vmatprep.subr.bf16.mxu0 0
      %5914 = vmatpush2.bf16.msra.mxu0 0
      %5915 = vmatprep.subr.bf16.mxu0 0
      %5916 = vmatpush2.bf16.msra.mxu0 0
      %5917 = vmatprep.mubr.bf16.mxu0 0
      %5918 = vmatmul.mubr.bf16.gmra.mxu0 %v5829
      %v5919 = vpop.f32.mrf.mxu0
      %v5920 = vadd.f32 0.0, %v5919
      %v5921 = vpop.f32.mrf.mxu0
      %v5922 = vpop.f32.mrf.mxu0
      %v5923 = vadd.f32 0.0, %v5922
      %v5924 = vpop.f32.mrf.mxu0
      %5925 = vmatprep.mubr.bf16.mxu0 0
      %5926 = vmatmul.mubr.bf16.gmra.mxu0 %v5830
      %v5927 = vpop.f32.mrf.mxu0
      %v5928 = vadd.f32 0.0, %v5927
      %v5929 = vpop.f32.mrf.mxu0
      %v5930 = vpop.f32.mrf.mxu0
      %v5931 = vadd.f32 0.0, %v5930
      %v5932 = vpop.f32.mrf.mxu0
      %5933 = vmatprep.mubr.bf16.mxu0 0
      %5934 = vmatmul.mubr.bf16.gmra.mxu0 %v5831
      %v5935 = vpop.f32.mrf.mxu0
      %v5936 = vadd.f32 0.0, %v5935
      %v5937 = vpop.f32.mrf.mxu0
      %v5938 = vpop.f32.mrf.mxu0
      %v5939 = vadd.f32 0.0, %v5938
      %v5940 = vpop.f32.mrf.mxu0
      %5941 = vmatprep.mubr.bf16.mxu0 0
      %5942 = vmatmul.mubr.bf16.gmra.mxu0 %v5832
      %v5943 = vpop.f32.mrf.mxu0
      %v5944 = vadd.f32 0.0, %v5943
      %v5945 = vpop.f32.mrf.mxu0
      %v5946 = vpop.f32.mrf.mxu0
      %v5947 = vadd.f32 0.0, %v5946
      %v5948 = vpop.f32.mrf.mxu0
      %5949 = vdwg.mxu0
      %v5950 = vadd.f32 %v5668, %v5920
      %v5951 = vadd.f32 %v5669, %v5923
      %v5952 = vadd.f32 %v5670, %v5928
      %v5953 = vadd.f32 %v5671, %v5931
      %v5954 = vadd.f32 %v5672, %v5936
      %v5955 = vadd.f32 %v5673, %v5939
      %v5956 = vadd.f32 %v5674, %v5944
      %v5957 = vadd.f32 %v5675, %v5947
      %v5958 = vld [vmem:[%s5505] sm:$0xe]
      %v5959 = vld [vmem:[%s5505 + $0x8] sm:$0xe]
      %v5960 = vld [vmem:[%s5505 + $0x10] sm:$0xe]
      %v5961 = vld [vmem:[%s5505 + $0x18] sm:$0xe]
      %v5962 = vld [vmem:[%s5505 + $0x20] sm:$0xe]
      %v5963 = vld [vmem:[%s5505 + $0x28] sm:$0xe]
      %v5964 = vld [vmem:[%s5505 + $0x30] sm:$0xe]
      %v5965 = vld [vmem:[%s5505 + $0x38] sm:$0xe]
      %v5982 = vrot.slane %v5958, 5
      %v5983 = vrot.slane %v5982, 4
      %v5984 = vrot.slane %v5677, 5
      %v5985 = vsel %vm677, %v5983, %v5984
      %v5986 = vrot.slane %v5959, 5
      %v5987 = vrot.slane %v5986, 4
      %v5988 = vrot.slane %v5679, 5
      %v5989 = vsel %vm677, %v5987, %v5988
      %v5990 = vrot.slane %v5960, 5
      %v5991 = vrot.slane %v5990, 4
      %v5992 = vrot.slane %v5681, 5
      %v5993 = vsel %vm677, %v5991, %v5992
      %v5994 = vrot.slane %v5961, 5
      %v5995 = vrot.slane %v5994, 4
      %v5996 = vrot.slane %v5683, 5
      %v5997 = vsel %vm677, %v5995, %v5996
      %v5998 = vrot.slane %v5962, 5
      %v5999 = vrot.slane %v5998, 4
      %v6000 = vrot.slane %v5685, 5
      %v6001 = vsel %vm677, %v5999, %v6000
      %v6002 = vrot.slane %v5963, 5
      %v6003 = vrot.slane %v6002, 4
      %v6004 = vrot.slane %v5687, 5
      %v6005 = vsel %vm677, %v6003, %v6004
      %v6006 = vrot.slane %v5964, 5
      %v6007 = vrot.slane %v6006, 4
      %v6008 = vrot.slane %v5689, 5
      %v6009 = vsel %vm677, %v6007, %v6008
      %v6010 = vrot.slane %v5965, 5
      %v6011 = vrot.slane %v6010, 4
      %v6012 = vrot.slane %v5691, 5
      %v6013 = vsel %vm677, %v6011, %v6012
      %s6014 = scalar_lea.vmem %s1, 1664
      %v6015 = vld [vmem:[%s6014] sm:$0xf]
      %v6016 = vld [vmem:[%s6014 + $0x4] sm:$0xf]
      %v6017 = vld [vmem:[%s6014 + $0x8] sm:$0xf]
      %v6018 = vld [vmem:[%s6014 + $0xc] sm:$0xf]
      %v6019 = vld [vmem:[%s6014 + $0x10] sm:$0xf]
      %v6020 = vld [vmem:[%s6014 + $0x14] sm:$0xf]
      %v6021 = vld [vmem:[%s6014 + $0x18] sm:$0xf]
      %v6022 = vld [vmem:[%s6014 + $0x1c] sm:$0xf]
      %v6023 = vld [vmem:[%s6014 + $0x20] sm:$0xf]
      %v6024 = vld [vmem:[%s6014 + $0x24] sm:$0xf]
      %v6025 = vld [vmem:[%s6014 + $0x28] sm:$0xf]
      %v6026 = vld [vmem:[%s6014 + $0x2c] sm:$0xf]
      %v6027 = vld [vmem:[%s6014 + $0x30] sm:$0xf]
      %v6028 = vld [vmem:[%s6014 + $0x34] sm:$0xf]
      %v6029 = vld [vmem:[%s6014 + $0x38] sm:$0xf]
      %v6030 = vld [vmem:[%s6014 + $0x3c] sm:$0xf]
      %v6031 = vunpack.c.l.b16 %v5985
      %v6032 = vunpack.c.l.b16 %v5989
      %v6033 = vunpack.c.l.b16 %v5993
      %v6034 = vunpack.c.l.b16 %v5997
      %v6035 = vunpack.c.l.b16 %v6001
      %v6036 = vunpack.c.l.b16 %v6005
      %v6037 = vunpack.c.l.b16 %v6009
      %v6038 = vunpack.c.l.b16 %v6013
      %v6039 = vpack.c.b16 %v6032, %v6031
      %v6040 = vpack.c.b16 %v6034, %v6033
      %v6041 = vpack.c.b16 %v6036, %v6035
      %v6042 = vpack.c.b16 %v6038, %v6037
      %v6063 = vunpack.c.l.b16 %v6015
      %v6064 = vunpack.c.l.b16 %v6016
      %v6065 = vunpack.c.l.b16 %v6017
      %v6066 = vunpack.c.l.b16 %v6018
      %v6067 = vunpack.c.l.b16 %v6019
      %v6068 = vunpack.c.l.b16 %v6020
      %v6069 = vunpack.c.l.b16 %v6021
      %v6070 = vunpack.c.l.b16 %v6022
      %v6071 = vunpack.c.l.b16 %v6023
      %v6072 = vunpack.c.l.b16 %v6024
      %v6073 = vunpack.c.l.b16 %v6025
      %v6074 = vunpack.c.l.b16 %v6026
      %v6075 = vunpack.c.l.b16 %v6027
      %v6076 = vunpack.c.l.b16 %v6028
      %v6077 = vunpack.c.l.b16 %v6029
      %v6078 = vunpack.c.l.b16 %v6030
      %v6079 = vpack.c.b16 %v6064, %v6063
      %v6080 = vpack.c.b16 %v6066, %v6065
      %v6081 = vpack.c.b16 %v6068, %v6067
      %v6082 = vpack.c.b16 %v6070, %v6069
      %v6083 = vpack.c.b16 %v6072, %v6071
      %v6084 = vpack.c.b16 %v6074, %v6073
      %v6085 = vpack.c.b16 %v6076, %v6075
      %v6086 = vpack.c.b16 %v6078, %v6077
      %6095 = vmatprep.subr.bf16.mxu0 0
      %6096 = vmatpush1.bf16.msra.mxu0 %v6086
      %6097 = vmatprep.subr.bf16.mxu0 0
      %6098 = vmatpush1.bf16.msra.mxu0 %v6085
      %6099 = vmatprep.subr.bf16.mxu0 0
      %6100 = vmatpush1.bf16.msra.mxu0 %v6084
      %6101 = vmatprep.subr.bf16.mxu0 0
      %6102 = vmatpush1.bf16.msra.mxu0 %v6083
      %6103 = vmatprep.subr.bf16.mxu0 0
      %6104 = vmatpush1.bf16.msra.mxu0 %v6082
      %6105 = vmatprep.subr.bf16.mxu0 0
      %6106 = vmatpush1.bf16.msra.mxu0 %v6081
      %6107 = vmatprep.subr.bf16.mxu0 0
      %6108 = vmatpush1.bf16.msra.mxu0 %v6080
      %6109 = vmatprep.subr.bf16.mxu0 0
      %6110 = vmatpush1.bf16.msra.mxu0 %v6079
      %6111 = vmatprep.subr.bf16.mxu0 0
      %6112 = vmatpush2.bf16.msra.mxu0 0
      %6113 = vmatprep.subr.bf16.mxu0 0
      %6114 = vmatpush2.bf16.msra.mxu0 0
      %6115 = vmatprep.subr.bf16.mxu0 0
      %6116 = vmatpush2.bf16.msra.mxu0 0
      %6117 = vmatprep.subr.bf16.mxu0 0
      %6118 = vmatpush2.bf16.msra.mxu0 0
      %6119 = vmatprep.subr.bf16.mxu0 0
      %6120 = vmatpush2.bf16.msra.mxu0 0
      %6121 = vmatprep.subr.bf16.mxu0 0
      %6122 = vmatpush2.bf16.msra.mxu0 0
      %6123 = vmatprep.subr.bf16.mxu0 0
      %6124 = vmatpush2.bf16.msra.mxu0 0
      %6125 = vmatprep.subr.bf16.mxu0 0
      %6126 = vmatpush2.bf16.msra.mxu0 0
      %6127 = vmatprep.mubr.bf16.mxu0 0
      %6128 = vmatmul.mubr.bf16.gmra.mxu0 %v6039
      %v6129 = vpop.f32.mrf.mxu0
      %v6130 = vadd.f32 0.0, %v6129
      %v6131 = vpop.f32.mrf.mxu0
      %v6132 = vpop.f32.mrf.mxu0
      %v6133 = vadd.f32 0.0, %v6132
      %v6134 = vpop.f32.mrf.mxu0
      %6135 = vmatprep.mubr.bf16.mxu0 0
      %6136 = vmatmul.mubr.bf16.gmra.mxu0 %v6040
      %v6137 = vpop.f32.mrf.mxu0
      %v6138 = vadd.f32 0.0, %v6137
      %v6139 = vpop.f32.mrf.mxu0
      %v6140 = vpop.f32.mrf.mxu0
      %v6141 = vadd.f32 0.0, %v6140
      %v6142 = vpop.f32.mrf.mxu0
      %6143 = vmatprep.mubr.bf16.mxu0 0
      %6144 = vmatmul.mubr.bf16.gmra.mxu0 %v6041
      %v6145 = vpop.f32.mrf.mxu0
      %v6146 = vadd.f32 0.0, %v6145
      %v6147 = vpop.f32.mrf.mxu0
      %v6148 = vpop.f32.mrf.mxu0
      %v6149 = vadd.f32 0.0, %v6148
      %v6150 = vpop.f32.mrf.mxu0
      %6151 = vmatprep.mubr.bf16.mxu0 0
      %6152 = vmatmul.mubr.bf16.gmra.mxu0 %v6042
      %v6153 = vpop.f32.mrf.mxu0
      %v6154 = vadd.f32 0.0, %v6153
      %v6155 = vpop.f32.mrf.mxu0
      %v6156 = vpop.f32.mrf.mxu0
      %v6157 = vadd.f32 0.0, %v6156
      %v6158 = vpop.f32.mrf.mxu0
      %6159 = vdwg.mxu0
      %v6160 = vadd.f32 %v5950, %v6130
      %v6161 = vadd.f32 %v5951, %v6133
      %v6162 = vadd.f32 %v5952, %v6138
      %v6163 = vadd.f32 %v5953, %v6141
      %v6164 = vadd.f32 %v5954, %v6146
      %v6165 = vadd.f32 %v5955, %v6149
      %v6166 = vadd.f32 %v5956, %v6154
      %v6167 = vadd.f32 %v5957, %v6157
      %6168 = vst [vmem:[%s210] sm:$0xff] %v6160
      %6169 = vst [vmem:[%s210 + $0x8] sm:$0xff] %v6161
      %6170 = vst [vmem:[%s210 + $0x10] sm:$0xff] %v6162
      %6171 = vst [vmem:[%s210 + $0x18] sm:$0xff] %v6163
      %6172 = vst [vmem:[%s210 + $0x20] sm:$0xff] %v6164
      %6173 = vst [vmem:[%s210 + $0x28] sm:$0xff] %v6165
      %6174 = vst [vmem:[%s210 + $0x30] sm:$0xff] %v6166
      %6175 = vst [vmem:[%s210 + $0x38] sm:$0xff] %v6167
      %v6176 = vadd.f32 %v6160, %v6161
      %v6177 = vadd.f32 %v6176, %v6162
      %v6178 = vadd.f32 %v6177, %v6163
      %v6179 = vadd.f32 %v6178, %v6164
      %v6180 = vadd.f32 %v6179, %v6165
      %v6181 = vadd.f32 %v6180, %v6166
      %v6182 = vadd.f32 %v6181, %v6167
      %v6183 = vrot.slane %v6182, 4
      %v6184 = vadd.f32 %v6182, %v6183
      %v6185 = vrot.slane %v6184, 2
      %v6186 = vadd.f32 %v6184, %v6185
      %v6187 = vrot.slane %v6186, 1
      %v6188 = vadd.f32 %v6186, %v6187
      %v6189 = vmul.f32 %v6160, %v6160
      %v6190 = vmul.f32 %v6161, %v6161
      %v6191 = vmul.f32 %v6162, %v6162
      %v6192 = vmul.f32 %v6163, %v6163
      %v6193 = vmul.f32 %v6164, %v6164
      %v6194 = vmul.f32 %v6165, %v6165
      %v6195 = vmul.f32 %v6166, %v6166
      %v6196 = vmul.f32 %v6167, %v6167
      %v6197 = vadd.f32 %v6189, %v6190
      %v6198 = vadd.f32 %v6197, %v6191
      %v6199 = vadd.f32 %v6198, %v6192
      %v6200 = vadd.f32 %v6199, %v6193
      %v6201 = vadd.f32 %v6200, %v6194
      %v6202 = vadd.f32 %v6201, %v6195
      %v6203 = vadd.f32 %v6202, %v6196
      %v6204 = vrot.slane %v6203, 4
      %v6205 = vadd.f32 %v6203, %v6204
      %v6206 = vrot.slane %v6205, 2
      %v6207 = vadd.f32 %v6205, %v6206
      %v6208 = vrot.slane %v6207, 1
      %v6209 = vadd.f32 %v6207, %v6208
      %6210 = vst [vmem:[%s215] sm:$0xff] %v6188
      %6211 = vst [vmem:[%s219] sm:$0xff] %v6209
      %s6212 = smul.u32 8, %s16
      %p6213 = scmp.lt.s32.totalorder %s6212, 127
      %s6214 = scalar_select %p6213, %s6212, 127
      %s6215 = smul.addr %s6214, 8
      %s6216 = scalar_lea.vmem %s2, %s6215
      %p6217 = scmp.lt.s32.totalorder %s16, 15
      %s6218 = scalar_select %p6217, %s16, 15
      %s6219 = smul.addr %s6218, 8
      %s6220 = scalar_lea.vmem %s3, %s6219
      %p6221 = scmp.lt.s32.totalorder %s16, 15
      %s6222 = scalar_select %p6221, %s16, 15
      %s6223 = smul.addr %s6222, 8
      %s6224 = scalar_lea.vmem %s4, %s6223
      // Predicated region
      $region29: #{bottleneck_block_forward.8} parent=27 // pred_check
        %p6225 = pneg %p81
      $region30: #{bottleneck_block_forward.8} parent=27 // pred_check_branch
        %6227 = sbr.rel (%p6225) target = $region32
      $region31: #{bottleneck_block_forward.8} parent=27 // pred_region
        %s6228 = smul.u32 8, %s16
      $region32: #{bottleneck_block_forward.8} parent=27 // pred_fallthru
        _
      // Predicated region
      $region33: #{bottleneck_block_forward.8} parent=27 // pred_check
        %p6229 = pneg %p107
      $region34: #{bottleneck_block_forward.8} parent=27 // pred_check_branch
        %6231 = sbr.rel (%p6229) target = $region36
      $region35: #{bottleneck_block_forward.8} parent=27 // pred_region
        _
      $region36: #{bottleneck_block_forward.8} parent=27 // pred_fallthru
        _
      // Predicated region
      $region37: #{bottleneck_block_forward.8} parent=27 // pred_check
        %p6232 = pneg %p133
      $region38: #{bottleneck_block_forward.8} parent=27 // pred_check_branch
        %6234 = sbr.rel (%p6232) target = $region40
      $region39: #{bottleneck_block_forward.8} parent=27 // pred_region
        _
      $region40: #{bottleneck_block_forward.8} parent=27 // pred_fallthru
        _
    $region28: #{bottleneck_block_forward.8} parent=5 // pred_fallthru
      _
    %p6235 = scmp.le.s32.totalorder 2, %s11
    // Predicated region
    $region41: #{bottleneck_block_forward.8} parent=5 // pred_check
      %p6236 = pneg %p6235
    $region42: #{bottleneck_block_forward.8} parent=5 // pred_check_branch
      %6238 = sbr.rel (%p6236) target = $region44
    $region43: #{bottleneck_block_forward.8} parent=5 // pred_region
      %s6239 = ssub.s32 %s11, 2
      // Predicated region
      $region45: #{bottleneck_block_forward.8} parent=43 // pred_check
        %p6240 = pneg %p87
      $region46: #{bottleneck_block_forward.8} parent=43 // pred_check_branch
        %6242 = sbr.rel (%p6240) target = $region48
      $region47: #{bottleneck_block_forward.8} parent=43 // pred_region
        %s6243 = smul.u32 8, %s17
        %p6244 = scmp.lt.s32.totalorder %s6243, 127
        %s6245 = scalar_select %p6244, %s6243, 127
        %s6246 = smul.addr %s6245, 8
        %s6247 = scalar_lea.vmem %s2, %s6246
      $region48: #{bottleneck_block_forward.8} parent=43 // pred_fallthru
        _
      // Predicated region
      $region49: #{bottleneck_block_forward.8} parent=43 // pred_check
        %p6248 = pneg %p113
      $region50: #{bottleneck_block_forward.8} parent=43 // pred_check_branch
        %6250 = sbr.rel (%p6248) target = $region52
      $region51: #{bottleneck_block_forward.8} parent=43 // pred_region
        %p6251 = scmp.lt.s32.totalorder %s17, 15
        %s6252 = scalar_select %p6251, %s17, 15
        %s6253 = smul.addr %s6252, 8
        %s6254 = scalar_lea.vmem %s3, %s6253
      $region52: #{bottleneck_block_forward.8} parent=43 // pred_fallthru
        _
      // Predicated region
      $region53: #{bottleneck_block_forward.8} parent=43 // pred_check
        %p6255 = pneg %p139
      $region54: #{bottleneck_block_forward.8} parent=43 // pred_check_branch
        %6257 = sbr.rel (%p6255) target = $region56
      $region55: #{bottleneck_block_forward.8} parent=43 // pred_region
        %p6258 = scmp.lt.s32.totalorder %s17, 15
        %s6259 = scalar_select %p6258, %s17, 15
        %s6260 = smul.addr %s6259, 8
        %s6261 = scalar_lea.vmem %s4, %s6260
      $region56: #{bottleneck_block_forward.8} parent=43 // pred_fallthru
        _
    $region44: #{bottleneck_block_forward.8} parent=5 // pred_fallthru
      _
  $region6: #{bottleneck_block_forward.8} parent=0 // loop_footer
    %s15 = sadd.s32 1, %s11
  $region7: #{bottleneck_block_forward.8} parent=0 // loop_footer_branch
    %10 = sbr.rel target = $region3
  $region8: #{bottleneck_block_forward.8} parent=0 // loop_exit
    _

</llo_original>
